<compile_context>
chip_gen: v5e
topology: v5e:2x2
jax: 0.10.0
libtpu: 0.0.40
codegen_flags: <defaults>
</compile_context>

<pallas_src>
import math

import jax
import jax.numpy as jnp
from jax.experimental import pallas as pl
from jax.experimental.pallas import tpu as pltpu


# ----------------------------------------------------------------------------
# Mamba block kernel (one tile = NB sequences, time-major)
# ----------------------------------------------------------------------------
def _mamba_kernel(x_ref, w_in_ref, conv_w_ref, conv_b_ref, w_xproj_ref,
                  w_dt_ref, b_dt_ref, a_fold_ref, d_row_ref, w_out_ref,
                  o_ref):
    """One Mamba block over a tile of NB sequences.

    x_ref / o_ref: [L, NB, d_model] -- dim 0 is the sequential scan axis,
    dim 1 indexes independent sequences.  NB is a multiple of 8 so the
    (L, NB, dm) <-> (L*NB, dm) reshapes are layout-trivial.
    """
    L, NB, dm = x_ref.shape
    R = L * NB
    d_inner = w_out_ref.shape[0]
    d_conv = conv_w_ref.shape[0]
    dt_rank = w_dt_ref.shape[0]
    d_state = a_fold_ref.shape[1] // d_inner

    # ---- fused in_proj: one [R, dm] @ [dm, 2*d_inner] MXU matmul -----------
    x2 = x_ref[...].reshape(R, dm)
    xz = jnp.dot(x2.astype(w_in_ref.dtype), w_in_ref[...],
                 preferred_element_type=jnp.float32)            # [R, 2*d_inner]
    xs = xz[:, :d_inner]
    z = xz[:, d_inner:]

    # ---- causal depthwise conv1d along time (shift = whole NB-row slabs) ---
    conv = xs * conv_w_ref[d_conv - 1:d_conv, :] + conv_b_ref[...]
    for s in range(1, d_conv):
        if s >= L:                      # taps looking past t=0 are all zero
            continue
        shifted = jnp.concatenate(
            [jnp.zeros((s * NB, d_inner), jnp.float32), xs[:R - s * NB, :]],
            axis=0)
        conv = conv + shifted * conv_w_ref[d_conv - 1 - s:d_conv - s, :]
    x_act = conv * jax.nn.sigmoid(conv)                          # SiLU

    # ---- fused x_proj -> (dt_low | B | C); dt head + softplus --------------
    dbc = jnp.dot(x_act.astype(w_xproj_ref.dtype), w_xproj_ref[...],
                  preferred_element_type=jnp.float32)            # [R, r+2*ds]
    dt_low = dbc[:, :dt_rank]
    Bm = dbc[:, dt_rank:dt_rank + d_state]
    Cm = dbc[:, dt_rank + d_state:dt_rank + 2 * d_state]
    dt = jnp.dot(dt_low.astype(w_dt_ref.dtype), w_dt_ref[...],
                 preferred_element_type=jnp.float32) + b_dt_ref[...]
    dt = jnp.maximum(dt, 0.0) + jnp.log1p(jnp.exp(-jnp.abs(dt)))  # softplus

    # ---- scan ingredients, hoisted out of the serial loop ------------------
    # Lane-folded layout: column s*d_inner + i  <->  (state s, channel i).
    dt_rep = jnp.concatenate([dt] * d_state, axis=1)             # [R, ds*di]
    dtx_rep = jnp.concatenate([dt * x_act] * d_state, axis=1)    # [R, ds*di]
    dA = jnp.exp(dt_rep * a_fold_ref[...])                       # EUP work batched
    b_rep = jnp.concatenate(
        [jnp.broadcast_to(Bm[:, s:s + 1], (R, d_inner)) for s in range(d_state)],
        axis=1)
    c_rep = jnp.concatenate(
        [jnp.broadcast_to(Cm[:, s:s + 1], (R, d_inner)) for s in range(d_state)],
        axis=1)
    dBx = dtx_rep * b_rep                                        # outer product hoisted
    dv = d_row_ref[...]                                          # [1, d_inner]

    # ---- sequential selective scan over L (static, unrolled) ---------------
    h = jnp.zeros((NB, d_state * d_inner), jnp.float32)
    ys = []
    for t in range(L):
        lo = t * NB
        h = dA[lo:lo + NB, :] * h + dBx[lo:lo + NB, :]
        hc = h * c_rep[lo:lo + NB, :]
        y_t = hc[:, :d_inner]
        for s in range(1, d_state):
            y_t = y_t + hc[:, s * d_inner:(s + 1) * d_inner]
        ys.append(y_t + x_act[lo:lo + NB, :] * dv)
    y = jnp.concatenate(ys, axis=0)                              # [R, d_inner]

    # ---- SiLU(z) gate + out_proj, one dense whole-tile store ---------------
    y = y * (z * jax.nn.sigmoid(z))
    out = jnp.dot(y.astype(w_out_ref.dtype), w_out_ref[...],
                  preferred_element_type=jnp.float32)            # [R, dm]
    o_ref[...] = out.reshape(L, NB, dm).astype(o_ref.dtype)


# ----------------------------------------------------------------------------
# Wrappers
# ----------------------------------------------------------------------------
def _round_up(x, m):
    return (x + m - 1) // m * m


def _param_specs(plist):
    return [pl.BlockSpec(p.shape, lambda i: (0, 0)) for p in plist]


def _choose_nb(n, l, d_state, d_inner):
    """Sequences per grid step: a multiple of 8 (keeps in-kernel reshapes
    layout-trivial), capped so the ~6 lane-folded f32 scan intermediates of
    shape [nb*l, d_state*d_inner] stay well under the scoped-VMEM default,
    and >= 2 grid steps when there is enough work (megacore / 2-TC v7x)."""
    per_seq = 6 * 4 * l * d_state * d_inner
    cap = max(8, (8 * 1024 * 1024 // max(per_seq, 1)) // 8 * 8)
    nb = min(64, cap, _round_up(n, 8))
    if nb >= n and n > 8:
        nb = max(8, _round_up((n + 1) // 2, 8))
    return nb


def _mamba_batched_call(x_tm, plist, nb):
    """pallas_call over a time-major [L, N_pad, dm] batch of sequences."""
    L, n_pad, dm = x_tm.shape
    return pl.pallas_call(
        _mamba_kernel,
        out_shape=jax.ShapeDtypeStruct((L, n_pad, dm), x_tm.dtype),
        grid=(n_pad // nb,),
        in_specs=[pl.BlockSpec((L, nb, dm), lambda i: (0, i, 0))]
        + _param_specs(plist),
        out_specs=pl.BlockSpec((L, nb, dm), lambda i: (0, i, 0)),
        compiler_params=pltpu.CompilerParams(
            dimension_semantics=("parallel",)),
    )(x_tm, *plist)


def mamba_over_sequences(x, plist):
    """One Mamba block over x: [N, L, d_model] -> [N, L, d_model]."""
    N, L, dm = x.shape
    d_inner = plist[-1].shape[0]
    d_state = plist[6].shape[1] // d_inner
    nb = _choose_nb(N, L, d_state, d_inner)
    n_pad = _round_up(N, nb)
    xt = jnp.transpose(x, (1, 0, 2))                    # [L, N, dm] time-major
    if n_pad != N:
        xt = jnp.concatenate(
            [xt, jnp.zeros((L, n_pad - N, dm), xt.dtype)], axis=1)
    out = _mamba_batched_call(xt, plist, nb)
    return jnp.transpose(out[:, :N, :], (1, 0, 2))


def mamba_dimwise(x4, plist):
    """Dimension-wise Mamba over [B, D, S, dm]: for each (b, s), scan across
    the D variables.  Reads/writes the [B, D, S, dm] layout directly through a
    squeezed 4-D BlockSpec (block = one batch element), so no HBM transpose is
    needed between the two stages or for the final output."""
    B, D, S, dm = x4.shape
    return pl.pallas_call(
        _mamba_kernel,
        out_shape=jax.ShapeDtypeStruct((B, D, S, dm), x4.dtype),
        grid=(B,),
        in_specs=[pl.BlockSpec((None, D, S, dm), lambda b: (b, 0, 0, 0))]
        + _param_specs(plist),
        out_specs=pl.BlockSpec((None, D, S, dm), lambda b: (b, 0, 0, 0)),
        compiler_params=pltpu.CompilerParams(
            dimension_semantics=("parallel",)),
    )(x4, *plist)


def two_stage_mamba_layer(x, time_plist, dim_plist):
    """TwoStageMambaLayer: x [B, D, S, d_model] -> [B, D, S, d_model]."""
    B, D, S, dm = x.shape
    d_inner = dim_plist[-1].shape[0]
    d_state = dim_plist[6].shape[1] // d_inner
    # Stage 1: time-wise Mamba over each variable's segment sequence.
    x1 = mamba_over_sequences(x.reshape(B * D, S, dm), time_plist)
    x1 = x1.reshape(B, D, S, dm)
    # Stage 2: dimension-wise Mamba over variables for each segment.
    folded_bytes = 6 * 4 * D * S * d_state * d_inner
    if S % 8 == 0 and folded_bytes <= 8 * 1024 * 1024:
        return mamba_dimwise(x1, dim_plist)          # transpose-free path
    # Fallback (odd S / very large per-batch tiles): generic batched path.
    xd = jnp.transpose(x1, (0, 2, 1, 3)).reshape(B * S, D, dm)
    xd = mamba_over_sequences(xd, dim_plist).reshape(B, S, D, dm)
    return jnp.transpose(xd, (0, 2, 1, 3))


# ----------------------------------------------------------------------------
# SegMerging (LayerNorm + Linear on merged segments) as a Pallas kernel
# ----------------------------------------------------------------------------
def _seg_merge_kernel(x_ref, gamma_ref, beta_ref, w_ref, b_ref, o_ref):
    x = x_ref[...].astype(jnp.float32)                  # [blk, win*dm]
    mu = jnp.mean(x, axis=-1, keepdims=True)
    xc = x - mu
    var = jnp.mean(xc * xc, axis=-1, keepdims=True)
    xn = xc * jax.lax.rsqrt(var + 1e-5)
    xn = xn * gamma_ref[...] + beta_ref[...]
    out = jnp.dot(xn, w_ref[...], preferred_element_type=jnp.float32)
    o_ref[...] = (out + b_ref[...]).astype(o_ref.dtype)


def seg_merging(x, plist, win):
    """SegMerging: [B, D, S, dm] -> [B, D, ceil(S/win), dm]."""
    B, D, S, dm = x.shape
    if S % win != 0:
        pad = win - S % win
        x = jnp.concatenate(
            [x, jnp.broadcast_to(x[:, :, -1:, :], (B, D, pad, dm))], axis=2)
        S = S + pad
    s2 = S // win
    xm = jnp.concatenate([x[:, :, i::win, :] for i in range(win)], axis=-1)
    m = B * D * s2
    xm2 = xm.reshape(m, win * dm)
    m_pad = _round_up(m, 8)
    if m_pad != m:
        xm2 = jnp.concatenate(
            [xm2, jnp.zeros((m_pad - m, win * dm), xm2.dtype)], axis=0)
    blk = 8
    for cand in range(8, min(m_pad, 512) + 1, 8):
        if m_pad % cand == 0:
            blk = cand
    out = pl.pallas_call(
        _seg_merge_kernel,
        out_shape=jax.ShapeDtypeStruct((m_pad, dm), x.dtype),
        grid=(m_pad // blk,),
        in_specs=[pl.BlockSpec((blk, win * dm), lambda i: (i, 0))]
        + _param_specs(plist),
        out_specs=pl.BlockSpec((blk, dm), lambda i: (i, 0)),
        compiler_params=pltpu.CompilerParams(
            dimension_semantics=("parallel",)),
    )(xm2, *plist)
    return out[:m].reshape(B, D, s2, dm)


def mamba_scale_block(x, merge_plist, time_plist, dim_plist, *, win_size):
    """MambaScaleBlock.forward: optional SegMerging then TwoStageMambaLayer."""
    if win_size > 1:
        x = seg_merging(x, merge_plist, win_size)
    return two_stage_mamba_layer(x, time_plist, dim_plist)


# ----------------------------------------------------------------------------
# Parameter construction
# ----------------------------------------------------------------------------
def init_mamba_params(key, d_model, d_state, d_conv, expand):
    """Deterministic synthetic init matching mamba_ssm.Mamba parameter shapes
    (linear weights stored pre-transposed so the kernel computes y = x @ W)."""
    d_inner = expand * d_model
    dt_rank = math.ceil(d_model / 16)
    ks = jax.random.split(key, 8)

    def rnd(k, shape, scale):
        return jax.random.normal(k, shape, dtype=jnp.float32) * scale

    # S4D-real style init: A_log[d, n] = log(n + 1)
    a_log = jnp.log(jnp.broadcast_to(
        jnp.arange(1, d_state + 1, dtype=jnp.float32)[None, :],
        (d_inner, d_state)))
    return {
        "w_in_x": rnd(ks[0], (d_model, d_inner), 0.05),
        "w_in_z": rnd(ks[1], (d_model, d_inner), 0.05),
        "conv_w": rnd(ks[2], (d_conv, d_inner), 0.2),
        "conv_b": jnp.zeros((1, d_inner), jnp.float32),
        "w_dt_in": rnd(ks[3], (d_inner, dt_rank), 0.1),
        "w_B": rnd(ks[4], (d_inner, d_state), 0.1),
        "w_C": rnd(ks[5], (d_inner, d_state), 0.1),
        "w_dt": rnd(ks[6], (dt_rank, d_inner), 0.1),
        "b_dt": jnp.full((1, d_inner), -2.0, jnp.float32),
        "A_log": a_log,
        "D": jnp.ones((1, d_inner), jnp.float32),
        "w_out": rnd(ks[7], (d_inner, d_model), 0.05),
    }


def prepare_mamba_params(raw):
    """Fuse / precompute kernel parameters: fused in_proj and x_proj weights,
    A = -exp(A_log) transposed + lane-folded to [1, d_state*d_inner], bf16
    projection weights (everything the scan touches stays f32)."""
    d_inner = raw["w_in_x"].shape[1]
    d_state = raw["w_B"].shape[1]
    w_in = jnp.concatenate([raw["w_in_x"], raw["w_in_z"]], axis=1)
    w_xproj = jnp.concatenate([raw["w_dt_in"], raw["w_B"], raw["w_C"]], axis=1)
    a_fold = (-jnp.exp(raw["A_log"])).T.reshape(1, d_state * d_inner)
    return [
        w_in.astype(jnp.bfloat16),            # 0 fused in_proj
        raw["conv_w"].astype(jnp.float32),    # 1
        raw["conv_b"].astype(jnp.float32),    # 2
        w_xproj.astype(jnp.bfloat16),         # 3 fused x_proj
        raw["w_dt"].astype(jnp.bfloat16),     # 4
        raw["b_dt"].astype(jnp.float32),      # 5
        a_fold.astype(jnp.float32),           # 6
        raw["D"].astype(jnp.float32),         # 7
        raw["w_out"].astype(jnp.bfloat16),    # 8
    ]


def init_segmerge_params(key, d_model, win_size):
    wd = win_size * d_model
    w = jax.random.normal(key, (wd, d_model), dtype=jnp.float32) / math.sqrt(wd)
    return [
        jnp.ones((1, wd), jnp.float32),        # LayerNorm gamma
        jnp.zeros((1, wd), jnp.float32),       # LayerNorm beta
        w,                                     # Linear weight (transposed)
        jnp.zeros((1, d_model), jnp.float32),  # Linear bias
    ]


# ----------------------------------------------------------------------------
if __name__ == "__main__":
    # MambaScaleBlock(win_size=2, d_model=32, d_state=16, d_conv=4, expand=2,
    #                 seg_num=16) applied to x = [B, D, seg_num, d_model].
    d_model, d_state, d_conv, expand = 32, 16, 4, 2
    B, D, seg_num, win_size = 2, 8, 16, 2

    key = jax.random.PRNGKey(0)
    kx, kt, kd, km = jax.random.split(key, 4)
    x = jax.random.normal(kx, (B, D, seg_num, d_model), dtype=jnp.float32)
    time_plist = prepare_mamba_params(
        init_mamba_params(kt, d_model, d_state, d_conv, expand))
    dim_plist = prepare_mamba_params(
        init_mamba_params(kd, d_model, d_state, d_conv, expand))
    merge_plist = init_segmerge_params(km, d_model, win_size)

    fwd = jax.jit(mamba_scale_block, static_argnames=("win_size",))
    out = fwd(x, merge_plist, time_plist, dim_plist, win_size=win_size)
    out = jax.block_until_ready(out)

    assert out.shape == (B, D, seg_num // win_size, d_model), out.shape
    assert bool(jnp.all(jnp.isfinite(out)))
    print("KERNEL_OK")
</pallas_src>

<mosaic_0001>
module attributes {stable_mosaic.version = 11 : i64} {
  func.func @_seg_merge_kernel(%arg0: i32, %arg1: memref<128x64xf32, #tpu.memory_space<vmem>>, %arg2: memref<1x64xf32, #tpu.memory_space<vmem>>, %arg3: memref<1x64xf32, #tpu.memory_space<vmem>>, %arg4: memref<64x32xf32, #tpu.memory_space<vmem>>, %arg5: memref<1x32xf32, #tpu.memory_space<vmem>>, %arg6: memref<128x32xf32, #tpu.memory_space<vmem>>) attributes {dimension_semantics = [#tpu.dimension_semantics<parallel>], iteration_bounds = array<i64: 1>, scalar_prefetch = 0 : i64, scratch_operands = 0 : i64, tpu.core_type = #tpu.core_type<tc>, window_params = [{transform_indices = @transform_0, window_bounds = array<i64: 128, 64>}, {pipeline_mode = #tpu.pipeline_mode<synchronous>, transform_indices = @transform_1, window_bounds = array<i64: 1, 64>}, {pipeline_mode = #tpu.pipeline_mode<synchronous>, transform_indices = @transform_2, window_bounds = array<i64: 1, 64>}, {pipeline_mode = #tpu.pipeline_mode<synchronous>, transform_indices = @transform_3, window_bounds = array<i64: 64, 32>}, {pipeline_mode = #tpu.pipeline_mode<synchronous>, transform_indices = @transform_4, window_bounds = array<i64: 1, 32>}, {transform_indices = @transform_5, window_bounds = array<i64: 128, 32>}]} {
    %c0 = arith.constant 0 : index
    %c0_0 = arith.constant 0 : index
    %0 = vector.load %arg1[%c0, %c0_0] : memref<128x64xf32, #tpu.memory_space<vmem>>, vector<128x64xf32>
    %cst = arith.constant dense<0.000000e+00> : vector<128xf32>
    %1 = vector.multi_reduction <add>, %0, %cst [1] : vector<128x64xf32> to vector<128xf32>
    %2 = vector.shape_cast %1 : vector<128xf32> to vector<128x1xf32>
    %cst_1 = arith.constant 6.400000e+01 : f32
    %3 = vector.broadcast %cst_1 : f32 to vector<128x1xf32>
    %4 = arith.divf %2, %3 : vector<128x1xf32>
    %5 = vector.broadcast %4 : vector<128x1xf32> to vector<128x64xf32>
    %6 = arith.subf %0, %5 : vector<128x64xf32>
    %7 = arith.mulf %6, %6 : vector<128x64xf32>
    %cst_2 = arith.constant dense<0.000000e+00> : vector<128xf32>
    %8 = vector.multi_reduction <add>, %7, %cst_2 [1] : vector<128x64xf32> to vector<128xf32>
    %9 = vector.shape_cast %8 : vector<128xf32> to vector<128x1xf32>
    %cst_3 = arith.constant 6.400000e+01 : f32
    %10 = vector.broadcast %cst_3 : f32 to vector<128x1xf32>
    %11 = arith.divf %9, %10 : vector<128x1xf32>
    %cst_4 = arith.constant 9.99999974E-6 : f32
    %12 = vector.broadcast %cst_4 : f32 to vector<128x1xf32>
    %13 = arith.addf %11, %12 : vector<128x1xf32>
    %14 = math.rsqrt %13 : vector<128x1xf32>
    %15 = vector.broadcast %14 : vector<128x1xf32> to vector<128x64xf32>
    %16 = arith.mulf %6, %15 : vector<128x64xf32>
    %c0_5 = arith.constant 0 : index
    %c0_6 = arith.constant 0 : index
    %17 = vector.load %arg2[%c0_5, %c0_6] : memref<1x64xf32, #tpu.memory_space<vmem>>, vector<1x64xf32>
    %18 = vector.broadcast %17 : vector<1x64xf32> to vector<128x64xf32>
    %19 = arith.mulf %16, %18 : vector<128x64xf32>
    %c0_7 = arith.constant 0 : index
    %c0_8 = arith.constant 0 : index
    %20 = vector.load %arg3[%c0_7, %c0_8] : memref<1x64xf32, #tpu.memory_space<vmem>>, vector<1x64xf32>
    %21 = vector.broadcast %20 : vector<1x64xf32> to vector<128x64xf32>
    %22 = arith.addf %19, %21 : vector<128x64xf32>
    %c0_9 = arith.constant 0 : index
    %c0_10 = arith.constant 0 : index
    %23 = vector.load %arg4[%c0_9, %c0_10] : memref<64x32xf32, #tpu.memory_space<vmem>>, vector<64x32xf32>
    %cst_11 = arith.constant dense<0.000000e+00> : vector<128x32xf32>
    %24 = tpu.matmul %22, %23, %cst_11 {dimension_numbers = #tpu.dot_dimension_numbers<[1], [0], [0], [1], [0, 0, 1, 1], [], []>} : vector<128x64xf32>, vector<64x32xf32>, vector<128x32xf32> -> vector<128x32xf32>
    %c0_12 = arith.constant 0 : index
    %c0_13 = arith.constant 0 : index
    %25 = vector.load %arg5[%c0_12, %c0_13] : memref<1x32xf32, #tpu.memory_space<vmem>>, vector<1x32xf32>
    %26 = vector.broadcast %25 : vector<1x32xf32> to vector<128x32xf32>
    %27 = arith.addf %24, %26 : vector<128x32xf32>
    %c0_14 = arith.constant 0 : index
    %c0_15 = arith.constant 0 : index
    %28 = vector.load %arg6[%c0_14, %c0_15] : memref<128x32xf32, #tpu.memory_space<vmem>>, vector<128x32xf32>
    tpu.vector_store %arg6[%c0_14, %c0_15], %27 {strides = array<i32>} : memref<128x32xf32, #tpu.memory_space<vmem>>, vector<128x32xf32>,
    return
  }
  func.func @transform_0(%arg0: i32) -> (i32, i32) {
    %c0_i32 = arith.constant 0 : i32
    %c0_i32_0 = arith.constant 0 : i32
    return %arg0, %c0_i32 : i32, i32
  }
  func.func @transform_1(%arg0: i32) -> (i32, i32) {
    %c0_i32 = arith.constant 0 : i32
    %c0_i32_0 = arith.constant 0 : i32
    %c0_i32_1 = arith.constant 0 : i32
    return %c0_i32, %c0_i32_0 : i32, i32
  }
  func.func @transform_2(%arg0: i32) -> (i32, i32) {
    %c0_i32 = arith.constant 0 : i32
    %c0_i32_0 = arith.constant 0 : i32
    %c0_i32_1 = arith.constant 0 : i32
    return %c0_i32, %c0_i32_0 : i32, i32
  }
  func.func @transform_3(%arg0: i32) -> (i32, i32) {
    %c0_i32 = arith.constant 0 : i32
    %c0_i32_0 = arith.constant 0 : i32
    %c0_i32_1 = arith.constant 0 : i32
    return %c0_i32, %c0_i32_0 : i32, i32
  }
  func.func @transform_4(%arg0: i32) -> (i32, i32) {
    %c0_i32 = arith.constant 0 : i32
    %c0_i32_0 = arith.constant 0 : i32
    %c0_i32_1 = arith.constant 0 : i32
    return %c0_i32, %c0_i32_0 : i32, i32
  }
  func.func @transform_5(%arg0: i32) -> (i32, i32) {
    %c0_i32 = arith.constant 0 : i32
    %c0_i32_0 = arith.constant 0 : i32
    return %arg0, %c0_i32 : i32, i32
  }
}

module attributes {stable_mosaic.version = 11 : i64} {
  func.func @_mamba_kernel(%arg0: i32, %arg1: memref<8x8x32xf32, #tpu.memory_space<vmem>>, %arg2: memref<32x128xbf16, #tpu.memory_space<vmem>>, %arg3: memref<4x64xf32, #tpu.memory_space<vmem>>, %arg4: memref<1x64xf32, #tpu.memory_space<vmem>>, %arg5: memref<64x34xbf16, #tpu.memory_space<vmem>>, %arg6: memref<2x64xbf16, #tpu.memory_space<vmem>>, %arg7: memref<1x64xf32, #tpu.memory_space<vmem>>, %arg8: memref<1x1024xf32, #tpu.memory_space<vmem>>, %arg9: memref<1x64xf32, #tpu.memory_space<vmem>>, %arg10: memref<64x32xbf16, #tpu.memory_space<vmem>>, %arg11: memref<8x8x32xf32, #tpu.memory_space<vmem>>) attributes {dimension_semantics = [#tpu.dimension_semantics<parallel>], iteration_bounds = array<i64: 2>, scalar_prefetch = 0 : i64, scratch_operands = 0 : i64, tpu.core_type = #tpu.core_type<tc>, window_params = [{transform_indices = @transform_0, window_bounds = array<i64: 8, 8, 32>}, {pipeline_mode = #tpu.pipeline_mode<synchronous>, transform_indices = @transform_1, window_bounds = array<i64: 32, 128>}, {pipeline_mode = #tpu.pipeline_mode<synchronous>, transform_indices = @transform_2, window_bounds = array<i64: 4, 64>}, {pipeline_mode = #tpu.pipeline_mode<synchronous>, transform_indices = @transform_3, window_bounds = array<i64: 1, 64>}, {pipeline_mode = #tpu.pipeline_mode<synchronous>, transform_indices = @transform_4, window_bounds = array<i64: 64, 34>}, {pipeline_mode = #tpu.pipeline_mode<synchronous>, transform_indices = @transform_5, window_bounds = array<i64: 2, 64>}, {pipeline_mode = #tpu.pipeline_mode<synchronous>, transform_indices = @transform_6, window_bounds = array<i64: 1, 64>}, {pipeline_mode = #tpu.pipeline_mode<synchronous>, transform_indices = @transform_7, window_bounds = array<i64: 1, 1024>}, {pipeline_mode = #tpu.pipeline_mode<synchronous>, transform_indices = @transform_8, window_bounds = array<i64: 1, 64>}, {pipeline_mode = #tpu.pipeline_mode<synchronous>, transform_indices = @transform_9, window_bounds = array<i64: 64, 32>}, {transform_indices = @transform_10, window_bounds = array<i64: 8, 8, 32>}]} {
    %c0 = arith.constant 0 : index
    %c0_0 = arith.constant 0 : index
    %c0_1 = arith.constant 0 : index
    %0 = vector.load %arg1[%c0, %c0_0, %c0_1] : memref<8x8x32xf32, #tpu.memory_space<vmem>>, vector<8x8x32xf32>
    %1 = vector.shape_cast %0 : vector<8x8x32xf32> to vector<64x32xf32>
    %2 = arith.truncf %1 : vector<64x32xf32> to vector<64x32xbf16>
    %c0_2 = arith.constant 0 : index
    %c0_3 = arith.constant 0 : index
    %3 = vector.load %arg2[%c0_2, %c0_3] : memref<32x128xbf16, #tpu.memory_space<vmem>>, vector<32x128xbf16>
    %cst = arith.constant dense<0.000000e+00> : vector<64x128xf32>
    %4 = tpu.matmul %2, %3, %cst {dimension_numbers = #tpu.dot_dimension_numbers<[1], [0], [0], [1], [0, 0, 1, 1], [], []>} : vector<64x32xbf16>, vector<32x128xbf16>, vector<64x128xf32> -> vector<64x128xf32>
    %5 = vector.extract_strided_slice %4 {offsets = [0, 0], sizes = [64, 64], strides = [1, 1]} : vector<64x128xf32> to vector<64x64xf32>
    %6 = vector.extract_strided_slice %4 {offsets = [0, 64], sizes = [64, 64], strides = [1, 1]} : vector<64x128xf32> to vector<64x64xf32>
    %c3 = arith.constant 3 : index
    %c0_4 = arith.constant 0 : index
    %7 = vector.load %arg3[%c3, %c0_4] : memref<4x64xf32, #tpu.memory_space<vmem>>, vector<1x64xf32>
    %8 = vector.broadcast %7 : vector<1x64xf32> to vector<64x64xf32>
    %9 = arith.mulf %5, %8 : vector<64x64xf32>
    %c0_5 = arith.constant 0 : index
    %c0_6 = arith.constant 0 : index
    %10 = vector.load %arg4[%c0_5, %c0_6] : memref<1x64xf32, #tpu.memory_space<vmem>>, vector<1x64xf32>
    %11 = vector.broadcast %10 : vector<1x64xf32> to vector<64x64xf32>
    %12 = arith.addf %9, %11 : vector<64x64xf32>
    %cst_7 = arith.constant 0.000000e+00 : f32
    %13 = vector.broadcast %cst_7 : f32 to vector<8x64xf32>
    %14 = vector.extract_strided_slice %5 {offsets = [0, 0], sizes = [56, 64], strides = [1, 1]} : vector<64x64xf32> to vector<56x64xf32>
    %15 = tpu.concatenate %13, %14 in 0 : vector<8x64xf32>, vector<56x64xf32> -> vector<64x64xf32>
    %c2 = arith.constant 2 : index
    %c0_8 = arith.constant 0 : index
    %16 = vector.load %arg3[%c2, %c0_8] : memref<4x64xf32, #tpu.memory_space<vmem>>, vector<1x64xf32>
    %17 = vector.broadcast %16 : vector<1x64xf32> to vector<64x64xf32>
    %18 = arith.mulf %15, %17 : vector<64x64xf32>
    %19 = arith.addf %12, %18 : vector<64x64xf32>
    %cst_9 = arith.constant 0.000000e+00 : f32
    %20 = vector.broadcast %cst_9 : f32 to vector<16x64xf32>
    %21 = vector.extract_strided_slice %5 {offsets = [0, 0], sizes = [48, 64], strides = [1, 1]} : vector<64x64xf32> to vector<48x64xf32>
    %22 = tpu.concatenate %20, %21 in 0 : vector<16x64xf32>, vector<48x64xf32> -> vector<64x64xf32>
    %c1 = arith.constant 1 : index
    %c0_10 = arith.constant 0 : index
    %23 = vector.load %arg3[%c1, %c0_10] : memref<4x64xf32, #tpu.memory_space<vmem>>, vector<1x64xf32>
    %24 = vector.broadcast %23 : vector<1x64xf32> to vector<64x64xf32>
    %25 = arith.mulf %22, %24 : vector<64x64xf32>
    %26 = arith.addf %19, %25 : vector<64x64xf32>
    %cst_11 = arith.constant 0.000000e+00 : f32
    %27 = vector.broadcast %cst_11 : f32 to vector<24x64xf32>
    %28 = vector.extract_strided_slice %5 {offsets = [0, 0], sizes = [40, 64], strides = [1, 1]} : vector<64x64xf32> to vector<40x64xf32>
    %29 = tpu.concatenate %27, %28 in 0 : vector<24x64xf32>, vector<40x64xf32> -> vector<64x64xf32>
    %c0_12 = arith.constant 0 : index
    %c0_13 = arith.constant 0 : index
    %30 = vector.load %arg3[%c0_12, %c0_13] : memref<4x64xf32, #tpu.memory_space<vmem>>, vector<1x64xf32>
    %31 = vector.broadcast %30 : vector<1x64xf32> to vector<64x64xf32>
    %32 = arith.mulf %29, %31 : vector<64x64xf32>
    %33 = arith.addf %26, %32 : vector<64x64xf32>
    %34 = arith.negf %33 : vector<64x64xf32>
    %35 = math.exp %34 : vector<64x64xf32>
    %cst_14 = arith.constant 1.000000e+00 : f32
    %36 = vector.broadcast %cst_14 : f32 to vector<64x64xf32>
    %37 = arith.addf %36, %35 : vector<64x64xf32>
    %38 = arith.divf %36, %37 : vector<64x64xf32>
    %39 = arith.mulf %33, %38 : vector<64x64xf32>
    %40 = arith.truncf %39 : vector<64x64xf32> to vector<64x64xbf16>
    %c0_15 = arith.constant 0 : index
    %c0_16 = arith.constant 0 : index
    %41 = vector.load %arg5[%c0_15, %c0_16] : memref<64x34xbf16, #tpu.memory_space<vmem>>, vector<64x34xbf16>
    %cst_17 = arith.constant dense<0.000000e+00> : vector<64x34xf32>
    %42 = tpu.matmul %40, %41, %cst_17 {dimension_numbers = #tpu.dot_dimension_numbers<[1], [0], [0], [1], [0, 0, 1, 1], [], []>} : vector<64x64xbf16>, vector<64x34xbf16>, vector<64x34xf32> -> vector<64x34xf32>
    %43 = vector.extract_strided_slice %42 {offsets = [0, 0], sizes = [64, 2], strides = [1, 1]} : vector<64x34xf32> to vector<64x2xf32>
    %44 = vector.extract_strided_slice %42 {offsets = [0, 2], sizes = [64, 16], strides = [1, 1]} : vector<64x34xf32> to vector<64x16xf32>
    %45 = vector.extract_strided_slice %42 {offsets = [0, 18], sizes = [64, 16], strides = [1, 1]} : vector<64x34xf32> to vector<64x16xf32>
    %46 = arith.truncf %43 : vector<64x2xf32> to vector<64x2xbf16>
    %c0_18 = arith.constant 0 : index
    %c0_19 = arith.constant 0 : index
    %47 = vector.load %arg6[%c0_18, %c0_19] : memref<2x64xbf16, #tpu.memory_space<vmem>>, vector<2x64xbf16>
    %cst_20 = arith.constant dense<0.000000e+00> : vector<64x64xf32>
    %48 = tpu.matmul %46, %47, %cst_20 {dimension_numbers = #tpu.dot_dimension_numbers<[1], [0], [0], [1], [0, 0, 1, 1], [], []>} : vector<64x2xbf16>, vector<2x64xbf16>, vector<64x64xf32> -> vector<64x64xf32>
    %c0_21 = arith.constant 0 : index
    %c0_22 = arith.constant 0 : index
    %49 = vector.load %arg7[%c0_21, %c0_22] : memref<1x64xf32, #tpu.memory_space<vmem>>, vector<1x64xf32>
    %50 = vector.broadcast %49 : vector<1x64xf32> to vector<64x64xf32>
    %51 = arith.addf %48, %50 : vector<64x64xf32>
    %cst_23 = arith.constant 0.000000e+00 : f32
    %52 = vector.broadcast %cst_23 : f32 to vector<64x64xf32>
    %53 = arith.maximumf %51, %52 : vector<64x64xf32>
    %54 = math.absf %51 : vector<64x64xf32>
    %cst_24 = arith.constant 0.000000e+00 : f32
    %55 = vector.broadcast %cst_24 : f32 to vector<64x64xf32>
    %56 = arith.subf %55, %54 : vector<64x64xf32>
    %57 = math.exp %56 : vector<64x64xf32>
    %58 = math.log1p %57 : vector<64x64xf32>
    %59 = arith.addf %53, %58 : vector<64x64xf32>
    %60 = tpu.concatenate %59, %59, %59, %59, %59, %59, %59, %59, %59, %59, %59, %59, %59, %59, %59, %59 in 1 : vector<64x64xf32>, vector<64x64xf32>, vector<64x64xf32>, vector<64x64xf32>, vector<64x64xf32>, vector<64x64xf32>, vector<64x64xf32>, vector<64x64xf32>, vector<64x64xf32>, vector<64x64xf32>, vector<64x64xf32>, vector<64x64xf32>, vector<64x64xf32>, vector<64x64xf32>, vector<64x64xf32>, vector<64x64xf32> -> vector<64x1024xf32>
    %61 = arith.mulf %59, %39 : vector<64x64xf32>
    %62 = tpu.concatenate %61, %61, %61, %61, %61, %61, %61, %61, %61, %61, %61, %61, %61, %61, %61, %61 in 1 : vector<64x64xf32>, vector<64x64xf32>, vector<64x64xf32>, vector<64x64xf32>, vector<64x64xf32>, vector<64x64xf32>, vector<64x64xf32>, vector<64x64xf32>, vector<64x64xf32>, vector<64x64xf32>, vector<64x64xf32>, vector<64x64xf32>, vector<64x64xf32>, vector<64x64xf32>, vector<64x64xf32>, vector<64x64xf32> -> vector<64x1024xf32>
    %c0_25 = arith.constant 0 : index
    %c0_26 = arith.constant 0 : index
    %63 = vector.load %arg8[%c0_25, %c0_26] : memref<1x1024xf32, #tpu.memory_space<vmem>>, vector<1x1024xf32>
    %64 = vector.broadcast %63 : vector<1x1024xf32> to vector<64x1024xf32>
    %65 = arith.mulf %60, %64 : vector<64x1024xf32>
    %66 = math.exp %65 : vector<64x1024xf32>
    %67 = vector.extract_strided_slice %44 {offsets = [0, 0], sizes = [64, 1], strides = [1, 1]} : vector<64x16xf32> to vector<64x1xf32>
    %68 = vector.shape_cast %67 : vector<64x1xf32> to vector<64x1xf32>
    %69 = vector.broadcast %68 : vector<64x1xf32> to vector<64x64xf32>
    %70 = vector.extract_strided_slice %44 {offsets = [0, 1], sizes = [64, 1], strides = [1, 1]} : vector<64x16xf32> to vector<64x1xf32>
    %71 = vector.shape_cast %70 : vector<64x1xf32> to vector<64x1xf32>
    %72 = vector.broadcast %71 : vector<64x1xf32> to vector<64x64xf32>
    %73 = vector.extract_strided_slice %44 {offsets = [0, 2], sizes = [64, 1], strides = [1, 1]} : vector<64x16xf32> to vector<64x1xf32>
    %74 = vector.shape_cast %73 : vector<64x1xf32> to vector<64x1xf32>
    %75 = vector.broadcast %74 : vector<64x1xf32> to vector<64x64xf32>
    %76 = vector.extract_strided_slice %44 {offsets = [0, 3], sizes = [64, 1], strides = [1, 1]} : vector<64x16xf32> to vector<64x1xf32>
    %77 = vector.shape_cast %76 : vector<64x1xf32> to vector<64x1xf32>
    %78 = vector.broadcast %77 : vector<64x1xf32> to vector<64x64xf32>
    %79 = vector.extract_strided_slice %44 {offsets = [0, 4], sizes = [64, 1], strides = [1, 1]} : vector<64x16xf32> to vector<64x1xf32>
    %80 = vector.shape_cast %79 : vector<64x1xf32> to vector<64x1xf32>
    %81 = vector.broadcast %80 : vector<64x1xf32> to vector<64x64xf32>
    %82 = vector.extract_strided_slice %44 {offsets = [0, 5], sizes = [64, 1], strides = [1, 1]} : vector<64x16xf32> to vector<64x1xf32>
    %83 = vector.shape_cast %82 : vector<64x1xf32> to vector<64x1xf32>
    %84 = vector.broadcast %83 : vector<64x1xf32> to vector<64x64xf32>
    %85 = vector.extract_strided_slice %44 {offsets = [0, 6], sizes = [64, 1], strides = [1, 1]} : vector<64x16xf32> to vector<64x1xf32>
    %86 = vector.shape_cast %85 : vector<64x1xf32> to vector<64x1xf32>
    %87 = vector.broadcast %86 : vector<64x1xf32> to vector<64x64xf32>
    %88 = vector.extract_strided_slice %44 {offsets = [0, 7], sizes = [64, 1], strides = [1, 1]} : vector<64x16xf32> to vector<64x1xf32>
    %89 = vector.shape_cast %88 : vector<64x1xf32> to vector<64x1xf32>
    %90 = vector.broadcast %89 : vector<64x1xf32> to vector<64x64xf32>
    %91 = vector.extract_strided_slice %44 {offsets = [0, 8], sizes = [64, 1], strides = [1, 1]} : vector<64x16xf32> to vector<64x1xf32>
    %92 = vector.shape_cast %91 : vector<64x1xf32> to vector<64x1xf32>
    %93 = vector.broadcast %92 : vector<64x1xf32> to vector<64x64xf32>
    %94 = vector.extract_strided_slice %44 {offsets = [0, 9], sizes = [64, 1], strides = [1, 1]} : vector<64x16xf32> to vector<64x1xf32>
    %95 = vector.shape_cast %94 : vector<64x1xf32> to vector<64x1xf32>
    %96 = vector.broadcast %95 : vector<64x1xf32> to vector<64x64xf32>
    %97 = vector.extract_strided_slice %44 {offsets = [0, 10], sizes = [64, 1], strides = [1, 1]} : vector<64x16xf32> to vector<64x1xf32>
    %98 = vector.shape_cast %97 : vector<64x1xf32> to vector<64x1xf32>
    %99 = vector.broadcast %98 : vector<64x1xf32> to vector<64x64xf32>
    %100 = vector.extract_strided_slice %44 {offsets = [0, 11], sizes = [64, 1], strides = [1, 1]} : vector<64x16xf32> to vector<64x1xf32>
    %101 = vector.shape_cast %100 : vector<64x1xf32> to vector<64x1xf32>
    %102 = vector.broadcast %101 : vector<64x1xf32> to vector<64x64xf32>
    %103 = vector.extract_strided_slice %44 {offsets = [0, 12], sizes = [64, 1], strides = [1, 1]} : vector<64x16xf32> to vector<64x1xf32>
    %104 = vector.shape_cast %103 : vector<64x1xf32> to vector<64x1xf32>
    %105 = vector.broadcast %104 : vector<64x1xf32> to vector<64x64xf32>
    %106 = vector.extract_strided_slice %44 {offsets = [0, 13], sizes = [64, 1], strides = [1, 1]} : vector<64x16xf32> to vector<64x1xf32>
    %107 = vector.shape_cast %106 : vector<64x1xf32> to vector<64x1xf32>
    %108 = vector.broadcast %107 : vector<64x1xf32> to vector<64x64xf32>
    %109 = vector.extract_strided_slice %44 {offsets = [0, 14], sizes = [64, 1], strides = [1, 1]} : vector<64x16xf32> to vector<64x1xf32>
    %110 = vector.shape_cast %109 : vector<64x1xf32> to vector<64x1xf32>
    %111 = vector.broadcast %110 : vector<64x1xf32> to vector<64x64xf32>
    %112 = vector.extract_strided_slice %44 {offsets = [0, 15], sizes = [64, 1], strides = [1, 1]} : vector<64x16xf32> to vector<64x1xf32>
    %113 = vector.shape_cast %112 : vector<64x1xf32> to vector<64x1xf32>
    %114 = vector.broadcast %113 : vector<64x1xf32> to vector<64x64xf32>
    %115 = tpu.concatenate %69, %72, %75, %78, %81, %84, %87, %90, %93, %96, %99, %102, %105, %108, %111, %114 in 1 : vector<64x64xf32>, vector<64x64xf32>, vector<64x64xf32>, vector<64x64xf32>, vector<64x64xf32>, vector<64x64xf32>, vector<64x64xf32>, vector<64x64xf32>, vector<64x64xf32>, vector<64x64xf32>, vector<64x64xf32>, vector<64x64xf32>, vector<64x64xf32>, vector<64x64xf32>, vector<64x64xf32>, vector<64x64xf32> -> vector<64x1024xf32>
    %116 = vector.extract_strided_slice %45 {offsets = [0, 0], sizes = [64, 1], strides = [1, 1]} : vector<64x16xf32> to vector<64x1xf32>
    %117 = vector.shape_cast %116 : vector<64x1xf32> to vector<64x1xf32>
    %118 = vector.broadcast %117 : vector<64x1xf32> to vector<64x64xf32>
    %119 = vector.extract_strided_slice %45 {offsets = [0, 1], sizes = [64, 1], strides = [1, 1]} : vector<64x16xf32> to vector<64x1xf32>
    %120 = vector.shape_cast %119 : vector<64x1xf32> to vector<64x1xf32>
    %121 = vector.broadcast %120 : vector<64x1xf32> to vector<64x64xf32>
    %122 = vector.extract_strided_slice %45 {offsets = [0, 2], sizes = [64, 1], strides = [1, 1]} : vector<64x16xf32> to vector<64x1xf32>
    %123 = vector.shape_cast %122 : vector<64x1xf32> to vector<64x1xf32>
    %124 = vector.broadcast %123 : vector<64x1xf32> to vector<64x64xf32>
    %125 = vector.extract_strided_slice %45 {offsets = [0, 3], sizes = [64, 1], strides = [1, 1]} : vector<64x16xf32> to vector<64x1xf32>
    %126 = vector.shape_cast %125 : vector<64x1xf32> to vector<64x1xf32>
    %127 = vector.broadcast %126 : vector<64x1xf32> to vector<64x64xf32>
    %128 = vector.extract_strided_slice %45 {offsets = [0, 4], sizes = [64, 1], strides = [1, 1]} : vector<64x16xf32> to vector<64x1xf32>
    %129 = vector.shape_cast %128 : vector<64x1xf32> to vector<64x1xf32>
    %130 = vector.broadcast %129 : vector<64x1xf32> to vector<64x64xf32>
    %131 = vector.extract_strided_slice %45 {offsets = [0, 5], sizes = [64, 1], strides = [1, 1]} : vector<64x16xf32> to vector<64x1xf32>
    %132 = vector.shape_cast %131 : vector<64x1xf32> to vector<64x1xf32>
    %133 = vector.broadcast %132 : vector<64x1xf32> to vector<64x64xf32>
    %134 = vector.extract_strided_slice %45 {offsets = [0, 6], sizes = [64, 1], strides = [1, 1]} : vector<64x16xf32> to vector<64x1xf32>
    %135 = vector.shape_cast %134 : vector<64x1xf32> to vector<64x1xf32>
    %136 = vector.broadcast %135 : vector<64x1xf32> to vector<64x64xf32>
    %137 = vector.extract_strided_slice %45 {offsets = [0, 7], sizes = [64, 1], strides = [1, 1]} : vector<64x16xf32> to vector<64x1xf32>
    %138 = vector.shape_cast %137 : vector<64x1xf32> to vector<64x1xf32>
    %139 = vector.broadcast %138 : vector<64x1xf32> to vector<64x64xf32>
    %140 = vector.extract_strided_slice %45 {offsets = [0, 8], sizes = [64, 1], strides = [1, 1]} : vector<64x16xf32> to vector<64x1xf32>
    %141 = vector.shape_cast %140 : vector<64x1xf32> to vector<64x1xf32>
    %142 = vector.broadcast %141 : vector<64x1xf32> to vector<64x64xf32>
    %143 = vector.extract_strided_slice %45 {offsets = [0, 9], sizes = [64, 1], strides = [1, 1]} : vector<64x16xf32> to vector<64x1xf32>
    %144 = vector.shape_cast %143 : vector<64x1xf32> to vector<64x1xf32>
    %145 = vector.broadcast %144 : vector<64x1xf32> to vector<64x64xf32>
    %146 = vector.extract_strided_slice %45 {offsets = [0, 10], sizes = [64, 1], strides = [1, 1]} : vector<64x16xf32> to vector<64x1xf32>
    %147 = vector.shape_cast %146 : vector<64x1xf32> to vector<64x1xf32>
    %148 = vector.broadcast %147 : vector<64x1xf32> to vector<64x64xf32>
    %149 = vector.extract_strided_slice %45 {offsets = [0, 11], sizes = [64, 1], strides = [1, 1]} : vector<64x16xf32> to vector<64x1xf32>
    %150 = vector.shape_cast %149 : vector<64x1xf32> to vector<64x1xf32>
    %151 = vector.broadcast %150 : vector<64x1xf32> to vector<64x64xf32>
    %152 = vector.extract_strided_slice %45 {offsets = [0, 12], sizes = [64, 1], strides = [1, 1]} : vector<64x16xf32> to vector<64x1xf32>
    %153 = vector.shape_cast %152 : vector<64x1xf32> to vector<64x1xf32>
    %154 = vector.broadcast %153 : vector<64x1xf32> to vector<64x64xf32>
    %155 = vector.extract_strided_slice %45 {offsets = [0, 13], sizes = [64, 1], strides = [1, 1]} : vector<64x16xf32> to vector<64x1xf32>
    %156 = vector.shape_cast %155 : vector<64x1xf32> to vector<64x1xf32>
    %157 = vector.broadcast %156 : vector<64x1xf32> to vector<64x64xf32>
    %158 = vector.extract_strided_slice %45 {offsets = [0, 14], sizes = [64, 1], strides = [1, 1]} : vector<64x16xf32> to vector<64x1xf32>
    %159 = vector.shape_cast %158 : vector<64x1xf32> to vector<64x1xf32>
    %160 = vector.broadcast %159 : vector<64x1xf32> to vector<64x64xf32>
    %161 = vector.extract_strided_slice %45 {offsets = [0, 15], sizes = [64, 1], strides = [1, 1]} : vector<64x16xf32> to vector<64x1xf32>
    %162 = vector.shape_cast %161 : vector<64x1xf32> to vector<64x1xf32>
    %163 = vector.broadcast %162 : vector<64x1xf32> to vector<64x64xf32>
    %164 = tpu.concatenate %118, %121, %124, %127, %130, %133, %136, %139, %142, %145, %148, %151, %154, %157, %160, %163 in 1 : vector<64x64xf32>, vector<64x64xf32>, vector<64x64xf32>, vector<64x64xf32>, vector<64x64xf32>, vector<64x64xf32>, vector<64x64xf32>, vector<64x64xf32>, vector<64x64xf32>, vector<64x64xf32>, vector<64x64xf32>, vector<64x64xf32>, vector<64x64xf32>, vector<64x64xf32>, vector<64x64xf32>, vector<64x64xf32> -> vector<64x1024xf32>
    %165 = arith.mulf %62, %115 : vector<64x1024xf32>
    %c0_27 = arith.constant 0 : index
    %c0_28 = arith.constant 0 : index
    %166 = vector.load %arg9[%c0_27, %c0_28] : memref<1x64xf32, #tpu.memory_space<vmem>>, vector<1x64xf32>
    %cst_29 = arith.constant 0.000000e+00 : f32
    %167 = vector.broadcast %cst_29 : f32 to vector<8x1024xf32>
    %168 = vector.extract_strided_slice %66 {offsets = [0, 0], sizes = [8, 1024], strides = [1, 1]} : vector<64x1024xf32> to vector<8x1024xf32>
    %169 = arith.mulf %168, %167 : vector<8x1024xf32>
    %170 = vector.extract_strided_slice %165 {offsets = [0, 0], sizes = [8, 1024], strides = [1, 1]} : vector<64x1024xf32> to vector<8x1024xf32>
    %171 = arith.addf %169, %170 : vector<8x1024xf32>
    %172 = vector.extract_strided_slice %164 {offsets = [0, 0], sizes = [8, 1024], strides = [1, 1]} : vector<64x1024xf32> to vector<8x1024xf32>
    %173 = arith.mulf %171, %172 : vector<8x1024xf32>
    %174 = vector.extract_strided_slice %173 {offsets = [0, 0], sizes = [8, 64], strides = [1, 1]} : vector<8x1024xf32> to vector<8x64xf32>
    %175 = vector.extract_strided_slice %173 {offsets = [0, 64], sizes = [8, 64], strides = [1, 1]} : vector<8x1024xf32> to vector<8x64xf32>
    %176 = arith.addf %174, %175 : vector<8x64xf32>
    %177 = vector.extract_strided_slice %173 {offsets = [0, 128], sizes = [8, 64], strides = [1, 1]} : vector<8x1024xf32> to vector<8x64xf32>
    %178 = arith.addf %176, %177 : vector<8x64xf32>
    %179 = vector.extract_strided_slice %173 {offsets = [0, 192], sizes = [8, 64], strides = [1, 1]} : vector<8x1024xf32> to vector<8x64xf32>
    %180 = arith.addf %178, %179 : vector<8x64xf32>
    %181 = vector.extract_strided_slice %173 {offsets = [0, 256], sizes = [8, 64], strides = [1, 1]} : vector<8x1024xf32> to vector<8x64xf32>
    %182 = arith.addf %180, %181 : vector<8x64xf32>
    %183 = vector.extract_strided_slice %173 {offsets = [0, 320], sizes = [8, 64], strides = [1, 1]} : vector<8x1024xf32> to vector<8x64xf32>
    %184 = arith.addf %182, %183 : vector<8x64xf32>
    %185 = vector.extract_strided_slice %173 {offsets = [0, 384], sizes = [8, 64], strides = [1, 1]} : vector<8x1024xf32> to vector<8x64xf32>
    %186 = arith.addf %184, %185 : vector<8x64xf32>
    %187 = vector.extract_strided_slice %173 {offsets = [0, 448], sizes = [8, 64], strides = [1, 1]} : vector<8x1024xf32> to vector<8x64xf32>
    %188 = arith.addf %186, %187 : vector<8x64xf32>
    %189 = vector.extract_strided_slice %173 {offsets = [0, 512], sizes = [8, 64], strides = [1, 1]} : vector<8x1024xf32> to vector<8x64xf32>
    %190 = arith.addf %188, %189 : vector<8x64xf32>
    %191 = vector.extract_strided_slice %173 {offsets = [0, 576], sizes = [8, 64], strides = [1, 1]} : vector<8x1024xf32> to vector<8x64xf32>
    %192 = arith.addf %190, %191 : vector<8x64xf32>
    %193 = vector.extract_strided_slice %173 {offsets = [0, 640], sizes = [8, 64], strides = [1, 1]} : vector<8x1024xf32> to vector<8x64xf32>
    %194 = arith.addf %192, %193 : vector<8x64xf32>
    %195 = vector.extract_strided_slice %173 {offsets = [0, 704], sizes = [8, 64], strides = [1, 1]} : vector<8x1024xf32> to vector<8x64xf32>
    %196 = arith.addf %194, %195 : vector<8x64xf32>
    %197 = vector.extract_strided_slice %173 {offsets = [0, 768], sizes = [8, 64], strides = [1, 1]} : vector<8x1024xf32> to vector<8x64xf32>
    %198 = arith.addf %196, %197 : vector<8x64xf32>
    %199 = vector.extract_strided_slice %173 {offsets = [0, 832], sizes = [8, 64], strides = [1, 1]} : vector<8x1024xf32> to vector<8x64xf32>
    %200 = arith.addf %198, %199 : vector<8x64xf32>
    %201 = vector.extract_strided_slice %173 {offsets = [0, 896], sizes = [8, 64], strides = [1, 1]} : vector<8x1024xf32> to vector<8x64xf32>
    %202 = arith.addf %200, %201 : vector<8x64xf32>
    %203 = vector.extract_strided_slice %173 {offsets = [0, 960], sizes = [8, 64], strides = [1, 1]} : vector<8x1024xf32> to vector<8x64xf32>
    %204 = arith.addf %202, %203 : vector<8x64xf32>
    %205 = vector.extract_strided_slice %39 {offsets = [0, 0], sizes = [8, 64], strides = [1, 1]} : vector<64x64xf32> to vector<8x64xf32>
    %206 = vector.broadcast %166 : vector<1x64xf32> to vector<8x64xf32>
    %207 = arith.mulf %205, %206 : vector<8x64xf32>
    %208 = arith.addf %204, %207 : vector<8x64xf32>
    %209 = vector.extract_strided_slice %66 {offsets = [8, 0], sizes = [8, 1024], strides = [1, 1]} : vector<64x1024xf32> to vector<8x1024xf32>
    %210 = arith.mulf %209, %171 : vector<8x1024xf32>
    %211 = vector.extract_strided_slice %165 {offsets = [8, 0], sizes = [8, 1024], strides = [1, 1]} : vector<64x1024xf32> to vector<8x1024xf32>
    %212 = arith.addf %210, %211 : vector<8x1024xf32>
    %213 = vector.extract_strided_slice %164 {offsets = [8, 0], sizes = [8, 1024], strides = [1, 1]} : vector<64x1024xf32> to vector<8x1024xf32>
    %214 = arith.mulf %212, %213 : vector<8x1024xf32>
    %215 = vector.extract_strided_slice %214 {offsets = [0, 0], sizes = [8, 64], strides = [1, 1]} : vector<8x1024xf32> to vector<8x64xf32>
    %216 = vector.extract_strided_slice %214 {offsets = [0, 64], sizes = [8, 64], strides = [1, 1]} : vector<8x1024xf32> to vector<8x64xf32>
    %217 = arith.addf %215, %216 : vector<8x64xf32>
    %218 = vector.extract_strided_slice %214 {offsets = [0, 128], sizes = [8, 64], strides = [1, 1]} : vector<8x1024xf32> to vector<8x64xf32>
    %219 = arith.addf %217, %218 : vector<8x64xf32>
    %220 = vector.extract_strided_slice %214 {offsets = [0, 192], sizes = [8, 64], strides = [1, 1]} : vector<8x1024xf32> to vector<8x64xf32>
    %221 = arith.addf %219, %220 : vector<8x64xf32>
    %222 = vector.extract_strided_slice %214 {offsets = [0, 256], sizes = [8, 64], strides = [1, 1]} : vector<8x1024xf32> to vector<8x64xf32>
    %223 = arith.addf %221, %222 : vector<8x64xf32>
    %224 = vector.extract_strided_slice %214 {offsets = [0, 320], sizes = [8, 64], strides = [1, 1]} : vector<8x1024xf32> to vector<8x64xf32>
    %225 = arith.addf %223, %224 : vector<8x64xf32>
    %226 = vector.extract_strided_slice %214 {offsets = [0, 384], sizes = [8, 64], strides = [1, 1]} : vector<8x1024xf32> to vector<8x64xf32>
    %227 = arith.addf %225, %226 : vector<8x64xf32>
    %228 = vector.extract_strided_slice %214 {offsets = [0, 448], sizes = [8, 64], strides = [1, 1]} : vector<8x1024xf32> to vector<8x64xf32>
    %229 = arith.addf %227, %228 : vector<8x64xf32>
    %230 = vector.extract_strided_slice %214 {offsets = [0, 512], sizes = [8, 64], strides = [1, 1]} : vector<8x1024xf32> to vector<8x64xf32>
    %231 = arith.addf %229, %230 : vector<8x64xf32>
    %232 = vector.extract_strided_slice %214 {offsets = [0, 576], sizes = [8, 64], strides = [1, 1]} : vector<8x1024xf32> to vector<8x64xf32>
    %233 = arith.addf %231, %232 : vector<8x64xf32>
    %234 = vector.extract_strided_slice %214 {offsets = [0, 640], sizes = [8, 64], strides = [1, 1]} : vector<8x1024xf32> to vector<8x64xf32>
    %235 = arith.addf %233, %234 : vector<8x64xf32>
    %236 = vector.extract_strided_slice %214 {offsets = [0, 704], sizes = [8, 64], strides = [1, 1]} : vector<8x1024xf32> to vector<8x64xf32>
    %237 = arith.addf %235, %236 : vector<8x64xf32>
    %238 = vector.extract_strided_slice %214 {offsets = [0, 768], sizes = [8, 64], strides = [1, 1]} : vector<8x1024xf32> to vector<8x64xf32>
    %239 = arith.addf %237, %238 : vector<8x64xf32>
    %240 = vector.extract_strided_slice %214 {offsets = [0, 832], sizes = [8, 64], strides = [1, 1]} : vector<8x1024xf32> to vector<8x64xf32>
    %241 = arith.addf %239, %240 : vector<8x64xf32>
    %242 = vector.extract_strided_slice %214 {offsets = [0, 896], sizes = [8, 64], strides = [1, 1]} : vector<8x1024xf32> to vector<8x64xf32>
    %243 = arith.addf %241, %242 : vector<8x64xf32>
    %244 = vector.extract_strided_slice %214 {offsets = [0, 960], sizes = [8, 64], strides = [1, 1]} : vector<8x1024xf32> to vector<8x64xf32>
    %245 = arith.addf %243, %244 : vector<8x64xf32>
    %246 = vector.extract_strided_slice %39 {offsets = [8, 0], sizes = [8, 64], strides = [1, 1]} : vector<64x64xf32> to vector<8x64xf32>
    %247 = vector.broadcast %166 : vector<1x64xf32> to vector<8x64xf32>
    %248 = arith.mulf %246, %247 : vector<8x64xf32>
    %249 = arith.addf %245, %248 : vector<8x64xf32>
    %250 = vector.extract_strided_slice %66 {offsets = [16, 0], sizes = [8, 1024], strides = [1, 1]} : vector<64x1024xf32> to vector<8x1024xf32>
    %251 = arith.mulf %250, %212 : vector<8x1024xf32>
    %252 = vector.extract_strided_slice %165 {offsets = [16, 0], sizes = [8, 1024], strides = [1, 1]} : vector<64x1024xf32> to vector<8x1024xf32>
    %253 = arith.addf %251, %252 : vector<8x1024xf32>
    %254 = vector.extract_strided_slice %164 {offsets = [16, 0], sizes = [8, 1024], strides = [1, 1]} : vector<64x1024xf32> to vector<8x1024xf32>
    %255 = arith.mulf %253, %254 : vector<8x1024xf32>
    %256 = vector.extract_strided_slice %255 {offsets = [0, 0], sizes = [8, 64], strides = [1, 1]} : vector<8x1024xf32> to vector<8x64xf32>
    %257 = vector.extract_strided_slice %255 {offsets = [0, 64], sizes = [8, 64], strides = [1, 1]} : vector<8x1024xf32> to vector<8x64xf32>
    %258 = arith.addf %256, %257 : vector<8x64xf32>
    %259 = vector.extract_strided_slice %255 {offsets = [0, 128], sizes = [8, 64], strides = [1, 1]} : vector<8x1024xf32> to vector<8x64xf32>
    %260 = arith.addf %258, %259 : vector<8x64xf32>
    %261 = vector.extract_strided_slice %255 {offsets = [0, 192], sizes = [8, 64], strides = [1, 1]} : vector<8x1024xf32> to vector<8x64xf32>
    %262 = arith.addf %260, %261 : vector<8x64xf32>
    %263 = vector.extract_strided_slice %255 {offsets = [0, 256], sizes = [8, 64], strides = [1, 1]} : vector<8x1024xf32> to vector<8x64xf32>
    %264 = arith.addf %262, %263 : vector<8x64xf32>
    %265 = vector.extract_strided_slice %255 {offsets = [0, 320], sizes = [8, 64], strides = [1, 1]} : vector<8x1024xf32> to vector<8x64xf32>
    %266 = arith.addf %264, %265 : vector<8x64xf32>
    %267 = vector.extract_strided_slice %255 {offsets = [0, 384], sizes = [8, 64], strides = [1, 1]} : vector<8x1024xf32> to vector<8x64xf32>
    %268 = arith.addf %266, %267 : vector<8x64xf32>
    %269 = vector.extract_strided_slice %255 {offsets = [0, 448], sizes = [8, 64], strides = [1, 1]} : vector<8x1024xf32> to vector<8x64xf32>
    %270 = arith.addf %268, %269 : vector<8x64xf32>
    %271 = vector.extract_strided_slice %255 {offsets = [0, 512], sizes = [8, 64], strides = [1, 1]} : vector<8x1024xf32> to vector<8x64xf32>
    %272 = arith.addf %270, %271 : vector<8x64xf32>
    %273 = vector.extract_strided_slice %255 {offsets = [0, 576], sizes = [8, 64], strides = [1, 1]} : vector<8x1024xf32> to vector<8x64xf32>
    %274 = arith.addf %272, %273 : vector<8x64xf32>
    %275 = vector.extract_strided_slice %255 {offsets = [0, 640], sizes = [8, 64], strides = [1, 1]} : vector<8x1024xf32> to vector<8x64xf32>
    %276 = arith.addf %274, %275 : vector<8x64xf32>
    %277 = vector.extract_strided_slice %255 {offsets = [0, 704], sizes = [8, 64], strides = [1, 1]} : vector<8x1024xf32> to vector<8x64xf32>
    %278 = arith.addf %276, %277 : vector<8x64xf32>
    %279 = vector.extract_strided_slice %255 {offsets = [0, 768], sizes = [8, 64], strides = [1, 1]} : vector<8x1024xf32> to vector<8x64xf32>
    %280 = arith.addf %278, %279 : vector<8x64xf32>
    %281 = vector.extract_strided_slice %255 {offsets = [0, 832], sizes = [8, 64], strides = [1, 1]} : vector<8x1024xf32> to vector<8x64xf32>
    %282 = arith.addf %280, %281 : vector<8x64xf32>
    %283 = vector.extract_strided_slice %255 {offsets = [0, 896], sizes = [8, 64], strides = [1, 1]} : vector<8x1024xf32> to vector<8x64xf32>
    %284 = arith.addf %282, %283 : vector<8x64xf32>
    %285 = vector.extract_strided_slice %255 {offsets = [0, 960], sizes = [8, 64], strides = [1, 1]} : vector<8x1024xf32> to vector<8x64xf32>
    %286 = arith.addf %284, %285 : vector<8x64xf32>
    %287 = vector.extract_strided_slice %39 {offsets = [16, 0], sizes = [8, 64], strides = [1, 1]} : vector<64x64xf32> to vector<8x64xf32>
    %288 = vector.broadcast %166 : vector<1x64xf32> to vector<8x64xf32>
    %289 = arith.mulf %287, %288 : vector<8x64xf32>
    %290 = arith.addf %286, %289 : vector<8x64xf32>
    %291 = vector.extract_strided_slice %66 {offsets = [24, 0], sizes = [8, 1024], strides = [1, 1]} : vector<64x1024xf32> to vector<8x1024xf32>
    %292 = arith.mulf %291, %253 : vector<8x1024xf32>
    %293 = vector.extract_strided_slice %165 {offsets = [24, 0], sizes = [8, 1024], strides = [1, 1]} : vector<64x1024xf32> to vector<8x1024xf32>
    %294 = arith.addf %292, %293 : vector<8x1024xf32>
    %295 = vector.extract_strided_slice %164 {offsets = [24, 0], sizes = [8, 1024], strides = [1, 1]} : vector<64x1024xf32> to vector<8x1024xf32>
    %296 = arith.mulf %294, %295 : vector<8x1024xf32>
    %297 = vector.extract_strided_slice %296 {offsets = [0, 0], sizes = [8, 64], strides = [1, 1]} : vector<8x1024xf32> to vector<8x64xf32>
    %298 = vector.extract_strided_slice %296 {offsets = [0, 64], sizes = [8, 64], strides = [1, 1]} : vector<8x1024xf32> to vector<8x64xf32>
    %299 = arith.addf %297, %298 : vector<8x64xf32>
    %300 = vector.extract_strided_slice %296 {offsets = [0, 128], sizes = [8, 64], strides = [1, 1]} : vector<8x1024xf32> to vector<8x64xf32>
    %301 = arith.addf %299, %300 : vector<8x64xf32>
    %302 = vector.extract_strided_slice %296 {offsets = [0, 192], sizes = [8, 64], strides = [1, 1]} : vector<8x1024xf32> to vector<8x64xf32>
    %303 = arith.addf %301, %302 : vector<8x64xf32>
    %304 = vector.extract_strided_slice %296 {offsets = [0, 256], sizes = [8, 64], strides = [1, 1]} : vector<8x1024xf32> to vector<8x64xf32>
    %305 = arith.addf %303, %304 : vector<8x64xf32>
    %306 = vector.extract_strided_slice %296 {offsets = [0, 320], sizes = [8, 64], strides = [1, 1]} : vector<8x1024xf32> to vector<8x64xf32>
    %307 = arith.addf %305, %306 : vector<8x64xf32>
    %308 = vector.extract_strided_slice %296 {offsets = [0, 384], sizes = [8, 64], strides = [1, 1]} : vector<8x1024xf32> to vector<8x64xf32>
    %309 = arith.addf %307, %308 : vector<8x64xf32>
    %310 = vector.extract_strided_slice %296 {offsets = [0, 448], sizes = [8, 64], strides = [1, 1]} : vector<8x1024xf32> to vector<8x64xf32>
    %311 = arith.addf %309, %310 : vector<8x64xf32>
    %312 = vector.extract_strided_slice %296 {offsets = [0, 512], sizes = [8, 64], strides = [1, 1]} : vector<8x1024xf32> to vector<8x64xf32>
    %313 = arith.addf %311, %312 : vector<8x64xf32>
    %314 = vector.extract_strided_slice %296 {offsets = [0, 576], sizes = [8, 64], strides = [1, 1]} : vector<8x1024xf32> to vector<8x64xf32>
    %315 = arith.addf %313, %314 : vector<8x64xf32>
    %316 = vector.extract_strided_slice %296 {offsets = [0, 640], sizes = [8, 64], strides = [1, 1]} : vector<8x1024xf32> to vector<8x64xf32>
    %317 = arith.addf %315, %316 : vector<8x64xf32>
    %318 = vector.extract_strided_slice %296 {offsets = [0, 704], sizes = [8, 64], strides = [1, 1]} : vector<8x1024xf32> to vector<8x64xf32>
    %319 = arith.addf %317, %318 : vector<8x64xf32>
    %320 = vector.extract_strided_slice %296 {offsets = [0, 768], sizes = [8, 64], strides = [1, 1]} : vector<8x1024xf32> to vector<8x64xf32>
    %321 = arith.addf %319, %320 : vector<8x64xf32>
    %322 = vector.extract_strided_slice %296 {offsets = [0, 832], sizes = [8, 64], strides = [1, 1]} : vector<8x1024xf32> to vector<8x64xf32>
    %323 = arith.addf %321, %322 : vector<8x64xf32>
    %324 = vector.extract_strided_slice %296 {offsets = [0, 896], sizes = [8, 64], strides = [1, 1]} : vector<8x1024xf32> to vector<8x64xf32>
    %325 = arith.addf %323, %324 : vector<8x64xf32>
    %326 = vector.extract_strided_slice %296 {offsets = [0, 960], sizes = [8, 64], strides = [1, 1]} : vector<8x1024xf32> to vector<8x64xf32>
    %327 = arith.addf %325, %326 : vector<8x64xf32>
    %328 = vector.extract_strided_slice %39 {offsets = [24, 0], sizes = [8, 64], strides = [1, 1]} : vector<64x64xf32> to vector<8x64xf32>
    %329 = vector.broadcast %166 : vector<1x64xf32> to vector<8x64xf32>
    %330 = arith.mulf %328, %329 : vector<8x64xf32>
    %331 = arith.addf %327, %330 : vector<8x64xf32>
    %332 = vector.extract_strided_slice %66 {offsets = [32, 0], sizes = [8, 1024], strides = [1, 1]} : vector<64x1024xf32> to vector<8x1024xf32>
    %333 = arith.mulf %332, %294 : vector<8x1024xf32>
    %334 = vector.extract_strided_slice %165 {offsets = [32, 0], sizes = [8, 1024], strides = [1, 1]} : vector<64x1024xf32> to vector<8x1024xf32>
    %335 = arith.addf %333, %334 : vector<8x1024xf32>
    %336 = vector.extract_strided_slice %164 {offsets = [32, 0], sizes = [8, 1024], strides = [1, 1]} : vector<64x1024xf32> to vector<8x1024xf32>
    %337 = arith.mulf %335, %336 : vector<8x1024xf32>
    %338 = vector.extract_strided_slice %337 {offsets = [0, 0], sizes = [8, 64], strides = [1, 1]} : vector<8x1024xf32> to vector<8x64xf32>
    %339 = vector.extract_strided_slice %337 {offsets = [0, 64], sizes = [8, 64], strides = [1, 1]} : vector<8x1024xf32> to vector<8x64xf32>
    %340 = arith.addf %338, %339 : vector<8x64xf32>
    %341 = vector.extract_strided_slice %337 {offsets = [0, 128], sizes = [8, 64], strides = [1, 1]} : vector<8x1024xf32> to vector<8x64xf32>
    %342 = arith.addf %340, %341 : vector<8x64xf32>
    %343 = vector.extract_strided_slice %337 {offsets = [0, 192], sizes = [8, 64], strides = [1, 1]} : vector<8x1024xf32> to vector<8x64xf32>
    %344 = arith.addf %342, %343 : vector<8x64xf32>
    %345 = vector.extract_strided_slice %337 {offsets = [0, 256], sizes = [8, 64], strides = [1, 1]} : vector<8x1024xf32> to vector<8x64xf32>
    %346 = arith.addf %344, %345 : vector<8x64xf32>
    %347 = vector.extract_strided_slice %337 {offsets = [0, 320], sizes = [8, 64], strides = [1, 1]} : vector<8x1024xf32> to vector<8x64xf32>
    %348 = arith.addf %346, %347 : vector<8x64xf32>
    %349 = vector.extract_strided_slice %337 {offsets = [0, 384], sizes = [8, 64], strides = [1, 1]} : vector<8x1024xf32> to vector<8x64xf32>
    %350 = arith.addf %348, %349 : vector<8x64xf32>
    %351 = vector.extract_strided_slice %337 {offsets = [0, 448], sizes = [8, 64], strides = [1, 1]} : vector<8x1024xf32> to vector<8x64xf32>
    %352 = arith.addf %350, %351 : vector<8x64xf32>
    %353 = vector.extract_strided_slice %337 {offsets = [0, 512], sizes = [8, 64], strides = [1, 1]} : vector<8x1024xf32> to vector<8x64xf32>
    %354 = arith.addf %352, %353 : vector<8x64xf32>
    %355 = vector.extract_strided_slice %337 {offsets = [0, 576], sizes = [8, 64], strides = [1, 1]} : vector<8x1024xf32> to vector<8x64xf32>
    %356 = arith.addf %354, %355 : vector<8x64xf32>
    %357 = vector.extract_strided_slice %337 {offsets = [0, 640], sizes = [8, 64], strides = [1, 1]} : vector<8x1024xf32> to vector<8x64xf32>
    %358 = arith.addf %356, %357 : vector<8x64xf32>
    %359 = vector.extract_strided_slice %337 {offsets = [0, 704], sizes = [8, 64], strides = [1, 1]} : vector<8x1024xf32> to vector<8x64xf32>
    %360 = arith.addf %358, %359 : vector<8x64xf32>
    %361 = vector.extract_strided_slice %337 {offsets = [0, 768], sizes = [8, 64], strides = [1, 1]} : vector<8x1024xf32> to vector<8x64xf32>
    %362 = arith.addf %360, %361 : vector<8x64xf32>
    %363 = vector.extract_strided_slice %337 {offsets = [0, 832], sizes = [8, 64], strides = [1, 1]} : vector<8x1024xf32> to vector<8x64xf32>
    %364 = arith.addf %362, %363 : vector<8x64xf32>
    %365 = vector.extract_strided_slice %337 {offsets = [0, 896], sizes = [8, 64], strides = [1, 1]} : vector<8x1024xf32> to vector<8x64xf32>
    %366 = arith.addf %364, %365 : vector<8x64xf32>
    %367 = vector.extract_strided_slice %337 {offsets = [0, 960], sizes = [8, 64], strides = [1, 1]} : vector<8x1024xf32> to vector<8x64xf32>
    %368 = arith.addf %366, %367 : vector<8x64xf32>
    %369 = vector.extract_strided_slice %39 {offsets = [32, 0], sizes = [8, 64], strides = [1, 1]} : vector<64x64xf32> to vector<8x64xf32>
    %370 = vector.broadcast %166 : vector<1x64xf32> to vector<8x64xf32>
    %371 = arith.mulf %369, %370 : vector<8x64xf32>
    %372 = arith.addf %368, %371 : vector<8x64xf32>
    %373 = vector.extract_strided_slice %66 {offsets = [40, 0], sizes = [8, 1024], strides = [1, 1]} : vector<64x1024xf32> to vector<8x1024xf32>
    %374 = arith.mulf %373, %335 : vector<8x1024xf32>
    %375 = vector.extract_strided_slice %165 {offsets = [40, 0], sizes = [8, 1024], strides = [1, 1]} : vector<64x1024xf32> to vector<8x1024xf32>
    %376 = arith.addf %374, %375 : vector<8x1024xf32>
    %377 = vector.extract_strided_slice %164 {offsets = [40, 0], sizes = [8, 1024], strides = [1, 1]} : vector<64x1024xf32> to vector<8x1024xf32>
    %378 = arith.mulf %376, %377 : vector<8x1024xf32>
    %379 = vector.extract_strided_slice %378 {offsets = [0, 0], sizes = [8, 64], strides = [1, 1]} : vector<8x1024xf32> to vector<8x64xf32>
    %380 = vector.extract_strided_slice %378 {offsets = [0, 64], sizes = [8, 64], strides = [1, 1]} : vector<8x1024xf32> to vector<8x64xf32>
    %381 = arith.addf %379, %380 : vector<8x64xf32>
    %382 = vector.extract_strided_slice %378 {offsets = [0, 128], sizes = [8, 64], strides = [1, 1]} : vector<8x1024xf32> to vector<8x64xf32>
    %383 = arith.addf %381, %382 : vector<8x64xf32>
    %384 = vector.extract_strided_slice %378 {offsets = [0, 192], sizes = [8, 64], strides = [1, 1]} : vector<8x1024xf32> to vector<8x64xf32>
    %385 = arith.addf %383, %384 : vector<8x64xf32>
    %386 = vector.extract_strided_slice %378 {offsets = [0, 256], sizes = [8, 64], strides = [1, 1]} : vector<8x1024xf32> to vector<8x64xf32>
    %387 = arith.addf %385, %386 : vector<8x64xf32>
    %388 = vector.extract_strided_slice %378 {offsets = [0, 320], sizes = [8, 64], strides = [1, 1]} : vector<8x1024xf32> to vector<8x64xf32>
    %389 = arith.addf %387, %388 : vector<8x64xf32>
    %390 = vector.extract_strided_slice %378 {offsets = [0, 384], sizes = [8, 64], strides = [1, 1]} : vector<8x1024xf32> to vector<8x64xf32>
    %391 = arith.addf %389, %390 : vector<8x64xf32>
    %392 = vector.extract_strided_slice %378 {offsets = [0, 448], sizes = [8, 64], strides = [1, 1]} : vector<8x1024xf32> to vector<8x64xf32>
    %393 = arith.addf %391, %392 : vector<8x64xf32>
    %394 = vector.extract_strided_slice %378 {offsets = [0, 512], sizes = [8, 64], strides = [1, 1]} : vector<8x1024xf32> to vector<8x64xf32>
    %395 = arith.addf %393, %394 : vector<8x64xf32>
    %396 = vector.extract_strided_slice %378 {offsets = [0, 576], sizes = [8, 64], strides = [1, 1]} : vector<8x1024xf32> to vector<8x64xf32>
    %397 = arith.addf %395, %396 : vector<8x64xf32>
    %398 = vector.extract_strided_slice %378 {offsets = [0, 640], sizes = [8, 64], strides = [1, 1]} : vector<8x1024xf32> to vector<8x64xf32>
    %399 = arith.addf %397, %398 : vector<8x64xf32>
    %400 = vector.extract_strided_slice %378 {offsets = [0, 704], sizes = [8, 64], strides = [1, 1]} : vector<8x1024xf32> to vector<8x64xf32>
    %401 = arith.addf %399, %400 : vector<8x64xf32>
    %402 = vector.extract_strided_slice %378 {offsets = [0, 768], sizes = [8, 64], strides = [1, 1]} : vector<8x1024xf32> to vector<8x64xf32>
    %403 = arith.addf %401, %402 : vector<8x64xf32>
    %404 = vector.extract_strided_slice %378 {offsets = [0, 832], sizes = [8, 64], strides = [1, 1]} : vector<8x1024xf32> to vector<8x64xf32>
    %405 = arith.addf %403, %404 : vector<8x64xf32>
    %406 = vector.extract_strided_slice %378 {offsets = [0, 896], sizes = [8, 64], strides = [1, 1]} : vector<8x1024xf32> to vector<8x64xf32>
    %407 = arith.addf %405, %406 : vector<8x64xf32>
    %408 = vector.extract_strided_slice %378 {offsets = [0, 960], sizes = [8, 64], strides = [1, 1]} : vector<8x1024xf32> to vector<8x64xf32>
    %409 = arith.addf %407, %408 : vector<8x64xf32>
    %410 = vector.extract_strided_slice %39 {offsets = [40, 0], sizes = [8, 64], strides = [1, 1]} : vector<64x64xf32> to vector<8x64xf32>
    %411 = vector.broadcast %166 : vector<1x64xf32> to vector<8x64xf32>
    %412 = arith.mulf %410, %411 : vector<8x64xf32>
    %413 = arith.addf %409, %412 : vector<8x64xf32>
    %414 = vector.extract_strided_slice %66 {offsets = [48, 0], sizes = [8, 1024], strides = [1, 1]} : vector<64x1024xf32> to vector<8x1024xf32>
    %415 = arith.mulf %414, %376 : vector<8x1024xf32>
    %416 = vector.extract_strided_slice %165 {offsets = [48, 0], sizes = [8, 1024], strides = [1, 1]} : vector<64x1024xf32> to vector<8x1024xf32>
    %417 = arith.addf %415, %416 : vector<8x1024xf32>
    %418 = vector.extract_strided_slice %164 {offsets = [48, 0], sizes = [8, 1024], strides = [1, 1]} : vector<64x1024xf32> to vector<8x1024xf32>
    %419 = arith.mulf %417, %418 : vector<8x1024xf32>
    %420 = vector.extract_strided_slice %419 {offsets = [0, 0], sizes = [8, 64], strides = [1, 1]} : vector<8x1024xf32> to vector<8x64xf32>
    %421 = vector.extract_strided_slice %419 {offsets = [0, 64], sizes = [8, 64], strides = [1, 1]} : vector<8x1024xf32> to vector<8x64xf32>
    %422 = arith.addf %420, %421 : vector<8x64xf32>
    %423 = vector.extract_strided_slice %419 {offsets = [0, 128], sizes = [8, 64], strides = [1, 1]} : vector<8x1024xf32> to vector<8x64xf32>
    %424 = arith.addf %422, %423 : vector<8x64xf32>
    %425 = vector.extract_strided_slice %419 {offsets = [0, 192], sizes = [8, 64], strides = [1, 1]} : vector<8x1024xf32> to vector<8x64xf32>
    %426 = arith.addf %424, %425 : vector<8x64xf32>
    %427 = vector.extract_strided_slice %419 {offsets = [0, 256], sizes = [8, 64], strides = [1, 1]} : vector<8x1024xf32> to vector<8x64xf32>
    %428 = arith.addf %426, %427 : vector<8x64xf32>
    %429 = vector.extract_strided_slice %419 {offsets = [0, 320], sizes = [8, 64], strides = [1, 1]} : vector<8x1024xf32> to vector<8x64xf32>
    %430 = arith.addf %428, %429 : vector<8x64xf32>
    %431 = vector.extract_strided_slice %419 {offsets = [0, 384], sizes = [8, 64], strides = [1, 1]} : vector<8x1024xf32> to vector<8x64xf32>
    %432 = arith.addf %430, %431 : vector<8x64xf32>
    %433 = vector.extract_strided_slice %419 {offsets = [0, 448], sizes = [8, 64], strides = [1, 1]} : vector<8x1024xf32> to vector<8x64xf32>
    %434 = arith.addf %432, %433 : vector<8x64xf32>
    %435 = vector.extract_strided_slice %419 {offsets = [0, 512], sizes = [8, 64], strides = [1, 1]} : vector<8x1024xf32> to vector<8x64xf32>
    %436 = arith.addf %434, %435 : vector<8x64xf32>
    %437 = vector.extract_strided_slice %419 {offsets = [0, 576], sizes = [8, 64], strides = [1, 1]} : vector<8x1024xf32> to vector<8x64xf32>
    %438 = arith.addf %436, %437 : vector<8x64xf32>
    %439 = vector.extract_strided_slice %419 {offsets = [0, 640], sizes = [8, 64], strides = [1, 1]} : vector<8x1024xf32> to vector<8x64xf32>
    %440 = arith.addf %438, %439 : vector<8x64xf32>
    %441 = vector.extract_strided_slice %419 {offsets = [0, 704], sizes = [8, 64], strides = [1, 1]} : vector<8x1024xf32> to vector<8x64xf32>
    %442 = arith.addf %440, %441 : vector<8x64xf32>
    %443 = vector.extract_strided_slice %419 {offsets = [0, 768], sizes = [8, 64], strides = [1, 1]} : vector<8x1024xf32> to vector<8x64xf32>
    %444 = arith.addf %442, %443 : vector<8x64xf32>
    %445 = vector.extract_strided_slice %419 {offsets = [0, 832], sizes = [8, 64], strides = [1, 1]} : vector<8x1024xf32> to vector<8x64xf32>
    %446 = arith.addf %444, %445 : vector<8x64xf32>
    %447 = vector.extract_strided_slice %419 {offsets = [0, 896], sizes = [8, 64], strides = [1, 1]} : vector<8x1024xf32> to vector<8x64xf32>
    %448 = arith.addf %446, %447 : vector<8x64xf32>
    %449 = vector.extract_strided_slice %419 {offsets = [0, 960], sizes = [8, 64], strides = [1, 1]} : vector<8x1024xf32> to vector<8x64xf32>
    %450 = arith.addf %448, %449 : vector<8x64xf32>
    %451 = vector.extract_strided_slice %39 {offsets = [48, 0], sizes = [8, 64], strides = [1, 1]} : vector<64x64xf32> to vector<8x64xf32>
    %452 = vector.broadcast %166 : vector<1x64xf32> to vector<8x64xf32>
    %453 = arith.mulf %451, %452 : vector<8x64xf32>
    %454 = arith.addf %450, %453 : vector<8x64xf32>
    %455 = vector.extract_strided_slice %66 {offsets = [56, 0], sizes = [8, 1024], strides = [1, 1]} : vector<64x1024xf32> to vector<8x1024xf32>
    %456 = arith.mulf %455, %417 : vector<8x1024xf32>
    %457 = vector.extract_strided_slice %165 {offsets = [56, 0], sizes = [8, 1024], strides = [1, 1]} : vector<64x1024xf32> to vector<8x1024xf32>
    %458 = arith.addf %456, %457 : vector<8x1024xf32>
    %459 = vector.extract_strided_slice %164 {offsets = [56, 0], sizes = [8, 1024], strides = [1, 1]} : vector<64x1024xf32> to vector<8x1024xf32>
    %460 = arith.mulf %458, %459 : vector<8x1024xf32>
    %461 = vector.extract_strided_slice %460 {offsets = [0, 0], sizes = [8, 64], strides = [1, 1]} : vector<8x1024xf32> to vector<8x64xf32>
    %462 = vector.extract_strided_slice %460 {offsets = [0, 64], sizes = [8, 64], strides = [1, 1]} : vector<8x1024xf32> to vector<8x64xf32>
    %463 = arith.addf %461, %462 : vector<8x64xf32>
    %464 = vector.extract_strided_slice %460 {offsets = [0, 128], sizes = [8, 64], strides = [1, 1]} : vector<8x1024xf32> to vector<8x64xf32>
    %465 = arith.addf %463, %464 : vector<8x64xf32>
    %466 = vector.extract_strided_slice %460 {offsets = [0, 192], sizes = [8, 64], strides = [1, 1]} : vector<8x1024xf32> to vector<8x64xf32>
    %467 = arith.addf %465, %466 : vector<8x64xf32>
    %468 = vector.extract_strided_slice %460 {offsets = [0, 256], sizes = [8, 64], strides = [1, 1]} : vector<8x1024xf32> to vector<8x64xf32>
    %469 = arith.addf %467, %468 : vector<8x64xf32>
    %470 = vector.extract_strided_slice %460 {offsets = [0, 320], sizes = [8, 64], strides = [1, 1]} : vector<8x1024xf32> to vector<8x64xf32>
    %471 = arith.addf %469, %470 : vector<8x64xf32>
    %472 = vector.extract_strided_slice %460 {offsets = [0, 384], sizes = [8, 64], strides = [1, 1]} : vector<8x1024xf32> to vector<8x64xf32>
    %473 = arith.addf %471, %472 : vector<8x64xf32>
    %474 = vector.extract_strided_slice %460 {offsets = [0, 448], sizes = [8, 64], strides = [1, 1]} : vector<8x1024xf32> to vector<8x64xf32>
    %475 = arith.addf %473, %474 : vector<8x64xf32>
    %476 = vector.extract_strided_slice %460 {offsets = [0, 512], sizes = [8, 64], strides = [1, 1]} : vector<8x1024xf32> to vector<8x64xf32>
    %477 = arith.addf %475, %476 : vector<8x64xf32>
    %478 = vector.extract_strided_slice %460 {offsets = [0, 576], sizes = [8, 64], strides = [1, 1]} : vector<8x1024xf32> to vector<8x64xf32>
    %479 = arith.addf %477, %478 : vector<8x64xf32>
    %480 = vector.extract_strided_slice %460 {offsets = [0, 640], sizes = [8, 64], strides = [1, 1]} : vector<8x1024xf32> to vector<8x64xf32>
    %481 = arith.addf %479, %480 : vector<8x64xf32>
    %482 = vector.extract_strided_slice %460 {offsets = [0, 704], sizes = [8, 64], strides = [1, 1]} : vector<8x1024xf32> to vector<8x64xf32>
    %483 = arith.addf %481, %482 : vector<8x64xf32>
    %484 = vector.extract_strided_slice %460 {offsets = [0, 768], sizes = [8, 64], strides = [1, 1]} : vector<8x1024xf32> to vector<8x64xf32>
    %485 = arith.addf %483, %484 : vector<8x64xf32>
    %486 = vector.extract_strided_slice %460 {offsets = [0, 832], sizes = [8, 64], strides = [1, 1]} : vector<8x1024xf32> to vector<8x64xf32>
    %487 = arith.addf %485, %486 : vector<8x64xf32>
    %488 = vector.extract_strided_slice %460 {offsets = [0, 896], sizes = [8, 64], strides = [1, 1]} : vector<8x1024xf32> to vector<8x64xf32>
    %489 = arith.addf %487, %488 : vector<8x64xf32>
    %490 = vector.extract_strided_slice %460 {offsets = [0, 960], sizes = [8, 64], strides = [1, 1]} : vector<8x1024xf32> to vector<8x64xf32>
    %491 = arith.addf %489, %490 : vector<8x64xf32>
    %492 = vector.extract_strided_slice %39 {offsets = [56, 0], sizes = [8, 64], strides = [1, 1]} : vector<64x64xf32> to vector<8x64xf32>
    %493 = vector.broadcast %166 : vector<1x64xf32> to vector<8x64xf32>
    %494 = arith.mulf %492, %493 : vector<8x64xf32>
    %495 = arith.addf %491, %494 : vector<8x64xf32>
    %496 = tpu.concatenate %208, %249, %290, %331, %372, %413, %454, %495 in 0 : vector<8x64xf32>, vector<8x64xf32>, vector<8x64xf32>, vector<8x64xf32>, vector<8x64xf32>, vector<8x64xf32>, vector<8x64xf32>, vector<8x64xf32> -> vector<64x64xf32>
    %497 = arith.negf %6 : vector<64x64xf32>
    %498 = math.exp %497 : vector<64x64xf32>
    %cst_30 = arith.constant 1.000000e+00 : f32
    %499 = vector.broadcast %cst_30 : f32 to vector<64x64xf32>
    %500 = arith.addf %499, %498 : vector<64x64xf32>
    %501 = arith.divf %499, %500 : vector<64x64xf32>
    %502 = arith.mulf %6, %501 : vector<64x64xf32>
    %503 = arith.mulf %496, %502 : vector<64x64xf32>
    %504 = arith.truncf %503 : vector<64x64xf32> to vector<64x64xbf16>
    %c0_31 = arith.constant 0 : index
    %c0_32 = arith.constant 0 : index
    %505 = vector.load %arg10[%c0_31, %c0_32] : memref<64x32xbf16, #tpu.memory_space<vmem>>, vector<64x32xbf16>
    %cst_33 = arith.constant dense<0.000000e+00> : vector<64x32xf32>
    %506 = tpu.matmul %504, %505, %cst_33 {dimension_numbers = #tpu.dot_dimension_numbers<[1], [0], [0], [1], [0, 0, 1, 1], [], []>} : vector<64x64xbf16>, vector<64x32xbf16>, vector<64x32xf32> -> vector<64x32xf32>
    %507 = vector.shape_cast %506 : vector<64x32xf32> to vector<8x8x32xf32>
    %c0_34 = arith.constant 0 : index
    %c0_35 = arith.constant 0 : index
    %c0_36 = arith.constant 0 : index
    %508 = vector.load %arg11[%c0_34, %c0_35, %c0_36] : memref<8x8x32xf32, #tpu.memory_space<vmem>>, vector<8x8x32xf32>
    tpu.vector_store %arg11[%c0_34, %c0_35, %c0_36], %507 {strides = array<i32>} : memref<8x8x32xf32, #tpu.memory_space<vmem>>, vector<8x8x32xf32>,
    return
  }
  func.func @transform_0(%arg0: i32) -> (i32, i32, i32) {
    %c0_i32 = arith.constant 0 : i32
    %c0_i32_0 = arith.constant 0 : i32
    %c0_i32_1 = arith.constant 0 : i32
    return %c0_i32, %arg0, %c0_i32_0 : i32, i32, i32
  }
  func.func @transform_1(%arg0: i32) -> (i32, i32) {
    %c0_i32 = arith.constant 0 : i32
    %c0_i32_0 = arith.constant 0 : i32
    %c0_i32_1 = arith.constant 0 : i32
    return %c0_i32, %c0_i32_0 : i32, i32
  }
  func.func @transform_2(%arg0: i32) -> (i32, i32) {
    %c0_i32 = arith.constant 0 : i32
    %c0_i32_0 = arith.constant 0 : i32
    %c0_i32_1 = arith.constant 0 : i32
    return %c0_i32, %c0_i32_0 : i32, i32
  }
  func.func @transform_3(%arg0: i32) -> (i32, i32) {
    %c0_i32 = arith.constant 0 : i32
    %c0_i32_0 = arith.constant 0 : i32
    %c0_i32_1 = arith.constant 0 : i32
    return %c0_i32, %c0_i32_0 : i32, i32
  }
  func.func @transform_4(%arg0: i32) -> (i32, i32) {
    %c0_i32 = arith.constant 0 : i32
    %c0_i32_0 = arith.constant 0 : i32
    %c0_i32_1 = arith.constant 0 : i32
    return %c0_i32, %c0_i32_0 : i32, i32
  }
  func.func @transform_5(%arg0: i32) -> (i32, i32) {
    %c0_i32 = arith.constant 0 : i32
    %c0_i32_0 = arith.constant 0 : i32
    %c0_i32_1 = arith.constant 0 : i32
    return %c0_i32, %c0_i32_0 : i32, i32
  }
  func.func @transform_6(%arg0: i32) -> (i32, i32) {
    %c0_i32 = arith.constant 0 : i32
    %c0_i32_0 = arith.constant 0 : i32
    %c0_i32_1 = arith.constant 0 : i32
    return %c0_i32, %c0_i32_0 : i32, i32
  }
  func.func @transform_7(%arg0: i32) -> (i32, i32) {
    %c0_i32 = arith.constant 0 : i32
    %c0_i32_0 = arith.constant 0 : i32
    %c0_i32_1 = arith.constant 0 : i32
    return %c0_i32, %c0_i32_0 : i32, i32
  }
  func.func @transform_8(%arg0: i32) -> (i32, i32) {
    %c0_i32 = arith.constant 0 : i32
    %c0_i32_0 = arith.constant 0 : i32
    %c0_i32_1 = arith.constant 0 : i32
    return %c0_i32, %c0_i32_0 : i32, i32
  }
  func.func @transform_9(%arg0: i32) -> (i32, i32) {
    %c0_i32 = arith.constant 0 : i32
    %c0_i32_0 = arith.constant 0 : i32
    %c0_i32_1 = arith.constant 0 : i32
    return %c0_i32, %c0_i32_0 : i32, i32
  }
  func.func @transform_10(%arg0: i32) -> (i32, i32, i32) {
    %c0_i32 = arith.constant 0 : i32
    %c0_i32_0 = arith.constant 0 : i32
    %c0_i32_1 = arith.constant 0 : i32
    return %c0_i32, %arg0, %c0_i32_0 : i32, i32, i32
  }
}

module attributes {stable_mosaic.version = 11 : i64} {
  func.func @_mamba_kernel(%arg0: i32, %arg1: memref<1x8x8x32xf32, #tpu.memory_space<vmem>>, %arg2: memref<32x128xbf16, #tpu.memory_space<vmem>>, %arg3: memref<4x64xf32, #tpu.memory_space<vmem>>, %arg4: memref<1x64xf32, #tpu.memory_space<vmem>>, %arg5: memref<64x34xbf16, #tpu.memory_space<vmem>>, %arg6: memref<2x64xbf16, #tpu.memory_space<vmem>>, %arg7: memref<1x64xf32, #tpu.memory_space<vmem>>, %arg8: memref<1x1024xf32, #tpu.memory_space<vmem>>, %arg9: memref<1x64xf32, #tpu.memory_space<vmem>>, %arg10: memref<64x32xbf16, #tpu.memory_space<vmem>>, %arg11: memref<1x8x8x32xf32, #tpu.memory_space<vmem>>) attributes {dimension_semantics = [#tpu.dimension_semantics<parallel>], iteration_bounds = array<i64: 2>, scalar_prefetch = 0 : i64, scratch_operands = 0 : i64, tpu.core_type = #tpu.core_type<tc>, window_params = [{transform_indices = @transform_0, window_bounds = array<i64: 1, 8, 8, 32>}, {pipeline_mode = #tpu.pipeline_mode<synchronous>, transform_indices = @transform_1, window_bounds = array<i64: 32, 128>}, {pipeline_mode = #tpu.pipeline_mode<synchronous>, transform_indices = @transform_2, window_bounds = array<i64: 4, 64>}, {pipeline_mode = #tpu.pipeline_mode<synchronous>, transform_indices = @transform_3, window_bounds = array<i64: 1, 64>}, {pipeline_mode = #tpu.pipeline_mode<synchronous>, transform_indices = @transform_4, window_bounds = array<i64: 64, 34>}, {pipeline_mode = #tpu.pipeline_mode<synchronous>, transform_indices = @transform_5, window_bounds = array<i64: 2, 64>}, {pipeline_mode = #tpu.pipeline_mode<synchronous>, transform_indices = @transform_6, window_bounds = array<i64: 1, 64>}, {pipeline_mode = #tpu.pipeline_mode<synchronous>, transform_indices = @transform_7, window_bounds = array<i64: 1, 1024>}, {pipeline_mode = #tpu.pipeline_mode<synchronous>, transform_indices = @transform_8, window_bounds = array<i64: 1, 64>}, {pipeline_mode = #tpu.pipeline_mode<synchronous>, transform_indices = @transform_9, window_bounds = array<i64: 64, 32>}, {transform_indices = @transform_10, window_bounds = array<i64: 1, 8, 8, 32>}]} {
    %c0 = arith.constant 0 : index
    %c0_0 = arith.constant 0 : index
    %c0_1 = arith.constant 0 : index
    %c0_2 = arith.constant 0 : index
    %0 = vector.load %arg1[%c0, %c0_0, %c0_1, %c0_2] : memref<1x8x8x32xf32, #tpu.memory_space<vmem>>, vector<1x8x8x32xf32>
    %1 = vector.shape_cast %0 : vector<1x8x8x32xf32> to vector<8x8x32xf32>
    %2 = vector.shape_cast %1 : vector<8x8x32xf32> to vector<64x32xf32>
    %3 = arith.truncf %2 : vector<64x32xf32> to vector<64x32xbf16>
    %c0_3 = arith.constant 0 : index
    %c0_4 = arith.constant 0 : index
    %4 = vector.load %arg2[%c0_3, %c0_4] : memref<32x128xbf16, #tpu.memory_space<vmem>>, vector<32x128xbf16>
    %cst = arith.constant dense<0.000000e+00> : vector<64x128xf32>
    %5 = tpu.matmul %3, %4, %cst {dimension_numbers = #tpu.dot_dimension_numbers<[1], [0], [0], [1], [0, 0, 1, 1], [], []>} : vector<64x32xbf16>, vector<32x128xbf16>, vector<64x128xf32> -> vector<64x128xf32>
    %6 = vector.extract_strided_slice %5 {offsets = [0, 0], sizes = [64, 64], strides = [1, 1]} : vector<64x128xf32> to vector<64x64xf32>
    %7 = vector.extract_strided_slice %5 {offsets = [0, 64], sizes = [64, 64], strides = [1, 1]} : vector<64x128xf32> to vector<64x64xf32>
    %c3 = arith.constant 3 : index
    %c0_5 = arith.constant 0 : index
    %8 = vector.load %arg3[%c3, %c0_5] : memref<4x64xf32, #tpu.memory_space<vmem>>, vector<1x64xf32>
    %9 = vector.broadcast %8 : vector<1x64xf32> to vector<64x64xf32>
    %10 = arith.mulf %6, %9 : vector<64x64xf32>
    %c0_6 = arith.constant 0 : index
    %c0_7 = arith.constant 0 : index
    %11 = vector.load %arg4[%c0_6, %c0_7] : memref<1x64xf32, #tpu.memory_space<vmem>>, vector<1x64xf32>
    %12 = vector.broadcast %11 : vector<1x64xf32> to vector<64x64xf32>
    %13 = arith.addf %10, %12 : vector<64x64xf32>
    %cst_8 = arith.constant 0.000000e+00 : f32
    %14 = vector.broadcast %cst_8 : f32 to vector<8x64xf32>
    %15 = vector.extract_strided_slice %6 {offsets = [0, 0], sizes = [56, 64], strides = [1, 1]} : vector<64x64xf32> to vector<56x64xf32>
    %16 = tpu.concatenate %14, %15 in 0 : vector<8x64xf32>, vector<56x64xf32> -> vector<64x64xf32>
    %c2 = arith.constant 2 : index
    %c0_9 = arith.constant 0 : index
    %17 = vector.load %arg3[%c2, %c0_9] : memref<4x64xf32, #tpu.memory_space<vmem>>, vector<1x64xf32>
    %18 = vector.broadcast %17 : vector<1x64xf32> to vector<64x64xf32>
    %19 = arith.mulf %16, %18 : vector<64x64xf32>
    %20 = arith.addf %13, %19 : vector<64x64xf32>
    %cst_10 = arith.constant 0.000000e+00 : f32
    %21 = vector.broadcast %cst_10 : f32 to vector<16x64xf32>
    %22 = vector.extract_strided_slice %6 {offsets = [0, 0], sizes = [48, 64], strides = [1, 1]} : vector<64x64xf32> to vector<48x64xf32>
    %23 = tpu.concatenate %21, %22 in 0 : vector<16x64xf32>, vector<48x64xf32> -> vector<64x64xf32>
    %c1 = arith.constant 1 : index
    %c0_11 = arith.constant 0 : index
    %24 = vector.load %arg3[%c1, %c0_11] : memref<4x64xf32, #tpu.memory_space<vmem>>, vector<1x64xf32>
    %25 = vector.broadcast %24 : vector<1x64xf32> to vector<64x64xf32>
    %26 = arith.mulf %23, %25 : vector<64x64xf32>
    %27 = arith.addf %20, %26 : vector<64x64xf32>
    %cst_12 = arith.constant 0.000000e+00 : f32
    %28 = vector.broadcast %cst_12 : f32 to vector<24x64xf32>
    %29 = vector.extract_strided_slice %6 {offsets = [0, 0], sizes = [40, 64], strides = [1, 1]} : vector<64x64xf32> to vector<40x64xf32>
    %30 = tpu.concatenate %28, %29 in 0 : vector<24x64xf32>, vector<40x64xf32> -> vector<64x64xf32>
    %c0_13 = arith.constant 0 : index
    %c0_14 = arith.constant 0 : index
    %31 = vector.load %arg3[%c0_13, %c0_14] : memref<4x64xf32, #tpu.memory_space<vmem>>, vector<1x64xf32>
    %32 = vector.broadcast %31 : vector<1x64xf32> to vector<64x64xf32>
    %33 = arith.mulf %30, %32 : vector<64x64xf32>
    %34 = arith.addf %27, %33 : vector<64x64xf32>
    %35 = arith.negf %34 : vector<64x64xf32>
    %36 = math.exp %35 : vector<64x64xf32>
    %cst_15 = arith.constant 1.000000e+00 : f32
    %37 = vector.broadcast %cst_15 : f32 to vector<64x64xf32>
    %38 = arith.addf %37, %36 : vector<64x64xf32>
    %39 = arith.divf %37, %38 : vector<64x64xf32>
    %40 = arith.mulf %34, %39 : vector<64x64xf32>
    %41 = arith.truncf %40 : vector<64x64xf32> to vector<64x64xbf16>
    %c0_16 = arith.constant 0 : index
    %c0_17 = arith.constant 0 : index
    %42 = vector.load %arg5[%c0_16, %c0_17] : memref<64x34xbf16, #tpu.memory_space<vmem>>, vector<64x34xbf16>
    %cst_18 = arith.constant dense<0.000000e+00> : vector<64x34xf32>
    %43 = tpu.matmul %41, %42, %cst_18 {dimension_numbers = #tpu.dot_dimension_numbers<[1], [0], [0], [1], [0, 0, 1, 1], [], []>} : vector<64x64xbf16>, vector<64x34xbf16>, vector<64x34xf32> -> vector<64x34xf32>
    %44 = vector.extract_strided_slice %43 {offsets = [0, 0], sizes = [64, 2], strides = [1, 1]} : vector<64x34xf32> to vector<64x2xf32>
    %45 = vector.extract_strided_slice %43 {offsets = [0, 2], sizes = [64, 16], strides = [1, 1]} : vector<64x34xf32> to vector<64x16xf32>
    %46 = vector.extract_strided_slice %43 {offsets = [0, 18], sizes = [64, 16], strides = [1, 1]} : vector<64x34xf32> to vector<64x16xf32>
    %47 = arith.truncf %44 : vector<64x2xf32> to vector<64x2xbf16>
    %c0_19 = arith.constant 0 : index
    %c0_20 = arith.constant 0 : index
    %48 = vector.load %arg6[%c0_19, %c0_20] : memref<2x64xbf16, #tpu.memory_space<vmem>>, vector<2x64xbf16>
    %cst_21 = arith.constant dense<0.000000e+00> : vector<64x64xf32>
    %49 = tpu.matmul %47, %48, %cst_21 {dimension_numbers = #tpu.dot_dimension_numbers<[1], [0], [0], [1], [0, 0, 1, 1], [], []>} : vector<64x2xbf16>, vector<2x64xbf16>, vector<64x64xf32> -> vector<64x64xf32>
    %c0_22 = arith.constant 0 : index
    %c0_23 = arith.constant 0 : index
    %50 = vector.load %arg7[%c0_22, %c0_23] : memref<1x64xf32, #tpu.memory_space<vmem>>, vector<1x64xf32>
    %51 = vector.broadcast %50 : vector<1x64xf32> to vector<64x64xf32>
    %52 = arith.addf %49, %51 : vector<64x64xf32>
    %cst_24 = arith.constant 0.000000e+00 : f32
    %53 = vector.broadcast %cst_24 : f32 to vector<64x64xf32>
    %54 = arith.maximumf %52, %53 : vector<64x64xf32>
    %55 = math.absf %52 : vector<64x64xf32>
    %cst_25 = arith.constant 0.000000e+00 : f32
    %56 = vector.broadcast %cst_25 : f32 to vector<64x64xf32>
    %57 = arith.subf %56, %55 : vector<64x64xf32>
    %58 = math.exp %57 : vector<64x64xf32>
    %59 = math.log1p %58 : vector<64x64xf32>
    %60 = arith.addf %54, %59 : vector<64x64xf32>
    %61 = tpu.concatenate %60, %60, %60, %60, %60, %60, %60, %60, %60, %60, %60, %60, %60, %60, %60, %60 in 1 : vector<64x64xf32>, vector<64x64xf32>, vector<64x64xf32>, vector<64x64xf32>, vector<64x64xf32>, vector<64x64xf32>, vector<64x64xf32>, vector<64x64xf32>, vector<64x64xf32>, vector<64x64xf32>, vector<64x64xf32>, vector<64x64xf32>, vector<64x64xf32>, vector<64x64xf32>, vector<64x64xf32>, vector<64x64xf32> -> vector<64x1024xf32>
    %62 = arith.mulf %60, %40 : vector<64x64xf32>
    %63 = tpu.concatenate %62, %62, %62, %62, %62, %62, %62, %62, %62, %62, %62, %62, %62, %62, %62, %62 in 1 : vector<64x64xf32>, vector<64x64xf32>, vector<64x64xf32>, vector<64x64xf32>, vector<64x64xf32>, vector<64x64xf32>, vector<64x64xf32>, vector<64x64xf32>, vector<64x64xf32>, vector<64x64xf32>, vector<64x64xf32>, vector<64x64xf32>, vector<64x64xf32>, vector<64x64xf32>, vector<64x64xf32>, vector<64x64xf32> -> vector<64x1024xf32>
    %c0_26 = arith.constant 0 : index
    %c0_27 = arith.constant 0 : index
    %64 = vector.load %arg8[%c0_26, %c0_27] : memref<1x1024xf32, #tpu.memory_space<vmem>>, vector<1x1024xf32>
    %65 = vector.broadcast %64 : vector<1x1024xf32> to vector<64x1024xf32>
    %66 = arith.mulf %61, %65 : vector<64x1024xf32>
    %67 = math.exp %66 : vector<64x1024xf32>
    %68 = vector.extract_strided_slice %45 {offsets = [0, 0], sizes = [64, 1], strides = [1, 1]} : vector<64x16xf32> to vector<64x1xf32>
    %69 = vector.shape_cast %68 : vector<64x1xf32> to vector<64x1xf32>
    %70 = vector.broadcast %69 : vector<64x1xf32> to vector<64x64xf32>
    %71 = vector.extract_strided_slice %45 {offsets = [0, 1], sizes = [64, 1], strides = [1, 1]} : vector<64x16xf32> to vector<64x1xf32>
    %72 = vector.shape_cast %71 : vector<64x1xf32> to vector<64x1xf32>
    %73 = vector.broadcast %72 : vector<64x1xf32> to vector<64x64xf32>
    %74 = vector.extract_strided_slice %45 {offsets = [0, 2], sizes = [64, 1], strides = [1, 1]} : vector<64x16xf32> to vector<64x1xf32>
    %75 = vector.shape_cast %74 : vector<64x1xf32> to vector<64x1xf32>
    %76 = vector.broadcast %75 : vector<64x1xf32> to vector<64x64xf32>
    %77 = vector.extract_strided_slice %45 {offsets = [0, 3], sizes = [64, 1], strides = [1, 1]} : vector<64x16xf32> to vector<64x1xf32>
    %78 = vector.shape_cast %77 : vector<64x1xf32> to vector<64x1xf32>
    %79 = vector.broadcast %78 : vector<64x1xf32> to vector<64x64xf32>
    %80 = vector.extract_strided_slice %45 {offsets = [0, 4], sizes = [64, 1], strides = [1, 1]} : vector<64x16xf32> to vector<64x1xf32>
    %81 = vector.shape_cast %80 : vector<64x1xf32> to vector<64x1xf32>
    %82 = vector.broadcast %81 : vector<64x1xf32> to vector<64x64xf32>
    %83 = vector.extract_strided_slice %45 {offsets = [0, 5], sizes = [64, 1], strides = [1, 1]} : vector<64x16xf32> to vector<64x1xf32>
    %84 = vector.shape_cast %83 : vector<64x1xf32> to vector<64x1xf32>
    %85 = vector.broadcast %84 : vector<64x1xf32> to vector<64x64xf32>
    %86 = vector.extract_strided_slice %45 {offsets = [0, 6], sizes = [64, 1], strides = [1, 1]} : vector<64x16xf32> to vector<64x1xf32>
    %87 = vector.shape_cast %86 : vector<64x1xf32> to vector<64x1xf32>
    %88 = vector.broadcast %87 : vector<64x1xf32> to vector<64x64xf32>
    %89 = vector.extract_strided_slice %45 {offsets = [0, 7], sizes = [64, 1], strides = [1, 1]} : vector<64x16xf32> to vector<64x1xf32>
    %90 = vector.shape_cast %89 : vector<64x1xf32> to vector<64x1xf32>
    %91 = vector.broadcast %90 : vector<64x1xf32> to vector<64x64xf32>
    %92 = vector.extract_strided_slice %45 {offsets = [0, 8], sizes = [64, 1], strides = [1, 1]} : vector<64x16xf32> to vector<64x1xf32>
    %93 = vector.shape_cast %92 : vector<64x1xf32> to vector<64x1xf32>
    %94 = vector.broadcast %93 : vector<64x1xf32> to vector<64x64xf32>
    %95 = vector.extract_strided_slice %45 {offsets = [0, 9], sizes = [64, 1], strides = [1, 1]} : vector<64x16xf32> to vector<64x1xf32>
    %96 = vector.shape_cast %95 : vector<64x1xf32> to vector<64x1xf32>
    %97 = vector.broadcast %96 : vector<64x1xf32> to vector<64x64xf32>
    %98 = vector.extract_strided_slice %45 {offsets = [0, 10], sizes = [64, 1], strides = [1, 1]} : vector<64x16xf32> to vector<64x1xf32>
    %99 = vector.shape_cast %98 : vector<64x1xf32> to vector<64x1xf32>
    %100 = vector.broadcast %99 : vector<64x1xf32> to vector<64x64xf32>
    %101 = vector.extract_strided_slice %45 {offsets = [0, 11], sizes = [64, 1], strides = [1, 1]} : vector<64x16xf32> to vector<64x1xf32>
    %102 = vector.shape_cast %101 : vector<64x1xf32> to vector<64x1xf32>
    %103 = vector.broadcast %102 : vector<64x1xf32> to vector<64x64xf32>
    %104 = vector.extract_strided_slice %45 {offsets = [0, 12], sizes = [64, 1], strides = [1, 1]} : vector<64x16xf32> to vector<64x1xf32>
    %105 = vector.shape_cast %104 : vector<64x1xf32> to vector<64x1xf32>
    %106 = vector.broadcast %105 : vector<64x1xf32> to vector<64x64xf32>
    %107 = vector.extract_strided_slice %45 {offsets = [0, 13], sizes = [64, 1], strides = [1, 1]} : vector<64x16xf32> to vector<64x1xf32>
    %108 = vector.shape_cast %107 : vector<64x1xf32> to vector<64x1xf32>
    %109 = vector.broadcast %108 : vector<64x1xf32> to vector<64x64xf32>
    %110 = vector.extract_strided_slice %45 {offsets = [0, 14], sizes = [64, 1], strides = [1, 1]} : vector<64x16xf32> to vector<64x1xf32>
    %111 = vector.shape_cast %110 : vector<64x1xf32> to vector<64x1xf32>
    %112 = vector.broadcast %111 : vector<64x1xf32> to vector<64x64xf32>
    %113 = vector.extract_strided_slice %45 {offsets = [0, 15], sizes = [64, 1], strides = [1, 1]} : vector<64x16xf32> to vector<64x1xf32>
    %114 = vector.shape_cast %113 : vector<64x1xf32> to vector<64x1xf32>
    %115 = vector.broadcast %114 : vector<64x1xf32> to vector<64x64xf32>
    %116 = tpu.concatenate %70, %73, %76, %79, %82, %85, %88, %91, %94, %97, %100, %103, %106, %109, %112, %115 in 1 : vector<64x64xf32>, vector<64x64xf32>, vector<64x64xf32>, vector<64x64xf32>, vector<64x64xf32>, vector<64x64xf32>, vector<64x64xf32>, vector<64x64xf32>, vector<64x64xf32>, vector<64x64xf32>, vector<64x64xf32>, vector<64x64xf32>, vector<64x64xf32>, vector<64x64xf32>, vector<64x64xf32>, vector<64x64xf32> -> vector<64x1024xf32>
    %117 = vector.extract_strided_slice %46 {offsets = [0, 0], sizes = [64, 1], strides = [1, 1]} : vector<64x16xf32> to vector<64x1xf32>
    %118 = vector.shape_cast %117 : vector<64x1xf32> to vector<64x1xf32>
    %119 = vector.broadcast %118 : vector<64x1xf32> to vector<64x64xf32>
    %120 = vector.extract_strided_slice %46 {offsets = [0, 1], sizes = [64, 1], strides = [1, 1]} : vector<64x16xf32> to vector<64x1xf32>
    %121 = vector.shape_cast %120 : vector<64x1xf32> to vector<64x1xf32>
    %122 = vector.broadcast %121 : vector<64x1xf32> to vector<64x64xf32>
    %123 = vector.extract_strided_slice %46 {offsets = [0, 2], sizes = [64, 1], strides = [1, 1]} : vector<64x16xf32> to vector<64x1xf32>
    %124 = vector.shape_cast %123 : vector<64x1xf32> to vector<64x1xf32>
    %125 = vector.broadcast %124 : vector<64x1xf32> to vector<64x64xf32>
    %126 = vector.extract_strided_slice %46 {offsets = [0, 3], sizes = [64, 1], strides = [1, 1]} : vector<64x16xf32> to vector<64x1xf32>
    %127 = vector.shape_cast %126 : vector<64x1xf32> to vector<64x1xf32>
    %128 = vector.broadcast %127 : vector<64x1xf32> to vector<64x64xf32>
    %129 = vector.extract_strided_slice %46 {offsets = [0, 4], sizes = [64, 1], strides = [1, 1]} : vector<64x16xf32> to vector<64x1xf32>
    %130 = vector.shape_cast %129 : vector<64x1xf32> to vector<64x1xf32>
    %131 = vector.broadcast %130 : vector<64x1xf32> to vector<64x64xf32>
    %132 = vector.extract_strided_slice %46 {offsets = [0, 5], sizes = [64, 1], strides = [1, 1]} : vector<64x16xf32> to vector<64x1xf32>
    %133 = vector.shape_cast %132 : vector<64x1xf32> to vector<64x1xf32>
    %134 = vector.broadcast %133 : vector<64x1xf32> to vector<64x64xf32>
    %135 = vector.extract_strided_slice %46 {offsets = [0, 6], sizes = [64, 1], strides = [1, 1]} : vector<64x16xf32> to vector<64x1xf32>
    %136 = vector.shape_cast %135 : vector<64x1xf32> to vector<64x1xf32>
    %137 = vector.broadcast %136 : vector<64x1xf32> to vector<64x64xf32>
    %138 = vector.extract_strided_slice %46 {offsets = [0, 7], sizes = [64, 1], strides = [1, 1]} : vector<64x16xf32> to vector<64x1xf32>
    %139 = vector.shape_cast %138 : vector<64x1xf32> to vector<64x1xf32>
    %140 = vector.broadcast %139 : vector<64x1xf32> to vector<64x64xf32>
    %141 = vector.extract_strided_slice %46 {offsets = [0, 8], sizes = [64, 1], strides = [1, 1]} : vector<64x16xf32> to vector<64x1xf32>
    %142 = vector.shape_cast %141 : vector<64x1xf32> to vector<64x1xf32>
    %143 = vector.broadcast %142 : vector<64x1xf32> to vector<64x64xf32>
    %144 = vector.extract_strided_slice %46 {offsets = [0, 9], sizes = [64, 1], strides = [1, 1]} : vector<64x16xf32> to vector<64x1xf32>
    %145 = vector.shape_cast %144 : vector<64x1xf32> to vector<64x1xf32>
    %146 = vector.broadcast %145 : vector<64x1xf32> to vector<64x64xf32>
    %147 = vector.extract_strided_slice %46 {offsets = [0, 10], sizes = [64, 1], strides = [1, 1]} : vector<64x16xf32> to vector<64x1xf32>
    %148 = vector.shape_cast %147 : vector<64x1xf32> to vector<64x1xf32>
    %149 = vector.broadcast %148 : vector<64x1xf32> to vector<64x64xf32>
    %150 = vector.extract_strided_slice %46 {offsets = [0, 11], sizes = [64, 1], strides = [1, 1]} : vector<64x16xf32> to vector<64x1xf32>
    %151 = vector.shape_cast %150 : vector<64x1xf32> to vector<64x1xf32>
    %152 = vector.broadcast %151 : vector<64x1xf32> to vector<64x64xf32>
    %153 = vector.extract_strided_slice %46 {offsets = [0, 12], sizes = [64, 1], strides = [1, 1]} : vector<64x16xf32> to vector<64x1xf32>
    %154 = vector.shape_cast %153 : vector<64x1xf32> to vector<64x1xf32>
    %155 = vector.broadcast %154 : vector<64x1xf32> to vector<64x64xf32>
    %156 = vector.extract_strided_slice %46 {offsets = [0, 13], sizes = [64, 1], strides = [1, 1]} : vector<64x16xf32> to vector<64x1xf32>
    %157 = vector.shape_cast %156 : vector<64x1xf32> to vector<64x1xf32>
    %158 = vector.broadcast %157 : vector<64x1xf32> to vector<64x64xf32>
    %159 = vector.extract_strided_slice %46 {offsets = [0, 14], sizes = [64, 1], strides = [1, 1]} : vector<64x16xf32> to vector<64x1xf32>
    %160 = vector.shape_cast %159 : vector<64x1xf32> to vector<64x1xf32>
    %161 = vector.broadcast %160 : vector<64x1xf32> to vector<64x64xf32>
    %162 = vector.extract_strided_slice %46 {offsets = [0, 15], sizes = [64, 1], strides = [1, 1]} : vector<64x16xf32> to vector<64x1xf32>
    %163 = vector.shape_cast %162 : vector<64x1xf32> to vector<64x1xf32>
    %164 = vector.broadcast %163 : vector<64x1xf32> to vector<64x64xf32>
    %165 = tpu.concatenate %119, %122, %125, %128, %131, %134, %137, %140, %143, %146, %149, %152, %155, %158, %161, %164 in 1 : vector<64x64xf32>, vector<64x64xf32>, vector<64x64xf32>, vector<64x64xf32>, vector<64x64xf32>, vector<64x64xf32>, vector<64x64xf32>, vector<64x64xf32>, vector<64x64xf32>, vector<64x64xf32>, vector<64x64xf32>, vector<64x64xf32>, vector<64x64xf32>, vector<64x64xf32>, vector<64x64xf32>, vector<64x64xf32> -> vector<64x1024xf32>
    %166 = arith.mulf %63, %116 : vector<64x1024xf32>
    %c0_28 = arith.constant 0 : index
    %c0_29 = arith.constant 0 : index
    %167 = vector.load %arg9[%c0_28, %c0_29] : memref<1x64xf32, #tpu.memory_space<vmem>>, vector<1x64xf32>
    %cst_30 = arith.constant 0.000000e+00 : f32
    %168 = vector.broadcast %cst_30 : f32 to vector<8x1024xf32>
    %169 = vector.extract_strided_slice %67 {offsets = [0, 0], sizes = [8, 1024], strides = [1, 1]} : vector<64x1024xf32> to vector<8x1024xf32>
    %170 = arith.mulf %169, %168 : vector<8x1024xf32>
    %171 = vector.extract_strided_slice %166 {offsets = [0, 0], sizes = [8, 1024], strides = [1, 1]} : vector<64x1024xf32> to vector<8x1024xf32>
    %172 = arith.addf %170, %171 : vector<8x1024xf32>
    %173 = vector.extract_strided_slice %165 {offsets = [0, 0], sizes = [8, 1024], strides = [1, 1]} : vector<64x1024xf32> to vector<8x1024xf32>
    %174 = arith.mulf %172, %173 : vector<8x1024xf32>
    %175 = vector.extract_strided_slice %174 {offsets = [0, 0], sizes = [8, 64], strides = [1, 1]} : vector<8x1024xf32> to vector<8x64xf32>
    %176 = vector.extract_strided_slice %174 {offsets = [0, 64], sizes = [8, 64], strides = [1, 1]} : vector<8x1024xf32> to vector<8x64xf32>
    %177 = arith.addf %175, %176 : vector<8x64xf32>
    %178 = vector.extract_strided_slice %174 {offsets = [0, 128], sizes = [8, 64], strides = [1, 1]} : vector<8x1024xf32> to vector<8x64xf32>
    %179 = arith.addf %177, %178 : vector<8x64xf32>
    %180 = vector.extract_strided_slice %174 {offsets = [0, 192], sizes = [8, 64], strides = [1, 1]} : vector<8x1024xf32> to vector<8x64xf32>
    %181 = arith.addf %179, %180 : vector<8x64xf32>
    %182 = vector.extract_strided_slice %174 {offsets = [0, 256], sizes = [8, 64], strides = [1, 1]} : vector<8x1024xf32> to vector<8x64xf32>
    %183 = arith.addf %181, %182 : vector<8x64xf32>
    %184 = vector.extract_strided_slice %174 {offsets = [0, 320], sizes = [8, 64], strides = [1, 1]} : vector<8x1024xf32> to vector<8x64xf32>
    %185 = arith.addf %183, %184 : vector<8x64xf32>
    %186 = vector.extract_strided_slice %174 {offsets = [0, 384], sizes = [8, 64], strides = [1, 1]} : vector<8x1024xf32> to vector<8x64xf32>
    %187 = arith.addf %185, %186 : vector<8x64xf32>
    %188 = vector.extract_strided_slice %174 {offsets = [0, 448], sizes = [8, 64], strides = [1, 1]} : vector<8x1024xf32> to vector<8x64xf32>
    %189 = arith.addf %187, %188 : vector<8x64xf32>
    %190 = vector.extract_strided_slice %174 {offsets = [0, 512], sizes = [8, 64], strides = [1, 1]} : vector<8x1024xf32> to vector<8x64xf32>
    %191 = arith.addf %189, %190 : vector<8x64xf32>
    %192 = vector.extract_strided_slice %174 {offsets = [0, 576], sizes = [8, 64], strides = [1, 1]} : vector<8x1024xf32> to vector<8x64xf32>
    %193 = arith.addf %191, %192 : vector<8x64xf32>
    %194 = vector.extract_strided_slice %174 {offsets = [0, 640], sizes = [8, 64], strides = [1, 1]} : vector<8x1024xf32> to vector<8x64xf32>
    %195 = arith.addf %193, %194 : vector<8x64xf32>
    %196 = vector.extract_strided_slice %174 {offsets = [0, 704], sizes = [8, 64], strides = [1, 1]} : vector<8x1024xf32> to vector<8x64xf32>
    %197 = arith.addf %195, %196 : vector<8x64xf32>
    %198 = vector.extract_strided_slice %174 {offsets = [0, 768], sizes = [8, 64], strides = [1, 1]} : vector<8x1024xf32> to vector<8x64xf32>
    %199 = arith.addf %197, %198 : vector<8x64xf32>
    %200 = vector.extract_strided_slice %174 {offsets = [0, 832], sizes = [8, 64], strides = [1, 1]} : vector<8x1024xf32> to vector<8x64xf32>
    %201 = arith.addf %199, %200 : vector<8x64xf32>
    %202 = vector.extract_strided_slice %174 {offsets = [0, 896], sizes = [8, 64], strides = [1, 1]} : vector<8x1024xf32> to vector<8x64xf32>
    %203 = arith.addf %201, %202 : vector<8x64xf32>
    %204 = vector.extract_strided_slice %174 {offsets = [0, 960], sizes = [8, 64], strides = [1, 1]} : vector<8x1024xf32> to vector<8x64xf32>
    %205 = arith.addf %203, %204 : vector<8x64xf32>
    %206 = vector.extract_strided_slice %40 {offsets = [0, 0], sizes = [8, 64], strides = [1, 1]} : vector<64x64xf32> to vector<8x64xf32>
    %207 = vector.broadcast %167 : vector<1x64xf32> to vector<8x64xf32>
    %208 = arith.mulf %206, %207 : vector<8x64xf32>
    %209 = arith.addf %205, %208 : vector<8x64xf32>
    %210 = vector.extract_strided_slice %67 {offsets = [8, 0], sizes = [8, 1024], strides = [1, 1]} : vector<64x1024xf32> to vector<8x1024xf32>
    %211 = arith.mulf %210, %172 : vector<8x1024xf32>
    %212 = vector.extract_strided_slice %166 {offsets = [8, 0], sizes = [8, 1024], strides = [1, 1]} : vector<64x1024xf32> to vector<8x1024xf32>
    %213 = arith.addf %211, %212 : vector<8x1024xf32>
    %214 = vector.extract_strided_slice %165 {offsets = [8, 0], sizes = [8, 1024], strides = [1, 1]} : vector<64x1024xf32> to vector<8x1024xf32>
    %215 = arith.mulf %213, %214 : vector<8x1024xf32>
    %216 = vector.extract_strided_slice %215 {offsets = [0, 0], sizes = [8, 64], strides = [1, 1]} : vector<8x1024xf32> to vector<8x64xf32>
    %217 = vector.extract_strided_slice %215 {offsets = [0, 64], sizes = [8, 64], strides = [1, 1]} : vector<8x1024xf32> to vector<8x64xf32>
    %218 = arith.addf %216, %217 : vector<8x64xf32>
    %219 = vector.extract_strided_slice %215 {offsets = [0, 128], sizes = [8, 64], strides = [1, 1]} : vector<8x1024xf32> to vector<8x64xf32>
    %220 = arith.addf %218, %219 : vector<8x64xf32>
    %221 = vector.extract_strided_slice %215 {offsets = [0, 192], sizes = [8, 64], strides = [1, 1]} : vector<8x1024xf32> to vector<8x64xf32>
    %222 = arith.addf %220, %221 : vector<8x64xf32>
    %223 = vector.extract_strided_slice %215 {offsets = [0, 256], sizes = [8, 64], strides = [1, 1]} : vector<8x1024xf32> to vector<8x64xf32>
    %224 = arith.addf %222, %223 : vector<8x64xf32>
    %225 = vector.extract_strided_slice %215 {offsets = [0, 320], sizes = [8, 64], strides = [1, 1]} : vector<8x1024xf32> to vector<8x64xf32>
    %226 = arith.addf %224, %225 : vector<8x64xf32>
    %227 = vector.extract_strided_slice %215 {offsets = [0, 384], sizes = [8, 64], strides = [1, 1]} : vector<8x1024xf32> to vector<8x64xf32>
    %228 = arith.addf %226, %227 : vector<8x64xf32>
    %229 = vector.extract_strided_slice %215 {offsets = [0, 448], sizes = [8, 64], strides = [1, 1]} : vector<8x1024xf32> to vector<8x64xf32>
    %230 = arith.addf %228, %229 : vector<8x64xf32>
    %231 = vector.extract_strided_slice %215 {offsets = [0, 512], sizes = [8, 64], strides = [1, 1]} : vector<8x1024xf32> to vector<8x64xf32>
    %232 = arith.addf %230, %231 : vector<8x64xf32>
    %233 = vector.extract_strided_slice %215 {offsets = [0, 576], sizes = [8, 64], strides = [1, 1]} : vector<8x1024xf32> to vector<8x64xf32>
    %234 = arith.addf %232, %233 : vector<8x64xf32>
    %235 = vector.extract_strided_slice %215 {offsets = [0, 640], sizes = [8, 64], strides = [1, 1]} : vector<8x1024xf32> to vector<8x64xf32>
    %236 = arith.addf %234, %235 : vector<8x64xf32>
    %237 = vector.extract_strided_slice %215 {offsets = [0, 704], sizes = [8, 64], strides = [1, 1]} : vector<8x1024xf32> to vector<8x64xf32>
    %238 = arith.addf %236, %237 : vector<8x64xf32>
    %239 = vector.extract_strided_slice %215 {offsets = [0, 768], sizes = [8, 64], strides = [1, 1]} : vector<8x1024xf32> to vector<8x64xf32>
    %240 = arith.addf %238, %239 : vector<8x64xf32>
    %241 = vector.extract_strided_slice %215 {offsets = [0, 832], sizes = [8, 64], strides = [1, 1]} : vector<8x1024xf32> to vector<8x64xf32>
    %242 = arith.addf %240, %241 : vector<8x64xf32>
    %243 = vector.extract_strided_slice %215 {offsets = [0, 896], sizes = [8, 64], strides = [1, 1]} : vector<8x1024xf32> to vector<8x64xf32>
    %244 = arith.addf %242, %243 : vector<8x64xf32>
    %245 = vector.extract_strided_slice %215 {offsets = [0, 960], sizes = [8, 64], strides = [1, 1]} : vector<8x1024xf32> to vector<8x64xf32>
    %246 = arith.addf %244, %245 : vector<8x64xf32>
    %247 = vector.extract_strided_slice %40 {offsets = [8, 0], sizes = [8, 64], strides = [1, 1]} : vector<64x64xf32> to vector<8x64xf32>
    %248 = vector.broadcast %167 : vector<1x64xf32> to vector<8x64xf32>
    %249 = arith.mulf %247, %248 : vector<8x64xf32>
    %250 = arith.addf %246, %249 : vector<8x64xf32>
    %251 = vector.extract_strided_slice %67 {offsets = [16, 0], sizes = [8, 1024], strides = [1, 1]} : vector<64x1024xf32> to vector<8x1024xf32>
    %252 = arith.mulf %251, %213 : vector<8x1024xf32>
    %253 = vector.extract_strided_slice %166 {offsets = [16, 0], sizes = [8, 1024], strides = [1, 1]} : vector<64x1024xf32> to vector<8x1024xf32>
    %254 = arith.addf %252, %253 : vector<8x1024xf32>
    %255 = vector.extract_strided_slice %165 {offsets = [16, 0], sizes = [8, 1024], strides = [1, 1]} : vector<64x1024xf32> to vector<8x1024xf32>
    %256 = arith.mulf %254, %255 : vector<8x1024xf32>
    %257 = vector.extract_strided_slice %256 {offsets = [0, 0], sizes = [8, 64], strides = [1, 1]} : vector<8x1024xf32> to vector<8x64xf32>
    %258 = vector.extract_strided_slice %256 {offsets = [0, 64], sizes = [8, 64], strides = [1, 1]} : vector<8x1024xf32> to vector<8x64xf32>
    %259 = arith.addf %257, %258 : vector<8x64xf32>
    %260 = vector.extract_strided_slice %256 {offsets = [0, 128], sizes = [8, 64], strides = [1, 1]} : vector<8x1024xf32> to vector<8x64xf32>
    %261 = arith.addf %259, %260 : vector<8x64xf32>
    %262 = vector.extract_strided_slice %256 {offsets = [0, 192], sizes = [8, 64], strides = [1, 1]} : vector<8x1024xf32> to vector<8x64xf32>
    %263 = arith.addf %261, %262 : vector<8x64xf32>
    %264 = vector.extract_strided_slice %256 {offsets = [0, 256], sizes = [8, 64], strides = [1, 1]} : vector<8x1024xf32> to vector<8x64xf32>
    %265 = arith.addf %263, %264 : vector<8x64xf32>
    %266 = vector.extract_strided_slice %256 {offsets = [0, 320], sizes = [8, 64], strides = [1, 1]} : vector<8x1024xf32> to vector<8x64xf32>
    %267 = arith.addf %265, %266 : vector<8x64xf32>
    %268 = vector.extract_strided_slice %256 {offsets = [0, 384], sizes = [8, 64], strides = [1, 1]} : vector<8x1024xf32> to vector<8x64xf32>
    %269 = arith.addf %267, %268 : vector<8x64xf32>
    %270 = vector.extract_strided_slice %256 {offsets = [0, 448], sizes = [8, 64], strides = [1, 1]} : vector<8x1024xf32> to vector<8x64xf32>
    %271 = arith.addf %269, %270 : vector<8x64xf32>
    %272 = vector.extract_strided_slice %256 {offsets = [0, 512], sizes = [8, 64], strides = [1, 1]} : vector<8x1024xf32> to vector<8x64xf32>
    %273 = arith.addf %271, %272 : vector<8x64xf32>
    %274 = vector.extract_strided_slice %256 {offsets = [0, 576], sizes = [8, 64], strides = [1, 1]} : vector<8x1024xf32> to vector<8x64xf32>
    %275 = arith.addf %273, %274 : vector<8x64xf32>
    %276 = vector.extract_strided_slice %256 {offsets = [0, 640], sizes = [8, 64], strides = [1, 1]} : vector<8x1024xf32> to vector<8x64xf32>
    %277 = arith.addf %275, %276 : vector<8x64xf32>
    %278 = vector.extract_strided_slice %256 {offsets = [0, 704], sizes = [8, 64], strides = [1, 1]} : vector<8x1024xf32> to vector<8x64xf32>
    %279 = arith.addf %277, %278 : vector<8x64xf32>
    %280 = vector.extract_strided_slice %256 {offsets = [0, 768], sizes = [8, 64], strides = [1, 1]} : vector<8x1024xf32> to vector<8x64xf32>
    %281 = arith.addf %279, %280 : vector<8x64xf32>
    %282 = vector.extract_strided_slice %256 {offsets = [0, 832], sizes = [8, 64], strides = [1, 1]} : vector<8x1024xf32> to vector<8x64xf32>
    %283 = arith.addf %281, %282 : vector<8x64xf32>
    %284 = vector.extract_strided_slice %256 {offsets = [0, 896], sizes = [8, 64], strides = [1, 1]} : vector<8x1024xf32> to vector<8x64xf32>
    %285 = arith.addf %283, %284 : vector<8x64xf32>
    %286 = vector.extract_strided_slice %256 {offsets = [0, 960], sizes = [8, 64], strides = [1, 1]} : vector<8x1024xf32> to vector<8x64xf32>
    %287 = arith.addf %285, %286 : vector<8x64xf32>
    %288 = vector.extract_strided_slice %40 {offsets = [16, 0], sizes = [8, 64], strides = [1, 1]} : vector<64x64xf32> to vector<8x64xf32>
    %289 = vector.broadcast %167 : vector<1x64xf32> to vector<8x64xf32>
    %290 = arith.mulf %288, %289 : vector<8x64xf32>
    %291 = arith.addf %287, %290 : vector<8x64xf32>
    %292 = vector.extract_strided_slice %67 {offsets = [24, 0], sizes = [8, 1024], strides = [1, 1]} : vector<64x1024xf32> to vector<8x1024xf32>
    %293 = arith.mulf %292, %254 : vector<8x1024xf32>
    %294 = vector.extract_strided_slice %166 {offsets = [24, 0], sizes = [8, 1024], strides = [1, 1]} : vector<64x1024xf32> to vector<8x1024xf32>
    %295 = arith.addf %293, %294 : vector<8x1024xf32>
    %296 = vector.extract_strided_slice %165 {offsets = [24, 0], sizes = [8, 1024], strides = [1, 1]} : vector<64x1024xf32> to vector<8x1024xf32>
    %297 = arith.mulf %295, %296 : vector<8x1024xf32>
    %298 = vector.extract_strided_slice %297 {offsets = [0, 0], sizes = [8, 64], strides = [1, 1]} : vector<8x1024xf32> to vector<8x64xf32>
    %299 = vector.extract_strided_slice %297 {offsets = [0, 64], sizes = [8, 64], strides = [1, 1]} : vector<8x1024xf32> to vector<8x64xf32>
    %300 = arith.addf %298, %299 : vector<8x64xf32>
    %301 = vector.extract_strided_slice %297 {offsets = [0, 128], sizes = [8, 64], strides = [1, 1]} : vector<8x1024xf32> to vector<8x64xf32>
    %302 = arith.addf %300, %301 : vector<8x64xf32>
    %303 = vector.extract_strided_slice %297 {offsets = [0, 192], sizes = [8, 64], strides = [1, 1]} : vector<8x1024xf32> to vector<8x64xf32>
    %304 = arith.addf %302, %303 : vector<8x64xf32>
    %305 = vector.extract_strided_slice %297 {offsets = [0, 256], sizes = [8, 64], strides = [1, 1]} : vector<8x1024xf32> to vector<8x64xf32>
    %306 = arith.addf %304, %305 : vector<8x64xf32>
    %307 = vector.extract_strided_slice %297 {offsets = [0, 320], sizes = [8, 64], strides = [1, 1]} : vector<8x1024xf32> to vector<8x64xf32>
    %308 = arith.addf %306, %307 : vector<8x64xf32>
    %309 = vector.extract_strided_slice %297 {offsets = [0, 384], sizes = [8, 64], strides = [1, 1]} : vector<8x1024xf32> to vector<8x64xf32>
    %310 = arith.addf %308, %309 : vector<8x64xf32>
    %311 = vector.extract_strided_slice %297 {offsets = [0, 448], sizes = [8, 64], strides = [1, 1]} : vector<8x1024xf32> to vector<8x64xf32>
    %312 = arith.addf %310, %311 : vector<8x64xf32>
    %313 = vector.extract_strided_slice %297 {offsets = [0, 512], sizes = [8, 64], strides = [1, 1]} : vector<8x1024xf32> to vector<8x64xf32>
    %314 = arith.addf %312, %313 : vector<8x64xf32>
    %315 = vector.extract_strided_slice %297 {offsets = [0, 576], sizes = [8, 64], strides = [1, 1]} : vector<8x1024xf32> to vector<8x64xf32>
    %316 = arith.addf %314, %315 : vector<8x64xf32>
    %317 = vector.extract_strided_slice %297 {offsets = [0, 640], sizes = [8, 64], strides = [1, 1]} : vector<8x1024xf32> to vector<8x64xf32>
    %318 = arith.addf %316, %317 : vector<8x64xf32>
    %319 = vector.extract_strided_slice %297 {offsets = [0, 704], sizes = [8, 64], strides = [1, 1]} : vector<8x1024xf32> to vector<8x64xf32>
    %320 = arith.addf %318, %319 : vector<8x64xf32>
    %321 = vector.extract_strided_slice %297 {offsets = [0, 768], sizes = [8, 64], strides = [1, 1]} : vector<8x1024xf32> to vector<8x64xf32>
    %322 = arith.addf %320, %321 : vector<8x64xf32>
    %323 = vector.extract_strided_slice %297 {offsets = [0, 832], sizes = [8, 64], strides = [1, 1]} : vector<8x1024xf32> to vector<8x64xf32>
    %324 = arith.addf %322, %323 : vector<8x64xf32>
    %325 = vector.extract_strided_slice %297 {offsets = [0, 896], sizes = [8, 64], strides = [1, 1]} : vector<8x1024xf32> to vector<8x64xf32>
    %326 = arith.addf %324, %325 : vector<8x64xf32>
    %327 = vector.extract_strided_slice %297 {offsets = [0, 960], sizes = [8, 64], strides = [1, 1]} : vector<8x1024xf32> to vector<8x64xf32>
    %328 = arith.addf %326, %327 : vector<8x64xf32>
    %329 = vector.extract_strided_slice %40 {offsets = [24, 0], sizes = [8, 64], strides = [1, 1]} : vector<64x64xf32> to vector<8x64xf32>
    %330 = vector.broadcast %167 : vector<1x64xf32> to vector<8x64xf32>
    %331 = arith.mulf %329, %330 : vector<8x64xf32>
    %332 = arith.addf %328, %331 : vector<8x64xf32>
    %333 = vector.extract_strided_slice %67 {offsets = [32, 0], sizes = [8, 1024], strides = [1, 1]} : vector<64x1024xf32> to vector<8x1024xf32>
    %334 = arith.mulf %333, %295 : vector<8x1024xf32>
    %335 = vector.extract_strided_slice %166 {offsets = [32, 0], sizes = [8, 1024], strides = [1, 1]} : vector<64x1024xf32> to vector<8x1024xf32>
    %336 = arith.addf %334, %335 : vector<8x1024xf32>
    %337 = vector.extract_strided_slice %165 {offsets = [32, 0], sizes = [8, 1024], strides = [1, 1]} : vector<64x1024xf32> to vector<8x1024xf32>
    %338 = arith.mulf %336, %337 : vector<8x1024xf32>
    %339 = vector.extract_strided_slice %338 {offsets = [0, 0], sizes = [8, 64], strides = [1, 1]} : vector<8x1024xf32> to vector<8x64xf32>
    %340 = vector.extract_strided_slice %338 {offsets = [0, 64], sizes = [8, 64], strides = [1, 1]} : vector<8x1024xf32> to vector<8x64xf32>
    %341 = arith.addf %339, %340 : vector<8x64xf32>
    %342 = vector.extract_strided_slice %338 {offsets = [0, 128], sizes = [8, 64], strides = [1, 1]} : vector<8x1024xf32> to vector<8x64xf32>
    %343 = arith.addf %341, %342 : vector<8x64xf32>
    %344 = vector.extract_strided_slice %338 {offsets = [0, 192], sizes = [8, 64], strides = [1, 1]} : vector<8x1024xf32> to vector<8x64xf32>
    %345 = arith.addf %343, %344 : vector<8x64xf32>
    %346 = vector.extract_strided_slice %338 {offsets = [0, 256], sizes = [8, 64], strides = [1, 1]} : vector<8x1024xf32> to vector<8x64xf32>
    %347 = arith.addf %345, %346 : vector<8x64xf32>
    %348 = vector.extract_strided_slice %338 {offsets = [0, 320], sizes = [8, 64], strides = [1, 1]} : vector<8x1024xf32> to vector<8x64xf32>
    %349 = arith.addf %347, %348 : vector<8x64xf32>
    %350 = vector.extract_strided_slice %338 {offsets = [0, 384], sizes = [8, 64], strides = [1, 1]} : vector<8x1024xf32> to vector<8x64xf32>
    %351 = arith.addf %349, %350 : vector<8x64xf32>
    %352 = vector.extract_strided_slice %338 {offsets = [0, 448], sizes = [8, 64], strides = [1, 1]} : vector<8x1024xf32> to vector<8x64xf32>
    %353 = arith.addf %351, %352 : vector<8x64xf32>
    %354 = vector.extract_strided_slice %338 {offsets = [0, 512], sizes = [8, 64], strides = [1, 1]} : vector<8x1024xf32> to vector<8x64xf32>
    %355 = arith.addf %353, %354 : vector<8x64xf32>
    %356 = vector.extract_strided_slice %338 {offsets = [0, 576], sizes = [8, 64], strides = [1, 1]} : vector<8x1024xf32> to vector<8x64xf32>
    %357 = arith.addf %355, %356 : vector<8x64xf32>
    %358 = vector.extract_strided_slice %338 {offsets = [0, 640], sizes = [8, 64], strides = [1, 1]} : vector<8x1024xf32> to vector<8x64xf32>
    %359 = arith.addf %357, %358 : vector<8x64xf32>
    %360 = vector.extract_strided_slice %338 {offsets = [0, 704], sizes = [8, 64], strides = [1, 1]} : vector<8x1024xf32> to vector<8x64xf32>
    %361 = arith.addf %359, %360 : vector<8x64xf32>
    %362 = vector.extract_strided_slice %338 {offsets = [0, 768], sizes = [8, 64], strides = [1, 1]} : vector<8x1024xf32> to vector<8x64xf32>
    %363 = arith.addf %361, %362 : vector<8x64xf32>
    %364 = vector.extract_strided_slice %338 {offsets = [0, 832], sizes = [8, 64], strides = [1, 1]} : vector<8x1024xf32> to vector<8x64xf32>
    %365 = arith.addf %363, %364 : vector<8x64xf32>
    %366 = vector.extract_strided_slice %338 {offsets = [0, 896], sizes = [8, 64], strides = [1, 1]} : vector<8x1024xf32> to vector<8x64xf32>
    %367 = arith.addf %365, %366 : vector<8x64xf32>
    %368 = vector.extract_strided_slice %338 {offsets = [0, 960], sizes = [8, 64], strides = [1, 1]} : vector<8x1024xf32> to vector<8x64xf32>
    %369 = arith.addf %367, %368 : vector<8x64xf32>
    %370 = vector.extract_strided_slice %40 {offsets = [32, 0], sizes = [8, 64], strides = [1, 1]} : vector<64x64xf32> to vector<8x64xf32>
    %371 = vector.broadcast %167 : vector<1x64xf32> to vector<8x64xf32>
    %372 = arith.mulf %370, %371 : vector<8x64xf32>
    %373 = arith.addf %369, %372 : vector<8x64xf32>
    %374 = vector.extract_strided_slice %67 {offsets = [40, 0], sizes = [8, 1024], strides = [1, 1]} : vector<64x1024xf32> to vector<8x1024xf32>
    %375 = arith.mulf %374, %336 : vector<8x1024xf32>
    %376 = vector.extract_strided_slice %166 {offsets = [40, 0], sizes = [8, 1024], strides = [1, 1]} : vector<64x1024xf32> to vector<8x1024xf32>
    %377 = arith.addf %375, %376 : vector<8x1024xf32>
    %378 = vector.extract_strided_slice %165 {offsets = [40, 0], sizes = [8, 1024], strides = [1, 1]} : vector<64x1024xf32> to vector<8x1024xf32>
    %379 = arith.mulf %377, %378 : vector<8x1024xf32>
    %380 = vector.extract_strided_slice %379 {offsets = [0, 0], sizes = [8, 64], strides = [1, 1]} : vector<8x1024xf32> to vector<8x64xf32>
    %381 = vector.extract_strided_slice %379 {offsets = [0, 64], sizes = [8, 64], strides = [1, 1]} : vector<8x1024xf32> to vector<8x64xf32>
    %382 = arith.addf %380, %381 : vector<8x64xf32>
    %383 = vector.extract_strided_slice %379 {offsets = [0, 128], sizes = [8, 64], strides = [1, 1]} : vector<8x1024xf32> to vector<8x64xf32>
    %384 = arith.addf %382, %383 : vector<8x64xf32>
    %385 = vector.extract_strided_slice %379 {offsets = [0, 192], sizes = [8, 64], strides = [1, 1]} : vector<8x1024xf32> to vector<8x64xf32>
    %386 = arith.addf %384, %385 : vector<8x64xf32>
    %387 = vector.extract_strided_slice %379 {offsets = [0, 256], sizes = [8, 64], strides = [1, 1]} : vector<8x1024xf32> to vector<8x64xf32>
    %388 = arith.addf %386, %387 : vector<8x64xf32>
    %389 = vector.extract_strided_slice %379 {offsets = [0, 320], sizes = [8, 64], strides = [1, 1]} : vector<8x1024xf32> to vector<8x64xf32>
    %390 = arith.addf %388, %389 : vector<8x64xf32>
    %391 = vector.extract_strided_slice %379 {offsets = [0, 384], sizes = [8, 64], strides = [1, 1]} : vector<8x1024xf32> to vector<8x64xf32>
    %392 = arith.addf %390, %391 : vector<8x64xf32>
    %393 = vector.extract_strided_slice %379 {offsets = [0, 448], sizes = [8, 64], strides = [1, 1]} : vector<8x1024xf32> to vector<8x64xf32>
    %394 = arith.addf %392, %393 : vector<8x64xf32>
    %395 = vector.extract_strided_slice %379 {offsets = [0, 512], sizes = [8, 64], strides = [1, 1]} : vector<8x1024xf32> to vector<8x64xf32>
    %396 = arith.addf %394, %395 : vector<8x64xf32>
    %397 = vector.extract_strided_slice %379 {offsets = [0, 576], sizes = [8, 64], strides = [1, 1]} : vector<8x1024xf32> to vector<8x64xf32>
    %398 = arith.addf %396, %397 : vector<8x64xf32>
    %399 = vector.extract_strided_slice %379 {offsets = [0, 640], sizes = [8, 64], strides = [1, 1]} : vector<8x1024xf32> to vector<8x64xf32>
    %400 = arith.addf %398, %399 : vector<8x64xf32>
    %401 = vector.extract_strided_slice %379 {offsets = [0, 704], sizes = [8, 64], strides = [1, 1]} : vector<8x1024xf32> to vector<8x64xf32>
    %402 = arith.addf %400, %401 : vector<8x64xf32>
    %403 = vector.extract_strided_slice %379 {offsets = [0, 768], sizes = [8, 64], strides = [1, 1]} : vector<8x1024xf32> to vector<8x64xf32>
    %404 = arith.addf %402, %403 : vector<8x64xf32>
    %405 = vector.extract_strided_slice %379 {offsets = [0, 832], sizes = [8, 64], strides = [1, 1]} : vector<8x1024xf32> to vector<8x64xf32>
    %406 = arith.addf %404, %405 : vector<8x64xf32>
    %407 = vector.extract_strided_slice %379 {offsets = [0, 896], sizes = [8, 64], strides = [1, 1]} : vector<8x1024xf32> to vector<8x64xf32>
    %408 = arith.addf %406, %407 : vector<8x64xf32>
    %409 = vector.extract_strided_slice %379 {offsets = [0, 960], sizes = [8, 64], strides = [1, 1]} : vector<8x1024xf32> to vector<8x64xf32>
    %410 = arith.addf %408, %409 : vector<8x64xf32>
    %411 = vector.extract_strided_slice %40 {offsets = [40, 0], sizes = [8, 64], strides = [1, 1]} : vector<64x64xf32> to vector<8x64xf32>
    %412 = vector.broadcast %167 : vector<1x64xf32> to vector<8x64xf32>
    %413 = arith.mulf %411, %412 : vector<8x64xf32>
    %414 = arith.addf %410, %413 : vector<8x64xf32>
    %415 = vector.extract_strided_slice %67 {offsets = [48, 0], sizes = [8, 1024], strides = [1, 1]} : vector<64x1024xf32> to vector<8x1024xf32>
    %416 = arith.mulf %415, %377 : vector<8x1024xf32>
    %417 = vector.extract_strided_slice %166 {offsets = [48, 0], sizes = [8, 1024], strides = [1, 1]} : vector<64x1024xf32> to vector<8x1024xf32>
    %418 = arith.addf %416, %417 : vector<8x1024xf32>
    %419 = vector.extract_strided_slice %165 {offsets = [48, 0], sizes = [8, 1024], strides = [1, 1]} : vector<64x1024xf32> to vector<8x1024xf32>
    %420 = arith.mulf %418, %419 : vector<8x1024xf32>
    %421 = vector.extract_strided_slice %420 {offsets = [0, 0], sizes = [8, 64], strides = [1, 1]} : vector<8x1024xf32> to vector<8x64xf32>
    %422 = vector.extract_strided_slice %420 {offsets = [0, 64], sizes = [8, 64], strides = [1, 1]} : vector<8x1024xf32> to vector<8x64xf32>
    %423 = arith.addf %421, %422 : vector<8x64xf32>
    %424 = vector.extract_strided_slice %420 {offsets = [0, 128], sizes = [8, 64], strides = [1, 1]} : vector<8x1024xf32> to vector<8x64xf32>
    %425 = arith.addf %423, %424 : vector<8x64xf32>
    %426 = vector.extract_strided_slice %420 {offsets = [0, 192], sizes = [8, 64], strides = [1, 1]} : vector<8x1024xf32> to vector<8x64xf32>
    %427 = arith.addf %425, %426 : vector<8x64xf32>
    %428 = vector.extract_strided_slice %420 {offsets = [0, 256], sizes = [8, 64], strides = [1, 1]} : vector<8x1024xf32> to vector<8x64xf32>
    %429 = arith.addf %427, %428 : vector<8x64xf32>
    %430 = vector.extract_strided_slice %420 {offsets = [0, 320], sizes = [8, 64], strides = [1, 1]} : vector<8x1024xf32> to vector<8x64xf32>
    %431 = arith.addf %429, %430 : vector<8x64xf32>
    %432 = vector.extract_strided_slice %420 {offsets = [0, 384], sizes = [8, 64], strides = [1, 1]} : vector<8x1024xf32> to vector<8x64xf32>
    %433 = arith.addf %431, %432 : vector<8x64xf32>
    %434 = vector.extract_strided_slice %420 {offsets = [0, 448], sizes = [8, 64], strides = [1, 1]} : vector<8x1024xf32> to vector<8x64xf32>
    %435 = arith.addf %433, %434 : vector<8x64xf32>
    %436 = vector.extract_strided_slice %420 {offsets = [0, 512], sizes = [8, 64], strides = [1, 1]} : vector<8x1024xf32> to vector<8x64xf32>
    %437 = arith.addf %435, %436 : vector<8x64xf32>
    %438 = vector.extract_strided_slice %420 {offsets = [0, 576], sizes = [8, 64], strides = [1, 1]} : vector<8x1024xf32> to vector<8x64xf32>
    %439 = arith.addf %437, %438 : vector<8x64xf32>
    %440 = vector.extract_strided_slice %420 {offsets = [0, 640], sizes = [8, 64], strides = [1, 1]} : vector<8x1024xf32> to vector<8x64xf32>
    %441 = arith.addf %439, %440 : vector<8x64xf32>
    %442 = vector.extract_strided_slice %420 {offsets = [0, 704], sizes = [8, 64], strides = [1, 1]} : vector<8x1024xf32> to vector<8x64xf32>
    %443 = arith.addf %441, %442 : vector<8x64xf32>
    %444 = vector.extract_strided_slice %420 {offsets = [0, 768], sizes = [8, 64], strides = [1, 1]} : vector<8x1024xf32> to vector<8x64xf32>
    %445 = arith.addf %443, %444 : vector<8x64xf32>
    %446 = vector.extract_strided_slice %420 {offsets = [0, 832], sizes = [8, 64], strides = [1, 1]} : vector<8x1024xf32> to vector<8x64xf32>
    %447 = arith.addf %445, %446 : vector<8x64xf32>
    %448 = vector.extract_strided_slice %420 {offsets = [0, 896], sizes = [8, 64], strides = [1, 1]} : vector<8x1024xf32> to vector<8x64xf32>
    %449 = arith.addf %447, %448 : vector<8x64xf32>
    %450 = vector.extract_strided_slice %420 {offsets = [0, 960], sizes = [8, 64], strides = [1, 1]} : vector<8x1024xf32> to vector<8x64xf32>
    %451 = arith.addf %449, %450 : vector<8x64xf32>
    %452 = vector.extract_strided_slice %40 {offsets = [48, 0], sizes = [8, 64], strides = [1, 1]} : vector<64x64xf32> to vector<8x64xf32>
    %453 = vector.broadcast %167 : vector<1x64xf32> to vector<8x64xf32>
    %454 = arith.mulf %452, %453 : vector<8x64xf32>
    %455 = arith.addf %451, %454 : vector<8x64xf32>
    %456 = vector.extract_strided_slice %67 {offsets = [56, 0], sizes = [8, 1024], strides = [1, 1]} : vector<64x1024xf32> to vector<8x1024xf32>
    %457 = arith.mulf %456, %418 : vector<8x1024xf32>
    %458 = vector.extract_strided_slice %166 {offsets = [56, 0], sizes = [8, 1024], strides = [1, 1]} : vector<64x1024xf32> to vector<8x1024xf32>
    %459 = arith.addf %457, %458 : vector<8x1024xf32>
    %460 = vector.extract_strided_slice %165 {offsets = [56, 0], sizes = [8, 1024], strides = [1, 1]} : vector<64x1024xf32> to vector<8x1024xf32>
    %461 = arith.mulf %459, %460 : vector<8x1024xf32>
    %462 = vector.extract_strided_slice %461 {offsets = [0, 0], sizes = [8, 64], strides = [1, 1]} : vector<8x1024xf32> to vector<8x64xf32>
    %463 = vector.extract_strided_slice %461 {offsets = [0, 64], sizes = [8, 64], strides = [1, 1]} : vector<8x1024xf32> to vector<8x64xf32>
    %464 = arith.addf %462, %463 : vector<8x64xf32>
    %465 = vector.extract_strided_slice %461 {offsets = [0, 128], sizes = [8, 64], strides = [1, 1]} : vector<8x1024xf32> to vector<8x64xf32>
    %466 = arith.addf %464, %465 : vector<8x64xf32>
    %467 = vector.extract_strided_slice %461 {offsets = [0, 192], sizes = [8, 64], strides = [1, 1]} : vector<8x1024xf32> to vector<8x64xf32>
    %468 = arith.addf %466, %467 : vector<8x64xf32>
    %469 = vector.extract_strided_slice %461 {offsets = [0, 256], sizes = [8, 64], strides = [1, 1]} : vector<8x1024xf32> to vector<8x64xf32>
    %470 = arith.addf %468, %469 : vector<8x64xf32>
    %471 = vector.extract_strided_slice %461 {offsets = [0, 320], sizes = [8, 64], strides = [1, 1]} : vector<8x1024xf32> to vector<8x64xf32>
    %472 = arith.addf %470, %471 : vector<8x64xf32>
    %473 = vector.extract_strided_slice %461 {offsets = [0, 384], sizes = [8, 64], strides = [1, 1]} : vector<8x1024xf32> to vector<8x64xf32>
    %474 = arith.addf %472, %473 : vector<8x64xf32>
    %475 = vector.extract_strided_slice %461 {offsets = [0, 448], sizes = [8, 64], strides = [1, 1]} : vector<8x1024xf32> to vector<8x64xf32>
    %476 = arith.addf %474, %475 : vector<8x64xf32>
    %477 = vector.extract_strided_slice %461 {offsets = [0, 512], sizes = [8, 64], strides = [1, 1]} : vector<8x1024xf32> to vector<8x64xf32>
    %478 = arith.addf %476, %477 : vector<8x64xf32>
    %479 = vector.extract_strided_slice %461 {offsets = [0, 576], sizes = [8, 64], strides = [1, 1]} : vector<8x1024xf32> to vector<8x64xf32>
    %480 = arith.addf %478, %479 : vector<8x64xf32>
    %481 = vector.extract_strided_slice %461 {offsets = [0, 640], sizes = [8, 64], strides = [1, 1]} : vector<8x1024xf32> to vector<8x64xf32>
    %482 = arith.addf %480, %481 : vector<8x64xf32>
    %483 = vector.extract_strided_slice %461 {offsets = [0, 704], sizes = [8, 64], strides = [1, 1]} : vector<8x1024xf32> to vector<8x64xf32>
    %484 = arith.addf %482, %483 : vector<8x64xf32>
    %485 = vector.extract_strided_slice %461 {offsets = [0, 768], sizes = [8, 64], strides = [1, 1]} : vector<8x1024xf32> to vector<8x64xf32>
    %486 = arith.addf %484, %485 : vector<8x64xf32>
    %487 = vector.extract_strided_slice %461 {offsets = [0, 832], sizes = [8, 64], strides = [1, 1]} : vector<8x1024xf32> to vector<8x64xf32>
    %488 = arith.addf %486, %487 : vector<8x64xf32>
    %489 = vector.extract_strided_slice %461 {offsets = [0, 896], sizes = [8, 64], strides = [1, 1]} : vector<8x1024xf32> to vector<8x64xf32>
    %490 = arith.addf %488, %489 : vector<8x64xf32>
    %491 = vector.extract_strided_slice %461 {offsets = [0, 960], sizes = [8, 64], strides = [1, 1]} : vector<8x1024xf32> to vector<8x64xf32>
    %492 = arith.addf %490, %491 : vector<8x64xf32>
    %493 = vector.extract_strided_slice %40 {offsets = [56, 0], sizes = [8, 64], strides = [1, 1]} : vector<64x64xf32> to vector<8x64xf32>
    %494 = vector.broadcast %167 : vector<1x64xf32> to vector<8x64xf32>
    %495 = arith.mulf %493, %494 : vector<8x64xf32>
    %496 = arith.addf %492, %495 : vector<8x64xf32>
    %497 = tpu.concatenate %209, %250, %291, %332, %373, %414, %455, %496 in 0 : vector<8x64xf32>, vector<8x64xf32>, vector<8x64xf32>, vector<8x64xf32>, vector<8x64xf32>, vector<8x64xf32>, vector<8x64xf32>, vector<8x64xf32> -> vector<64x64xf32>
    %498 = arith.negf %7 : vector<64x64xf32>
    %499 = math.exp %498 : vector<64x64xf32>
    %cst_31 = arith.constant 1.000000e+00 : f32
    %500 = vector.broadcast %cst_31 : f32 to vector<64x64xf32>
    %501 = arith.addf %500, %499 : vector<64x64xf32>
    %502 = arith.divf %500, %501 : vector<64x64xf32>
    %503 = arith.mulf %7, %502 : vector<64x64xf32>
    %504 = arith.mulf %497, %503 : vector<64x64xf32>
    %505 = arith.truncf %504 : vector<64x64xf32> to vector<64x64xbf16>
    %c0_32 = arith.constant 0 : index
    %c0_33 = arith.constant 0 : index
    %506 = vector.load %arg10[%c0_32, %c0_33] : memref<64x32xbf16, #tpu.memory_space<vmem>>, vector<64x32xbf16>
    %cst_34 = arith.constant dense<0.000000e+00> : vector<64x32xf32>
    %507 = tpu.matmul %505, %506, %cst_34 {dimension_numbers = #tpu.dot_dimension_numbers<[1], [0], [0], [1], [0, 0, 1, 1], [], []>} : vector<64x64xbf16>, vector<64x32xbf16>, vector<64x32xf32> -> vector<64x32xf32>
    %508 = vector.shape_cast %507 : vector<64x32xf32> to vector<8x8x32xf32>
    %c0_35 = arith.constant 0 : index
    %c0_36 = arith.constant 0 : index
    %c0_37 = arith.constant 0 : index
    %c0_38 = arith.constant 0 : index
    %509 = vector.load %arg11[%c0_35, %c0_36, %c0_37, %c0_38] : memref<1x8x8x32xf32, #tpu.memory_space<vmem>>, vector<1x8x8x32xf32>
    %510 = vector.shape_cast %509 : vector<1x8x8x32xf32> to vector<8x8x32xf32>
    %511 = vector.shape_cast %508 : vector<8x8x32xf32> to vector<1x8x8x32xf32>
    tpu.vector_store %arg11[%c0_35, %c0_36, %c0_37, %c0_38], %511 {strides = array<i32>} : memref<1x8x8x32xf32, #tpu.memory_space<vmem>>, vector<1x8x8x32xf32>,
    return
  }
  func.func @transform_0(%arg0: i32) -> (i32, i32, i32, i32) {
    %c0_i32 = arith.constant 0 : i32
    %c0_i32_0 = arith.constant 0 : i32
    %c0_i32_1 = arith.constant 0 : i32
    %c0_i32_2 = arith.constant 0 : i32
    return %arg0, %c0_i32, %c0_i32_0, %c0_i32_1 : i32, i32, i32, i32
  }
  func.func @transform_1(%arg0: i32) -> (i32, i32) {
    %c0_i32 = arith.constant 0 : i32
    %c0_i32_0 = arith.constant 0 : i32
    %c0_i32_1 = arith.constant 0 : i32
    return %c0_i32, %c0_i32_0 : i32, i32
  }
  func.func @transform_2(%arg0: i32) -> (i32, i32) {
    %c0_i32 = arith.constant 0 : i32
    %c0_i32_0 = arith.constant 0 : i32
    %c0_i32_1 = arith.constant 0 : i32
    return %c0_i32, %c0_i32_0 : i32, i32
  }
  func.func @transform_3(%arg0: i32) -> (i32, i32) {
    %c0_i32 = arith.constant 0 : i32
    %c0_i32_0 = arith.constant 0 : i32
    %c0_i32_1 = arith.constant 0 : i32
    return %c0_i32, %c0_i32_0 : i32, i32
  }
  func.func @transform_4(%arg0: i32) -> (i32, i32) {
    %c0_i32 = arith.constant 0 : i32
    %c0_i32_0 = arith.constant 0 : i32
    %c0_i32_1 = arith.constant 0 : i32
    return %c0_i32, %c0_i32_0 : i32, i32
  }
  func.func @transform_5(%arg0: i32) -> (i32, i32) {
    %c0_i32 = arith.constant 0 : i32
    %c0_i32_0 = arith.constant 0 : i32
    %c0_i32_1 = arith.constant 0 : i32
    return %c0_i32, %c0_i32_0 : i32, i32
  }
  func.func @transform_6(%arg0: i32) -> (i32, i32) {
    %c0_i32 = arith.constant 0 : i32
    %c0_i32_0 = arith.constant 0 : i32
    %c0_i32_1 = arith.constant 0 : i32
    return %c0_i32, %c0_i32_0 : i32, i32
  }
  func.func @transform_7(%arg0: i32) -> (i32, i32) {
    %c0_i32 = arith.constant 0 : i32
    %c0_i32_0 = arith.constant 0 : i32
    %c0_i32_1 = arith.constant 0 : i32
    return %c0_i32, %c0_i32_0 : i32, i32
  }
  func.func @transform_8(%arg0: i32) -> (i32, i32) {
    %c0_i32 = arith.constant 0 : i32
    %c0_i32_0 = arith.constant 0 : i32
    %c0_i32_1 = arith.constant 0 : i32
    return %c0_i32, %c0_i32_0 : i32, i32
  }
  func.func @transform_9(%arg0: i32) -> (i32, i32) {
    %c0_i32 = arith.constant 0 : i32
    %c0_i32_0 = arith.constant 0 : i32
    %c0_i32_1 = arith.constant 0 : i32
    return %c0_i32, %c0_i32_0 : i32, i32
  }
  func.func @transform_10(%arg0: i32) -> (i32, i32, i32, i32) {
    %c0_i32 = arith.constant 0 : i32
    %c0_i32_0 = arith.constant 0 : i32
    %c0_i32_1 = arith.constant 0 : i32
    %c0_i32_2 = arith.constant 0 : i32
    return %arg0, %c0_i32, %c0_i32_0, %c0_i32_1 : i32, i32, i32, i32
  }
}

</mosaic_0001>

<llo_original>
// kernel: mamba_scale_block.3
$region0: #{mamba_scale_block.3}
  #allocation0 [shape = 'u32[]', space=smem, size = 0x4, offset = 0x4, fixed_abs, tag = 'smem constant byte address 0x4 - core index']
  #allocation1 [shape = 'u32[72,128]{1,0:T(1,128)}', space=vmem, size = 0x9000, scoped, tag = 'internal scratch']
  %s0 = inlined_call_operand.vmem [shape: f32[128,64], index: 0, kind: input, shape index: {}]
  %s1 = inlined_call_operand.vmem [shape: f32[1,64], index: 1, kind: input, shape index: {}]
  %s2 = inlined_call_operand.vmem [shape: f32[1,64], index: 2, kind: input, shape index: {}]
  %s3 = inlined_call_operand.vmem [shape: f32[64,32], index: 3, kind: input, shape index: {}]
  %s4 = inlined_call_operand.vmem [shape: f32[1,32], index: 4, kind: input, shape index: {}]
  %s5 = inlined_call_operand.vmem [shape: f32[128,32], index: 5, kind: output, shape index: {}]
  %s6 = sld [smem:[#allocation0]]
  $region30: #{mamba_scale_block.3} parent=0
    _
  %s8 = ssub.s32 1, %s6
  %s9 = scalar_select 0, %s8, %s6
  // Predicated region
  $region2: #{mamba_scale_block.3} parent=0 // pred_check
    _
  $region3: #{mamba_scale_block.3} parent=0 // pred_check_branch
    %11 = sbr.rel (0) target = $region5
  $region4: #{mamba_scale_block.3} parent=0 // pred_region
    _
  $region5: #{mamba_scale_block.3} parent=0 // pred_fallthru
    _
  // Predicated region
  $region6: #{mamba_scale_block.3} parent=0 // pred_check
    _
  $region7: #{mamba_scale_block.3} parent=0 // pred_check_branch
    %13 = sbr.rel (0) target = $region9
  $region8: #{mamba_scale_block.3} parent=0 // pred_region
    _
  $region9: #{mamba_scale_block.3} parent=0 // pred_fallthru
    _
  // Predicated region
  $region10: #{mamba_scale_block.3} parent=0 // pred_check
    _
  $region11: #{mamba_scale_block.3} parent=0 // pred_check_branch
    %15 = sbr.rel (0) target = $region13
  $region12: #{mamba_scale_block.3} parent=0 // pred_region
    _
  $region13: #{mamba_scale_block.3} parent=0 // pred_fallthru
    _
  // Predicated region
  $region14: #{mamba_scale_block.3} parent=0 // pred_check
    _
  $region15: #{mamba_scale_block.3} parent=0 // pred_check_branch
    %17 = sbr.rel (0) target = $region17
  $region16: #{mamba_scale_block.3} parent=0 // pred_region
    _
  $region17: #{mamba_scale_block.3} parent=0 // pred_fallthru
    _
  // Predicated region
  $region18: #{mamba_scale_block.3} parent=0 // pred_check
    _
  $region19: #{mamba_scale_block.3} parent=0 // pred_check_branch
    %19 = sbr.rel (0) target = $region21
  $region20: #{mamba_scale_block.3} parent=0 // pred_region
    _
  $region21: #{mamba_scale_block.3} parent=0 // pred_fallthru
    _
  %v20 = vld [vmem:[%s0] sm:$0xff]
  %v21 = vld [vmem:[%s0 + $0x8] sm:$0xff]
  %v22 = vld [vmem:[%s0 + $0x10] sm:$0xff]
  %v23 = vld [vmem:[%s0 + $0x18] sm:$0xff]
  %v24 = vld [vmem:[%s0 + $0x20] sm:$0xff]
  %v25 = vld [vmem:[%s0 + $0x28] sm:$0xff]
  %v26 = vld [vmem:[%s0 + $0x30] sm:$0xff]
  %v27 = vld [vmem:[%s0 + $0x38] sm:$0xff]
  %v28 = vld [vmem:[%s0 + $0x40] sm:$0xff]
  %v29 = vld [vmem:[%s0 + $0x48] sm:$0xff]
  %v30 = vld [vmem:[%s0 + $0x50] sm:$0xff]
  %v31 = vld [vmem:[%s0 + $0x58] sm:$0xff]
  %v32 = vld [vmem:[%s0 + $0x60] sm:$0xff]
  %v33 = vld [vmem:[%s0 + $0x68] sm:$0xff]
  %v34 = vld [vmem:[%s0 + $0x70] sm:$0xff]
  %v35 = vld [vmem:[%s0 + $0x78] sm:$0xff]
  %vm36 = vcmask 523264
  %v37 = vsel %vm36, %v20, 0.0
  %38 = vadd.xlane.f32.xlu0 %v37
  %v39 = vpop.xlane.xlu0 %38
  %v40 = vsel %vm36, %v21, 0.0
  %41 = vadd.xlane.f32.xlu0 %v40
  %v42 = vpop.xlane.xlu0 %41
  %v43 = vsel %vm36, %v22, 0.0
  %44 = vadd.xlane.f32.xlu0 %v43
  %v45 = vpop.xlane.xlu0 %44
  %v46 = vsel %vm36, %v23, 0.0
  %47 = vadd.xlane.f32.xlu0 %v46
  %v48 = vpop.xlane.xlu0 %47
  %v49 = vsel %vm36, %v24, 0.0
  %50 = vadd.xlane.f32.xlu0 %v49
  %v51 = vpop.xlane.xlu0 %50
  %v52 = vsel %vm36, %v25, 0.0
  %53 = vadd.xlane.f32.xlu0 %v52
  %v54 = vpop.xlane.xlu0 %53
  %v55 = vsel %vm36, %v26, 0.0
  %56 = vadd.xlane.f32.xlu0 %v55
  %v57 = vpop.xlane.xlu0 %56
  %v58 = vsel %vm36, %v27, 0.0
  %59 = vadd.xlane.f32.xlu0 %v58
  %v60 = vpop.xlane.xlu0 %59
  %v61 = vsel %vm36, %v28, 0.0
  %62 = vadd.xlane.f32.xlu0 %v61
  %v63 = vpop.xlane.xlu0 %62
  %v64 = vsel %vm36, %v29, 0.0
  %65 = vadd.xlane.f32.xlu0 %v64
  %v66 = vpop.xlane.xlu0 %65
  %v67 = vsel %vm36, %v30, 0.0
  %68 = vadd.xlane.f32.xlu0 %v67
  %v69 = vpop.xlane.xlu0 %68
  %v70 = vsel %vm36, %v31, 0.0
  %71 = vadd.xlane.f32.xlu0 %v70
  %v72 = vpop.xlane.xlu0 %71
  %v73 = vsel %vm36, %v32, 0.0
  %74 = vadd.xlane.f32.xlu0 %v73
  %v75 = vpop.xlane.xlu0 %74
  %v76 = vsel %vm36, %v33, 0.0
  %77 = vadd.xlane.f32.xlu0 %v76
  %v78 = vpop.xlane.xlu0 %77
  %v79 = vsel %vm36, %v34, 0.0
  %80 = vadd.xlane.f32.xlu0 %v79
  %v81 = vpop.xlane.xlu0 %80
  %v82 = vsel %vm36, %v35, 0.0
  %83 = vadd.xlane.f32.xlu0 %v82
  %v84 = vpop.xlane.xlu0 %83
  %v85 = vrcp.pop 64.0
  %v86 = vmul.f32 64.0, %v85
  %v87 = vsub.f32 1.0, %v86
  %v88 = vmul.f32 %v85, %v87
  %v89 = vadd.f32 %v85, %v88
  %vm90 = vweird.f32 %v85
  %v91 = vsel %vm90, %v85, %v89
  %v92 = vmul.f32 %v39, %v91
  %v93 = vmul.f32 %v42, %v91
  %v94 = vmul.f32 %v45, %v91
  %v95 = vmul.f32 %v48, %v91
  %v96 = vmul.f32 %v51, %v91
  %v97 = vmul.f32 %v54, %v91
  %v98 = vmul.f32 %v57, %v91
  %v99 = vmul.f32 %v60, %v91
  %v100 = vmul.f32 %v63, %v91
  %v101 = vmul.f32 %v66, %v91
  %v102 = vmul.f32 %v69, %v91
  %v103 = vmul.f32 %v72, %v91
  %v104 = vmul.f32 %v75, %v91
  %v105 = vmul.f32 %v78, %v91
  %v106 = vmul.f32 %v81, %v91
  %v107 = vmul.f32 %v84, %v91
  %v108 = vsub.f32 %v20, %v92
  %v109 = vsub.f32 %v21, %v93
  %v110 = vsub.f32 %v22, %v94
  %v111 = vsub.f32 %v23, %v95
  %v112 = vsub.f32 %v24, %v96
  %v113 = vsub.f32 %v25, %v97
  %v114 = vsub.f32 %v26, %v98
  %v115 = vsub.f32 %v27, %v99
  %v116 = vsub.f32 %v28, %v100
  %v117 = vsub.f32 %v29, %v101
  %v118 = vsub.f32 %v30, %v102
  %v119 = vsub.f32 %v31, %v103
  %v120 = vsub.f32 %v32, %v104
  %v121 = vsub.f32 %v33, %v105
  %v122 = vsub.f32 %v34, %v106
  %v123 = vsub.f32 %v35, %v107
  %v124 = vmul.f32 %v108, %v108
  %v125 = vmul.f32 %v109, %v109
  %v126 = vmul.f32 %v110, %v110
  %v127 = vmul.f32 %v111, %v111
  %v128 = vmul.f32 %v112, %v112
  %v129 = vmul.f32 %v113, %v113
  %v130 = vmul.f32 %v114, %v114
  %v131 = vmul.f32 %v115, %v115
  %v132 = vmul.f32 %v116, %v116
  %v133 = vmul.f32 %v117, %v117
  %v134 = vmul.f32 %v118, %v118
  %v135 = vmul.f32 %v119, %v119
  %v136 = vmul.f32 %v120, %v120
  %v137 = vmul.f32 %v121, %v121
  %v138 = vmul.f32 %v122, %v122
  %v139 = vmul.f32 %v123, %v123
  %v140 = vsel %vm36, %v124, 0.0
  %141 = vadd.xlane.f32.xlu0 %v140
  %v142 = vpop.xlane.xlu0 %141
  %v143 = vsel %vm36, %v125, 0.0
  %144 = vadd.xlane.f32.xlu0 %v143
  %v145 = vpop.xlane.xlu0 %144
  %v146 = vsel %vm36, %v126, 0.0
  %147 = vadd.xlane.f32.xlu0 %v146
  %v148 = vpop.xlane.xlu0 %147
  %v149 = vsel %vm36, %v127, 0.0
  %150 = vadd.xlane.f32.xlu0 %v149
  %v151 = vpop.xlane.xlu0 %150
  %v152 = vsel %vm36, %v128, 0.0
  %153 = vadd.xlane.f32.xlu0 %v152
  %v154 = vpop.xlane.xlu0 %153
  %v155 = vsel %vm36, %v129, 0.0
  %156 = vadd.xlane.f32.xlu0 %v155
  %v157 = vpop.xlane.xlu0 %156
  %v158 = vsel %vm36, %v130, 0.0
  %159 = vadd.xlane.f32.xlu0 %v158
  %v160 = vpop.xlane.xlu0 %159
  %v161 = vsel %vm36, %v131, 0.0
  %162 = vadd.xlane.f32.xlu0 %v161
  %v163 = vpop.xlane.xlu0 %162
  %v164 = vsel %vm36, %v132, 0.0
  %165 = vadd.xlane.f32.xlu0 %v164
  %v166 = vpop.xlane.xlu0 %165
  %v167 = vsel %vm36, %v133, 0.0
  %168 = vadd.xlane.f32.xlu0 %v167
  %v169 = vpop.xlane.xlu0 %168
  %v170 = vsel %vm36, %v134, 0.0
  %171 = vadd.xlane.f32.xlu0 %v170
  %v172 = vpop.xlane.xlu0 %171
  %v173 = vsel %vm36, %v135, 0.0
  %174 = vadd.xlane.f32.xlu0 %v173
  %v175 = vpop.xlane.xlu0 %174
  %v176 = vsel %vm36, %v136, 0.0
  %177 = vadd.xlane.f32.xlu0 %v176
  %v178 = vpop.xlane.xlu0 %177
  %v179 = vsel %vm36, %v137, 0.0
  %180 = vadd.xlane.f32.xlu0 %v179
  %v181 = vpop.xlane.xlu0 %180
  %v182 = vsel %vm36, %v138, 0.0
  %183 = vadd.xlane.f32.xlu0 %v182
  %v184 = vpop.xlane.xlu0 %183
  %v185 = vsel %vm36, %v139, 0.0
  %186 = vadd.xlane.f32.xlu0 %v185
  %v187 = vpop.xlane.xlu0 %186
  %v188 = vmul.f32 %v142, %v91
  %v189 = vmul.f32 %v145, %v91
  %v190 = vmul.f32 %v148, %v91
  %v191 = vmul.f32 %v151, %v91
  %v192 = vmul.f32 %v154, %v91
  %v193 = vmul.f32 %v157, %v91
  %v194 = vmul.f32 %v160, %v91
  %v195 = vmul.f32 %v163, %v91
  %v196 = vmul.f32 %v166, %v91
  %v197 = vmul.f32 %v169, %v91
  %v198 = vmul.f32 %v172, %v91
  %v199 = vmul.f32 %v175, %v91
  %v200 = vmul.f32 %v178, %v91
  %v201 = vmul.f32 %v181, %v91
  %v202 = vmul.f32 %v184, %v91
  %v203 = vmul.f32 %v187, %v91
  %v204 = vadd.f32 %v188, 1e-05
  %v205 = vadd.f32 %v189, 1e-05
  %v206 = vadd.f32 %v190, 1e-05
  %v207 = vadd.f32 %v191, 1e-05
  %v208 = vadd.f32 %v192, 1e-05
  %v209 = vadd.f32 %v193, 1e-05
  %v210 = vadd.f32 %v194, 1e-05
  %v211 = vadd.f32 %v195, 1e-05
  %v212 = vadd.f32 %v196, 1e-05
  %v213 = vadd.f32 %v197, 1e-05
  %v214 = vadd.f32 %v198, 1e-05
  %v215 = vadd.f32 %v199, 1e-05
  %v216 = vadd.f32 %v200, 1e-05
  %v217 = vadd.f32 %v201, 1e-05
  %v218 = vadd.f32 %v202, 1e-05
  %v219 = vadd.f32 %v203, 1e-05
  %v220 = vrsqrt.pop %v204
  %v221 = vmul.f32 %v220, %v204
  %v222 = vmul.f32 %v221, %v220
  %v223 = vmul.f32 0.5, %v222
  %v224 = vsub.f32 1.5, %v223
  %v225 = vmul.f32 %v220, %v224
  %vm226 = vweird.f32 %v204
  %vm227 = vweird.f32 %v220
  %vm228 = vmor %vm226, %vm227
  %v229 = vsel %vm228, %v220, %v225
  %v230 = vrsqrt.pop %v205
  %v231 = vmul.f32 %v230, %v205
  %v232 = vmul.f32 %v231, %v230
  %v233 = vmul.f32 0.5, %v232
  %v234 = vsub.f32 1.5, %v233
  %v235 = vmul.f32 %v230, %v234
  %vm236 = vweird.f32 %v205
  %vm237 = vweird.f32 %v230
  %vm238 = vmor %vm236, %vm237
  %v239 = vsel %vm238, %v230, %v235
  %v240 = vrsqrt.pop %v206
  %v241 = vmul.f32 %v240, %v206
  %v242 = vmul.f32 %v241, %v240
  %v243 = vmul.f32 0.5, %v242
  %v244 = vsub.f32 1.5, %v243
  %v245 = vmul.f32 %v240, %v244
  %vm246 = vweird.f32 %v206
  %vm247 = vweird.f32 %v240
  %vm248 = vmor %vm246, %vm247
  %v249 = vsel %vm248, %v240, %v245
  %v250 = vrsqrt.pop %v207
  %v251 = vmul.f32 %v250, %v207
  %v252 = vmul.f32 %v251, %v250
  %v253 = vmul.f32 0.5, %v252
  %v254 = vsub.f32 1.5, %v253
  %v255 = vmul.f32 %v250, %v254
  %vm256 = vweird.f32 %v207
  %vm257 = vweird.f32 %v250
  %vm258 = vmor %vm256, %vm257
  %v259 = vsel %vm258, %v250, %v255
  %v260 = vrsqrt.pop %v208
  %v261 = vmul.f32 %v260, %v208
  %v262 = vmul.f32 %v261, %v260
  %v263 = vmul.f32 0.5, %v262
  %v264 = vsub.f32 1.5, %v263
  %v265 = vmul.f32 %v260, %v264
  %vm266 = vweird.f32 %v208
  %vm267 = vweird.f32 %v260
  %vm268 = vmor %vm266, %vm267
  %v269 = vsel %vm268, %v260, %v265
  %v270 = vrsqrt.pop %v209
  %v271 = vmul.f32 %v270, %v209
  %v272 = vmul.f32 %v271, %v270
  %v273 = vmul.f32 0.5, %v272
  %v274 = vsub.f32 1.5, %v273
  %v275 = vmul.f32 %v270, %v274
  %vm276 = vweird.f32 %v209
  %vm277 = vweird.f32 %v270
  %vm278 = vmor %vm276, %vm277
  %v279 = vsel %vm278, %v270, %v275
  %v280 = vrsqrt.pop %v210
  %v281 = vmul.f32 %v280, %v210
  %v282 = vmul.f32 %v281, %v280
  %v283 = vmul.f32 0.5, %v282
  %v284 = vsub.f32 1.5, %v283
  %v285 = vmul.f32 %v280, %v284
  %vm286 = vweird.f32 %v210
  %vm287 = vweird.f32 %v280
  %vm288 = vmor %vm286, %vm287
  %v289 = vsel %vm288, %v280, %v285
  %v290 = vrsqrt.pop %v211
  %v291 = vmul.f32 %v290, %v211
  %v292 = vmul.f32 %v291, %v290
  %v293 = vmul.f32 0.5, %v292
  %v294 = vsub.f32 1.5, %v293
  %v295 = vmul.f32 %v290, %v294
  %vm296 = vweird.f32 %v211
  %vm297 = vweird.f32 %v290
  %vm298 = vmor %vm296, %vm297
  %v299 = vsel %vm298, %v290, %v295
  %v300 = vrsqrt.pop %v212
  %v301 = vmul.f32 %v300, %v212
  %v302 = vmul.f32 %v301, %v300
  %v303 = vmul.f32 0.5, %v302
  %v304 = vsub.f32 1.5, %v303
  %v305 = vmul.f32 %v300, %v304
  %vm306 = vweird.f32 %v212
  %vm307 = vweird.f32 %v300
  %vm308 = vmor %vm306, %vm307
  %v309 = vsel %vm308, %v300, %v305
  %v310 = vrsqrt.pop %v213
  %v311 = vmul.f32 %v310, %v213
  %v312 = vmul.f32 %v311, %v310
  %v313 = vmul.f32 0.5, %v312
  %v314 = vsub.f32 1.5, %v313
  %v315 = vmul.f32 %v310, %v314
  %vm316 = vweird.f32 %v213
  %vm317 = vweird.f32 %v310
  %vm318 = vmor %vm316, %vm317
  %v319 = vsel %vm318, %v310, %v315
  %v320 = vrsqrt.pop %v214
  %v321 = vmul.f32 %v320, %v214
  %v322 = vmul.f32 %v321, %v320
  %v323 = vmul.f32 0.5, %v322
  %v324 = vsub.f32 1.5, %v323
  %v325 = vmul.f32 %v320, %v324
  %vm326 = vweird.f32 %v214
  %vm327 = vweird.f32 %v320
  %vm328 = vmor %vm326, %vm327
  %v329 = vsel %vm328, %v320, %v325
  %v330 = vrsqrt.pop %v215
  %v331 = vmul.f32 %v330, %v215
  %v332 = vmul.f32 %v331, %v330
  %v333 = vmul.f32 0.5, %v332
  %v334 = vsub.f32 1.5, %v333
  %v335 = vmul.f32 %v330, %v334
  %vm336 = vweird.f32 %v215
  %vm337 = vweird.f32 %v330
  %vm338 = vmor %vm336, %vm337
  %v339 = vsel %vm338, %v330, %v335
  %v340 = vrsqrt.pop %v216
  %v341 = vmul.f32 %v340, %v216
  %v342 = vmul.f32 %v341, %v340
  %v343 = vmul.f32 0.5, %v342
  %v344 = vsub.f32 1.5, %v343
  %v345 = vmul.f32 %v340, %v344
  %vm346 = vweird.f32 %v216
  %vm347 = vweird.f32 %v340
  %vm348 = vmor %vm346, %vm347
  %v349 = vsel %vm348, %v340, %v345
  %v350 = vrsqrt.pop %v217
  %v351 = vmul.f32 %v350, %v217
  %v352 = vmul.f32 %v351, %v350
  %v353 = vmul.f32 0.5, %v352
  %v354 = vsub.f32 1.5, %v353
  %v355 = vmul.f32 %v350, %v354
  %vm356 = vweird.f32 %v217
  %vm357 = vweird.f32 %v350
  %vm358 = vmor %vm356, %vm357
  %v359 = vsel %vm358, %v350, %v355
  %v360 = vrsqrt.pop %v218
  %v361 = vmul.f32 %v360, %v218
  %v362 = vmul.f32 %v361, %v360
  %v363 = vmul.f32 0.5, %v362
  %v364 = vsub.f32 1.5, %v363
  %v365 = vmul.f32 %v360, %v364
  %vm366 = vweird.f32 %v218
  %vm367 = vweird.f32 %v360
  %vm368 = vmor %vm366, %vm367
  %v369 = vsel %vm368, %v360, %v365
  %v370 = vrsqrt.pop %v219
  %v371 = vmul.f32 %v370, %v219
  %v372 = vmul.f32 %v371, %v370
  %v373 = vmul.f32 0.5, %v372
  %v374 = vsub.f32 1.5, %v373
  %v375 = vmul.f32 %v370, %v374
  %vm376 = vweird.f32 %v219
  %vm377 = vweird.f32 %v370
  %vm378 = vmor %vm376, %vm377
  %v379 = vsel %vm378, %v370, %v375
  %v380 = vmul.f32 %v108, %v229
  %v381 = vmul.f32 %v109, %v239
  %v382 = vmul.f32 %v110, %v249
  %v383 = vmul.f32 %v111, %v259
  %v384 = vmul.f32 %v112, %v269
  %v385 = vmul.f32 %v113, %v279
  %v386 = vmul.f32 %v114, %v289
  %v387 = vmul.f32 %v115, %v299
  %v388 = vmul.f32 %v116, %v309
  %v389 = vmul.f32 %v117, %v319
  %v390 = vmul.f32 %v118, %v329
  %v391 = vmul.f32 %v119, %v339
  %v392 = vmul.f32 %v120, %v349
  %v393 = vmul.f32 %v121, %v359
  %v394 = vmul.f32 %v122, %v369
  %v395 = vmul.f32 %v123, %v379
  %v396 = vld [vmem:[%s1] sm:$0x1]
  %v398 = vperm.slane %v396, 0
  %v400 = vmul.f32 %v380, %v398
  %v401 = vmul.f32 %v381, %v398
  %v402 = vmul.f32 %v382, %v398
  %v403 = vmul.f32 %v383, %v398
  %v404 = vmul.f32 %v384, %v398
  %v405 = vmul.f32 %v385, %v398
  %v406 = vmul.f32 %v386, %v398
  %v407 = vmul.f32 %v387, %v398
  %v408 = vmul.f32 %v388, %v398
  %v409 = vmul.f32 %v389, %v398
  %v410 = vmul.f32 %v390, %v398
  %v411 = vmul.f32 %v391, %v398
  %v412 = vmul.f32 %v392, %v398
  %v413 = vmul.f32 %v393, %v398
  %v414 = vmul.f32 %v394, %v398
  %v415 = vmul.f32 %v395, %v398
  %v416 = vld [vmem:[%s2] sm:$0x1]
  %v418 = vperm.slane %v416, 0
  %v420 = vadd.f32 %v400, %v418
  %v421 = vadd.f32 %v401, %v418
  %v422 = vadd.f32 %v402, %v418
  %v423 = vadd.f32 %v403, %v418
  %v424 = vadd.f32 %v404, %v418
  %v425 = vadd.f32 %v405, %v418
  %v426 = vadd.f32 %v406, %v418
  %v427 = vadd.f32 %v407, %v418
  %v428 = vadd.f32 %v408, %v418
  %v429 = vadd.f32 %v409, %v418
  %v430 = vadd.f32 %v410, %v418
  %v431 = vadd.f32 %v411, %v418
  %v432 = vadd.f32 %v412, %v418
  %v433 = vadd.f32 %v413, %v418
  %v434 = vadd.f32 %v414, %v418
  %v435 = vadd.f32 %v415, %v418
  %v436 = vld [vmem:[%s3] sm:$0xff]
  %v437 = vld [vmem:[%s3 + $0x8] sm:$0xff]
  %v438 = vld [vmem:[%s3 + $0x10] sm:$0xff]
  %v439 = vld [vmem:[%s3 + $0x18] sm:$0xff]
  %v440 = vld [vmem:[%s3 + $0x20] sm:$0xff]
  %v441 = vld [vmem:[%s3 + $0x28] sm:$0xff]
  %v442 = vld [vmem:[%s3 + $0x30] sm:$0xff]
  %v443 = vld [vmem:[%s3 + $0x38] sm:$0xff]
  %v444 = vld [vmem:[%s4] sm:$0x1]
  %v446 = vperm.slane %v444, 0
  %v449 = vsel %vm36, %v420, 0
  %v452 = vsel %vm36, %v421, 0
  %v455 = vsel %vm36, %v422, 0
  %v458 = vsel %vm36, %v423, 0
  %v461 = vsel %vm36, %v424, 0
  %v464 = vsel %vm36, %v425, 0
  %v467 = vsel %vm36, %v426, 0
  %v470 = vsel %vm36, %v427, 0
  %v473 = vsel %vm36, %v428, 0
  %v476 = vsel %vm36, %v429, 0
  %v479 = vsel %vm36, %v430, 0
  %v482 = vsel %vm36, %v431, 0
  %v485 = vsel %vm36, %v432, 0
  %v488 = vsel %vm36, %v433, 0
  %v491 = vsel %vm36, %v434, 0
  %v494 = vsel %vm36, %v435, 0
  %496 = vmatpush.msra.mxu0 0.0
  %497 = vmatpush.msra.mxu0 0.0
  %498 = vmatpush.msra.mxu0 0.0
  %499 = vmatpush.msra.mxu0 0.0
  %500 = vmatpush.msra.mxu0 0.0
  %501 = vmatpush.msra.mxu0 0.0
  %502 = vmatpush.msra.mxu0 0.0
  %503 = vmatpush.msra.mxu0 0.0
  %504 = vmatpush.msra.mxu0 %v443
  %505 = vmatpush.msra.mxu0 %v442
  %506 = vmatpush.msra.mxu0 %v441
  %507 = vmatpush.msra.mxu0 %v440
  %508 = vmatpush.msra.mxu0 %v439
  %509 = vmatpush.msra.mxu0 %v438
  %510 = vmatpush.msra.mxu0 %v437
  %511 = vmatpush.msra.mxu0 %v436
  %512 = vmatmul.f32.gmra.mxu0 %v449
  %v513 = vpop.f32.mrf.mxu0
  %v514 = vadd.f32 %v446, %v513
  %515 = vmatmul.f32.gmra.mxu0 %v452
  %v516 = vpop.f32.mrf.mxu0
  %v517 = vadd.f32 %v446, %v516
  %518 = vmatmul.f32.gmra.mxu0 %v455
  %v519 = vpop.f32.mrf.mxu0
  %v520 = vadd.f32 %v446, %v519
  %521 = vmatmul.f32.gmra.mxu0 %v458
  %v522 = vpop.f32.mrf.mxu0
  %v523 = vadd.f32 %v446, %v522
  %524 = vmatmul.f32.gmra.mxu0 %v461
  %v525 = vpop.f32.mrf.mxu0
  %v526 = vadd.f32 %v446, %v525
  %527 = vmatmul.f32.gmra.mxu0 %v464
  %v528 = vpop.f32.mrf.mxu0
  %v529 = vadd.f32 %v446, %v528
  %530 = vmatmul.f32.gmra.mxu0 %v467
  %v531 = vpop.f32.mrf.mxu0
  %v532 = vadd.f32 %v446, %v531
  %533 = vmatmul.f32.gmra.mxu0 %v470
  %v534 = vpop.f32.mrf.mxu0
  %v535 = vadd.f32 %v446, %v534
  %536 = vmatmul.f32.gmra.mxu0 %v473
  %v537 = vpop.f32.mrf.mxu0
  %v538 = vadd.f32 %v446, %v537
  %539 = vmatmul.f32.gmra.mxu0 %v476
  %v540 = vpop.f32.mrf.mxu0
  %v541 = vadd.f32 %v446, %v540
  %542 = vmatmul.f32.gmra.mxu0 %v479
  %v543 = vpop.f32.mrf.mxu0
  %v544 = vadd.f32 %v446, %v543
  %545 = vmatmul.f32.gmra.mxu0 %v482
  %v546 = vpop.f32.mrf.mxu0
  %v547 = vadd.f32 %v446, %v546
  %548 = vmatmul.f32.gmra.mxu0 %v485
  %v549 = vpop.f32.mrf.mxu0
  %v550 = vadd.f32 %v446, %v549
  %551 = vmatmul.f32.gmra.mxu0 %v488
  %v552 = vpop.f32.mrf.mxu0
  %v553 = vadd.f32 %v446, %v552
  %554 = vmatmul.f32.gmra.mxu0 %v491
  %v555 = vpop.f32.mrf.mxu0
  %v556 = vadd.f32 %v446, %v555
  %557 = vmatmul.f32.gmra.mxu0 %v494
  %v558 = vpop.f32.mrf.mxu0
  %v559 = vadd.f32 %v446, %v558
  %560 = vdwg.mxu0
  %vm561 = vcmask 261120
  %562 = vst.msk [vmem:[%s5] sm:$0xff] %vm561, %v514
  %563 = vst.msk [vmem:[%s5 + $0x8] sm:$0xff] %vm561, %v517
  %564 = vst.msk [vmem:[%s5 + $0x10] sm:$0xff] %vm561, %v520
  %565 = vst.msk [vmem:[%s5 + $0x18] sm:$0xff] %vm561, %v523
  %566 = vst.msk [vmem:[%s5 + $0x20] sm:$0xff] %vm561, %v526
  %567 = vst.msk [vmem:[%s5 + $0x28] sm:$0xff] %vm561, %v529
  %568 = vst.msk [vmem:[%s5 + $0x30] sm:$0xff] %vm561, %v532
  %569 = vst.msk [vmem:[%s5 + $0x38] sm:$0xff] %vm561, %v535
  %570 = vst.msk [vmem:[%s5 + $0x40] sm:$0xff] %vm561, %v538
  %571 = vst.msk [vmem:[%s5 + $0x48] sm:$0xff] %vm561, %v541
  %572 = vst.msk [vmem:[%s5 + $0x50] sm:$0xff] %vm561, %v544
  %573 = vst.msk [vmem:[%s5 + $0x58] sm:$0xff] %vm561, %v547
  %574 = vst.msk [vmem:[%s5 + $0x60] sm:$0xff] %vm561, %v550
  %575 = vst.msk [vmem:[%s5 + $0x68] sm:$0xff] %vm561, %v553
  %576 = vst.msk [vmem:[%s5 + $0x70] sm:$0xff] %vm561, %v556
  %577 = vst.msk [vmem:[%s5 + $0x78] sm:$0xff] %vm561, %v559
  // Predicated region
  $region22: #{mamba_scale_block.3} parent=0 // pred_check
    _
  $region23: #{mamba_scale_block.3} parent=0 // pred_check_branch
    %579 = sbr.rel (0) target = $region25
  $region24: #{mamba_scale_block.3} parent=0 // pred_region
    _
  $region25: #{mamba_scale_block.3} parent=0 // pred_fallthru
    _
  // Predicated region
  $region26: #{mamba_scale_block.3} parent=0 // pred_check
    _
  $region27: #{mamba_scale_block.3} parent=0 // pred_check_branch
    %581 = sbr.rel (0) target = $region29
  $region28: #{mamba_scale_block.3} parent=0 // pred_region
    _
  $region29: #{mamba_scale_block.3} parent=0 // pred_fallthru
    _

// kernel: mamba_scale_block.4
$region0: #{mamba_scale_block.4}
  #allocation0 [shape = 'u32[]', space=smem, size = 0x4, offset = 0x4, fixed_abs, tag = 'smem constant byte address 0x4 - core index']
  #allocation1 [shape = 'u32[72,128]{1,0:T(1,128)}', space=vmem, size = 0x9000, scoped, tag = 'internal scratch']
  %s0 = inlined_call_operand.vmem [shape: f32[8,16,32], index: 0, kind: input, shape index: {}]
  %s1 = inlined_call_operand.vmem [shape: bf16[32,128], index: 1, kind: input, shape index: {}]
  %s2 = inlined_call_operand.vmem [shape: f32[4,64], index: 2, kind: input, shape index: {}]
  %s3 = inlined_call_operand.vmem [shape: f32[1,64], index: 3, kind: input, shape index: {}]
  %s4 = inlined_call_operand.vmem [shape: bf16[64,34], index: 4, kind: input, shape index: {}]
  %s5 = inlined_call_operand.vmem [shape: bf16[2,64], index: 5, kind: input, shape index: {}]
  %s6 = inlined_call_operand.vmem [shape: f32[1,64], index: 6, kind: input, shape index: {}]
  %s7 = inlined_call_operand.vmem [shape: f32[1,1024], index: 7, kind: input, shape index: {}]
  %s8 = inlined_call_operand.vmem [shape: f32[1,64], index: 8, kind: input, shape index: {}]
  %s9 = inlined_call_operand.vmem [shape: bf16[64,32], index: 9, kind: input, shape index: {}]
  %s10 = inlined_call_operand.vmem [shape: f32[8,16,32], index: 10, kind: output, shape index: {}]
  %s11 = sld [smem:[#allocation0]]
  $region145: #{mamba_scale_block.4} parent=0
    _
  %s13 = ssub.s32 1, %s11
  %s14 = scalar_select 0, %s13, %s11
  $region1: #{mamba_scale_block.4} parent=0
    #allocation2 [shape = 'u8[65536]{0}', space=vmem, size = 0x10000, scoped, tag = 'input window, operand 0']
    #allocation3 [shape = 'u8[65536]{0}', space=vmem, size = 0x10000, scoped, tag = 'output window, operand 0']
    loop: start=0, step=1, limit=4
    $region2: #{mamba_scale_block.4} parent=1 // loop_pre_header
      _
    $region3: #{mamba_scale_block.4} parent=1 // loop_header
      %s16 = sphi 0, %s20
      %p17 = scmp.ge.s32.totalorder %s16, 4
      %s26 = sphi 0, %s28
      %s29 = sphi 0, %s26
      %s30 = sphi 0, %s29
      %s46 = sphi 0, %s30
      %s50 = sphi 0, %s50
      %s52 = sphi 0, %s50
      %s53 = sphi 0, %s52
      %s67 = sphi 0, %s53
      %s71 = sphi 0, %s71
      %s73 = sphi 0, %s71
      %s74 = sphi 0, %s73
      %s88 = sphi 0, %s74
      %s92 = sphi 0, %s92
      %s94 = sphi 0, %s92
      %s95 = sphi 0, %s94
      %s109 = sphi 0, %s95
      %s113 = sphi 0, %s113
      %s115 = sphi 0, %s113
      %s116 = sphi 0, %s115
      %s130 = sphi 0, %s116
      %s134 = sphi 0, %s134
      %s136 = sphi 0, %s134
      %s137 = sphi 0, %s136
      %s151 = sphi 0, %s137
      %s155 = sphi 0, %s155
      %s157 = sphi 0, %s155
      %s158 = sphi 0, %s157
      %s172 = sphi 0, %s158
      %s176 = sphi 0, %s176
      %s178 = sphi 0, %s176
      %s179 = sphi 0, %s178
      %s193 = sphi 0, %s179
      %s197 = sphi 0, %s197
      %s199 = sphi 0, %s197
      %s200 = sphi 0, %s199
      %s214 = sphi 0, %s200
      %s218 = sphi 0, %s218
      %s220 = sphi 0, %s218
      %s221 = sphi 0, %s220
      %s235 = sphi 0, %s221
      %s241 = sphi 0, %s243
      %s244 = sphi 0, %s241
      %s245 = sphi 0, %s244
      %s261 = sphi 0, %s245
    $region4: #{mamba_scale_block.4} parent=1 // loop_header_branch
      %19 = sbr.rel (%p17) target = $region8
    $region5: #{mamba_scale_block.4} parent=1 // loop_body
      %s21 = ssub.s32 %s16, 1
      %s22 = ssub.s32 %s16, 2
      %s23 = sadd.s32 %s16, 1
      %s24 = ssub.s32 %s16, %s23
      %p25 = scmp.eq.s32.totalorder %s24, 0
      %s27 = sadd.s32 %s26, 1
      %s28 = scalar_select %p25, %s26, %s27
      %p31 = pneg %p25
      %p32 = scmp.eq.s32.totalorder %s16, 1
      %p33 = por %p31, %p32
      %p34 = scmp.ne.s32.totalorder %s26, %s29
      %p35 = scmp.eq.s32.totalorder %s16, 0
      %p36 = por %p34, %p35
      %p37 = scmp.ne.s32.totalorder %s26, %s29
      %p38 = scmp.eq.s32.totalorder %s21, 1
      %p39 = por %p37, %p38
      %p40 = scmp.ne.s32.totalorder %s29, %s30
      %p41 = scmp.eq.s32.totalorder %s21, 0
      %p42 = por %p40, %p41
      %p43 = scmp.ne.s32.totalorder %s29, %s30
      %p44 = scmp.eq.s32.totalorder %s22, 1
      %p45 = por %p43, %p44
      %p47 = scmp.ne.s32.totalorder %s30, %s46
      %p48 = scmp.eq.s32.totalorder %s22, 0
      %p49 = por %p47, %p48
      %s51 = sadd.s32 %s50, 1
      %p54 = scmp.eq.s32.totalorder %s16, 1
      %p55 = scmp.ne.s32.totalorder %s50, %s52
      %p56 = scmp.eq.s32.totalorder %s16, 0
      %p57 = por %p55, %p56
      %p58 = scmp.ne.s32.totalorder %s50, %s52
      %p59 = scmp.eq.s32.totalorder %s21, 1
      %p60 = por %p58, %p59
      %p61 = scmp.ne.s32.totalorder %s52, %s53
      %p62 = scmp.eq.s32.totalorder %s21, 0
      %p63 = por %p61, %p62
      %p64 = scmp.ne.s32.totalorder %s52, %s53
      %p65 = scmp.eq.s32.totalorder %s22, 1
      %p66 = por %p64, %p65
      %p68 = scmp.ne.s32.totalorder %s53, %s67
      %p69 = scmp.eq.s32.totalorder %s22, 0
      %p70 = por %p68, %p69
      %s72 = sadd.s32 %s71, 1
      %p75 = scmp.eq.s32.totalorder %s16, 1
      %p76 = scmp.ne.s32.totalorder %s71, %s73
      %p77 = scmp.eq.s32.totalorder %s16, 0
      %p78 = por %p76, %p77
      %p79 = scmp.ne.s32.totalorder %s71, %s73
      %p80 = scmp.eq.s32.totalorder %s21, 1
      %p81 = por %p79, %p80
      %p82 = scmp.ne.s32.totalorder %s73, %s74
      %p83 = scmp.eq.s32.totalorder %s21, 0
      %p84 = por %p82, %p83
      %p85 = scmp.ne.s32.totalorder %s73, %s74
      %p86 = scmp.eq.s32.totalorder %s22, 1
      %p87 = por %p85, %p86
      %p89 = scmp.ne.s32.totalorder %s74, %s88
      %p90 = scmp.eq.s32.totalorder %s22, 0
      %p91 = por %p89, %p90
      %s93 = sadd.s32 %s92, 1
      %p96 = scmp.eq.s32.totalorder %s16, 1
      %p97 = scmp.ne.s32.totalorder %s92, %s94
      %p98 = scmp.eq.s32.totalorder %s16, 0
      %p99 = por %p97, %p98
      %p100 = scmp.ne.s32.totalorder %s92, %s94
      %p101 = scmp.eq.s32.totalorder %s21, 1
      %p102 = por %p100, %p101
      %p103 = scmp.ne.s32.totalorder %s94, %s95
      %p104 = scmp.eq.s32.totalorder %s21, 0
      %p105 = por %p103, %p104
      %p106 = scmp.ne.s32.totalorder %s94, %s95
      %p107 = scmp.eq.s32.totalorder %s22, 1
      %p108 = por %p106, %p107
      %p110 = scmp.ne.s32.totalorder %s95, %s109
      %p111 = scmp.eq.s32.totalorder %s22, 0
      %p112 = por %p110, %p111
      %s114 = sadd.s32 %s113, 1
      %p117 = scmp.eq.s32.totalorder %s16, 1
      %p118 = scmp.ne.s32.totalorder %s113, %s115
      %p119 = scmp.eq.s32.totalorder %s16, 0
      %p120 = por %p118, %p119
      %p121 = scmp.ne.s32.totalorder %s113, %s115
      %p122 = scmp.eq.s32.totalorder %s21, 1
      %p123 = por %p121, %p122
      %p124 = scmp.ne.s32.totalorder %s115, %s116
      %p125 = scmp.eq.s32.totalorder %s21, 0
      %p126 = por %p124, %p125
      %p127 = scmp.ne.s32.totalorder %s115, %s116
      %p128 = scmp.eq.s32.totalorder %s22, 1
      %p129 = por %p127, %p128
      %p131 = scmp.ne.s32.totalorder %s116, %s130
      %p132 = scmp.eq.s32.totalorder %s22, 0
      %p133 = por %p131, %p132
      %s135 = sadd.s32 %s134, 1
      %p138 = scmp.eq.s32.totalorder %s16, 1
      %p139 = scmp.ne.s32.totalorder %s134, %s136
      %p140 = scmp.eq.s32.totalorder %s16, 0
      %p141 = por %p139, %p140
      %p142 = scmp.ne.s32.totalorder %s134, %s136
      %p143 = scmp.eq.s32.totalorder %s21, 1
      %p144 = por %p142, %p143
      %p145 = scmp.ne.s32.totalorder %s136, %s137
      %p146 = scmp.eq.s32.totalorder %s21, 0
      %p147 = por %p145, %p146
      %p148 = scmp.ne.s32.totalorder %s136, %s137
      %p149 = scmp.eq.s32.totalorder %s22, 1
      %p150 = por %p148, %p149
      %p152 = scmp.ne.s32.totalorder %s137, %s151
      %p153 = scmp.eq.s32.totalorder %s22, 0
      %p154 = por %p152, %p153
      %s156 = sadd.s32 %s155, 1
      %p159 = scmp.eq.s32.totalorder %s16, 1
      %p160 = scmp.ne.s32.totalorder %s155, %s157
      %p161 = scmp.eq.s32.totalorder %s16, 0
      %p162 = por %p160, %p161
      %p163 = scmp.ne.s32.totalorder %s155, %s157
      %p164 = scmp.eq.s32.totalorder %s21, 1
      %p165 = por %p163, %p164
      %p166 = scmp.ne.s32.totalorder %s157, %s158
      %p167 = scmp.eq.s32.totalorder %s21, 0
      %p168 = por %p166, %p167
      %p169 = scmp.ne.s32.totalorder %s157, %s158
      %p170 = scmp.eq.s32.totalorder %s22, 1
      %p171 = por %p169, %p170
      %p173 = scmp.ne.s32.totalorder %s158, %s172
      %p174 = scmp.eq.s32.totalorder %s22, 0
      %p175 = por %p173, %p174
      %s177 = sadd.s32 %s176, 1
      %p180 = scmp.eq.s32.totalorder %s16, 1
      %p181 = scmp.ne.s32.totalorder %s176, %s178
      %p182 = scmp.eq.s32.totalorder %s16, 0
      %p183 = por %p181, %p182
      %p184 = scmp.ne.s32.totalorder %s176, %s178
      %p185 = scmp.eq.s32.totalorder %s21, 1
      %p186 = por %p184, %p185
      %p187 = scmp.ne.s32.totalorder %s178, %s179
      %p188 = scmp.eq.s32.totalorder %s21, 0
      %p189 = por %p187, %p188
      %p190 = scmp.ne.s32.totalorder %s178, %s179
      %p191 = scmp.eq.s32.totalorder %s22, 1
      %p192 = por %p190, %p191
      %p194 = scmp.ne.s32.totalorder %s179, %s193
      %p195 = scmp.eq.s32.totalorder %s22, 0
      %p196 = por %p194, %p195
      %s198 = sadd.s32 %s197, 1
      %p201 = scmp.eq.s32.totalorder %s16, 1
      %p202 = scmp.ne.s32.totalorder %s197, %s199
      %p203 = scmp.eq.s32.totalorder %s16, 0
      %p204 = por %p202, %p203
      %p205 = scmp.ne.s32.totalorder %s197, %s199
      %p206 = scmp.eq.s32.totalorder %s21, 1
      %p207 = por %p205, %p206
      %p208 = scmp.ne.s32.totalorder %s199, %s200
      %p209 = scmp.eq.s32.totalorder %s21, 0
      %p210 = por %p208, %p209
      %p211 = scmp.ne.s32.totalorder %s199, %s200
      %p212 = scmp.eq.s32.totalorder %s22, 1
      %p213 = por %p211, %p212
      %p215 = scmp.ne.s32.totalorder %s200, %s214
      %p216 = scmp.eq.s32.totalorder %s22, 0
      %p217 = por %p215, %p216
      %s219 = sadd.s32 %s218, 1
      %p222 = scmp.eq.s32.totalorder %s16, 1
      %p223 = scmp.ne.s32.totalorder %s218, %s220
      %p224 = scmp.eq.s32.totalorder %s16, 0
      %p225 = por %p223, %p224
      %p226 = scmp.ne.s32.totalorder %s218, %s220
      %p227 = scmp.eq.s32.totalorder %s21, 1
      %p228 = por %p226, %p227
      %p229 = scmp.ne.s32.totalorder %s220, %s221
      %p230 = scmp.eq.s32.totalorder %s21, 0
      %p231 = por %p229, %p230
      %p232 = scmp.ne.s32.totalorder %s220, %s221
      %p233 = scmp.eq.s32.totalorder %s22, 1
      %p234 = por %p232, %p233
      %p236 = scmp.ne.s32.totalorder %s221, %s235
      %p237 = scmp.eq.s32.totalorder %s22, 0
      %p238 = por %p236, %p237
      %s239 = ssub.s32 %s16, %s23
      %p240 = scmp.eq.s32.totalorder %s239, 0
      %s242 = sadd.s32 %s241, 1
      %s243 = scalar_select %p240, %s241, %s242
      %p246 = pneg %p240
      %p247 = scmp.eq.s32.totalorder %s16, 1
      %p248 = por %p246, %p247
      %p249 = scmp.ne.s32.totalorder %s241, %s244
      %p250 = scmp.eq.s32.totalorder %s16, 0
      %p251 = por %p249, %p250
      %p252 = scmp.ne.s32.totalorder %s241, %s244
      %p253 = scmp.eq.s32.totalorder %s21, 1
      %p254 = por %p252, %p253
      %p255 = scmp.ne.s32.totalorder %s244, %s245
      %p256 = scmp.eq.s32.totalorder %s21, 0
      %p257 = por %p255, %p256
      %p258 = scmp.ne.s32.totalorder %s244, %s245
      %p259 = scmp.eq.s32.totalorder %s22, 1
      %p260 = por %p258, %p259
      %p262 = scmp.ne.s32.totalorder %s245, %s261
      %p263 = scmp.eq.s32.totalorder %s22, 0
      %p264 = por %p262, %p263
      %p265 = scmp.le.s32.totalorder 1, %s16
      %p266 = scmp.lt.s32.totalorder %s16, 3
      %p267 = pnand %p265, %p266
      %p268 = pneg %p267
      // Predicated region
      $region9: #{mamba_scale_block.4} parent=5 // pred_check
        _
      $region10: #{mamba_scale_block.4} parent=5 // pred_check_branch
        %270 = sbr.rel (%p267) target = $region12
      $region11: #{mamba_scale_block.4} parent=5 // pred_region
        %s271 = ssub.s32 %s16, 1
        // Predicated region
        $region13: #{mamba_scale_block.4} parent=11 // pred_check
          %p272 = pneg %p63
        $region14: #{mamba_scale_block.4} parent=11 // pred_check_branch
          %274 = sbr.rel (%p272) target = $region16
        $region15: #{mamba_scale_block.4} parent=11 // pred_region
          _
        $region16: #{mamba_scale_block.4} parent=11 // pred_fallthru
          _
        // Predicated region
        $region17: #{mamba_scale_block.4} parent=11 // pred_check
          %p275 = pneg %p84
        $region18: #{mamba_scale_block.4} parent=11 // pred_check_branch
          %277 = sbr.rel (%p275) target = $region20
        $region19: #{mamba_scale_block.4} parent=11 // pred_region
          _
        $region20: #{mamba_scale_block.4} parent=11 // pred_fallthru
          _
        // Predicated region
        $region21: #{mamba_scale_block.4} parent=11 // pred_check
          %p278 = pneg %p105
        $region22: #{mamba_scale_block.4} parent=11 // pred_check_branch
          %280 = sbr.rel (%p278) target = $region24
        $region23: #{mamba_scale_block.4} parent=11 // pred_region
          _
        $region24: #{mamba_scale_block.4} parent=11 // pred_fallthru
          _
        // Predicated region
        $region25: #{mamba_scale_block.4} parent=11 // pred_check
          %p281 = pneg %p126
        $region26: #{mamba_scale_block.4} parent=11 // pred_check_branch
          %283 = sbr.rel (%p281) target = $region28
        $region27: #{mamba_scale_block.4} parent=11 // pred_region
          _
        $region28: #{mamba_scale_block.4} parent=11 // pred_fallthru
          _
        // Predicated region
        $region29: #{mamba_scale_block.4} parent=11 // pred_check
          %p284 = pneg %p147
        $region30: #{mamba_scale_block.4} parent=11 // pred_check_branch
          %286 = sbr.rel (%p284) target = $region32
        $region31: #{mamba_scale_block.4} parent=11 // pred_region
          _
        $region32: #{mamba_scale_block.4} parent=11 // pred_fallthru
          _
        // Predicated region
        $region33: #{mamba_scale_block.4} parent=11 // pred_check
          %p287 = pneg %p168
        $region34: #{mamba_scale_block.4} parent=11 // pred_check_branch
          %289 = sbr.rel (%p287) target = $region36
        $region35: #{mamba_scale_block.4} parent=11 // pred_region
          _
        $region36: #{mamba_scale_block.4} parent=11 // pred_fallthru
          _
        // Predicated region
        $region37: #{mamba_scale_block.4} parent=11 // pred_check
          %p290 = pneg %p189
        $region38: #{mamba_scale_block.4} parent=11 // pred_check_branch
          %292 = sbr.rel (%p290) target = $region40
        $region39: #{mamba_scale_block.4} parent=11 // pred_region
          _
        $region40: #{mamba_scale_block.4} parent=11 // pred_fallthru
          _
        // Predicated region
        $region41: #{mamba_scale_block.4} parent=11 // pred_check
          %p293 = pneg %p210
        $region42: #{mamba_scale_block.4} parent=11 // pred_check_branch
          %295 = sbr.rel (%p293) target = $region44
        $region43: #{mamba_scale_block.4} parent=11 // pred_region
          _
        $region44: #{mamba_scale_block.4} parent=11 // pred_fallthru
          _
        // Predicated region
        $region45: #{mamba_scale_block.4} parent=11 // pred_check
          %p296 = pneg %p231
        $region46: #{mamba_scale_block.4} parent=11 // pred_check_branch
          %298 = sbr.rel (%p296) target = $region48
        $region47: #{mamba_scale_block.4} parent=11 // pred_region
          _
        $region48: #{mamba_scale_block.4} parent=11 // pred_fallthru
          _
      $region12: #{mamba_scale_block.4} parent=5 // pred_fallthru
        _
      %p299 = scmp.lt.s32.totalorder %s16, 2
      // Predicated region
      $region49: #{mamba_scale_block.4} parent=5 // pred_check
        %p300 = pneg %p299
      $region50: #{mamba_scale_block.4} parent=5 // pred_check_branch
        %302 = sbr.rel (%p300) target = $region52
      $region51: #{mamba_scale_block.4} parent=5 // pred_region
        // Predicated region
        $region53: #{mamba_scale_block.4} parent=51 // pred_check
          %p303 = pneg %p36
        $region54: #{mamba_scale_block.4} parent=51 // pred_check_branch
          %305 = sbr.rel (%p303) target = $region56
        $region55: #{mamba_scale_block.4} parent=51 // pred_region
          %s306 = sand.u32 %s26, 1
          %s307 = sand.u32 %s26, 1
          %s308 = smul.addr %s307, 64
          %s309 = scalar_lea.vmem [#allocation2], %s308
          %s310 = smul.addr %s16, 8
          %s311 = scalar_lea.vmem %s0, %s310
          // Predicated region
          $region57: #{mamba_scale_block.4} parent=55 // pred_check
            _
          $region58: #{mamba_scale_block.4} parent=55 // pred_check_branch
            %313 = sbr.rel (0) target = $region60
          $region59: #{mamba_scale_block.4} parent=55 // pred_region
            // Predicated region
            $region61: #{mamba_scale_block.4} parent=59 // pred_check
              _
            $region62: #{mamba_scale_block.4} parent=59 // pred_check_branch
              %315 = sbr.rel (0) target = $region64
            $region63: #{mamba_scale_block.4} parent=59 // pred_region
              // Predicated region
              $region76: #{mamba_scale_block.4} parent=63 // pred_check
                _
              $region77: #{mamba_scale_block.4} parent=63 // pred_check_branch
                %345 = sbr.rel (0) target = $region79
              $region78: #{mamba_scale_block.4} parent=63 // pred_region
                loop: start=0, step=1, limit=1
                $region80: #{mamba_scale_block.4} parent=78 // loop_pre_header
                  _
                $region81: #{mamba_scale_block.4} parent=78 // loop_header
                  %s347 = sphi 0, %s351
                  %p348 = scmp.ge.s32.totalorder %s347, 1
                  %s352 = sphi %s311, %s311
                  %s353 = sphi %s309, %s309
                $region82: #{mamba_scale_block.4} parent=78 // loop_header_branch
                  %350 = sbr.rel (%p348) target = $region86
                $region83: #{mamba_scale_block.4} parent=78 // loop_body
                  %v354 = vld [vmem:[%s352] sm:$0xff]
                  %355 = vst [vmem:[%s353] sm:$0xff] %v354
                  %v356 = vld [vmem:[%s352 + $0x10] sm:$0xff]
                  %357 = vst [vmem:[%s353 + $0x8] sm:$0xff] %v356
                  %v358 = vld [vmem:[%s352 + $0x20] sm:$0xff]
                  %359 = vst [vmem:[%s353 + $0x10] sm:$0xff] %v358
                  %v360 = vld [vmem:[%s352 + $0x30] sm:$0xff]
                  %361 = vst [vmem:[%s353 + $0x18] sm:$0xff] %v360
                  %v362 = vld [vmem:[%s352 + $0x40] sm:$0xff]
                  %363 = vst [vmem:[%s353 + $0x20] sm:$0xff] %v362
                  %v364 = vld [vmem:[%s352 + $0x50] sm:$0xff]
                  %365 = vst [vmem:[%s353 + $0x28] sm:$0xff] %v364
                  %v366 = vld [vmem:[%s352 + $0x60] sm:$0xff]
                  %367 = vst [vmem:[%s353 + $0x30] sm:$0xff] %v366
                  %v368 = vld [vmem:[%s352 + $0x70] sm:$0xff]
                  %369 = vst [vmem:[%s353 + $0x38] sm:$0xff] %v368
                $region84: #{mamba_scale_block.4} parent=78 // loop_footer
                  %s351 = sadd.s32 1, %s347
                $region85: #{mamba_scale_block.4} parent=78 // loop_footer_branch
                  %346 = sbr.rel target = $region81
                $region86: #{mamba_scale_block.4} parent=78 // loop_exit
                  _
              $region79: #{mamba_scale_block.4} parent=63 // pred_fallthru
                _
              // Predicated region
              $region87: #{mamba_scale_block.4} parent=63 // pred_check
                _
              $region88: #{mamba_scale_block.4} parent=63 // pred_check_branch
                %371 = sbr.rel target = $region90
              $region89: #{mamba_scale_block.4} parent=63 // pred_region
                _
              $region90: #{mamba_scale_block.4} parent=63 // pred_fallthru
                _
            $region64: #{mamba_scale_block.4} parent=59 // pred_fallthru
              _
            // Predicated region
            $region65: #{mamba_scale_block.4} parent=59 // pred_check
              _
            $region66: #{mamba_scale_block.4} parent=59 // pred_check_branch
              %317 = sbr.rel target = $region68
            $region67: #{mamba_scale_block.4} parent=59 // pred_region
              %s319 = ssub.s32 256, 1
              loop: start=0, step=1, limit=1
              $region69: #{mamba_scale_block.4} parent=67 // loop_pre_header
                _
              $region70: #{mamba_scale_block.4} parent=67 // loop_header
                %s321 = sphi 0, %s325
                %p322 = scmp.ge.s32.totalorder %s321, 1
                %s326 = sphi %s311, %s311
                %s327 = sphi %s309, %s309
              $region71: #{mamba_scale_block.4} parent=67 // loop_header_branch
                %324 = sbr.rel (%p322) target = $region75
              $region72: #{mamba_scale_block.4} parent=67 // loop_body
                %v328 = vld [vmem:[%s326] sm:%s319]
                %329 = vst [vmem:[%s327] sm:%s319] %v328
                %v330 = vld [vmem:[%s326 + $0x10] sm:%s319]
                %331 = vst [vmem:[%s327 + $0x8] sm:%s319] %v330
                %v332 = vld [vmem:[%s326 + $0x20] sm:%s319]
                %333 = vst [vmem:[%s327 + $0x10] sm:%s319] %v332
                %v334 = vld [vmem:[%s326 + $0x30] sm:%s319]
                %335 = vst [vmem:[%s327 + $0x18] sm:%s319] %v334
                %v336 = vld [vmem:[%s326 + $0x40] sm:%s319]
                %337 = vst [vmem:[%s327 + $0x20] sm:%s319] %v336
                %v338 = vld [vmem:[%s326 + $0x50] sm:%s319]
                %339 = vst [vmem:[%s327 + $0x28] sm:%s319] %v338
                %v340 = vld [vmem:[%s326 + $0x60] sm:%s319]
                %341 = vst [vmem:[%s327 + $0x30] sm:%s319] %v340
                %v342 = vld [vmem:[%s326 + $0x70] sm:%s319]
                %343 = vst [vmem:[%s327 + $0x38] sm:%s319] %v342
              $region73: #{mamba_scale_block.4} parent=67 // loop_footer
                %s325 = sadd.s32 1, %s321
              $region74: #{mamba_scale_block.4} parent=67 // loop_footer_branch
                %320 = sbr.rel target = $region70
              $region75: #{mamba_scale_block.4} parent=67 // loop_exit
                _
            $region68: #{mamba_scale_block.4} parent=59 // pred_fallthru
              _
          $region60: #{mamba_scale_block.4} parent=55 // pred_fallthru
            _
          %372 = vnop
        $region56: #{mamba_scale_block.4} parent=51 // pred_fallthru
          _
      $region52: #{mamba_scale_block.4} parent=5 // pred_fallthru
        _
      %p373 = scmp.le.s32.totalorder 1, %s16
      %p374 = scmp.lt.s32.totalorder %s16, 3
      %p375 = pnand %p373, %p374
      %p376 = pneg %p375
      // Predicated region
      $region91: #{mamba_scale_block.4} parent=5 // pred_check
        _
      $region92: #{mamba_scale_block.4} parent=5 // pred_check_branch
        %378 = sbr.rel (%p375) target = $region94
      $region93: #{mamba_scale_block.4} parent=5 // pred_region
        %s379 = ssub.s32 %s16, 1
        %s380 = sand.u32 %s29, 1
        %s381 = sand.u32 %s29, 1
        %s382 = smul.addr %s381, 64
        %s383 = scalar_lea.vmem [#allocation2], %s382
        // Predicated region
        $region95: #{mamba_scale_block.4} parent=93 // pred_check
          %p384 = pneg %p42
        $region96: #{mamba_scale_block.4} parent=93 // pred_check_branch
          %386 = sbr.rel (%p384) target = $region98
        $region97: #{mamba_scale_block.4} parent=93 // pred_region
          _
        $region98: #{mamba_scale_block.4} parent=93 // pred_fallthru
          _
        %s387 = sand.u32 %s29, 1
        %s388 = sand.u32 %s29, 1
        %s389 = smul.addr %s388, 64
        %s390 = scalar_lea.vmem [#allocation2], %s389
        %p391 = pneg %p42
        %p392 = pneg %p39
        %p393 = pneg %p63
        %p394 = pneg %p60
        %p395 = pneg %p84
        %p396 = pneg %p81
        %p397 = pneg %p105
        %p398 = pneg %p102
        %p399 = pneg %p126
        %p400 = pneg %p123
        %p401 = pneg %p147
        %p402 = pneg %p144
        %p403 = pneg %p168
        %p404 = pneg %p165
        %p405 = pneg %p189
        %p406 = pneg %p186
        %p407 = pneg %p210
        %p408 = pneg %p207
        %p409 = pneg %p231
        %p410 = pneg %p228
        %p411 = pneg %p257
        %p412 = pneg %p254
        %s413 = sand.u32 %s244, 1
        %s414 = sand.u32 %s244, 1
        %s415 = smul.addr %s414, 64
        %s416 = scalar_lea.vmem [#allocation3], %s415
        %v418 = vld [vmem:[%s383] sm:$0xff]
        %v419 = vld [vmem:[%s383 + $0x8] sm:$0xff]
        %v420 = vld [vmem:[%s383 + $0x10] sm:$0xff]
        %v421 = vld [vmem:[%s383 + $0x18] sm:$0xff]
        %v422 = vld [vmem:[%s383 + $0x20] sm:$0xff]
        %v423 = vld [vmem:[%s383 + $0x28] sm:$0xff]
        %v424 = vld [vmem:[%s383 + $0x30] sm:$0xff]
        %v425 = vld [vmem:[%s383 + $0x38] sm:$0xff]
        %v426 = vpack.c.bf16 %v419, %v418
        %v427 = vpack.c.bf16 %v421, %v420
        %v428 = vpack.c.bf16 %v423, %v422
        %v429 = vpack.c.bf16 %v425, %v424
        %v430 = vld [vmem:[%s1] sm:$0xf]
        %v431 = vld [vmem:[%s1 + $0x4] sm:$0xf]
        %v432 = vld [vmem:[%s1 + $0x8] sm:$0xf]
        %v433 = vld [vmem:[%s1 + $0xc] sm:$0xf]
        %v438 = vunpack.c.l.b16 %v430
        %v439 = vunpack.c.l.b16 %v431
        %v440 = vunpack.c.l.b16 %v432
        %v441 = vunpack.c.l.b16 %v433
        %v442 = vpack.c.b16 %v439, %v438
        %v443 = vpack.c.b16 %v441, %v440
        %vm446 = vcmask 261120
        %v448 = vsel %vm446, %v426, 0
        %v451 = vsel %vm446, %v427, 0
        %v454 = vsel %vm446, %v428, 0
        %v457 = vsel %vm446, %v429, 0
        %459 = vmatpush.bf16.msra.mxu0 0
        %460 = vmatpush.bf16.msra.mxu0 0
        %461 = vmatpush.bf16.msra.mxu0 0
        %462 = vmatpush.bf16.msra.mxu0 0
        %463 = vmatpush.bf16.msra.mxu0 0
        %464 = vmatpush.bf16.msra.mxu0 0
        %465 = vmatpush.bf16.msra.mxu0 %v443
        %466 = vmatpush.bf16.msra.mxu0 %v442
        %467 = vmatmul.bf16.gmra.mxu0 %v448
        %v468 = vpop.f32.mrf.mxu0
        %v469 = vadd.f32 0.0, %v468
        %v470 = vpop.f32.mrf.mxu0
        %v471 = vadd.f32 0.0, %v470
        %472 = vmatmul.bf16.gmra.mxu0 %v451
        %v473 = vpop.f32.mrf.mxu0
        %v474 = vadd.f32 0.0, %v473
        %v475 = vpop.f32.mrf.mxu0
        %v476 = vadd.f32 0.0, %v475
        %477 = vmatmul.bf16.gmra.mxu0 %v454
        %v478 = vpop.f32.mrf.mxu0
        %v479 = vadd.f32 0.0, %v478
        %v480 = vpop.f32.mrf.mxu0
        %v481 = vadd.f32 0.0, %v480
        %482 = vmatmul.bf16.gmra.mxu0 %v457
        %v483 = vpop.f32.mrf.mxu0
        %v484 = vadd.f32 0.0, %v483
        %v485 = vpop.f32.mrf.mxu0
        %v486 = vadd.f32 0.0, %v485
        %487 = vdwg.mxu0
        %v488 = vld [vmem:[%s2 + $0x3] sm:$0x1]
        %v489 = vperm.slane %v488, 0
        %v490 = vmul.f32 %v469, %v489
        %v491 = vmul.f32 %v471, %v489
        %v492 = vmul.f32 %v474, %v489
        %v493 = vmul.f32 %v476, %v489
        %v494 = vmul.f32 %v479, %v489
        %v495 = vmul.f32 %v481, %v489
        %v496 = vmul.f32 %v484, %v489
        %v497 = vmul.f32 %v486, %v489
        %v498 = vld [vmem:[%s3] sm:$0x1]
        %v500 = vperm.slane %v498, 0
        %v502 = vadd.f32 %v490, %v500
        %v503 = vadd.f32 %v491, %v500
        %v504 = vadd.f32 %v492, %v500
        %v505 = vadd.f32 %v493, %v500
        %v506 = vadd.f32 %v494, %v500
        %v507 = vadd.f32 %v495, %v500
        %v508 = vadd.f32 %v496, %v500
        %v509 = vadd.f32 %v497, %v500
        %v510 = vld [vmem:[%s2 + $0x2] sm:$0x1]
        %v511 = vperm.slane %v510, 0
        %v512 = vmul.f32 %v511, 0.0
        %v513 = vmul.f32 %v469, %v511
        %v514 = vmul.f32 %v471, %v511
        %v515 = vmul.f32 %v474, %v511
        %v516 = vmul.f32 %v476, %v511
        %v517 = vmul.f32 %v479, %v511
        %v518 = vmul.f32 %v481, %v511
        %v519 = vmul.f32 %v484, %v511
        %v520 = vadd.f32 %v502, %v512
        %v521 = vadd.f32 %v503, %v513
        %v522 = vadd.f32 %v504, %v514
        %v523 = vadd.f32 %v505, %v515
        %v524 = vadd.f32 %v506, %v516
        %v525 = vadd.f32 %v507, %v517
        %v526 = vadd.f32 %v508, %v518
        %v527 = vadd.f32 %v509, %v519
        %v528 = vld [vmem:[%s2 + $0x1] sm:$0x1]
        %v529 = vperm.slane %v528, 0
        %v530 = vmul.f32 %v529, 0.0
        %v531 = vmul.f32 %v469, %v529
        %v532 = vmul.f32 %v471, %v529
        %v533 = vmul.f32 %v474, %v529
        %v534 = vmul.f32 %v476, %v529
        %v535 = vmul.f32 %v479, %v529
        %v536 = vmul.f32 %v481, %v529
        %v537 = vadd.f32 %v520, %v530
        %v538 = vadd.f32 %v521, %v530
        %v539 = vadd.f32 %v522, %v531
        %v540 = vadd.f32 %v523, %v532
        %v541 = vadd.f32 %v524, %v533
        %v542 = vadd.f32 %v525, %v534
        %v543 = vadd.f32 %v526, %v535
        %v544 = vadd.f32 %v527, %v536
        %v545 = vld [vmem:[%s2] sm:$0x1]
        %v546 = vperm.slane %v545, 0
        %v547 = vmul.f32 %v546, 0.0
        %v548 = vmul.f32 %v469, %v546
        %v549 = vmul.f32 %v471, %v546
        %v550 = vmul.f32 %v474, %v546
        %v551 = vmul.f32 %v476, %v546
        %v552 = vmul.f32 %v479, %v546
        %v553 = vadd.f32 %v537, %v547
        %v554 = vadd.f32 %v538, %v547
        %v555 = vadd.f32 %v539, %v547
        %v556 = vadd.f32 %v540, %v548
        %v557 = vadd.f32 %v541, %v549
        %v558 = vadd.f32 %v542, %v550
        %v559 = vadd.f32 %v543, %v551
        %v560 = vadd.f32 %v544, %v552
        %v561 = vxor.u32 %v553, 2147483648
        %v562 = vxor.u32 %v554, 2147483648
        %v563 = vxor.u32 %v555, 2147483648
        %v564 = vxor.u32 %v556, 2147483648
        %v565 = vxor.u32 %v557, 2147483648
        %v566 = vxor.u32 %v558, 2147483648
        %v567 = vxor.u32 %v559, 2147483648
        %v568 = vxor.u32 %v560, 2147483648
        %v569 = vmul.f32 %v561, 1.442695
        %v570 = vpow.pop %v569
        %v571 = vmul.f32 %v562, 1.442695
        %v572 = vpow.pop %v571
        %v573 = vmul.f32 %v563, 1.442695
        %v574 = vpow.pop %v573
        %v575 = vmul.f32 %v564, 1.442695
        %v576 = vpow.pop %v575
        %v577 = vmul.f32 %v565, 1.442695
        %v578 = vpow.pop %v577
        %v579 = vmul.f32 %v566, 1.442695
        %v580 = vpow.pop %v579
        %v581 = vmul.f32 %v567, 1.442695
        %v582 = vpow.pop %v581
        %v583 = vmul.f32 %v568, 1.442695
        %v584 = vpow.pop %v583
        %v585 = vadd.f32 %v570, 1.0
        %v586 = vadd.f32 %v572, 1.0
        %v587 = vadd.f32 %v574, 1.0
        %v588 = vadd.f32 %v576, 1.0
        %v589 = vadd.f32 %v578, 1.0
        %v590 = vadd.f32 %v580, 1.0
        %v591 = vadd.f32 %v582, 1.0
        %v592 = vadd.f32 %v584, 1.0
        %v593 = vrcp.pop %v585
        %v594 = vmul.f32 %v585, %v593
        %v595 = vsub.f32 1.0, %v594
        %v596 = vmul.f32 %v593, %v595
        %v597 = vadd.f32 %v593, %v596
        %vm598 = vweird.f32 %v585
        %vm599 = vweird.f32 %v593
        %vm600 = vmor %vm598, %vm599
        %v601 = vsel %vm600, %v593, %v597
        %v602 = vand.u32 2147483647, %v585
        %vm603 = vcmp.eq.f32.partialorder %v602, 8.507059e+37
        %v604 = vand.u32 %v585, 2147483648
        %v605 = vor.u32 1.1754944e-38, %v604
        %v606 = vsel %vm603, %v605, %v601
        %v607 = vmul.f32 1.0, %v606
        %v608 = vrcp.pop %v586
        %v609 = vmul.f32 %v586, %v608
        %v610 = vsub.f32 1.0, %v609
        %v611 = vmul.f32 %v608, %v610
        %v612 = vadd.f32 %v608, %v611
        %vm613 = vweird.f32 %v586
        %vm614 = vweird.f32 %v608
        %vm615 = vmor %vm613, %vm614
        %v616 = vsel %vm615, %v608, %v612
        %v617 = vand.u32 2147483647, %v586
        %vm618 = vcmp.eq.f32.partialorder %v617, 8.507059e+37
        %v619 = vand.u32 %v586, 2147483648
        %v620 = vor.u32 1.1754944e-38, %v619
        %v621 = vsel %vm618, %v620, %v616
        %v622 = vmul.f32 1.0, %v621
        %v623 = vrcp.pop %v587
        %v624 = vmul.f32 %v587, %v623
        %v625 = vsub.f32 1.0, %v624
        %v626 = vmul.f32 %v623, %v625
        %v627 = vadd.f32 %v623, %v626
        %vm628 = vweird.f32 %v587
        %vm629 = vweird.f32 %v623
        %vm630 = vmor %vm628, %vm629
        %v631 = vsel %vm630, %v623, %v627
        %v632 = vand.u32 2147483647, %v587
        %vm633 = vcmp.eq.f32.partialorder %v632, 8.507059e+37
        %v634 = vand.u32 %v587, 2147483648
        %v635 = vor.u32 1.1754944e-38, %v634
        %v636 = vsel %vm633, %v635, %v631
        %v637 = vmul.f32 1.0, %v636
        %v638 = vrcp.pop %v588
        %v639 = vmul.f32 %v588, %v638
        %v640 = vsub.f32 1.0, %v639
        %v641 = vmul.f32 %v638, %v640
        %v642 = vadd.f32 %v638, %v641
        %vm643 = vweird.f32 %v588
        %vm644 = vweird.f32 %v638
        %vm645 = vmor %vm643, %vm644
        %v646 = vsel %vm645, %v638, %v642
        %v647 = vand.u32 2147483647, %v588
        %vm648 = vcmp.eq.f32.partialorder %v647, 8.507059e+37
        %v649 = vand.u32 %v588, 2147483648
        %v650 = vor.u32 1.1754944e-38, %v649
        %v651 = vsel %vm648, %v650, %v646
        %v652 = vmul.f32 1.0, %v651
        %v653 = vrcp.pop %v589
        %v654 = vmul.f32 %v589, %v653
        %v655 = vsub.f32 1.0, %v654
        %v656 = vmul.f32 %v653, %v655
        %v657 = vadd.f32 %v653, %v656
        %vm658 = vweird.f32 %v589
        %vm659 = vweird.f32 %v653
        %vm660 = vmor %vm658, %vm659
        %v661 = vsel %vm660, %v653, %v657
        %v662 = vand.u32 2147483647, %v589
        %vm663 = vcmp.eq.f32.partialorder %v662, 8.507059e+37
        %v664 = vand.u32 %v589, 2147483648
        %v665 = vor.u32 1.1754944e-38, %v664
        %v666 = vsel %vm663, %v665, %v661
        %v667 = vmul.f32 1.0, %v666
        %v668 = vrcp.pop %v590
        %v669 = vmul.f32 %v590, %v668
        %v670 = vsub.f32 1.0, %v669
        %v671 = vmul.f32 %v668, %v670
        %v672 = vadd.f32 %v668, %v671
        %vm673 = vweird.f32 %v590
        %vm674 = vweird.f32 %v668
        %vm675 = vmor %vm673, %vm674
        %v676 = vsel %vm675, %v668, %v672
        %v677 = vand.u32 2147483647, %v590
        %vm678 = vcmp.eq.f32.partialorder %v677, 8.507059e+37
        %v679 = vand.u32 %v590, 2147483648
        %v680 = vor.u32 1.1754944e-38, %v679
        %v681 = vsel %vm678, %v680, %v676
        %v682 = vmul.f32 1.0, %v681
        %v683 = vrcp.pop %v591
        %v684 = vmul.f32 %v591, %v683
        %v685 = vsub.f32 1.0, %v684
        %v686 = vmul.f32 %v683, %v685
        %v687 = vadd.f32 %v683, %v686
        %vm688 = vweird.f32 %v591
        %vm689 = vweird.f32 %v683
        %vm690 = vmor %vm688, %vm689
        %v691 = vsel %vm690, %v683, %v687
        %v692 = vand.u32 2147483647, %v591
        %vm693 = vcmp.eq.f32.partialorder %v692, 8.507059e+37
        %v694 = vand.u32 %v591, 2147483648
        %v695 = vor.u32 1.1754944e-38, %v694
        %v696 = vsel %vm693, %v695, %v691
        %v697 = vmul.f32 1.0, %v696
        %v698 = vrcp.pop %v592
        %v699 = vmul.f32 %v592, %v698
        %v700 = vsub.f32 1.0, %v699
        %v701 = vmul.f32 %v698, %v700
        %v702 = vadd.f32 %v698, %v701
        %vm703 = vweird.f32 %v592
        %vm704 = vweird.f32 %v698
        %vm705 = vmor %vm703, %vm704
        %v706 = vsel %vm705, %v698, %v702
        %v707 = vand.u32 2147483647, %v592
        %vm708 = vcmp.eq.f32.partialorder %v707, 8.507059e+37
        %v709 = vand.u32 %v592, 2147483648
        %v710 = vor.u32 1.1754944e-38, %v709
        %v711 = vsel %vm708, %v710, %v706
        %v712 = vmul.f32 1.0, %v711
        %v713 = vmul.f32 %v553, %v607
        %v714 = vmul.f32 %v554, %v622
        %v715 = vmul.f32 %v555, %v637
        %v716 = vmul.f32 %v556, %v652
        %v717 = vmul.f32 %v557, %v667
        %v718 = vmul.f32 %v558, %v682
        %v719 = vmul.f32 %v559, %v697
        %v720 = vmul.f32 %v560, %v712
        %v721 = vpack.c.bf16 %v714, %v713
        %v722 = vpack.c.bf16 %v716, %v715
        %v723 = vpack.c.bf16 %v718, %v717
        %v724 = vpack.c.bf16 %v720, %v719
        %v725 = vld [vmem:[%s4] sm:$0xf]
        %v726 = vld [vmem:[%s4 + $0x4] sm:$0xf]
        %v727 = vld [vmem:[%s4 + $0x8] sm:$0xf]
        %v728 = vld [vmem:[%s4 + $0xc] sm:$0xf]
        %v729 = vld [vmem:[%s4 + $0x10] sm:$0xf]
        %v730 = vld [vmem:[%s4 + $0x14] sm:$0xf]
        %v731 = vld [vmem:[%s4 + $0x18] sm:$0xf]
        %v732 = vld [vmem:[%s4 + $0x1c] sm:$0xf]
        %v741 = vunpack.c.l.b16 %v725
        %v742 = vunpack.c.l.b16 %v726
        %v743 = vunpack.c.l.b16 %v727
        %v744 = vunpack.c.l.b16 %v728
        %v745 = vunpack.c.l.b16 %v729
        %v746 = vunpack.c.l.b16 %v730
        %v747 = vunpack.c.l.b16 %v731
        %v748 = vunpack.c.l.b16 %v732
        %v749 = vpack.c.b16 %v742, %v741
        %v750 = vpack.c.b16 %v744, %v743
        %v751 = vpack.c.b16 %v746, %v745
        %v752 = vpack.c.b16 %v748, %v747
        %vm757 = vcmask 523264
        %v759 = vsel %vm757, %v721, 0
        %v762 = vsel %vm757, %v722, 0
        %v765 = vsel %vm757, %v723, 0
        %v768 = vsel %vm757, %v724, 0
        %770 = vmatpush.bf16.msra.mxu0 0
        %771 = vmatpush.bf16.msra.mxu0 0
        %772 = vmatpush.bf16.msra.mxu0 0
        %773 = vmatpush.bf16.msra.mxu0 0
        %774 = vmatpush.bf16.msra.mxu0 %v752
        %775 = vmatpush.bf16.msra.mxu0 %v751
        %776 = vmatpush.bf16.msra.mxu0 %v750
        %777 = vmatpush.bf16.msra.mxu0 %v749
        %778 = vmatmul.bf16.gmra.mxu0 %v759
        %v779 = vpop.f32.mrf.mxu0
        %v780 = vadd.f32 0.0, %v779
        %v781 = vpop.f32.mrf.mxu0
        %v782 = vadd.f32 0.0, %v781
        %783 = vmatmul.bf16.gmra.mxu0 %v762
        %v784 = vpop.f32.mrf.mxu0
        %v785 = vadd.f32 0.0, %v784
        %v786 = vpop.f32.mrf.mxu0
        %v787 = vadd.f32 0.0, %v786
        %788 = vmatmul.bf16.gmra.mxu0 %v765
        %v789 = vpop.f32.mrf.mxu0
        %v790 = vadd.f32 0.0, %v789
        %v791 = vpop.f32.mrf.mxu0
        %v792 = vadd.f32 0.0, %v791
        %793 = vmatmul.bf16.gmra.mxu0 %v768
        %v794 = vpop.f32.mrf.mxu0
        %v795 = vadd.f32 0.0, %v794
        %v796 = vpop.f32.mrf.mxu0
        %v797 = vadd.f32 0.0, %v796
        %798 = vdwg.mxu0
        %v799 = vpack.c.bf16 %v782, %v780
        %v800 = vpack.c.bf16 %v787, %v785
        %v801 = vpack.c.bf16 %v792, %v790
        %v802 = vpack.c.bf16 %v797, %v795
        %v803 = vld [vmem:[%s5] sm:$0x1]
        %v804 = vld [vmem:[%s6] sm:$0x1]
        %v806 = vperm.slane %v804, 0
        %vm808 = vcmask 15360
        %v810 = vsel %vm808, %v799, 0
        %v813 = vsel %vm808, %v800, 0
        %v816 = vsel %vm808, %v801, 0
        %v819 = vsel %vm808, %v802, 0
        %vm821 = vcmask 1040384
        %v823 = vsel %vm821, %v803, 0
        %825 = vmatpush.bf16.msra.mxu0 0
        %826 = vmatpush.bf16.msra.mxu0 0
        %827 = vmatpush.bf16.msra.mxu0 0
        %828 = vmatpush.bf16.msra.mxu0 0
        %829 = vmatpush.bf16.msra.mxu0 0
        %830 = vmatpush.bf16.msra.mxu0 0
        %831 = vmatpush.bf16.msra.mxu0 0
        %832 = vmatpush.bf16.msra.mxu0 %v823
        %833 = vmatmul.bf16.gmra.mxu0 %v810
        %v834 = vpop.f32.mrf.mxu0
        %v835 = vadd.f32 %v806, %v834
        %v836 = vpop.f32.mrf.mxu0
        %v837 = vadd.f32 %v806, %v836
        %838 = vmatmul.bf16.gmra.mxu0 %v813
        %v839 = vpop.f32.mrf.mxu0
        %v840 = vadd.f32 %v806, %v839
        %v841 = vpop.f32.mrf.mxu0
        %v842 = vadd.f32 %v806, %v841
        %843 = vmatmul.bf16.gmra.mxu0 %v816
        %v844 = vpop.f32.mrf.mxu0
        %v845 = vadd.f32 %v806, %v844
        %v846 = vpop.f32.mrf.mxu0
        %v847 = vadd.f32 %v806, %v846
        %848 = vmatmul.bf16.gmra.mxu0 %v819
        %v849 = vpop.f32.mrf.mxu0
        %v850 = vadd.f32 %v806, %v849
        %v851 = vpop.f32.mrf.mxu0
        %v852 = vadd.f32 %v806, %v851
        %853 = vdwg.mxu0
        %v854 = vmax.f32 %v835, 0.0
        %v855 = vmax.f32 %v837, 0.0
        %v856 = vmax.f32 %v840, 0.0
        %v857 = vmax.f32 %v842, 0.0
        %v858 = vmax.f32 %v845, 0.0
        %v859 = vmax.f32 %v847, 0.0
        %v860 = vmax.f32 %v850, 0.0
        %v861 = vmax.f32 %v852, 0.0
        %v862 = vand.u32 2147483647, %v835
        %v863 = vand.u32 2147483647, %v837
        %v864 = vand.u32 2147483647, %v840
        %v865 = vand.u32 2147483647, %v842
        %v866 = vand.u32 2147483647, %v845
        %v867 = vand.u32 2147483647, %v847
        %v868 = vand.u32 2147483647, %v850
        %v869 = vand.u32 2147483647, %v852
        %v870 = vsub.f32 0.0, %v862
        %v871 = vsub.f32 0.0, %v863
        %v872 = vsub.f32 0.0, %v864
        %v873 = vsub.f32 0.0, %v865
        %v874 = vsub.f32 0.0, %v866
        %v875 = vsub.f32 0.0, %v867
        %v876 = vsub.f32 0.0, %v868
        %v877 = vsub.f32 0.0, %v869
        %v878 = vmul.f32 %v870, 1.442695
        %v879 = vpow.pop %v878
        %v880 = vmul.f32 %v871, 1.442695
        %v881 = vpow.pop %v880
        %v882 = vmul.f32 %v872, 1.442695
        %v883 = vpow.pop %v882
        %v884 = vmul.f32 %v873, 1.442695
        %v885 = vpow.pop %v884
        %v886 = vmul.f32 %v874, 1.442695
        %v887 = vpow.pop %v886
        %v888 = vmul.f32 %v875, 1.442695
        %v889 = vpow.pop %v888
        %v890 = vmul.f32 %v876, 1.442695
        %v891 = vpow.pop %v890
        %v892 = vmul.f32 %v877, 1.442695
        %v893 = vpow.pop %v892
        %v894 = vadd.f32 %v879, 1.0
        %v895 = vlog2.pop %v894
        %v896 = vmul.f32 %v895, 0.6931472
        %v897 = vmul.f32 -0.5, %v879
        %v898 = vadd.f32 %v897, 1.0
        %v899 = vmul.f32 %v898, %v879
        %v900 = vand.u32 2147483647, %v879
        %vm901 = vcmp.lt.f32.partialorder %v900, 0.0004427343
        %v902 = vsel %vm901, %v899, %v896
        %v903 = vadd.f32 %v881, 1.0
        %v904 = vlog2.pop %v903
        %v905 = vmul.f32 %v904, 0.6931472
        %v906 = vmul.f32 -0.5, %v881
        %v907 = vadd.f32 %v906, 1.0
        %v908 = vmul.f32 %v907, %v881
        %v909 = vand.u32 2147483647, %v881
        %vm910 = vcmp.lt.f32.partialorder %v909, 0.0004427343
        %v911 = vsel %vm910, %v908, %v905
        %v912 = vadd.f32 %v883, 1.0
        %v913 = vlog2.pop %v912
        %v914 = vmul.f32 %v913, 0.6931472
        %v915 = vmul.f32 -0.5, %v883
        %v916 = vadd.f32 %v915, 1.0
        %v917 = vmul.f32 %v916, %v883
        %v918 = vand.u32 2147483647, %v883
        %vm919 = vcmp.lt.f32.partialorder %v918, 0.0004427343
        %v920 = vsel %vm919, %v917, %v914
        %v921 = vadd.f32 %v885, 1.0
        %v922 = vlog2.pop %v921
        %v923 = vmul.f32 %v922, 0.6931472
        %v924 = vmul.f32 -0.5, %v885
        %v925 = vadd.f32 %v924, 1.0
        %v926 = vmul.f32 %v925, %v885
        %v927 = vand.u32 2147483647, %v885
        %vm928 = vcmp.lt.f32.partialorder %v927, 0.0004427343
        %v929 = vsel %vm928, %v926, %v923
        %v930 = vadd.f32 %v887, 1.0
        %v931 = vlog2.pop %v930
        %v932 = vmul.f32 %v931, 0.6931472
        %v933 = vmul.f32 -0.5, %v887
        %v934 = vadd.f32 %v933, 1.0
        %v935 = vmul.f32 %v934, %v887
        %v936 = vand.u32 2147483647, %v887
        %vm937 = vcmp.lt.f32.partialorder %v936, 0.0004427343
        %v938 = vsel %vm937, %v935, %v932
        %v939 = vadd.f32 %v889, 1.0
        %v940 = vlog2.pop %v939
        %v941 = vmul.f32 %v940, 0.6931472
        %v942 = vmul.f32 -0.5, %v889
        %v943 = vadd.f32 %v942, 1.0
        %v944 = vmul.f32 %v943, %v889
        %v945 = vand.u32 2147483647, %v889
        %vm946 = vcmp.lt.f32.partialorder %v945, 0.0004427343
        %v947 = vsel %vm946, %v944, %v941
        %v948 = vadd.f32 %v891, 1.0
        %v949 = vlog2.pop %v948
        %v950 = vmul.f32 %v949, 0.6931472
        %v951 = vmul.f32 -0.5, %v891
        %v952 = vadd.f32 %v951, 1.0
        %v953 = vmul.f32 %v952, %v891
        %v954 = vand.u32 2147483647, %v891
        %vm955 = vcmp.lt.f32.partialorder %v954, 0.0004427343
        %v956 = vsel %vm955, %v953, %v950
        %v957 = vadd.f32 %v893, 1.0
        %v958 = vlog2.pop %v957
        %v959 = vmul.f32 %v958, 0.6931472
        %v960 = vmul.f32 -0.5, %v893
        %v961 = vadd.f32 %v960, 1.0
        %v962 = vmul.f32 %v961, %v893
        %v963 = vand.u32 2147483647, %v893
        %vm964 = vcmp.lt.f32.partialorder %v963, 0.0004427343
        %v965 = vsel %vm964, %v962, %v959
        %v966 = vadd.f32 %v854, %v902
        %v967 = vadd.f32 %v855, %v911
        %v968 = vadd.f32 %v856, %v920
        %v969 = vadd.f32 %v857, %v929
        %v970 = vadd.f32 %v858, %v938
        %v971 = vadd.f32 %v859, %v947
        %v972 = vadd.f32 %v860, %v956
        %v973 = vadd.f32 %v861, %v965
        %982 = vrot.lane.b32.xlu0 %v966, 64
        %v983 = vpop.permute.xlu0 %982
        %984 = vrot.lane.b32.xlu0 %v967, 64
        %v985 = vpop.permute.xlu0 %984
        %986 = vrot.lane.b32.xlu0 %v968, 64
        %v987 = vpop.permute.xlu0 %986
        %988 = vrot.lane.b32.xlu0 %v969, 64
        %v989 = vpop.permute.xlu0 %988
        %990 = vrot.lane.b32.xlu0 %v970, 64
        %v991 = vpop.permute.xlu0 %990
        %992 = vrot.lane.b32.xlu0 %v971, 64
        %v993 = vpop.permute.xlu0 %992
        %994 = vrot.lane.b32.xlu0 %v972, 64
        %v995 = vpop.permute.xlu0 %994
        %996 = vrot.lane.b32.xlu0 %v973, 64
        %v997 = vpop.permute.xlu0 %996
        %v1006 = vsel %vm757, %v966, %v983
        %v1007 = vsel %vm757, %v967, %v985
        %v1008 = vsel %vm757, %v968, %v987
        %v1009 = vsel %vm757, %v969, %v989
        %v1010 = vsel %vm757, %v970, %v991
        %v1011 = vsel %vm757, %v971, %v993
        %v1012 = vsel %vm757, %v972, %v995
        %v1013 = vsel %vm757, %v973, %v997
        %v1014 = vmul.f32 %v966, %v713
        %v1015 = vmul.f32 %v967, %v714
        %v1016 = vmul.f32 %v968, %v715
        %v1017 = vmul.f32 %v969, %v716
        %v1018 = vmul.f32 %v970, %v717
        %v1019 = vmul.f32 %v971, %v718
        %v1020 = vmul.f32 %v972, %v719
        %v1021 = vmul.f32 %v973, %v720
        %1030 = vrot.lane.b32.xlu0 %v1014, 64
        %v1031 = vpop.permute.xlu0 %1030
        %1032 = vrot.lane.b32.xlu0 %v1015, 64
        %v1033 = vpop.permute.xlu0 %1032
        %1034 = vrot.lane.b32.xlu0 %v1016, 64
        %v1035 = vpop.permute.xlu0 %1034
        %1036 = vrot.lane.b32.xlu0 %v1017, 64
        %v1037 = vpop.permute.xlu0 %1036
        %1038 = vrot.lane.b32.xlu0 %v1018, 64
        %v1039 = vpop.permute.xlu0 %1038
        %1040 = vrot.lane.b32.xlu0 %v1019, 64
        %v1041 = vpop.permute.xlu0 %1040
        %1042 = vrot.lane.b32.xlu0 %v1020, 64
        %v1043 = vpop.permute.xlu0 %1042
        %1044 = vrot.lane.b32.xlu0 %v1021, 64
        %v1045 = vpop.permute.xlu0 %1044
        %v1054 = vsel %vm757, %v1014, %v1031
        %v1055 = vsel %vm757, %v1015, %v1033
        %v1056 = vsel %vm757, %v1016, %v1035
        %v1057 = vsel %vm757, %v1017, %v1037
        %v1058 = vsel %vm757, %v1018, %v1039
        %v1059 = vsel %vm757, %v1019, %v1041
        %v1060 = vsel %vm757, %v1020, %v1043
        %v1061 = vsel %vm757, %v1021, %v1045
        %v1062 = vld [vmem:[%s7] sm:$0xff]
        %v1064 = vperm.slane %v1062, 0
        %v1065 = vperm.slane %v1062, 1
        %v1066 = vperm.slane %v1062, 2
        %v1067 = vperm.slane %v1062, 3
        %v1068 = vperm.slane %v1062, 4
        %v1069 = vperm.slane %v1062, 5
        %v1070 = vperm.slane %v1062, 6
        %v1071 = vperm.slane %v1062, 7
        %v1080 = vmul.f32 %v1006, %v1064
        %v1081 = vmul.f32 %v1006, %v1065
        %v1082 = vmul.f32 %v1006, %v1066
        %v1083 = vmul.f32 %v1006, %v1067
        %v1084 = vmul.f32 %v1006, %v1068
        %v1085 = vmul.f32 %v1006, %v1069
        %v1086 = vmul.f32 %v1006, %v1070
        %v1087 = vmul.f32 %v1006, %v1071
        %v1088 = vmul.f32 %v1007, %v1064
        %v1089 = vmul.f32 %v1007, %v1065
        %v1090 = vmul.f32 %v1007, %v1066
        %v1091 = vmul.f32 %v1007, %v1067
        %v1092 = vmul.f32 %v1007, %v1068
        %v1093 = vmul.f32 %v1007, %v1069
        %v1094 = vmul.f32 %v1007, %v1070
        %v1095 = vmul.f32 %v1007, %v1071
        %v1096 = vmul.f32 %v1008, %v1064
        %v1097 = vmul.f32 %v1008, %v1065
        %v1098 = vmul.f32 %v1008, %v1066
        %v1099 = vmul.f32 %v1008, %v1067
        %v1100 = vmul.f32 %v1008, %v1068
        %v1101 = vmul.f32 %v1008, %v1069
        %v1102 = vmul.f32 %v1008, %v1070
        %v1103 = vmul.f32 %v1008, %v1071
        %v1104 = vmul.f32 %v1009, %v1064
        %v1105 = vmul.f32 %v1009, %v1065
        %v1106 = vmul.f32 %v1009, %v1066
        %v1107 = vmul.f32 %v1009, %v1067
        %v1108 = vmul.f32 %v1009, %v1068
        %v1109 = vmul.f32 %v1009, %v1069
        %v1110 = vmul.f32 %v1009, %v1070
        %v1111 = vmul.f32 %v1009, %v1071
        %v1112 = vmul.f32 %v1010, %v1064
        %v1113 = vmul.f32 %v1010, %v1065
        %v1114 = vmul.f32 %v1010, %v1066
        %v1115 = vmul.f32 %v1010, %v1067
        %v1116 = vmul.f32 %v1010, %v1068
        %v1117 = vmul.f32 %v1010, %v1069
        %v1118 = vmul.f32 %v1010, %v1070
        %v1119 = vmul.f32 %v1010, %v1071
        %v1120 = vmul.f32 %v1011, %v1064
        %v1121 = vmul.f32 %v1011, %v1065
        %v1122 = vmul.f32 %v1011, %v1066
        %v1123 = vmul.f32 %v1011, %v1067
        %v1124 = vmul.f32 %v1011, %v1068
        %v1125 = vmul.f32 %v1011, %v1069
        %v1126 = vmul.f32 %v1011, %v1070
        %v1127 = vmul.f32 %v1011, %v1071
        %v1128 = vmul.f32 %v1012, %v1064
        %v1129 = vmul.f32 %v1012, %v1065
        %v1130 = vmul.f32 %v1012, %v1066
        %v1131 = vmul.f32 %v1012, %v1067
        %v1132 = vmul.f32 %v1012, %v1068
        %v1133 = vmul.f32 %v1012, %v1069
        %v1134 = vmul.f32 %v1012, %v1070
        %v1135 = vmul.f32 %v1012, %v1071
        %v1136 = vmul.f32 %v1013, %v1064
        %v1137 = vmul.f32 %v1013, %v1065
        %v1138 = vmul.f32 %v1013, %v1066
        %v1139 = vmul.f32 %v1013, %v1067
        %v1140 = vmul.f32 %v1013, %v1068
        %v1141 = vmul.f32 %v1013, %v1069
        %v1142 = vmul.f32 %v1013, %v1070
        %v1143 = vmul.f32 %v1013, %v1071
        %v1144 = vmul.f32 %v1080, 1.442695
        %v1145 = vpow.pop %v1144
        %v1146 = vmul.f32 %v1081, 1.442695
        %v1147 = vpow.pop %v1146
        %v1148 = vmul.f32 %v1082, 1.442695
        %v1149 = vpow.pop %v1148
        %v1150 = vmul.f32 %v1083, 1.442695
        %v1151 = vpow.pop %v1150
        %v1152 = vmul.f32 %v1084, 1.442695
        %v1153 = vpow.pop %v1152
        %v1154 = vmul.f32 %v1085, 1.442695
        %v1155 = vpow.pop %v1154
        %v1156 = vmul.f32 %v1086, 1.442695
        %v1157 = vpow.pop %v1156
        %v1158 = vmul.f32 %v1087, 1.442695
        %v1159 = vpow.pop %v1158
        %v1160 = vmul.f32 %v1088, 1.442695
        %v1161 = vpow.pop %v1160
        %v1162 = vmul.f32 %v1089, 1.442695
        %v1163 = vpow.pop %v1162
        %v1164 = vmul.f32 %v1090, 1.442695
        %v1165 = vpow.pop %v1164
        %v1166 = vmul.f32 %v1091, 1.442695
        %v1167 = vpow.pop %v1166
        %v1168 = vmul.f32 %v1092, 1.442695
        %v1169 = vpow.pop %v1168
        %v1170 = vmul.f32 %v1093, 1.442695
        %v1171 = vpow.pop %v1170
        %v1172 = vmul.f32 %v1094, 1.442695
        %v1173 = vpow.pop %v1172
        %v1174 = vmul.f32 %v1095, 1.442695
        %v1175 = vpow.pop %v1174
        %v1176 = vmul.f32 %v1096, 1.442695
        %v1177 = vpow.pop %v1176
        %v1178 = vmul.f32 %v1097, 1.442695
        %v1179 = vpow.pop %v1178
        %v1180 = vmul.f32 %v1098, 1.442695
        %v1181 = vpow.pop %v1180
        %v1182 = vmul.f32 %v1099, 1.442695
        %v1183 = vpow.pop %v1182
        %v1184 = vmul.f32 %v1100, 1.442695
        %v1185 = vpow.pop %v1184
        %v1186 = vmul.f32 %v1101, 1.442695
        %v1187 = vpow.pop %v1186
        %v1188 = vmul.f32 %v1102, 1.442695
        %v1189 = vpow.pop %v1188
        %v1190 = vmul.f32 %v1103, 1.442695
        %v1191 = vpow.pop %v1190
        %v1192 = vmul.f32 %v1104, 1.442695
        %v1193 = vpow.pop %v1192
        %v1194 = vmul.f32 %v1105, 1.442695
        %v1195 = vpow.pop %v1194
        %v1196 = vmul.f32 %v1106, 1.442695
        %v1197 = vpow.pop %v1196
        %v1198 = vmul.f32 %v1107, 1.442695
        %v1199 = vpow.pop %v1198
        %v1200 = vmul.f32 %v1108, 1.442695
        %v1201 = vpow.pop %v1200
        %v1202 = vmul.f32 %v1109, 1.442695
        %v1203 = vpow.pop %v1202
        %v1204 = vmul.f32 %v1110, 1.442695
        %v1205 = vpow.pop %v1204
        %v1206 = vmul.f32 %v1111, 1.442695
        %v1207 = vpow.pop %v1206
        %v1208 = vmul.f32 %v1112, 1.442695
        %v1209 = vpow.pop %v1208
        %v1210 = vmul.f32 %v1113, 1.442695
        %v1211 = vpow.pop %v1210
        %v1212 = vmul.f32 %v1114, 1.442695
        %v1213 = vpow.pop %v1212
        %v1214 = vmul.f32 %v1115, 1.442695
        %v1215 = vpow.pop %v1214
        %v1216 = vmul.f32 %v1116, 1.442695
        %v1217 = vpow.pop %v1216
        %v1218 = vmul.f32 %v1117, 1.442695
        %v1219 = vpow.pop %v1218
        %v1220 = vmul.f32 %v1118, 1.442695
        %v1221 = vpow.pop %v1220
        %v1222 = vmul.f32 %v1119, 1.442695
        %v1223 = vpow.pop %v1222
        %v1224 = vmul.f32 %v1120, 1.442695
        %v1225 = vpow.pop %v1224
        %v1226 = vmul.f32 %v1121, 1.442695
        %v1227 = vpow.pop %v1226
        %v1228 = vmul.f32 %v1122, 1.442695
        %v1229 = vpow.pop %v1228
        %v1230 = vmul.f32 %v1123, 1.442695
        %v1231 = vpow.pop %v1230
        %v1232 = vmul.f32 %v1124, 1.442695
        %v1233 = vpow.pop %v1232
        %v1234 = vmul.f32 %v1125, 1.442695
        %v1235 = vpow.pop %v1234
        %v1236 = vmul.f32 %v1126, 1.442695
        %v1237 = vpow.pop %v1236
        %v1238 = vmul.f32 %v1127, 1.442695
        %v1239 = vpow.pop %v1238
        %v1240 = vmul.f32 %v1128, 1.442695
        %v1241 = vpow.pop %v1240
        %v1242 = vmul.f32 %v1129, 1.442695
        %v1243 = vpow.pop %v1242
        %v1244 = vmul.f32 %v1130, 1.442695
        %v1245 = vpow.pop %v1244
        %v1246 = vmul.f32 %v1131, 1.442695
        %v1247 = vpow.pop %v1246
        %v1248 = vmul.f32 %v1132, 1.442695
        %v1249 = vpow.pop %v1248
        %v1250 = vmul.f32 %v1133, 1.442695
        %v1251 = vpow.pop %v1250
        %v1252 = vmul.f32 %v1134, 1.442695
        %v1253 = vpow.pop %v1252
        %v1254 = vmul.f32 %v1135, 1.442695
        %v1255 = vpow.pop %v1254
        %v1256 = vmul.f32 %v1136, 1.442695
        %v1257 = vpow.pop %v1256
        %v1258 = vmul.f32 %v1137, 1.442695
        %v1259 = vpow.pop %v1258
        %v1260 = vmul.f32 %v1138, 1.442695
        %v1261 = vpow.pop %v1260
        %v1262 = vmul.f32 %v1139, 1.442695
        %v1263 = vpow.pop %v1262
        %v1264 = vmul.f32 %v1140, 1.442695
        %v1265 = vpow.pop %v1264
        %v1266 = vmul.f32 %v1141, 1.442695
        %v1267 = vpow.pop %v1266
        %v1268 = vmul.f32 %v1142, 1.442695
        %v1269 = vpow.pop %v1268
        %v1270 = vmul.f32 %v1143, 1.442695
        %v1271 = vpow.pop %v1270
        %1273 = vset.pattern.permute.xlu0 2
        %1274 = vperm.xlu0 %1273, %v780
        %v1275 = vpop.permute.xlu0 %1274
        %1278 = vset.pattern.permute.xlu0 2
        %1279 = vperm.xlu0 %1278, %v782
        %v1280 = vpop.permute.xlu0 %1279
        %1283 = vset.pattern.permute.xlu0 2
        %1284 = vperm.xlu0 %1283, %v785
        %v1285 = vpop.permute.xlu0 %1284
        %1288 = vset.pattern.permute.xlu0 2
        %1289 = vperm.xlu0 %1288, %v787
        %v1290 = vpop.permute.xlu0 %1289
        %1293 = vset.pattern.permute.xlu0 2
        %1294 = vperm.xlu0 %1293, %v790
        %v1295 = vpop.permute.xlu0 %1294
        %1298 = vset.pattern.permute.xlu0 2
        %1299 = vperm.xlu0 %1298, %v792
        %v1300 = vpop.permute.xlu0 %1299
        %1303 = vset.pattern.permute.xlu0 2
        %1304 = vperm.xlu0 %1303, %v795
        %v1305 = vpop.permute.xlu0 %1304
        %1308 = vset.pattern.permute.xlu0 2
        %1309 = vperm.xlu0 %1308, %v797
        %v1310 = vpop.permute.xlu0 %1309
        %1312 = vset.pattern.permute.xlu0 3
        %1313 = vperm.xlu0 %1312, %v780
        %v1314 = vpop.permute.xlu0 %1313
        %1316 = vset.pattern.permute.xlu0 3
        %1317 = vperm.xlu0 %1316, %v782
        %v1318 = vpop.permute.xlu0 %1317
        %1320 = vset.pattern.permute.xlu0 3
        %1321 = vperm.xlu0 %1320, %v785
        %v1322 = vpop.permute.xlu0 %1321
        %1324 = vset.pattern.permute.xlu0 3
        %1325 = vperm.xlu0 %1324, %v787
        %v1326 = vpop.permute.xlu0 %1325
        %1328 = vset.pattern.permute.xlu0 3
        %1329 = vperm.xlu0 %1328, %v790
        %v1330 = vpop.permute.xlu0 %1329
        %1332 = vset.pattern.permute.xlu0 3
        %1333 = vperm.xlu0 %1332, %v792
        %v1334 = vpop.permute.xlu0 %1333
        %1336 = vset.pattern.permute.xlu0 3
        %1337 = vperm.xlu0 %1336, %v795
        %v1338 = vpop.permute.xlu0 %1337
        %1340 = vset.pattern.permute.xlu0 3
        %1341 = vperm.xlu0 %1340, %v797
        %v1342 = vpop.permute.xlu0 %1341
        %1344 = vset.pattern.permute.xlu0 4
        %1345 = vperm.xlu0 %1344, %v780
        %v1346 = vpop.permute.xlu0 %1345
        %1348 = vset.pattern.permute.xlu0 4
        %1349 = vperm.xlu0 %1348, %v782
        %v1350 = vpop.permute.xlu0 %1349
        %1352 = vset.pattern.permute.xlu0 4
        %1353 = vperm.xlu0 %1352, %v785
        %v1354 = vpop.permute.xlu0 %1353
        %1356 = vset.pattern.permute.xlu0 4
        %1357 = vperm.xlu0 %1356, %v787
        %v1358 = vpop.permute.xlu0 %1357
        %1360 = vset.pattern.permute.xlu0 4
        %1361 = vperm.xlu0 %1360, %v790
        %v1362 = vpop.permute.xlu0 %1361
        %1364 = vset.pattern.permute.xlu0 4
        %1365 = vperm.xlu0 %1364, %v792
        %v1366 = vpop.permute.xlu0 %1365
        %1368 = vset.pattern.permute.xlu0 4
        %1369 = vperm.xlu0 %1368, %v795
        %v1370 = vpop.permute.xlu0 %1369
        %1372 = vset.pattern.permute.xlu0 4
        %1373 = vperm.xlu0 %1372, %v797
        %v1374 = vpop.permute.xlu0 %1373
        %1376 = vset.pattern.permute.xlu0 5
        %1377 = vperm.xlu0 %1376, %v780
        %v1378 = vpop.permute.xlu0 %1377
        %1380 = vset.pattern.permute.xlu0 5
        %1381 = vperm.xlu0 %1380, %v782
        %v1382 = vpop.permute.xlu0 %1381
        %1384 = vset.pattern.permute.xlu0 5
        %1385 = vperm.xlu0 %1384, %v785
        %v1386 = vpop.permute.xlu0 %1385
        %1388 = vset.pattern.permute.xlu0 5
        %1389 = vperm.xlu0 %1388, %v787
        %v1390 = vpop.permute.xlu0 %1389
        %1392 = vset.pattern.permute.xlu0 5
        %1393 = vperm.xlu0 %1392, %v790
        %v1394 = vpop.permute.xlu0 %1393
        %1396 = vset.pattern.permute.xlu0 5
        %1397 = vperm.xlu0 %1396, %v792
        %v1398 = vpop.permute.xlu0 %1397
        %1400 = vset.pattern.permute.xlu0 5
        %1401 = vperm.xlu0 %1400, %v795
        %v1402 = vpop.permute.xlu0 %1401
        %1404 = vset.pattern.permute.xlu0 5
        %1405 = vperm.xlu0 %1404, %v797
        %v1406 = vpop.permute.xlu0 %1405
        %1408 = vset.pattern.permute.xlu0 6
        %1409 = vperm.xlu0 %1408, %v780
        %v1410 = vpop.permute.xlu0 %1409
        %1412 = vset.pattern.permute.xlu0 6
        %1413 = vperm.xlu0 %1412, %v782
        %v1414 = vpop.permute.xlu0 %1413
        %1416 = vset.pattern.permute.xlu0 6
        %1417 = vperm.xlu0 %1416, %v785
        %v1418 = vpop.permute.xlu0 %1417
        %1420 = vset.pattern.permute.xlu0 6
        %1421 = vperm.xlu0 %1420, %v787
        %v1422 = vpop.permute.xlu0 %1421
        %1424 = vset.pattern.permute.xlu0 6
        %1425 = vperm.xlu0 %1424, %v790
        %v1426 = vpop.permute.xlu0 %1425
        %1428 = vset.pattern.permute.xlu0 6
        %1429 = vperm.xlu0 %1428, %v792
        %v1430 = vpop.permute.xlu0 %1429
        %1432 = vset.pattern.permute.xlu0 6
        %1433 = vperm.xlu0 %1432, %v795
        %v1434 = vpop.permute.xlu0 %1433
        %1436 = vset.pattern.permute.xlu0 6
        %1437 = vperm.xlu0 %1436, %v797
        %v1438 = vpop.permute.xlu0 %1437
        %1440 = vset.pattern.permute.xlu0 7
        %1441 = vperm.xlu0 %1440, %v780
        %v1442 = vpop.permute.xlu0 %1441
        %1444 = vset.pattern.permute.xlu0 7
        %1445 = vperm.xlu0 %1444, %v782
        %v1446 = vpop.permute.xlu0 %1445
        %1448 = vset.pattern.permute.xlu0 7
        %1449 = vperm.xlu0 %1448, %v785
        %v1450 = vpop.permute.xlu0 %1449
        %1452 = vset.pattern.permute.xlu0 7
        %1453 = vperm.xlu0 %1452, %v787
        %v1454 = vpop.permute.xlu0 %1453
        %1456 = vset.pattern.permute.xlu0 7
        %1457 = vperm.xlu0 %1456, %v790
        %v1458 = vpop.permute.xlu0 %1457
        %1460 = vset.pattern.permute.xlu0 7
        %1461 = vperm.xlu0 %1460, %v792
        %v1462 = vpop.permute.xlu0 %1461
        %1464 = vset.pattern.permute.xlu0 7
        %1465 = vperm.xlu0 %1464, %v795
        %v1466 = vpop.permute.xlu0 %1465
        %1468 = vset.pattern.permute.xlu0 7
        %1469 = vperm.xlu0 %1468, %v797
        %v1470 = vpop.permute.xlu0 %1469
        %1472 = vset.pattern.permute.xlu0 8
        %1473 = vperm.xlu0 %1472, %v780
        %v1474 = vpop.permute.xlu0 %1473
        %1476 = vset.pattern.permute.xlu0 8
        %1477 = vperm.xlu0 %1476, %v782
        %v1478 = vpop.permute.xlu0 %1477
        %1480 = vset.pattern.permute.xlu0 8
        %1481 = vperm.xlu0 %1480, %v785
        %v1482 = vpop.permute.xlu0 %1481
        %1484 = vset.pattern.permute.xlu0 8
        %1485 = vperm.xlu0 %1484, %v787
        %v1486 = vpop.permute.xlu0 %1485
        %1488 = vset.pattern.permute.xlu0 8
        %1489 = vperm.xlu0 %1488, %v790
        %v1490 = vpop.permute.xlu0 %1489
        %1492 = vset.pattern.permute.xlu0 8
        %1493 = vperm.xlu0 %1492, %v792
        %v1494 = vpop.permute.xlu0 %1493
        %1496 = vset.pattern.permute.xlu0 8
        %1497 = vperm.xlu0 %1496, %v795
        %v1498 = vpop.permute.xlu0 %1497
        %1500 = vset.pattern.permute.xlu0 8
        %1501 = vperm.xlu0 %1500, %v797
        %v1502 = vpop.permute.xlu0 %1501
        %1504 = vset.pattern.permute.xlu0 9
        %1505 = vperm.xlu0 %1504, %v780
        %v1506 = vpop.permute.xlu0 %1505
        %1508 = vset.pattern.permute.xlu0 9
        %1509 = vperm.xlu0 %1508, %v782
        %v1510 = vpop.permute.xlu0 %1509
        %1512 = vset.pattern.permute.xlu0 9
        %1513 = vperm.xlu0 %1512, %v785
        %v1514 = vpop.permute.xlu0 %1513
        %1516 = vset.pattern.permute.xlu0 9
        %1517 = vperm.xlu0 %1516, %v787
        %v1518 = vpop.permute.xlu0 %1517
        %1520 = vset.pattern.permute.xlu0 9
        %1521 = vperm.xlu0 %1520, %v790
        %v1522 = vpop.permute.xlu0 %1521
        %1524 = vset.pattern.permute.xlu0 9
        %1525 = vperm.xlu0 %1524, %v792
        %v1526 = vpop.permute.xlu0 %1525
        %1528 = vset.pattern.permute.xlu0 9
        %1529 = vperm.xlu0 %1528, %v795
        %v1530 = vpop.permute.xlu0 %1529
        %1532 = vset.pattern.permute.xlu0 9
        %1533 = vperm.xlu0 %1532, %v797
        %v1534 = vpop.permute.xlu0 %1533
        %1536 = vset.pattern.permute.xlu0 10
        %1537 = vperm.xlu0 %1536, %v780
        %v1538 = vpop.permute.xlu0 %1537
        %1540 = vset.pattern.permute.xlu0 10
        %1541 = vperm.xlu0 %1540, %v782
        %v1542 = vpop.permute.xlu0 %1541
        %1544 = vset.pattern.permute.xlu0 10
        %1545 = vperm.xlu0 %1544, %v785
        %v1546 = vpop.permute.xlu0 %1545
        %1548 = vset.pattern.permute.xlu0 10
        %1549 = vperm.xlu0 %1548, %v787
        %v1550 = vpop.permute.xlu0 %1549
        %1552 = vset.pattern.permute.xlu0 10
        %1553 = vperm.xlu0 %1552, %v790
        %v1554 = vpop.permute.xlu0 %1553
        %1556 = vset.pattern.permute.xlu0 10
        %1557 = vperm.xlu0 %1556, %v792
        %v1558 = vpop.permute.xlu0 %1557
        %1560 = vset.pattern.permute.xlu0 10
        %1561 = vperm.xlu0 %1560, %v795
        %v1562 = vpop.permute.xlu0 %1561
        %1564 = vset.pattern.permute.xlu0 10
        %1565 = vperm.xlu0 %1564, %v797
        %v1566 = vpop.permute.xlu0 %1565
        %1568 = vset.pattern.permute.xlu0 11
        %1569 = vperm.xlu0 %1568, %v780
        %v1570 = vpop.permute.xlu0 %1569
        %1572 = vset.pattern.permute.xlu0 11
        %1573 = vperm.xlu0 %1572, %v782
        %v1574 = vpop.permute.xlu0 %1573
        %1576 = vset.pattern.permute.xlu0 11
        %1577 = vperm.xlu0 %1576, %v785
        %v1578 = vpop.permute.xlu0 %1577
        %1580 = vset.pattern.permute.xlu0 11
        %1581 = vperm.xlu0 %1580, %v787
        %v1582 = vpop.permute.xlu0 %1581
        %1584 = vset.pattern.permute.xlu0 11
        %1585 = vperm.xlu0 %1584, %v790
        %v1586 = vpop.permute.xlu0 %1585
        %1588 = vset.pattern.permute.xlu0 11
        %1589 = vperm.xlu0 %1588, %v792
        %v1590 = vpop.permute.xlu0 %1589
        %1592 = vset.pattern.permute.xlu0 11
        %1593 = vperm.xlu0 %1592, %v795
        %v1594 = vpop.permute.xlu0 %1593
        %1596 = vset.pattern.permute.xlu0 11
        %1597 = vperm.xlu0 %1596, %v797
        %v1598 = vpop.permute.xlu0 %1597
        %1600 = vset.pattern.permute.xlu0 12
        %1601 = vperm.xlu0 %1600, %v780
        %v1602 = vpop.permute.xlu0 %1601
        %1604 = vset.pattern.permute.xlu0 12
        %1605 = vperm.xlu0 %1604, %v782
        %v1606 = vpop.permute.xlu0 %1605
        %1608 = vset.pattern.permute.xlu0 12
        %1609 = vperm.xlu0 %1608, %v785
        %v1610 = vpop.permute.xlu0 %1609
        %1612 = vset.pattern.permute.xlu0 12
        %1613 = vperm.xlu0 %1612, %v787
        %v1614 = vpop.permute.xlu0 %1613
        %1616 = vset.pattern.permute.xlu0 12
        %1617 = vperm.xlu0 %1616, %v790
        %v1618 = vpop.permute.xlu0 %1617
        %1620 = vset.pattern.permute.xlu0 12
        %1621 = vperm.xlu0 %1620, %v792
        %v1622 = vpop.permute.xlu0 %1621
        %1624 = vset.pattern.permute.xlu0 12
        %1625 = vperm.xlu0 %1624, %v795
        %v1626 = vpop.permute.xlu0 %1625
        %1628 = vset.pattern.permute.xlu0 12
        %1629 = vperm.xlu0 %1628, %v797
        %v1630 = vpop.permute.xlu0 %1629
        %1632 = vset.pattern.permute.xlu0 13
        %1633 = vperm.xlu0 %1632, %v780
        %v1634 = vpop.permute.xlu0 %1633
        %1636 = vset.pattern.permute.xlu0 13
        %1637 = vperm.xlu0 %1636, %v782
        %v1638 = vpop.permute.xlu0 %1637
        %1640 = vset.pattern.permute.xlu0 13
        %1641 = vperm.xlu0 %1640, %v785
        %v1642 = vpop.permute.xlu0 %1641
        %1644 = vset.pattern.permute.xlu0 13
        %1645 = vperm.xlu0 %1644, %v787
        %v1646 = vpop.permute.xlu0 %1645
        %1648 = vset.pattern.permute.xlu0 13
        %1649 = vperm.xlu0 %1648, %v790
        %v1650 = vpop.permute.xlu0 %1649
        %1652 = vset.pattern.permute.xlu0 13
        %1653 = vperm.xlu0 %1652, %v792
        %v1654 = vpop.permute.xlu0 %1653
        %1656 = vset.pattern.permute.xlu0 13
        %1657 = vperm.xlu0 %1656, %v795
        %v1658 = vpop.permute.xlu0 %1657
        %1660 = vset.pattern.permute.xlu0 13
        %1661 = vperm.xlu0 %1660, %v797
        %v1662 = vpop.permute.xlu0 %1661
        %1664 = vset.pattern.permute.xlu0 14
        %1665 = vperm.xlu0 %1664, %v780
        %v1666 = vpop.permute.xlu0 %1665
        %1668 = vset.pattern.permute.xlu0 14
        %1669 = vperm.xlu0 %1668, %v782
        %v1670 = vpop.permute.xlu0 %1669
        %1672 = vset.pattern.permute.xlu0 14
        %1673 = vperm.xlu0 %1672, %v785
        %v1674 = vpop.permute.xlu0 %1673
        %1676 = vset.pattern.permute.xlu0 14
        %1677 = vperm.xlu0 %1676, %v787
        %v1678 = vpop.permute.xlu0 %1677
        %1680 = vset.pattern.permute.xlu0 14
        %1681 = vperm.xlu0 %1680, %v790
        %v1682 = vpop.permute.xlu0 %1681
        %1684 = vset.pattern.permute.xlu0 14
        %1685 = vperm.xlu0 %1684, %v792
        %v1686 = vpop.permute.xlu0 %1685
        %1688 = vset.pattern.permute.xlu0 14
        %1689 = vperm.xlu0 %1688, %v795
        %v1690 = vpop.permute.xlu0 %1689
        %1692 = vset.pattern.permute.xlu0 14
        %1693 = vperm.xlu0 %1692, %v797
        %v1694 = vpop.permute.xlu0 %1693
        %1696 = vset.pattern.permute.xlu0 15
        %1697 = vperm.xlu0 %1696, %v780
        %v1698 = vpop.permute.xlu0 %1697
        %1700 = vset.pattern.permute.xlu0 15
        %1701 = vperm.xlu0 %1700, %v782
        %v1702 = vpop.permute.xlu0 %1701
        %1704 = vset.pattern.permute.xlu0 15
        %1705 = vperm.xlu0 %1704, %v785
        %v1706 = vpop.permute.xlu0 %1705
        %1708 = vset.pattern.permute.xlu0 15
        %1709 = vperm.xlu0 %1708, %v787
        %v1710 = vpop.permute.xlu0 %1709
        %1712 = vset.pattern.permute.xlu0 15
        %1713 = vperm.xlu0 %1712, %v790
        %v1714 = vpop.permute.xlu0 %1713
        %1716 = vset.pattern.permute.xlu0 15
        %1717 = vperm.xlu0 %1716, %v792
        %v1718 = vpop.permute.xlu0 %1717
        %1720 = vset.pattern.permute.xlu0 15
        %1721 = vperm.xlu0 %1720, %v795
        %v1722 = vpop.permute.xlu0 %1721
        %1724 = vset.pattern.permute.xlu0 15
        %1725 = vperm.xlu0 %1724, %v797
        %v1726 = vpop.permute.xlu0 %1725
        %1728 = vset.pattern.permute.xlu0 16
        %1729 = vperm.xlu0 %1728, %v780
        %v1730 = vpop.permute.xlu0 %1729
        %1732 = vset.pattern.permute.xlu0 16
        %1733 = vperm.xlu0 %1732, %v782
        %v1734 = vpop.permute.xlu0 %1733
        %1736 = vset.pattern.permute.xlu0 16
        %1737 = vperm.xlu0 %1736, %v785
        %v1738 = vpop.permute.xlu0 %1737
        %1740 = vset.pattern.permute.xlu0 16
        %1741 = vperm.xlu0 %1740, %v787
        %v1742 = vpop.permute.xlu0 %1741
        %1744 = vset.pattern.permute.xlu0 16
        %1745 = vperm.xlu0 %1744, %v790
        %v1746 = vpop.permute.xlu0 %1745
        %1748 = vset.pattern.permute.xlu0 16
        %1749 = vperm.xlu0 %1748, %v792
        %v1750 = vpop.permute.xlu0 %1749
        %1752 = vset.pattern.permute.xlu0 16
        %1753 = vperm.xlu0 %1752, %v795
        %v1754 = vpop.permute.xlu0 %1753
        %1756 = vset.pattern.permute.xlu0 16
        %1757 = vperm.xlu0 %1756, %v797
        %v1758 = vpop.permute.xlu0 %1757
        %1760 = vset.pattern.permute.xlu0 17
        %1761 = vperm.xlu0 %1760, %v780
        %v1762 = vpop.permute.xlu0 %1761
        %1764 = vset.pattern.permute.xlu0 17
        %1765 = vperm.xlu0 %1764, %v782
        %v1766 = vpop.permute.xlu0 %1765
        %1768 = vset.pattern.permute.xlu0 17
        %1769 = vperm.xlu0 %1768, %v785
        %v1770 = vpop.permute.xlu0 %1769
        %1772 = vset.pattern.permute.xlu0 17
        %1773 = vperm.xlu0 %1772, %v787
        %v1774 = vpop.permute.xlu0 %1773
        %1776 = vset.pattern.permute.xlu0 17
        %1777 = vperm.xlu0 %1776, %v790
        %v1778 = vpop.permute.xlu0 %1777
        %1780 = vset.pattern.permute.xlu0 17
        %1781 = vperm.xlu0 %1780, %v792
        %v1782 = vpop.permute.xlu0 %1781
        %1784 = vset.pattern.permute.xlu0 17
        %1785 = vperm.xlu0 %1784, %v795
        %v1786 = vpop.permute.xlu0 %1785
        %1788 = vset.pattern.permute.xlu0 17
        %1789 = vperm.xlu0 %1788, %v797
        %v1790 = vpop.permute.xlu0 %1789
        %v1792 = vsel %vm757, %v1275, %v1314
        %v1793 = vsel %vm757, %v1280, %v1318
        %v1794 = vsel %vm757, %v1285, %v1322
        %v1795 = vsel %vm757, %v1290, %v1326
        %v1796 = vsel %vm757, %v1295, %v1330
        %v1797 = vsel %vm757, %v1300, %v1334
        %v1798 = vsel %vm757, %v1305, %v1338
        %v1799 = vsel %vm757, %v1310, %v1342
        %v1800 = vsel %vm757, %v1346, %v1378
        %v1801 = vsel %vm757, %v1350, %v1382
        %v1802 = vsel %vm757, %v1354, %v1386
        %v1803 = vsel %vm757, %v1358, %v1390
        %v1804 = vsel %vm757, %v1362, %v1394
        %v1805 = vsel %vm757, %v1366, %v1398
        %v1806 = vsel %vm757, %v1370, %v1402
        %v1807 = vsel %vm757, %v1374, %v1406
        %v1808 = vsel %vm757, %v1410, %v1442
        %v1809 = vsel %vm757, %v1414, %v1446
        %v1810 = vsel %vm757, %v1418, %v1450
        %v1811 = vsel %vm757, %v1422, %v1454
        %v1812 = vsel %vm757, %v1426, %v1458
        %v1813 = vsel %vm757, %v1430, %v1462
        %v1814 = vsel %vm757, %v1434, %v1466
        %v1815 = vsel %vm757, %v1438, %v1470
        %v1816 = vsel %vm757, %v1474, %v1506
        %v1817 = vsel %vm757, %v1478, %v1510
        %v1818 = vsel %vm757, %v1482, %v1514
        %v1819 = vsel %vm757, %v1486, %v1518
        %v1820 = vsel %vm757, %v1490, %v1522
        %v1821 = vsel %vm757, %v1494, %v1526
        %v1822 = vsel %vm757, %v1498, %v1530
        %v1823 = vsel %vm757, %v1502, %v1534
        %v1824 = vsel %vm757, %v1538, %v1570
        %v1825 = vsel %vm757, %v1542, %v1574
        %v1826 = vsel %vm757, %v1546, %v1578
        %v1827 = vsel %vm757, %v1550, %v1582
        %v1828 = vsel %vm757, %v1554, %v1586
        %v1829 = vsel %vm757, %v1558, %v1590
        %v1830 = vsel %vm757, %v1562, %v1594
        %v1831 = vsel %vm757, %v1566, %v1598
        %v1832 = vsel %vm757, %v1602, %v1634
        %v1833 = vsel %vm757, %v1606, %v1638
        %v1834 = vsel %vm757, %v1610, %v1642
        %v1835 = vsel %vm757, %v1614, %v1646
        %v1836 = vsel %vm757, %v1618, %v1650
        %v1837 = vsel %vm757, %v1622, %v1654
        %v1838 = vsel %vm757, %v1626, %v1658
        %v1839 = vsel %vm757, %v1630, %v1662
        %v1840 = vsel %vm757, %v1666, %v1698
        %v1841 = vsel %vm757, %v1670, %v1702
        %v1842 = vsel %vm757, %v1674, %v1706
        %v1843 = vsel %vm757, %v1678, %v1710
        %v1844 = vsel %vm757, %v1682, %v1714
        %v1845 = vsel %vm757, %v1686, %v1718
        %v1846 = vsel %vm757, %v1690, %v1722
        %v1847 = vsel %vm757, %v1694, %v1726
        %v1848 = vsel %vm757, %v1730, %v1762
        %v1849 = vsel %vm757, %v1734, %v1766
        %v1850 = vsel %vm757, %v1738, %v1770
        %v1851 = vsel %vm757, %v1742, %v1774
        %v1852 = vsel %vm757, %v1746, %v1778
        %v1853 = vsel %vm757, %v1750, %v1782
        %v1854 = vsel %vm757, %v1754, %v1786
        %v1855 = vsel %vm757, %v1758, %v1790
        %1856 = vset.pattern.permute.xlu0 18
        %1857 = vperm.xlu0 %1856, %v780
        %v1858 = vpop.permute.xlu0 %1857
        %1860 = vset.pattern.permute.xlu0 18
        %1861 = vperm.xlu0 %1860, %v782
        %v1862 = vpop.permute.xlu0 %1861
        %1864 = vset.pattern.permute.xlu0 18
        %1865 = vperm.xlu0 %1864, %v785
        %v1866 = vpop.permute.xlu0 %1865
        %1868 = vset.pattern.permute.xlu0 18
        %1869 = vperm.xlu0 %1868, %v787
        %v1870 = vpop.permute.xlu0 %1869
        %1872 = vset.pattern.permute.xlu0 18
        %1873 = vperm.xlu0 %1872, %v790
        %v1874 = vpop.permute.xlu0 %1873
        %1876 = vset.pattern.permute.xlu0 18
        %1877 = vperm.xlu0 %1876, %v792
        %v1878 = vpop.permute.xlu0 %1877
        %1880 = vset.pattern.permute.xlu0 18
        %1881 = vperm.xlu0 %1880, %v795
        %v1882 = vpop.permute.xlu0 %1881
        %1884 = vset.pattern.permute.xlu0 18
        %1885 = vperm.xlu0 %1884, %v797
        %v1886 = vpop.permute.xlu0 %1885
        %1888 = vset.pattern.permute.xlu0 19
        %1889 = vperm.xlu0 %1888, %v780
        %v1890 = vpop.permute.xlu0 %1889
        %1892 = vset.pattern.permute.xlu0 19
        %1893 = vperm.xlu0 %1892, %v782
        %v1894 = vpop.permute.xlu0 %1893
        %1896 = vset.pattern.permute.xlu0 19
        %1897 = vperm.xlu0 %1896, %v785
        %v1898 = vpop.permute.xlu0 %1897
        %1900 = vset.pattern.permute.xlu0 19
        %1901 = vperm.xlu0 %1900, %v787
        %v1902 = vpop.permute.xlu0 %1901
        %1904 = vset.pattern.permute.xlu0 19
        %1905 = vperm.xlu0 %1904, %v790
        %v1906 = vpop.permute.xlu0 %1905
        %1908 = vset.pattern.permute.xlu0 19
        %1909 = vperm.xlu0 %1908, %v792
        %v1910 = vpop.permute.xlu0 %1909
        %1912 = vset.pattern.permute.xlu0 19
        %1913 = vperm.xlu0 %1912, %v795
        %v1914 = vpop.permute.xlu0 %1913
        %1916 = vset.pattern.permute.xlu0 19
        %1917 = vperm.xlu0 %1916, %v797
        %v1918 = vpop.permute.xlu0 %1917
        %1920 = vset.pattern.permute.xlu0 20
        %1921 = vperm.xlu0 %1920, %v780
        %v1922 = vpop.permute.xlu0 %1921
        %1924 = vset.pattern.permute.xlu0 20
        %1925 = vperm.xlu0 %1924, %v782
        %v1926 = vpop.permute.xlu0 %1925
        %1928 = vset.pattern.permute.xlu0 20
        %1929 = vperm.xlu0 %1928, %v785
        %v1930 = vpop.permute.xlu0 %1929
        %1932 = vset.pattern.permute.xlu0 20
        %1933 = vperm.xlu0 %1932, %v787
        %v1934 = vpop.permute.xlu0 %1933
        %1936 = vset.pattern.permute.xlu0 20
        %1937 = vperm.xlu0 %1936, %v790
        %v1938 = vpop.permute.xlu0 %1937
        %1940 = vset.pattern.permute.xlu0 20
        %1941 = vperm.xlu0 %1940, %v792
        %v1942 = vpop.permute.xlu0 %1941
        %1944 = vset.pattern.permute.xlu0 20
        %1945 = vperm.xlu0 %1944, %v795
        %v1946 = vpop.permute.xlu0 %1945
        %1948 = vset.pattern.permute.xlu0 20
        %1949 = vperm.xlu0 %1948, %v797
        %v1950 = vpop.permute.xlu0 %1949
        %1952 = vset.pattern.permute.xlu0 21
        %1953 = vperm.xlu0 %1952, %v780
        %v1954 = vpop.permute.xlu0 %1953
        %1956 = vset.pattern.permute.xlu0 21
        %1957 = vperm.xlu0 %1956, %v782
        %v1958 = vpop.permute.xlu0 %1957
        %1960 = vset.pattern.permute.xlu0 21
        %1961 = vperm.xlu0 %1960, %v785
        %v1962 = vpop.permute.xlu0 %1961
        %1964 = vset.pattern.permute.xlu0 21
        %1965 = vperm.xlu0 %1964, %v787
        %v1966 = vpop.permute.xlu0 %1965
        %1968 = vset.pattern.permute.xlu0 21
        %1969 = vperm.xlu0 %1968, %v790
        %v1970 = vpop.permute.xlu0 %1969
        %1972 = vset.pattern.permute.xlu0 21
        %1973 = vperm.xlu0 %1972, %v792
        %v1974 = vpop.permute.xlu0 %1973
        %1976 = vset.pattern.permute.xlu0 21
        %1977 = vperm.xlu0 %1976, %v795
        %v1978 = vpop.permute.xlu0 %1977
        %1980 = vset.pattern.permute.xlu0 21
        %1981 = vperm.xlu0 %1980, %v797
        %v1982 = vpop.permute.xlu0 %1981
        %1984 = vset.pattern.permute.xlu0 22
        %1985 = vperm.xlu0 %1984, %v780
        %v1986 = vpop.permute.xlu0 %1985
        %1988 = vset.pattern.permute.xlu0 22
        %1989 = vperm.xlu0 %1988, %v782
        %v1990 = vpop.permute.xlu0 %1989
        %1992 = vset.pattern.permute.xlu0 22
        %1993 = vperm.xlu0 %1992, %v785
        %v1994 = vpop.permute.xlu0 %1993
        %1996 = vset.pattern.permute.xlu0 22
        %1997 = vperm.xlu0 %1996, %v787
        %v1998 = vpop.permute.xlu0 %1997
        %2000 = vset.pattern.permute.xlu0 22
        %2001 = vperm.xlu0 %2000, %v790
        %v2002 = vpop.permute.xlu0 %2001
        %2004 = vset.pattern.permute.xlu0 22
        %2005 = vperm.xlu0 %2004, %v792
        %v2006 = vpop.permute.xlu0 %2005
        %2008 = vset.pattern.permute.xlu0 22
        %2009 = vperm.xlu0 %2008, %v795
        %v2010 = vpop.permute.xlu0 %2009
        %2012 = vset.pattern.permute.xlu0 22
        %2013 = vperm.xlu0 %2012, %v797
        %v2014 = vpop.permute.xlu0 %2013
        %2016 = vset.pattern.permute.xlu0 23
        %2017 = vperm.xlu0 %2016, %v780
        %v2018 = vpop.permute.xlu0 %2017
        %2020 = vset.pattern.permute.xlu0 23
        %2021 = vperm.xlu0 %2020, %v782
        %v2022 = vpop.permute.xlu0 %2021
        %2024 = vset.pattern.permute.xlu0 23
        %2025 = vperm.xlu0 %2024, %v785
        %v2026 = vpop.permute.xlu0 %2025
        %2028 = vset.pattern.permute.xlu0 23
        %2029 = vperm.xlu0 %2028, %v787
        %v2030 = vpop.permute.xlu0 %2029
        %2032 = vset.pattern.permute.xlu0 23
        %2033 = vperm.xlu0 %2032, %v790
        %v2034 = vpop.permute.xlu0 %2033
        %2036 = vset.pattern.permute.xlu0 23
        %2037 = vperm.xlu0 %2036, %v792
        %v2038 = vpop.permute.xlu0 %2037
        %2040 = vset.pattern.permute.xlu0 23
        %2041 = vperm.xlu0 %2040, %v795
        %v2042 = vpop.permute.xlu0 %2041
        %2044 = vset.pattern.permute.xlu0 23
        %2045 = vperm.xlu0 %2044, %v797
        %v2046 = vpop.permute.xlu0 %2045
        %2048 = vset.pattern.permute.xlu0 24
        %2049 = vperm.xlu0 %2048, %v780
        %v2050 = vpop.permute.xlu0 %2049
        %2052 = vset.pattern.permute.xlu0 24
        %2053 = vperm.xlu0 %2052, %v782
        %v2054 = vpop.permute.xlu0 %2053
        %2056 = vset.pattern.permute.xlu0 24
        %2057 = vperm.xlu0 %2056, %v785
        %v2058 = vpop.permute.xlu0 %2057
        %2060 = vset.pattern.permute.xlu0 24
        %2061 = vperm.xlu0 %2060, %v787
        %v2062 = vpop.permute.xlu0 %2061
        %2064 = vset.pattern.permute.xlu0 24
        %2065 = vperm.xlu0 %2064, %v790
        %v2066 = vpop.permute.xlu0 %2065
        %2068 = vset.pattern.permute.xlu0 24
        %2069 = vperm.xlu0 %2068, %v792
        %v2070 = vpop.permute.xlu0 %2069
        %2072 = vset.pattern.permute.xlu0 24
        %2073 = vperm.xlu0 %2072, %v795
        %v2074 = vpop.permute.xlu0 %2073
        %2076 = vset.pattern.permute.xlu0 24
        %2077 = vperm.xlu0 %2076, %v797
        %v2078 = vpop.permute.xlu0 %2077
        %2080 = vset.pattern.permute.xlu0 25
        %2081 = vperm.xlu0 %2080, %v780
        %v2082 = vpop.permute.xlu0 %2081
        %2084 = vset.pattern.permute.xlu0 25
        %2085 = vperm.xlu0 %2084, %v782
        %v2086 = vpop.permute.xlu0 %2085
        %2088 = vset.pattern.permute.xlu0 25
        %2089 = vperm.xlu0 %2088, %v785
        %v2090 = vpop.permute.xlu0 %2089
        %2092 = vset.pattern.permute.xlu0 25
        %2093 = vperm.xlu0 %2092, %v787
        %v2094 = vpop.permute.xlu0 %2093
        %2096 = vset.pattern.permute.xlu0 25
        %2097 = vperm.xlu0 %2096, %v790
        %v2098 = vpop.permute.xlu0 %2097
        %2100 = vset.pattern.permute.xlu0 25
        %2101 = vperm.xlu0 %2100, %v792
        %v2102 = vpop.permute.xlu0 %2101
        %2104 = vset.pattern.permute.xlu0 25
        %2105 = vperm.xlu0 %2104, %v795
        %v2106 = vpop.permute.xlu0 %2105
        %2108 = vset.pattern.permute.xlu0 25
        %2109 = vperm.xlu0 %2108, %v797
        %v2110 = vpop.permute.xlu0 %2109
        %2112 = vset.pattern.permute.xlu0 26
        %2113 = vperm.xlu0 %2112, %v780
        %v2114 = vpop.permute.xlu0 %2113
        %2116 = vset.pattern.permute.xlu0 26
        %2117 = vperm.xlu0 %2116, %v782
        %v2118 = vpop.permute.xlu0 %2117
        %2120 = vset.pattern.permute.xlu0 26
        %2121 = vperm.xlu0 %2120, %v785
        %v2122 = vpop.permute.xlu0 %2121
        %2124 = vset.pattern.permute.xlu0 26
        %2125 = vperm.xlu0 %2124, %v787
        %v2126 = vpop.permute.xlu0 %2125
        %2128 = vset.pattern.permute.xlu0 26
        %2129 = vperm.xlu0 %2128, %v790
        %v2130 = vpop.permute.xlu0 %2129
        %2132 = vset.pattern.permute.xlu0 26
        %2133 = vperm.xlu0 %2132, %v792
        %v2134 = vpop.permute.xlu0 %2133
        %2136 = vset.pattern.permute.xlu0 26
        %2137 = vperm.xlu0 %2136, %v795
        %v2138 = vpop.permute.xlu0 %2137
        %2140 = vset.pattern.permute.xlu0 26
        %2141 = vperm.xlu0 %2140, %v797
        %v2142 = vpop.permute.xlu0 %2141
        %2144 = vset.pattern.permute.xlu0 27
        %2145 = vperm.xlu0 %2144, %v780
        %v2146 = vpop.permute.xlu0 %2145
        %2148 = vset.pattern.permute.xlu0 27
        %2149 = vperm.xlu0 %2148, %v782
        %v2150 = vpop.permute.xlu0 %2149
        %2152 = vset.pattern.permute.xlu0 27
        %2153 = vperm.xlu0 %2152, %v785
        %v2154 = vpop.permute.xlu0 %2153
        %2156 = vset.pattern.permute.xlu0 27
        %2157 = vperm.xlu0 %2156, %v787
        %v2158 = vpop.permute.xlu0 %2157
        %2160 = vset.pattern.permute.xlu0 27
        %2161 = vperm.xlu0 %2160, %v790
        %v2162 = vpop.permute.xlu0 %2161
        %2164 = vset.pattern.permute.xlu0 27
        %2165 = vperm.xlu0 %2164, %v792
        %v2166 = vpop.permute.xlu0 %2165
        %2168 = vset.pattern.permute.xlu0 27
        %2169 = vperm.xlu0 %2168, %v795
        %v2170 = vpop.permute.xlu0 %2169
        %2172 = vset.pattern.permute.xlu0 27
        %2173 = vperm.xlu0 %2172, %v797
        %v2174 = vpop.permute.xlu0 %2173
        %2176 = vset.pattern.permute.xlu0 28
        %2177 = vperm.xlu0 %2176, %v780
        %v2178 = vpop.permute.xlu0 %2177
        %2180 = vset.pattern.permute.xlu0 28
        %2181 = vperm.xlu0 %2180, %v782
        %v2182 = vpop.permute.xlu0 %2181
        %2184 = vset.pattern.permute.xlu0 28
        %2185 = vperm.xlu0 %2184, %v785
        %v2186 = vpop.permute.xlu0 %2185
        %2188 = vset.pattern.permute.xlu0 28
        %2189 = vperm.xlu0 %2188, %v787
        %v2190 = vpop.permute.xlu0 %2189
        %2192 = vset.pattern.permute.xlu0 28
        %2193 = vperm.xlu0 %2192, %v790
        %v2194 = vpop.permute.xlu0 %2193
        %2196 = vset.pattern.permute.xlu0 28
        %2197 = vperm.xlu0 %2196, %v792
        %v2198 = vpop.permute.xlu0 %2197
        %2200 = vset.pattern.permute.xlu0 28
        %2201 = vperm.xlu0 %2200, %v795
        %v2202 = vpop.permute.xlu0 %2201
        %2204 = vset.pattern.permute.xlu0 28
        %2205 = vperm.xlu0 %2204, %v797
        %v2206 = vpop.permute.xlu0 %2205
        %2208 = vset.pattern.permute.xlu0 29
        %2209 = vperm.xlu0 %2208, %v780
        %v2210 = vpop.permute.xlu0 %2209
        %2212 = vset.pattern.permute.xlu0 29
        %2213 = vperm.xlu0 %2212, %v782
        %v2214 = vpop.permute.xlu0 %2213
        %2216 = vset.pattern.permute.xlu0 29
        %2217 = vperm.xlu0 %2216, %v785
        %v2218 = vpop.permute.xlu0 %2217
        %2220 = vset.pattern.permute.xlu0 29
        %2221 = vperm.xlu0 %2220, %v787
        %v2222 = vpop.permute.xlu0 %2221
        %2224 = vset.pattern.permute.xlu0 29
        %2225 = vperm.xlu0 %2224, %v790
        %v2226 = vpop.permute.xlu0 %2225
        %2228 = vset.pattern.permute.xlu0 29
        %2229 = vperm.xlu0 %2228, %v792
        %v2230 = vpop.permute.xlu0 %2229
        %2232 = vset.pattern.permute.xlu0 29
        %2233 = vperm.xlu0 %2232, %v795
        %v2234 = vpop.permute.xlu0 %2233
        %2236 = vset.pattern.permute.xlu0 29
        %2237 = vperm.xlu0 %2236, %v797
        %v2238 = vpop.permute.xlu0 %2237
        %2240 = vset.pattern.permute.xlu0 30
        %2241 = vperm.xlu0 %2240, %v780
        %v2242 = vpop.permute.xlu0 %2241
        %2244 = vset.pattern.permute.xlu0 30
        %2245 = vperm.xlu0 %2244, %v782
        %v2246 = vpop.permute.xlu0 %2245
        %2248 = vset.pattern.permute.xlu0 30
        %2249 = vperm.xlu0 %2248, %v785
        %v2250 = vpop.permute.xlu0 %2249
        %2252 = vset.pattern.permute.xlu0 30
        %2253 = vperm.xlu0 %2252, %v787
        %v2254 = vpop.permute.xlu0 %2253
        %2256 = vset.pattern.permute.xlu0 30
        %2257 = vperm.xlu0 %2256, %v790
        %v2258 = vpop.permute.xlu0 %2257
        %2260 = vset.pattern.permute.xlu0 30
        %2261 = vperm.xlu0 %2260, %v792
        %v2262 = vpop.permute.xlu0 %2261
        %2264 = vset.pattern.permute.xlu0 30
        %2265 = vperm.xlu0 %2264, %v795
        %v2266 = vpop.permute.xlu0 %2265
        %2268 = vset.pattern.permute.xlu0 30
        %2269 = vperm.xlu0 %2268, %v797
        %v2270 = vpop.permute.xlu0 %2269
        %2272 = vset.pattern.permute.xlu0 31
        %2273 = vperm.xlu0 %2272, %v780
        %v2274 = vpop.permute.xlu0 %2273
        %2276 = vset.pattern.permute.xlu0 31
        %2277 = vperm.xlu0 %2276, %v782
        %v2278 = vpop.permute.xlu0 %2277
        %2280 = vset.pattern.permute.xlu0 31
        %2281 = vperm.xlu0 %2280, %v785
        %v2282 = vpop.permute.xlu0 %2281
        %2284 = vset.pattern.permute.xlu0 31
        %2285 = vperm.xlu0 %2284, %v787
        %v2286 = vpop.permute.xlu0 %2285
        %2288 = vset.pattern.permute.xlu0 31
        %2289 = vperm.xlu0 %2288, %v790
        %v2290 = vpop.permute.xlu0 %2289
        %2292 = vset.pattern.permute.xlu0 31
        %2293 = vperm.xlu0 %2292, %v792
        %v2294 = vpop.permute.xlu0 %2293
        %2296 = vset.pattern.permute.xlu0 31
        %2297 = vperm.xlu0 %2296, %v795
        %v2298 = vpop.permute.xlu0 %2297
        %2300 = vset.pattern.permute.xlu0 31
        %2301 = vperm.xlu0 %2300, %v797
        %v2302 = vpop.permute.xlu0 %2301
        %2304 = vset.pattern.permute.xlu0 32
        %2305 = vperm.xlu0 %2304, %v780
        %v2306 = vpop.permute.xlu0 %2305
        %2308 = vset.pattern.permute.xlu0 32
        %2309 = vperm.xlu0 %2308, %v782
        %v2310 = vpop.permute.xlu0 %2309
        %2312 = vset.pattern.permute.xlu0 32
        %2313 = vperm.xlu0 %2312, %v785
        %v2314 = vpop.permute.xlu0 %2313
        %2316 = vset.pattern.permute.xlu0 32
        %2317 = vperm.xlu0 %2316, %v787
        %v2318 = vpop.permute.xlu0 %2317
        %2320 = vset.pattern.permute.xlu0 32
        %2321 = vperm.xlu0 %2320, %v790
        %v2322 = vpop.permute.xlu0 %2321
        %2324 = vset.pattern.permute.xlu0 32
        %2325 = vperm.xlu0 %2324, %v792
        %v2326 = vpop.permute.xlu0 %2325
        %2328 = vset.pattern.permute.xlu0 32
        %2329 = vperm.xlu0 %2328, %v795
        %v2330 = vpop.permute.xlu0 %2329
        %2332 = vset.pattern.permute.xlu0 32
        %2333 = vperm.xlu0 %2332, %v797
        %v2334 = vpop.permute.xlu0 %2333
        %2336 = vset.pattern.permute.xlu0 33
        %2337 = vperm.xlu0 %2336, %v780
        %v2338 = vpop.permute.xlu0 %2337
        %2340 = vset.pattern.permute.xlu0 33
        %2341 = vperm.xlu0 %2340, %v782
        %v2342 = vpop.permute.xlu0 %2341
        %2344 = vset.pattern.permute.xlu0 33
        %2345 = vperm.xlu0 %2344, %v785
        %v2346 = vpop.permute.xlu0 %2345
        %2348 = vset.pattern.permute.xlu0 33
        %2349 = vperm.xlu0 %2348, %v787
        %v2350 = vpop.permute.xlu0 %2349
        %2352 = vset.pattern.permute.xlu0 33
        %2353 = vperm.xlu0 %2352, %v790
        %v2354 = vpop.permute.xlu0 %2353
        %2356 = vset.pattern.permute.xlu0 33
        %2357 = vperm.xlu0 %2356, %v792
        %v2358 = vpop.permute.xlu0 %2357
        %2360 = vset.pattern.permute.xlu0 33
        %2361 = vperm.xlu0 %2360, %v795
        %v2362 = vpop.permute.xlu0 %2361
        %2364 = vset.pattern.permute.xlu0 33
        %2365 = vperm.xlu0 %2364, %v797
        %v2366 = vpop.permute.xlu0 %2365
        %v2368 = vsel %vm757, %v1858, %v1890
        %v2369 = vsel %vm757, %v1862, %v1894
        %v2370 = vsel %vm757, %v1866, %v1898
        %v2371 = vsel %vm757, %v1870, %v1902
        %v2372 = vsel %vm757, %v1874, %v1906
        %v2373 = vsel %vm757, %v1878, %v1910
        %v2374 = vsel %vm757, %v1882, %v1914
        %v2375 = vsel %vm757, %v1886, %v1918
        %v2376 = vsel %vm757, %v1922, %v1954
        %v2377 = vsel %vm757, %v1926, %v1958
        %v2378 = vsel %vm757, %v1930, %v1962
        %v2379 = vsel %vm757, %v1934, %v1966
        %v2380 = vsel %vm757, %v1938, %v1970
        %v2381 = vsel %vm757, %v1942, %v1974
        %v2382 = vsel %vm757, %v1946, %v1978
        %v2383 = vsel %vm757, %v1950, %v1982
        %v2384 = vsel %vm757, %v1986, %v2018
        %v2385 = vsel %vm757, %v1990, %v2022
        %v2386 = vsel %vm757, %v1994, %v2026
        %v2387 = vsel %vm757, %v1998, %v2030
        %v2388 = vsel %vm757, %v2002, %v2034
        %v2389 = vsel %vm757, %v2006, %v2038
        %v2390 = vsel %vm757, %v2010, %v2042
        %v2391 = vsel %vm757, %v2014, %v2046
        %v2392 = vsel %vm757, %v2050, %v2082
        %v2393 = vsel %vm757, %v2054, %v2086
        %v2394 = vsel %vm757, %v2058, %v2090
        %v2395 = vsel %vm757, %v2062, %v2094
        %v2396 = vsel %vm757, %v2066, %v2098
        %v2397 = vsel %vm757, %v2070, %v2102
        %v2398 = vsel %vm757, %v2074, %v2106
        %v2399 = vsel %vm757, %v2078, %v2110
        %v2400 = vsel %vm757, %v2114, %v2146
        %v2401 = vsel %vm757, %v2118, %v2150
        %v2402 = vsel %vm757, %v2122, %v2154
        %v2403 = vsel %vm757, %v2126, %v2158
        %v2404 = vsel %vm757, %v2130, %v2162
        %v2405 = vsel %vm757, %v2134, %v2166
        %v2406 = vsel %vm757, %v2138, %v2170
        %v2407 = vsel %vm757, %v2142, %v2174
        %v2408 = vsel %vm757, %v2178, %v2210
        %v2409 = vsel %vm757, %v2182, %v2214
        %v2410 = vsel %vm757, %v2186, %v2218
        %v2411 = vsel %vm757, %v2190, %v2222
        %v2412 = vsel %vm757, %v2194, %v2226
        %v2413 = vsel %vm757, %v2198, %v2230
        %v2414 = vsel %vm757, %v2202, %v2234
        %v2415 = vsel %vm757, %v2206, %v2238
        %v2416 = vsel %vm757, %v2242, %v2274
        %v2417 = vsel %vm757, %v2246, %v2278
        %v2418 = vsel %vm757, %v2250, %v2282
        %v2419 = vsel %vm757, %v2254, %v2286
        %v2420 = vsel %vm757, %v2258, %v2290
        %v2421 = vsel %vm757, %v2262, %v2294
        %v2422 = vsel %vm757, %v2266, %v2298
        %v2423 = vsel %vm757, %v2270, %v2302
        %v2424 = vsel %vm757, %v2306, %v2338
        %v2425 = vsel %vm757, %v2310, %v2342
        %v2426 = vsel %vm757, %v2314, %v2346
        %v2427 = vsel %vm757, %v2318, %v2350
        %v2428 = vsel %vm757, %v2322, %v2354
        %v2429 = vsel %vm757, %v2326, %v2358
        %v2430 = vsel %vm757, %v2330, %v2362
        %v2431 = vsel %vm757, %v2334, %v2366
        %v2432 = vmul.f32 %v1054, %v1792
        %v2433 = vmul.f32 %v1054, %v1800
        %v2434 = vmul.f32 %v1054, %v1808
        %v2435 = vmul.f32 %v1054, %v1816
        %v2436 = vmul.f32 %v1054, %v1824
        %v2437 = vmul.f32 %v1054, %v1832
        %v2438 = vmul.f32 %v1054, %v1840
        %v2439 = vmul.f32 %v1054, %v1848
        %v2440 = vmul.f32 %v1055, %v1793
        %v2441 = vmul.f32 %v1055, %v1801
        %v2442 = vmul.f32 %v1055, %v1809
        %v2443 = vmul.f32 %v1055, %v1817
        %v2444 = vmul.f32 %v1055, %v1825
        %v2445 = vmul.f32 %v1055, %v1833
        %v2446 = vmul.f32 %v1055, %v1841
        %v2447 = vmul.f32 %v1055, %v1849
        %v2448 = vmul.f32 %v1056, %v1794
        %v2449 = vmul.f32 %v1056, %v1802
        %v2450 = vmul.f32 %v1056, %v1810
        %v2451 = vmul.f32 %v1056, %v1818
        %v2452 = vmul.f32 %v1056, %v1826
        %v2453 = vmul.f32 %v1056, %v1834
        %v2454 = vmul.f32 %v1056, %v1842
        %v2455 = vmul.f32 %v1056, %v1850
        %v2456 = vmul.f32 %v1057, %v1795
        %v2457 = vmul.f32 %v1057, %v1803
        %v2458 = vmul.f32 %v1057, %v1811
        %v2459 = vmul.f32 %v1057, %v1819
        %v2460 = vmul.f32 %v1057, %v1827
        %v2461 = vmul.f32 %v1057, %v1835
        %v2462 = vmul.f32 %v1057, %v1843
        %v2463 = vmul.f32 %v1057, %v1851
        %v2464 = vmul.f32 %v1058, %v1796
        %v2465 = vmul.f32 %v1058, %v1804
        %v2466 = vmul.f32 %v1058, %v1812
        %v2467 = vmul.f32 %v1058, %v1820
        %v2468 = vmul.f32 %v1058, %v1828
        %v2469 = vmul.f32 %v1058, %v1836
        %v2470 = vmul.f32 %v1058, %v1844
        %v2471 = vmul.f32 %v1058, %v1852
        %v2472 = vmul.f32 %v1059, %v1797
        %v2473 = vmul.f32 %v1059, %v1805
        %v2474 = vmul.f32 %v1059, %v1813
        %v2475 = vmul.f32 %v1059, %v1821
        %v2476 = vmul.f32 %v1059, %v1829
        %v2477 = vmul.f32 %v1059, %v1837
        %v2478 = vmul.f32 %v1059, %v1845
        %v2479 = vmul.f32 %v1059, %v1853
        %v2480 = vmul.f32 %v1060, %v1798
        %v2481 = vmul.f32 %v1060, %v1806
        %v2482 = vmul.f32 %v1060, %v1814
        %v2483 = vmul.f32 %v1060, %v1822
        %v2484 = vmul.f32 %v1060, %v1830
        %v2485 = vmul.f32 %v1060, %v1838
        %v2486 = vmul.f32 %v1060, %v1846
        %v2487 = vmul.f32 %v1060, %v1854
        %v2488 = vmul.f32 %v1061, %v1799
        %v2489 = vmul.f32 %v1061, %v1807
        %v2490 = vmul.f32 %v1061, %v1815
        %v2491 = vmul.f32 %v1061, %v1823
        %v2492 = vmul.f32 %v1061, %v1831
        %v2493 = vmul.f32 %v1061, %v1839
        %v2494 = vmul.f32 %v1061, %v1847
        %v2495 = vmul.f32 %v1061, %v1855
        %v2496 = vld [vmem:[%s8] sm:$0x1]
        %v2497 = vmul.f32 %v1145, 0.0
        %v2498 = vmul.f32 %v1147, 0.0
        %v2499 = vmul.f32 %v1149, 0.0
        %v2500 = vmul.f32 %v1151, 0.0
        %v2501 = vmul.f32 %v1153, 0.0
        %v2502 = vmul.f32 %v1155, 0.0
        %v2503 = vmul.f32 %v1157, 0.0
        %v2504 = vmul.f32 %v1159, 0.0
        %v2505 = vadd.f32 %v2497, %v2432
        %v2506 = vadd.f32 %v2498, %v2433
        %v2507 = vadd.f32 %v2499, %v2434
        %v2508 = vadd.f32 %v2500, %v2435
        %v2509 = vadd.f32 %v2501, %v2436
        %v2510 = vadd.f32 %v2502, %v2437
        %v2511 = vadd.f32 %v2503, %v2438
        %v2512 = vadd.f32 %v2504, %v2439
        %v2513 = vmul.f32 %v2505, %v2368
        %v2514 = vmul.f32 %v2506, %v2376
        %v2515 = vmul.f32 %v2507, %v2384
        %v2516 = vmul.f32 %v2508, %v2392
        %v2517 = vmul.f32 %v2509, %v2400
        %v2518 = vmul.f32 %v2510, %v2408
        %v2519 = vmul.f32 %v2511, %v2416
        %v2520 = vmul.f32 %v2512, %v2424
        %2522 = vrot.lane.b32.xlu0 %v2513, 64
        %v2523 = vpop.permute.xlu0 %2522
        %v2525 = vadd.f32 %v2513, %v2523
        %v2526 = vadd.f32 %v2525, %v2514
        %2528 = vrot.lane.b32.xlu0 %v2514, 64
        %v2529 = vpop.permute.xlu0 %2528
        %v2531 = vadd.f32 %v2526, %v2529
        %v2532 = vadd.f32 %v2531, %v2515
        %2534 = vrot.lane.b32.xlu0 %v2515, 64
        %v2535 = vpop.permute.xlu0 %2534
        %v2537 = vadd.f32 %v2532, %v2535
        %v2538 = vadd.f32 %v2537, %v2516
        %2540 = vrot.lane.b32.xlu0 %v2516, 64
        %v2541 = vpop.permute.xlu0 %2540
        %v2543 = vadd.f32 %v2538, %v2541
        %v2544 = vadd.f32 %v2543, %v2517
        %2546 = vrot.lane.b32.xlu0 %v2517, 64
        %v2547 = vpop.permute.xlu0 %2546
        %v2549 = vadd.f32 %v2544, %v2547
        %v2550 = vadd.f32 %v2549, %v2518
        %2552 = vrot.lane.b32.xlu0 %v2518, 64
        %v2553 = vpop.permute.xlu0 %2552
        %v2555 = vadd.f32 %v2550, %v2553
        %v2556 = vadd.f32 %v2555, %v2519
        %2558 = vrot.lane.b32.xlu0 %v2519, 64
        %v2559 = vpop.permute.xlu0 %2558
        %v2561 = vadd.f32 %v2556, %v2559
        %v2562 = vadd.f32 %v2561, %v2520
        %2564 = vrot.lane.b32.xlu0 %v2520, 64
        %v2565 = vpop.permute.xlu0 %2564
        %v2567 = vadd.f32 %v2562, %v2565
        %v2569 = vperm.slane %v2496, 0
        %v2571 = vmul.f32 %v713, %v2569
        %v2572 = vadd.f32 %v2567, %v2571
        %v2573 = vmul.f32 %v1161, %v2505
        %v2574 = vmul.f32 %v1163, %v2506
        %v2575 = vmul.f32 %v1165, %v2507
        %v2576 = vmul.f32 %v1167, %v2508
        %v2577 = vmul.f32 %v1169, %v2509
        %v2578 = vmul.f32 %v1171, %v2510
        %v2579 = vmul.f32 %v1173, %v2511
        %v2580 = vmul.f32 %v1175, %v2512
        %v2581 = vadd.f32 %v2573, %v2440
        %v2582 = vadd.f32 %v2574, %v2441
        %v2583 = vadd.f32 %v2575, %v2442
        %v2584 = vadd.f32 %v2576, %v2443
        %v2585 = vadd.f32 %v2577, %v2444
        %v2586 = vadd.f32 %v2578, %v2445
        %v2587 = vadd.f32 %v2579, %v2446
        %v2588 = vadd.f32 %v2580, %v2447
        %v2589 = vmul.f32 %v2581, %v2369
        %v2590 = vmul.f32 %v2582, %v2377
        %v2591 = vmul.f32 %v2583, %v2385
        %v2592 = vmul.f32 %v2584, %v2393
        %v2593 = vmul.f32 %v2585, %v2401
        %v2594 = vmul.f32 %v2586, %v2409
        %v2595 = vmul.f32 %v2587, %v2417
        %v2596 = vmul.f32 %v2588, %v2425
        %2598 = vrot.lane.b32.xlu0 %v2589, 64
        %v2599 = vpop.permute.xlu0 %2598
        %v2601 = vadd.f32 %v2589, %v2599
        %v2602 = vadd.f32 %v2601, %v2590
        %2604 = vrot.lane.b32.xlu0 %v2590, 64
        %v2605 = vpop.permute.xlu0 %2604
        %v2607 = vadd.f32 %v2602, %v2605
        %v2608 = vadd.f32 %v2607, %v2591
        %2610 = vrot.lane.b32.xlu0 %v2591, 64
        %v2611 = vpop.permute.xlu0 %2610
        %v2613 = vadd.f32 %v2608, %v2611
        %v2614 = vadd.f32 %v2613, %v2592
        %2616 = vrot.lane.b32.xlu0 %v2592, 64
        %v2617 = vpop.permute.xlu0 %2616
        %v2619 = vadd.f32 %v2614, %v2617
        %v2620 = vadd.f32 %v2619, %v2593
        %2622 = vrot.lane.b32.xlu0 %v2593, 64
        %v2623 = vpop.permute.xlu0 %2622
        %v2625 = vadd.f32 %v2620, %v2623
        %v2626 = vadd.f32 %v2625, %v2594
        %2628 = vrot.lane.b32.xlu0 %v2594, 64
        %v2629 = vpop.permute.xlu0 %2628
        %v2631 = vadd.f32 %v2626, %v2629
        %v2632 = vadd.f32 %v2631, %v2595
        %2634 = vrot.lane.b32.xlu0 %v2595, 64
        %v2635 = vpop.permute.xlu0 %2634
        %v2637 = vadd.f32 %v2632, %v2635
        %v2638 = vadd.f32 %v2637, %v2596
        %2640 = vrot.lane.b32.xlu0 %v2596, 64
        %v2641 = vpop.permute.xlu0 %2640
        %v2643 = vadd.f32 %v2638, %v2641
        %v2644 = vmul.f32 %v714, %v2569
        %v2645 = vadd.f32 %v2643, %v2644
        %v2646 = vmul.f32 %v1177, %v2581
        %v2647 = vmul.f32 %v1179, %v2582
        %v2648 = vmul.f32 %v1181, %v2583
        %v2649 = vmul.f32 %v1183, %v2584
        %v2650 = vmul.f32 %v1185, %v2585
        %v2651 = vmul.f32 %v1187, %v2586
        %v2652 = vmul.f32 %v1189, %v2587
        %v2653 = vmul.f32 %v1191, %v2588
        %v2654 = vadd.f32 %v2646, %v2448
        %v2655 = vadd.f32 %v2647, %v2449
        %v2656 = vadd.f32 %v2648, %v2450
        %v2657 = vadd.f32 %v2649, %v2451
        %v2658 = vadd.f32 %v2650, %v2452
        %v2659 = vadd.f32 %v2651, %v2453
        %v2660 = vadd.f32 %v2652, %v2454
        %v2661 = vadd.f32 %v2653, %v2455
        %v2662 = vmul.f32 %v2654, %v2370
        %v2663 = vmul.f32 %v2655, %v2378
        %v2664 = vmul.f32 %v2656, %v2386
        %v2665 = vmul.f32 %v2657, %v2394
        %v2666 = vmul.f32 %v2658, %v2402
        %v2667 = vmul.f32 %v2659, %v2410
        %v2668 = vmul.f32 %v2660, %v2418
        %v2669 = vmul.f32 %v2661, %v2426
        %2671 = vrot.lane.b32.xlu0 %v2662, 64
        %v2672 = vpop.permute.xlu0 %2671
        %v2674 = vadd.f32 %v2662, %v2672
        %v2675 = vadd.f32 %v2674, %v2663
        %2677 = vrot.lane.b32.xlu0 %v2663, 64
        %v2678 = vpop.permute.xlu0 %2677
        %v2680 = vadd.f32 %v2675, %v2678
        %v2681 = vadd.f32 %v2680, %v2664
        %2683 = vrot.lane.b32.xlu0 %v2664, 64
        %v2684 = vpop.permute.xlu0 %2683
        %v2686 = vadd.f32 %v2681, %v2684
        %v2687 = vadd.f32 %v2686, %v2665
        %2689 = vrot.lane.b32.xlu0 %v2665, 64
        %v2690 = vpop.permute.xlu0 %2689
        %v2692 = vadd.f32 %v2687, %v2690
        %v2693 = vadd.f32 %v2692, %v2666
        %2695 = vrot.lane.b32.xlu0 %v2666, 64
        %v2696 = vpop.permute.xlu0 %2695
        %v2698 = vadd.f32 %v2693, %v2696
        %v2699 = vadd.f32 %v2698, %v2667
        %2701 = vrot.lane.b32.xlu0 %v2667, 64
        %v2702 = vpop.permute.xlu0 %2701
        %v2704 = vadd.f32 %v2699, %v2702
        %v2705 = vadd.f32 %v2704, %v2668
        %2707 = vrot.lane.b32.xlu0 %v2668, 64
        %v2708 = vpop.permute.xlu0 %2707
        %v2710 = vadd.f32 %v2705, %v2708
        %v2711 = vadd.f32 %v2710, %v2669
        %2713 = vrot.lane.b32.xlu0 %v2669, 64
        %v2714 = vpop.permute.xlu0 %2713
        %v2716 = vadd.f32 %v2711, %v2714
        %v2717 = vmul.f32 %v715, %v2569
        %v2718 = vadd.f32 %v2716, %v2717
        %v2719 = vmul.f32 %v1193, %v2654
        %v2720 = vmul.f32 %v1195, %v2655
        %v2721 = vmul.f32 %v1197, %v2656
        %v2722 = vmul.f32 %v1199, %v2657
        %v2723 = vmul.f32 %v1201, %v2658
        %v2724 = vmul.f32 %v1203, %v2659
        %v2725 = vmul.f32 %v1205, %v2660
        %v2726 = vmul.f32 %v1207, %v2661
        %v2727 = vadd.f32 %v2719, %v2456
        %v2728 = vadd.f32 %v2720, %v2457
        %v2729 = vadd.f32 %v2721, %v2458
        %v2730 = vadd.f32 %v2722, %v2459
        %v2731 = vadd.f32 %v2723, %v2460
        %v2732 = vadd.f32 %v2724, %v2461
        %v2733 = vadd.f32 %v2725, %v2462
        %v2734 = vadd.f32 %v2726, %v2463
        %v2735 = vmul.f32 %v2727, %v2371
        %v2736 = vmul.f32 %v2728, %v2379
        %v2737 = vmul.f32 %v2729, %v2387
        %v2738 = vmul.f32 %v2730, %v2395
        %v2739 = vmul.f32 %v2731, %v2403
        %v2740 = vmul.f32 %v2732, %v2411
        %v2741 = vmul.f32 %v2733, %v2419
        %v2742 = vmul.f32 %v2734, %v2427
        %2744 = vrot.lane.b32.xlu0 %v2735, 64
        %v2745 = vpop.permute.xlu0 %2744
        %v2747 = vadd.f32 %v2735, %v2745
        %v2748 = vadd.f32 %v2747, %v2736
        %2750 = vrot.lane.b32.xlu0 %v2736, 64
        %v2751 = vpop.permute.xlu0 %2750
        %v2753 = vadd.f32 %v2748, %v2751
        %v2754 = vadd.f32 %v2753, %v2737
        %2756 = vrot.lane.b32.xlu0 %v2737, 64
        %v2757 = vpop.permute.xlu0 %2756
        %v2759 = vadd.f32 %v2754, %v2757
        %v2760 = vadd.f32 %v2759, %v2738
        %2762 = vrot.lane.b32.xlu0 %v2738, 64
        %v2763 = vpop.permute.xlu0 %2762
        %v2765 = vadd.f32 %v2760, %v2763
        %v2766 = vadd.f32 %v2765, %v2739
        %2768 = vrot.lane.b32.xlu0 %v2739, 64
        %v2769 = vpop.permute.xlu0 %2768
        %v2771 = vadd.f32 %v2766, %v2769
        %v2772 = vadd.f32 %v2771, %v2740
        %2774 = vrot.lane.b32.xlu0 %v2740, 64
        %v2775 = vpop.permute.xlu0 %2774
        %v2777 = vadd.f32 %v2772, %v2775
        %v2778 = vadd.f32 %v2777, %v2741
        %2780 = vrot.lane.b32.xlu0 %v2741, 64
        %v2781 = vpop.permute.xlu0 %2780
        %v2783 = vadd.f32 %v2778, %v2781
        %v2784 = vadd.f32 %v2783, %v2742
        %2786 = vrot.lane.b32.xlu0 %v2742, 64
        %v2787 = vpop.permute.xlu0 %2786
        %v2789 = vadd.f32 %v2784, %v2787
        %v2790 = vmul.f32 %v716, %v2569
        %v2791 = vadd.f32 %v2789, %v2790
        %v2792 = vmul.f32 %v1209, %v2727
        %v2793 = vmul.f32 %v1211, %v2728
        %v2794 = vmul.f32 %v1213, %v2729
        %v2795 = vmul.f32 %v1215, %v2730
        %v2796 = vmul.f32 %v1217, %v2731
        %v2797 = vmul.f32 %v1219, %v2732
        %v2798 = vmul.f32 %v1221, %v2733
        %v2799 = vmul.f32 %v1223, %v2734
        %v2800 = vadd.f32 %v2792, %v2464
        %v2801 = vadd.f32 %v2793, %v2465
        %v2802 = vadd.f32 %v2794, %v2466
        %v2803 = vadd.f32 %v2795, %v2467
        %v2804 = vadd.f32 %v2796, %v2468
        %v2805 = vadd.f32 %v2797, %v2469
        %v2806 = vadd.f32 %v2798, %v2470
        %v2807 = vadd.f32 %v2799, %v2471
        %v2808 = vmul.f32 %v2800, %v2372
        %v2809 = vmul.f32 %v2801, %v2380
        %v2810 = vmul.f32 %v2802, %v2388
        %v2811 = vmul.f32 %v2803, %v2396
        %v2812 = vmul.f32 %v2804, %v2404
        %v2813 = vmul.f32 %v2805, %v2412
        %v2814 = vmul.f32 %v2806, %v2420
        %v2815 = vmul.f32 %v2807, %v2428
        %2817 = vrot.lane.b32.xlu0 %v2808, 64
        %v2818 = vpop.permute.xlu0 %2817
        %v2820 = vadd.f32 %v2808, %v2818
        %v2821 = vadd.f32 %v2820, %v2809
        %2823 = vrot.lane.b32.xlu0 %v2809, 64
        %v2824 = vpop.permute.xlu0 %2823
        %v2826 = vadd.f32 %v2821, %v2824
        %v2827 = vadd.f32 %v2826, %v2810
        %2829 = vrot.lane.b32.xlu0 %v2810, 64
        %v2830 = vpop.permute.xlu0 %2829
        %v2832 = vadd.f32 %v2827, %v2830
        %v2833 = vadd.f32 %v2832, %v2811
        %2835 = vrot.lane.b32.xlu0 %v2811, 64
        %v2836 = vpop.permute.xlu0 %2835
        %v2838 = vadd.f32 %v2833, %v2836
        %v2839 = vadd.f32 %v2838, %v2812
        %2841 = vrot.lane.b32.xlu0 %v2812, 64
        %v2842 = vpop.permute.xlu0 %2841
        %v2844 = vadd.f32 %v2839, %v2842
        %v2845 = vadd.f32 %v2844, %v2813
        %2847 = vrot.lane.b32.xlu0 %v2813, 64
        %v2848 = vpop.permute.xlu0 %2847
        %v2850 = vadd.f32 %v2845, %v2848
        %v2851 = vadd.f32 %v2850, %v2814
        %2853 = vrot.lane.b32.xlu0 %v2814, 64
        %v2854 = vpop.permute.xlu0 %2853
        %v2856 = vadd.f32 %v2851, %v2854
        %v2857 = vadd.f32 %v2856, %v2815
        %2859 = vrot.lane.b32.xlu0 %v2815, 64
        %v2860 = vpop.permute.xlu0 %2859
        %v2862 = vadd.f32 %v2857, %v2860
        %v2863 = vmul.f32 %v717, %v2569
        %v2864 = vadd.f32 %v2862, %v2863
        %v2865 = vmul.f32 %v1225, %v2800
        %v2866 = vmul.f32 %v1227, %v2801
        %v2867 = vmul.f32 %v1229, %v2802
        %v2868 = vmul.f32 %v1231, %v2803
        %v2869 = vmul.f32 %v1233, %v2804
        %v2870 = vmul.f32 %v1235, %v2805
        %v2871 = vmul.f32 %v1237, %v2806
        %v2872 = vmul.f32 %v1239, %v2807
        %v2873 = vadd.f32 %v2865, %v2472
        %v2874 = vadd.f32 %v2866, %v2473
        %v2875 = vadd.f32 %v2867, %v2474
        %v2876 = vadd.f32 %v2868, %v2475
        %v2877 = vadd.f32 %v2869, %v2476
        %v2878 = vadd.f32 %v2870, %v2477
        %v2879 = vadd.f32 %v2871, %v2478
        %v2880 = vadd.f32 %v2872, %v2479
        %v2881 = vmul.f32 %v2873, %v2373
        %v2882 = vmul.f32 %v2874, %v2381
        %v2883 = vmul.f32 %v2875, %v2389
        %v2884 = vmul.f32 %v2876, %v2397
        %v2885 = vmul.f32 %v2877, %v2405
        %v2886 = vmul.f32 %v2878, %v2413
        %v2887 = vmul.f32 %v2879, %v2421
        %v2888 = vmul.f32 %v2880, %v2429
        %2890 = vrot.lane.b32.xlu0 %v2881, 64
        %v2891 = vpop.permute.xlu0 %2890
        %v2893 = vadd.f32 %v2881, %v2891
        %v2894 = vadd.f32 %v2893, %v2882
        %2896 = vrot.lane.b32.xlu0 %v2882, 64
        %v2897 = vpop.permute.xlu0 %2896
        %v2899 = vadd.f32 %v2894, %v2897
        %v2900 = vadd.f32 %v2899, %v2883
        %2902 = vrot.lane.b32.xlu0 %v2883, 64
        %v2903 = vpop.permute.xlu0 %2902
        %v2905 = vadd.f32 %v2900, %v2903
        %v2906 = vadd.f32 %v2905, %v2884
        %2908 = vrot.lane.b32.xlu0 %v2884, 64
        %v2909 = vpop.permute.xlu0 %2908
        %v2911 = vadd.f32 %v2906, %v2909
        %v2912 = vadd.f32 %v2911, %v2885
        %2914 = vrot.lane.b32.xlu0 %v2885, 64
        %v2915 = vpop.permute.xlu0 %2914
        %v2917 = vadd.f32 %v2912, %v2915
        %v2918 = vadd.f32 %v2917, %v2886
        %2920 = vrot.lane.b32.xlu0 %v2886, 64
        %v2921 = vpop.permute.xlu0 %2920
        %v2923 = vadd.f32 %v2918, %v2921
        %v2924 = vadd.f32 %v2923, %v2887
        %2926 = vrot.lane.b32.xlu0 %v2887, 64
        %v2927 = vpop.permute.xlu0 %2926
        %v2929 = vadd.f32 %v2924, %v2927
        %v2930 = vadd.f32 %v2929, %v2888
        %2932 = vrot.lane.b32.xlu0 %v2888, 64
        %v2933 = vpop.permute.xlu0 %2932
        %v2935 = vadd.f32 %v2930, %v2933
        %v2936 = vmul.f32 %v718, %v2569
        %v2937 = vadd.f32 %v2935, %v2936
        %v2938 = vmul.f32 %v1241, %v2873
        %v2939 = vmul.f32 %v1243, %v2874
        %v2940 = vmul.f32 %v1245, %v2875
        %v2941 = vmul.f32 %v1247, %v2876
        %v2942 = vmul.f32 %v1249, %v2877
        %v2943 = vmul.f32 %v1251, %v2878
        %v2944 = vmul.f32 %v1253, %v2879
        %v2945 = vmul.f32 %v1255, %v2880
        %v2946 = vadd.f32 %v2938, %v2480
        %v2947 = vadd.f32 %v2939, %v2481
        %v2948 = vadd.f32 %v2940, %v2482
        %v2949 = vadd.f32 %v2941, %v2483
        %v2950 = vadd.f32 %v2942, %v2484
        %v2951 = vadd.f32 %v2943, %v2485
        %v2952 = vadd.f32 %v2944, %v2486
        %v2953 = vadd.f32 %v2945, %v2487
        %v2954 = vmul.f32 %v2946, %v2374
        %v2955 = vmul.f32 %v2947, %v2382
        %v2956 = vmul.f32 %v2948, %v2390
        %v2957 = vmul.f32 %v2949, %v2398
        %v2958 = vmul.f32 %v2950, %v2406
        %v2959 = vmul.f32 %v2951, %v2414
        %v2960 = vmul.f32 %v2952, %v2422
        %v2961 = vmul.f32 %v2953, %v2430
        %2963 = vrot.lane.b32.xlu0 %v2954, 64
        %v2964 = vpop.permute.xlu0 %2963
        %v2966 = vadd.f32 %v2954, %v2964
        %v2967 = vadd.f32 %v2966, %v2955
        %2969 = vrot.lane.b32.xlu0 %v2955, 64
        %v2970 = vpop.permute.xlu0 %2969
        %v2972 = vadd.f32 %v2967, %v2970
        %v2973 = vadd.f32 %v2972, %v2956
        %2975 = vrot.lane.b32.xlu0 %v2956, 64
        %v2976 = vpop.permute.xlu0 %2975
        %v2978 = vadd.f32 %v2973, %v2976
        %v2979 = vadd.f32 %v2978, %v2957
        %2981 = vrot.lane.b32.xlu0 %v2957, 64
        %v2982 = vpop.permute.xlu0 %2981
        %v2984 = vadd.f32 %v2979, %v2982
        %v2985 = vadd.f32 %v2984, %v2958
        %2987 = vrot.lane.b32.xlu0 %v2958, 64
        %v2988 = vpop.permute.xlu0 %2987
        %v2990 = vadd.f32 %v2985, %v2988
        %v2991 = vadd.f32 %v2990, %v2959
        %2993 = vrot.lane.b32.xlu0 %v2959, 64
        %v2994 = vpop.permute.xlu0 %2993
        %v2996 = vadd.f32 %v2991, %v2994
        %v2997 = vadd.f32 %v2996, %v2960
        %2999 = vrot.lane.b32.xlu0 %v2960, 64
        %v3000 = vpop.permute.xlu0 %2999
        %v3002 = vadd.f32 %v2997, %v3000
        %v3003 = vadd.f32 %v3002, %v2961
        %3005 = vrot.lane.b32.xlu0 %v2961, 64
        %v3006 = vpop.permute.xlu0 %3005
        %v3008 = vadd.f32 %v3003, %v3006
        %v3009 = vmul.f32 %v719, %v2569
        %v3010 = vadd.f32 %v3008, %v3009
        %v3011 = vmul.f32 %v1257, %v2946
        %v3012 = vmul.f32 %v1259, %v2947
        %v3013 = vmul.f32 %v1261, %v2948
        %v3014 = vmul.f32 %v1263, %v2949
        %v3015 = vmul.f32 %v1265, %v2950
        %v3016 = vmul.f32 %v1267, %v2951
        %v3017 = vmul.f32 %v1269, %v2952
        %v3018 = vmul.f32 %v1271, %v2953
        %v3019 = vadd.f32 %v3011, %v2488
        %v3020 = vadd.f32 %v3012, %v2489
        %v3021 = vadd.f32 %v3013, %v2490
        %v3022 = vadd.f32 %v3014, %v2491
        %v3023 = vadd.f32 %v3015, %v2492
        %v3024 = vadd.f32 %v3016, %v2493
        %v3025 = vadd.f32 %v3017, %v2494
        %v3026 = vadd.f32 %v3018, %v2495
        %v3027 = vmul.f32 %v3019, %v2375
        %v3028 = vmul.f32 %v3020, %v2383
        %v3029 = vmul.f32 %v3021, %v2391
        %v3030 = vmul.f32 %v3022, %v2399
        %v3031 = vmul.f32 %v3023, %v2407
        %v3032 = vmul.f32 %v3024, %v2415
        %v3033 = vmul.f32 %v3025, %v2423
        %v3034 = vmul.f32 %v3026, %v2431
        %3036 = vrot.lane.b32.xlu0 %v3027, 64
        %v3037 = vpop.permute.xlu0 %3036
        %v3039 = vadd.f32 %v3027, %v3037
        %v3040 = vadd.f32 %v3039, %v3028
        %3042 = vrot.lane.b32.xlu0 %v3028, 64
        %v3043 = vpop.permute.xlu0 %3042
        %v3045 = vadd.f32 %v3040, %v3043
        %v3046 = vadd.f32 %v3045, %v3029
        %3048 = vrot.lane.b32.xlu0 %v3029, 64
        %v3049 = vpop.permute.xlu0 %3048
        %v3051 = vadd.f32 %v3046, %v3049
        %v3052 = vadd.f32 %v3051, %v3030
        %3054 = vrot.lane.b32.xlu0 %v3030, 64
        %v3055 = vpop.permute.xlu0 %3054
        %v3057 = vadd.f32 %v3052, %v3055
        %v3058 = vadd.f32 %v3057, %v3031
        %3060 = vrot.lane.b32.xlu0 %v3031, 64
        %v3061 = vpop.permute.xlu0 %3060
        %v3063 = vadd.f32 %v3058, %v3061
        %v3064 = vadd.f32 %v3063, %v3032
        %3066 = vrot.lane.b32.xlu0 %v3032, 64
        %v3067 = vpop.permute.xlu0 %3066
        %v3069 = vadd.f32 %v3064, %v3067
        %v3070 = vadd.f32 %v3069, %v3033
        %3072 = vrot.lane.b32.xlu0 %v3033, 64
        %v3073 = vpop.permute.xlu0 %3072
        %v3075 = vadd.f32 %v3070, %v3073
        %v3076 = vadd.f32 %v3075, %v3034
        %3078 = vrot.lane.b32.xlu0 %v3034, 64
        %v3079 = vpop.permute.xlu0 %3078
        %v3081 = vadd.f32 %v3076, %v3079
        %v3082 = vmul.f32 %v720, %v2569
        %v3083 = vadd.f32 %v3081, %v3082
        %v3084 = vxor.u32 %v469, 2147483648
        %v3085 = vxor.u32 %v471, 2147483648
        %v3086 = vxor.u32 %v474, 2147483648
        %v3087 = vxor.u32 %v476, 2147483648
        %v3088 = vxor.u32 %v479, 2147483648
        %v3089 = vxor.u32 %v481, 2147483648
        %v3090 = vxor.u32 %v484, 2147483648
        %v3091 = vxor.u32 %v486, 2147483648
        %v3092 = vmul.f32 %v3084, 1.442695
        %v3093 = vpow.pop %v3092
        %v3094 = vmul.f32 %v3085, 1.442695
        %v3095 = vpow.pop %v3094
        %v3096 = vmul.f32 %v3086, 1.442695
        %v3097 = vpow.pop %v3096
        %v3098 = vmul.f32 %v3087, 1.442695
        %v3099 = vpow.pop %v3098
        %v3100 = vmul.f32 %v3088, 1.442695
        %v3101 = vpow.pop %v3100
        %v3102 = vmul.f32 %v3089, 1.442695
        %v3103 = vpow.pop %v3102
        %v3104 = vmul.f32 %v3090, 1.442695
        %v3105 = vpow.pop %v3104
        %v3106 = vmul.f32 %v3091, 1.442695
        %v3107 = vpow.pop %v3106
        %v3108 = vadd.f32 %v3093, 1.0
        %v3109 = vadd.f32 %v3095, 1.0
        %v3110 = vadd.f32 %v3097, 1.0
        %v3111 = vadd.f32 %v3099, 1.0
        %v3112 = vadd.f32 %v3101, 1.0
        %v3113 = vadd.f32 %v3103, 1.0
        %v3114 = vadd.f32 %v3105, 1.0
        %v3115 = vadd.f32 %v3107, 1.0
        %v3116 = vrcp.pop %v3108
        %v3117 = vmul.f32 %v3108, %v3116
        %v3118 = vsub.f32 1.0, %v3117
        %v3119 = vmul.f32 %v3116, %v3118
        %v3120 = vadd.f32 %v3116, %v3119
        %vm3121 = vweird.f32 %v3108
        %vm3122 = vweird.f32 %v3116
        %vm3123 = vmor %vm3121, %vm3122
        %v3124 = vsel %vm3123, %v3116, %v3120
        %v3125 = vand.u32 2147483647, %v3108
        %vm3126 = vcmp.eq.f32.partialorder %v3125, 8.507059e+37
        %v3127 = vand.u32 %v3108, 2147483648
        %v3128 = vor.u32 1.1754944e-38, %v3127
        %v3129 = vsel %vm3126, %v3128, %v3124
        %v3130 = vmul.f32 1.0, %v3129
        %v3131 = vrcp.pop %v3109
        %v3132 = vmul.f32 %v3109, %v3131
        %v3133 = vsub.f32 1.0, %v3132
        %v3134 = vmul.f32 %v3131, %v3133
        %v3135 = vadd.f32 %v3131, %v3134
        %vm3136 = vweird.f32 %v3109
        %vm3137 = vweird.f32 %v3131
        %vm3138 = vmor %vm3136, %vm3137
        %v3139 = vsel %vm3138, %v3131, %v3135
        %v3140 = vand.u32 2147483647, %v3109
        %vm3141 = vcmp.eq.f32.partialorder %v3140, 8.507059e+37
        %v3142 = vand.u32 %v3109, 2147483648
        %v3143 = vor.u32 1.1754944e-38, %v3142
        %v3144 = vsel %vm3141, %v3143, %v3139
        %v3145 = vmul.f32 1.0, %v3144
        %v3146 = vrcp.pop %v3110
        %v3147 = vmul.f32 %v3110, %v3146
        %v3148 = vsub.f32 1.0, %v3147
        %v3149 = vmul.f32 %v3146, %v3148
        %v3150 = vadd.f32 %v3146, %v3149
        %vm3151 = vweird.f32 %v3110
        %vm3152 = vweird.f32 %v3146
        %vm3153 = vmor %vm3151, %vm3152
        %v3154 = vsel %vm3153, %v3146, %v3150
        %v3155 = vand.u32 2147483647, %v3110
        %vm3156 = vcmp.eq.f32.partialorder %v3155, 8.507059e+37
        %v3157 = vand.u32 %v3110, 2147483648
        %v3158 = vor.u32 1.1754944e-38, %v3157
        %v3159 = vsel %vm3156, %v3158, %v3154
        %v3160 = vmul.f32 1.0, %v3159
        %v3161 = vrcp.pop %v3111
        %v3162 = vmul.f32 %v3111, %v3161
        %v3163 = vsub.f32 1.0, %v3162
        %v3164 = vmul.f32 %v3161, %v3163
        %v3165 = vadd.f32 %v3161, %v3164
        %vm3166 = vweird.f32 %v3111
        %vm3167 = vweird.f32 %v3161
        %vm3168 = vmor %vm3166, %vm3167
        %v3169 = vsel %vm3168, %v3161, %v3165
        %v3170 = vand.u32 2147483647, %v3111
        %vm3171 = vcmp.eq.f32.partialorder %v3170, 8.507059e+37
        %v3172 = vand.u32 %v3111, 2147483648
        %v3173 = vor.u32 1.1754944e-38, %v3172
        %v3174 = vsel %vm3171, %v3173, %v3169
        %v3175 = vmul.f32 1.0, %v3174
        %v3176 = vrcp.pop %v3112
        %v3177 = vmul.f32 %v3112, %v3176
        %v3178 = vsub.f32 1.0, %v3177
        %v3179 = vmul.f32 %v3176, %v3178
        %v3180 = vadd.f32 %v3176, %v3179
        %vm3181 = vweird.f32 %v3112
        %vm3182 = vweird.f32 %v3176
        %vm3183 = vmor %vm3181, %vm3182
        %v3184 = vsel %vm3183, %v3176, %v3180
        %v3185 = vand.u32 2147483647, %v3112
        %vm3186 = vcmp.eq.f32.partialorder %v3185, 8.507059e+37
        %v3187 = vand.u32 %v3112, 2147483648
        %v3188 = vor.u32 1.1754944e-38, %v3187
        %v3189 = vsel %vm3186, %v3188, %v3184
        %v3190 = vmul.f32 1.0, %v3189
        %v3191 = vrcp.pop %v3113
        %v3192 = vmul.f32 %v3113, %v3191
        %v3193 = vsub.f32 1.0, %v3192
        %v3194 = vmul.f32 %v3191, %v3193
        %v3195 = vadd.f32 %v3191, %v3194
        %vm3196 = vweird.f32 %v3113
        %vm3197 = vweird.f32 %v3191
        %vm3198 = vmor %vm3196, %vm3197
        %v3199 = vsel %vm3198, %v3191, %v3195
        %v3200 = vand.u32 2147483647, %v3113
        %vm3201 = vcmp.eq.f32.partialorder %v3200, 8.507059e+37
        %v3202 = vand.u32 %v3113, 2147483648
        %v3203 = vor.u32 1.1754944e-38, %v3202
        %v3204 = vsel %vm3201, %v3203, %v3199
        %v3205 = vmul.f32 1.0, %v3204
        %v3206 = vrcp.pop %v3114
        %v3207 = vmul.f32 %v3114, %v3206
        %v3208 = vsub.f32 1.0, %v3207
        %v3209 = vmul.f32 %v3206, %v3208
        %v3210 = vadd.f32 %v3206, %v3209
        %vm3211 = vweird.f32 %v3114
        %vm3212 = vweird.f32 %v3206
        %vm3213 = vmor %vm3211, %vm3212
        %v3214 = vsel %vm3213, %v3206, %v3210
        %v3215 = vand.u32 2147483647, %v3114
        %vm3216 = vcmp.eq.f32.partialorder %v3215, 8.507059e+37
        %v3217 = vand.u32 %v3114, 2147483648
        %v3218 = vor.u32 1.1754944e-38, %v3217
        %v3219 = vsel %vm3216, %v3218, %v3214
        %v3220 = vmul.f32 1.0, %v3219
        %v3221 = vrcp.pop %v3115
        %v3222 = vmul.f32 %v3115, %v3221
        %v3223 = vsub.f32 1.0, %v3222
        %v3224 = vmul.f32 %v3221, %v3223
        %v3225 = vadd.f32 %v3221, %v3224
        %vm3226 = vweird.f32 %v3115
        %vm3227 = vweird.f32 %v3221
        %vm3228 = vmor %vm3226, %vm3227
        %v3229 = vsel %vm3228, %v3221, %v3225
        %v3230 = vand.u32 2147483647, %v3115
        %vm3231 = vcmp.eq.f32.partialorder %v3230, 8.507059e+37
        %v3232 = vand.u32 %v3115, 2147483648
        %v3233 = vor.u32 1.1754944e-38, %v3232
        %v3234 = vsel %vm3231, %v3233, %v3229
        %v3235 = vmul.f32 1.0, %v3234
        %v3236 = vmul.f32 %v469, %v3130
        %v3237 = vmul.f32 %v471, %v3145
        %v3238 = vmul.f32 %v474, %v3160
        %v3239 = vmul.f32 %v476, %v3175
        %v3240 = vmul.f32 %v479, %v3190
        %v3241 = vmul.f32 %v481, %v3205
        %v3242 = vmul.f32 %v484, %v3220
        %v3243 = vmul.f32 %v486, %v3235
        %3252 = vrot.lane.b32.xlu0 %v3236, 64
        %v3253 = vpop.permute.xlu0 %3252
        %3254 = vrot.lane.b32.xlu0 %v3237, 64
        %v3255 = vpop.permute.xlu0 %3254
        %3256 = vrot.lane.b32.xlu0 %v3238, 64
        %v3257 = vpop.permute.xlu0 %3256
        %3258 = vrot.lane.b32.xlu0 %v3239, 64
        %v3259 = vpop.permute.xlu0 %3258
        %3260 = vrot.lane.b32.xlu0 %v3240, 64
        %v3261 = vpop.permute.xlu0 %3260
        %3262 = vrot.lane.b32.xlu0 %v3241, 64
        %v3263 = vpop.permute.xlu0 %3262
        %3264 = vrot.lane.b32.xlu0 %v3242, 64
        %v3265 = vpop.permute.xlu0 %3264
        %3266 = vrot.lane.b32.xlu0 %v3243, 64
        %v3267 = vpop.permute.xlu0 %3266
        %v3276 = vmul.f32 %v2572, %v3253
        %v3277 = vmul.f32 %v2645, %v3255
        %v3278 = vmul.f32 %v2718, %v3257
        %v3279 = vmul.f32 %v2791, %v3259
        %v3280 = vmul.f32 %v2864, %v3261
        %v3281 = vmul.f32 %v2937, %v3263
        %v3282 = vmul.f32 %v3010, %v3265
        %v3283 = vmul.f32 %v3083, %v3267
        %v3284 = vpack.c.bf16 %v3277, %v3276
        %v3285 = vpack.c.bf16 %v3279, %v3278
        %v3286 = vpack.c.bf16 %v3281, %v3280
        %v3287 = vpack.c.bf16 %v3283, %v3282
        %v3288 = vld [vmem:[%s9] sm:$0xf]
        %v3289 = vld [vmem:[%s9 + $0x4] sm:$0xf]
        %v3290 = vld [vmem:[%s9 + $0x8] sm:$0xf]
        %v3291 = vld [vmem:[%s9 + $0xc] sm:$0xf]
        %v3292 = vld [vmem:[%s9 + $0x10] sm:$0xf]
        %v3293 = vld [vmem:[%s9 + $0x14] sm:$0xf]
        %v3294 = vld [vmem:[%s9 + $0x18] sm:$0xf]
        %v3295 = vld [vmem:[%s9 + $0x1c] sm:$0xf]
        %v3304 = vunpack.c.l.b16 %v3288
        %v3305 = vunpack.c.l.b16 %v3289
        %v3306 = vunpack.c.l.b16 %v3290
        %v3307 = vunpack.c.l.b16 %v3291
        %v3308 = vunpack.c.l.b16 %v3292
        %v3309 = vunpack.c.l.b16 %v3293
        %v3310 = vunpack.c.l.b16 %v3294
        %v3311 = vunpack.c.l.b16 %v3295
        %v3312 = vpack.c.b16 %v3305, %v3304
        %v3313 = vpack.c.b16 %v3307, %v3306
        %v3314 = vpack.c.b16 %v3309, %v3308
        %v3315 = vpack.c.b16 %v3311, %v3310
        %v3321 = vsel %vm757, %v3284, 0
        %v3324 = vsel %vm757, %v3285, 0
        %v3327 = vsel %vm757, %v3286, 0
        %v3330 = vsel %vm757, %v3287, 0
        %3332 = vmatpush.bf16.msra.mxu0 0
        %3333 = vmatpush.bf16.msra.mxu0 0
        %3334 = vmatpush.bf16.msra.mxu0 0
        %3335 = vmatpush.bf16.msra.mxu0 0
        %3336 = vmatpush.bf16.msra.mxu0 %v3315
        %3337 = vmatpush.bf16.msra.mxu0 %v3314
        %3338 = vmatpush.bf16.msra.mxu0 %v3313
        %3339 = vmatpush.bf16.msra.mxu0 %v3312
        %3340 = vmatmul.bf16.gmra.mxu0 %v3321
        %v3341 = vpop.f32.mrf.mxu0
        %v3342 = vadd.f32 0.0, %v3341
        %v3343 = vpop.f32.mrf.mxu0
        %v3344 = vadd.f32 0.0, %v3343
        %3345 = vmatmul.bf16.gmra.mxu0 %v3324
        %v3346 = vpop.f32.mrf.mxu0
        %v3347 = vadd.f32 0.0, %v3346
        %v3348 = vpop.f32.mrf.mxu0
        %v3349 = vadd.f32 0.0, %v3348
        %3350 = vmatmul.bf16.gmra.mxu0 %v3327
        %v3351 = vpop.f32.mrf.mxu0
        %v3352 = vadd.f32 0.0, %v3351
        %v3353 = vpop.f32.mrf.mxu0
        %v3354 = vadd.f32 0.0, %v3353
        %3355 = vmatmul.bf16.gmra.mxu0 %v3330
        %v3356 = vpop.f32.mrf.mxu0
        %v3357 = vadd.f32 0.0, %v3356
        %v3358 = vpop.f32.mrf.mxu0
        %v3359 = vadd.f32 0.0, %v3358
        %3360 = vdwg.mxu0
        %3361 = vst.msk [vmem:[%s416] sm:$0xff] %vm446, %v3342
        %3362 = vst.msk [vmem:[%s416 + $0x8] sm:$0xff] %vm446, %v3344
        %3363 = vst.msk [vmem:[%s416 + $0x10] sm:$0xff] %vm446, %v3347
        %3364 = vst.msk [vmem:[%s416 + $0x18] sm:$0xff] %vm446, %v3349
        %3365 = vst.msk [vmem:[%s416 + $0x20] sm:$0xff] %vm446, %v3352
        %3366 = vst.msk [vmem:[%s416 + $0x28] sm:$0xff] %vm446, %v3354
        %3367 = vst.msk [vmem:[%s416 + $0x30] sm:$0xff] %vm446, %v3357
        %3368 = vst.msk [vmem:[%s416 + $0x38] sm:$0xff] %vm446, %v3359
        %s3369 = sand.u32 %s244, 1
        %s3370 = sand.u32 %s244, 1
        %s3371 = smul.addr %s3370, 64
        %s3372 = scalar_lea.vmem [#allocation3], %s3371
        // Predicated region
        $region99: #{mamba_scale_block.4} parent=93 // pred_check
          %p3373 = pneg %p254
        $region100: #{mamba_scale_block.4} parent=93 // pred_check_branch
          %3375 = sbr.rel (%p3373) target = $region102
        $region101: #{mamba_scale_block.4} parent=93 // pred_region
          %s3376 = smul.addr %s21, 8
          %s3377 = scalar_lea.vmem %s10, %s3376
          // Predicated region
          $region103: #{mamba_scale_block.4} parent=101 // pred_check
            _
          $region104: #{mamba_scale_block.4} parent=101 // pred_check_branch
            %3379 = sbr.rel (0) target = $region106
          $region105: #{mamba_scale_block.4} parent=101 // pred_region
            // Predicated region
            $region107: #{mamba_scale_block.4} parent=105 // pred_check
              _
            $region108: #{mamba_scale_block.4} parent=105 // pred_check_branch
              %3381 = sbr.rel (0) target = $region110
            $region109: #{mamba_scale_block.4} parent=105 // pred_region
              // Predicated region
              $region122: #{mamba_scale_block.4} parent=109 // pred_check
                _
              $region123: #{mamba_scale_block.4} parent=109 // pred_check_branch
                %3411 = sbr.rel (0) target = $region125
              $region124: #{mamba_scale_block.4} parent=109 // pred_region
                loop: start=0, step=1, limit=1
                $region126: #{mamba_scale_block.4} parent=124 // loop_pre_header
                  _
                $region127: #{mamba_scale_block.4} parent=124 // loop_header
                  %s3413 = sphi 0, %s3417
                  %p3414 = scmp.ge.s32.totalorder %s3413, 1
                  %s3418 = sphi %s3372, %s3372
                  %s3419 = sphi %s3377, %s3377
                $region128: #{mamba_scale_block.4} parent=124 // loop_header_branch
                  %3416 = sbr.rel (%p3414) target = $region132
                $region129: #{mamba_scale_block.4} parent=124 // loop_body
                  %v3420 = vld [vmem:[%s3418] sm:$0xff]
                  %3421 = vst [vmem:[%s3419] sm:$0xff] %v3420
                  %v3422 = vld [vmem:[%s3418 + $0x8] sm:$0xff]
                  %3423 = vst [vmem:[%s3419 + $0x10] sm:$0xff] %v3422
                  %v3424 = vld [vmem:[%s3418 + $0x10] sm:$0xff]
                  %3425 = vst [vmem:[%s3419 + $0x20] sm:$0xff] %v3424
                  %v3426 = vld [vmem:[%s3418 + $0x18] sm:$0xff]
                  %3427 = vst [vmem:[%s3419 + $0x30] sm:$0xff] %v3426
                  %v3428 = vld [vmem:[%s3418 + $0x20] sm:$0xff]
                  %3429 = vst [vmem:[%s3419 + $0x40] sm:$0xff] %v3428
                  %v3430 = vld [vmem:[%s3418 + $0x28] sm:$0xff]
                  %3431 = vst [vmem:[%s3419 + $0x50] sm:$0xff] %v3430
                  %v3432 = vld [vmem:[%s3418 + $0x30] sm:$0xff]
                  %3433 = vst [vmem:[%s3419 + $0x60] sm:$0xff] %v3432
                  %v3434 = vld [vmem:[%s3418 + $0x38] sm:$0xff]
                  %3435 = vst [vmem:[%s3419 + $0x70] sm:$0xff] %v3434
                $region130: #{mamba_scale_block.4} parent=124 // loop_footer
                  %s3417 = sadd.s32 1, %s3413
                $region131: #{mamba_scale_block.4} parent=124 // loop_footer_branch
                  %3412 = sbr.rel target = $region127
                $region132: #{mamba_scale_block.4} parent=124 // loop_exit
                  _
              $region125: #{mamba_scale_block.4} parent=109 // pred_fallthru
                _
              // Predicated region
              $region133: #{mamba_scale_block.4} parent=109 // pred_check
                _
              $region134: #{mamba_scale_block.4} parent=109 // pred_check_branch
                %3437 = sbr.rel target = $region136
              $region135: #{mamba_scale_block.4} parent=109 // pred_region
                _
              $region136: #{mamba_scale_block.4} parent=109 // pred_fallthru
                _
            $region110: #{mamba_scale_block.4} parent=105 // pred_fallthru
              _
            // Predicated region
            $region111: #{mamba_scale_block.4} parent=105 // pred_check
              _
            $region112: #{mamba_scale_block.4} parent=105 // pred_check_branch
              %3383 = sbr.rel target = $region114
            $region113: #{mamba_scale_block.4} parent=105 // pred_region
              %s3385 = ssub.s32 256, 1
              loop: start=0, step=1, limit=1
              $region115: #{mamba_scale_block.4} parent=113 // loop_pre_header
                _
              $region116: #{mamba_scale_block.4} parent=113 // loop_header
                %s3387 = sphi 0, %s3391
                %p3388 = scmp.ge.s32.totalorder %s3387, 1
                %s3392 = sphi %s3372, %s3372
                %s3393 = sphi %s3377, %s3377
              $region117: #{mamba_scale_block.4} parent=113 // loop_header_branch
                %3390 = sbr.rel (%p3388) target = $region121
              $region118: #{mamba_scale_block.4} parent=113 // loop_body
                %v3394 = vld [vmem:[%s3392] sm:%s3385]
                %3395 = vst [vmem:[%s3393] sm:%s3385] %v3394
                %v3396 = vld [vmem:[%s3392 + $0x8] sm:%s3385]
                %3397 = vst [vmem:[%s3393 + $0x10] sm:%s3385] %v3396
                %v3398 = vld [vmem:[%s3392 + $0x10] sm:%s3385]
                %3399 = vst [vmem:[%s3393 + $0x20] sm:%s3385] %v3398
                %v3400 = vld [vmem:[%s3392 + $0x18] sm:%s3385]
                %3401 = vst [vmem:[%s3393 + $0x30] sm:%s3385] %v3400
                %v3402 = vld [vmem:[%s3392 + $0x20] sm:%s3385]
                %3403 = vst [vmem:[%s3393 + $0x40] sm:%s3385] %v3402
                %v3404 = vld [vmem:[%s3392 + $0x28] sm:%s3385]
                %3405 = vst [vmem:[%s3393 + $0x50] sm:%s3385] %v3404
                %v3406 = vld [vmem:[%s3392 + $0x30] sm:%s3385]
                %3407 = vst [vmem:[%s3393 + $0x60] sm:%s3385] %v3406
                %v3408 = vld [vmem:[%s3392 + $0x38] sm:%s3385]
                %3409 = vst [vmem:[%s3393 + $0x70] sm:%s3385] %v3408
              $region119: #{mamba_scale_block.4} parent=113 // loop_footer
                %s3391 = sadd.s32 1, %s3387
              $region120: #{mamba_scale_block.4} parent=113 // loop_footer_branch
                %3386 = sbr.rel target = $region116
              $region121: #{mamba_scale_block.4} parent=113 // loop_exit
                _
            $region114: #{mamba_scale_block.4} parent=105 // pred_fallthru
              _
          $region106: #{mamba_scale_block.4} parent=101 // pred_fallthru
            _
          %3438 = vnop
        $region102: #{mamba_scale_block.4} parent=93 // pred_fallthru
          _
      $region94: #{mamba_scale_block.4} parent=5 // pred_fallthru
        _
      %p3439 = scmp.le.s32.totalorder 2, %s16
      // Predicated region
      $region137: #{mamba_scale_block.4} parent=5 // pred_check
        %p3440 = pneg %p3439
      $region138: #{mamba_scale_block.4} parent=5 // pred_check_branch
        %3442 = sbr.rel (%p3440) target = $region140
      $region139: #{mamba_scale_block.4} parent=5 // pred_region
        %s3443 = ssub.s32 %s16, 2
        // Predicated region
        $region141: #{mamba_scale_block.4} parent=139 // pred_check
          %p3444 = pneg %p260
        $region142: #{mamba_scale_block.4} parent=139 // pred_check_branch
          %3446 = sbr.rel (%p3444) target = $region144
        $region143: #{mamba_scale_block.4} parent=139 // pred_region
          %s3447 = sand.u32 %s245, 1
          %s3448 = sand.u32 %s245, 1
          %s3449 = smul.addr %s3448, 64
          %s3450 = scalar_lea.vmem [#allocation3], %s3449
        $region144: #{mamba_scale_block.4} parent=139 // pred_fallthru
          _
      $region140: #{mamba_scale_block.4} parent=5 // pred_fallthru
        _
    $region6: #{mamba_scale_block.4} parent=1 // loop_footer
      %s20 = sadd.s32 1, %s16
    $region7: #{mamba_scale_block.4} parent=1 // loop_footer_branch
      %15 = sbr.rel target = $region3
    $region8: #{mamba_scale_block.4} parent=1 // loop_exit
      _

// kernel: mamba_scale_block.5
$region0: #{mamba_scale_block.5}
  #allocation0 [shape = 'u32[]', space=smem, size = 0x4, offset = 0x4, fixed_abs, tag = 'smem constant byte address 0x4 - core index']
  #allocation1 [shape = 'u32[72,128]{1,0:T(1,128)}', space=vmem, size = 0x9000, scoped, tag = 'internal scratch']
  %s0 = inlined_call_operand.vmem [shape: f32[2,8,8,32], index: 0, kind: input, shape index: {}]
  %s1 = inlined_call_operand.vmem [shape: bf16[32,128], index: 1, kind: input, shape index: {}]
  %s2 = inlined_call_operand.vmem [shape: f32[4,64], index: 2, kind: input, shape index: {}]
  %s3 = inlined_call_operand.vmem [shape: f32[1,64], index: 3, kind: input, shape index: {}]
  %s4 = inlined_call_operand.vmem [shape: bf16[64,34], index: 4, kind: input, shape index: {}]
  %s5 = inlined_call_operand.vmem [shape: bf16[2,64], index: 5, kind: input, shape index: {}]
  %s6 = inlined_call_operand.vmem [shape: f32[1,64], index: 6, kind: input, shape index: {}]
  %s7 = inlined_call_operand.vmem [shape: f32[1,1024], index: 7, kind: input, shape index: {}]
  %s8 = inlined_call_operand.vmem [shape: f32[1,64], index: 8, kind: input, shape index: {}]
  %s9 = inlined_call_operand.vmem [shape: bf16[64,32], index: 9, kind: input, shape index: {}]
  %s10 = inlined_call_operand.hbm [shape: f32[2,8,8,32], index: 10, kind: output, shape index: {}]
  %s11 = sld [smem:[#allocation0]]
  $region73: #{mamba_scale_block.5} parent=0
    _
  %s13 = ssub.s32 1, %s11
  %s14 = scalar_select 0, %s13, %s11
  $region1: #{mamba_scale_block.5} parent=0
    #allocation2 [shape = 'u8[65536]{0}', space=vmem, size = 0x10000, scoped, tag = 'output window, operand 0']
    #allocation3 [shape = 's32[2]{0}', space=sflag, size = 0x8, scoped, tag = 'scoped memory for mamba_scale_block.5']
    %15 = vsyncpa [#allocation3], 0
    %s16 = scalar_lea.sflag [#allocation3], 1
    %17 = vsyncpa %s16, 0
    loop: start=0, step=1, limit=4
    $region2: #{mamba_scale_block.5} parent=1 // loop_pre_header
      _
    $region3: #{mamba_scale_block.5} parent=1 // loop_header
      %s19 = sphi 0, %s23
      %p20 = scmp.ge.s32.totalorder %s19, 4
      %s29 = sphi 0, %s31
      %s32 = sphi 0, %s29
      %s33 = sphi 0, %s32
      %s49 = sphi 0, %s33
      %s53 = sphi 0, %s53
      %s55 = sphi 0, %s53
      %s56 = sphi 0, %s55
      %s70 = sphi 0, %s56
      %s74 = sphi 0, %s74
      %s76 = sphi 0, %s74
      %s77 = sphi 0, %s76
      %s91 = sphi 0, %s77
      %s95 = sphi 0, %s95
      %s97 = sphi 0, %s95
      %s98 = sphi 0, %s97
      %s112 = sphi 0, %s98
      %s116 = sphi 0, %s116
      %s118 = sphi 0, %s116
      %s119 = sphi 0, %s118
      %s133 = sphi 0, %s119
      %s137 = sphi 0, %s137
      %s139 = sphi 0, %s137
      %s140 = sphi 0, %s139
      %s154 = sphi 0, %s140
      %s158 = sphi 0, %s158
      %s160 = sphi 0, %s158
      %s161 = sphi 0, %s160
      %s175 = sphi 0, %s161
      %s179 = sphi 0, %s179
      %s181 = sphi 0, %s179
      %s182 = sphi 0, %s181
      %s196 = sphi 0, %s182
      %s200 = sphi 0, %s200
      %s202 = sphi 0, %s200
      %s203 = sphi 0, %s202
      %s217 = sphi 0, %s203
      %s221 = sphi 0, %s221
      %s223 = sphi 0, %s221
      %s224 = sphi 0, %s223
      %s238 = sphi 0, %s224
      %s244 = sphi 0, %s246
      %s247 = sphi 0, %s244
      %s248 = sphi 0, %s247
      %s264 = sphi 0, %s248
    $region4: #{mamba_scale_block.5} parent=1 // loop_header_branch
      %22 = sbr.rel (%p20) target = $region8
    $region5: #{mamba_scale_block.5} parent=1 // loop_body
      %s24 = ssub.s32 %s19, 1
      %s25 = ssub.s32 %s19, 2
      %s26 = sadd.s32 %s19, 1
      %s27 = ssub.s32 %s19, %s26
      %p28 = scmp.eq.s32.totalorder %s27, 0
      %s30 = sadd.s32 %s29, 1
      %s31 = scalar_select %p28, %s29, %s30
      %p34 = pneg %p28
      %p35 = scmp.eq.s32.totalorder %s19, 1
      %p36 = por %p34, %p35
      %p37 = scmp.ne.s32.totalorder %s29, %s32
      %p38 = scmp.eq.s32.totalorder %s19, 0
      %p39 = por %p37, %p38
      %p40 = scmp.ne.s32.totalorder %s29, %s32
      %p41 = scmp.eq.s32.totalorder %s24, 1
      %p42 = por %p40, %p41
      %p43 = scmp.ne.s32.totalorder %s32, %s33
      %p44 = scmp.eq.s32.totalorder %s24, 0
      %p45 = por %p43, %p44
      %p46 = scmp.ne.s32.totalorder %s32, %s33
      %p47 = scmp.eq.s32.totalorder %s25, 1
      %p48 = por %p46, %p47
      %p50 = scmp.ne.s32.totalorder %s33, %s49
      %p51 = scmp.eq.s32.totalorder %s25, 0
      %p52 = por %p50, %p51
      %s54 = sadd.s32 %s53, 1
      %p57 = scmp.eq.s32.totalorder %s19, 1
      %p58 = scmp.ne.s32.totalorder %s53, %s55
      %p59 = scmp.eq.s32.totalorder %s19, 0
      %p60 = por %p58, %p59
      %p61 = scmp.ne.s32.totalorder %s53, %s55
      %p62 = scmp.eq.s32.totalorder %s24, 1
      %p63 = por %p61, %p62
      %p64 = scmp.ne.s32.totalorder %s55, %s56
      %p65 = scmp.eq.s32.totalorder %s24, 0
      %p66 = por %p64, %p65
      %p67 = scmp.ne.s32.totalorder %s55, %s56
      %p68 = scmp.eq.s32.totalorder %s25, 1
      %p69 = por %p67, %p68
      %p71 = scmp.ne.s32.totalorder %s56, %s70
      %p72 = scmp.eq.s32.totalorder %s25, 0
      %p73 = por %p71, %p72
      %s75 = sadd.s32 %s74, 1
      %p78 = scmp.eq.s32.totalorder %s19, 1
      %p79 = scmp.ne.s32.totalorder %s74, %s76
      %p80 = scmp.eq.s32.totalorder %s19, 0
      %p81 = por %p79, %p80
      %p82 = scmp.ne.s32.totalorder %s74, %s76
      %p83 = scmp.eq.s32.totalorder %s24, 1
      %p84 = por %p82, %p83
      %p85 = scmp.ne.s32.totalorder %s76, %s77
      %p86 = scmp.eq.s32.totalorder %s24, 0
      %p87 = por %p85, %p86
      %p88 = scmp.ne.s32.totalorder %s76, %s77
      %p89 = scmp.eq.s32.totalorder %s25, 1
      %p90 = por %p88, %p89
      %p92 = scmp.ne.s32.totalorder %s77, %s91
      %p93 = scmp.eq.s32.totalorder %s25, 0
      %p94 = por %p92, %p93
      %s96 = sadd.s32 %s95, 1
      %p99 = scmp.eq.s32.totalorder %s19, 1
      %p100 = scmp.ne.s32.totalorder %s95, %s97
      %p101 = scmp.eq.s32.totalorder %s19, 0
      %p102 = por %p100, %p101
      %p103 = scmp.ne.s32.totalorder %s95, %s97
      %p104 = scmp.eq.s32.totalorder %s24, 1
      %p105 = por %p103, %p104
      %p106 = scmp.ne.s32.totalorder %s97, %s98
      %p107 = scmp.eq.s32.totalorder %s24, 0
      %p108 = por %p106, %p107
      %p109 = scmp.ne.s32.totalorder %s97, %s98
      %p110 = scmp.eq.s32.totalorder %s25, 1
      %p111 = por %p109, %p110
      %p113 = scmp.ne.s32.totalorder %s98, %s112
      %p114 = scmp.eq.s32.totalorder %s25, 0
      %p115 = por %p113, %p114
      %s117 = sadd.s32 %s116, 1
      %p120 = scmp.eq.s32.totalorder %s19, 1
      %p121 = scmp.ne.s32.totalorder %s116, %s118
      %p122 = scmp.eq.s32.totalorder %s19, 0
      %p123 = por %p121, %p122
      %p124 = scmp.ne.s32.totalorder %s116, %s118
      %p125 = scmp.eq.s32.totalorder %s24, 1
      %p126 = por %p124, %p125
      %p127 = scmp.ne.s32.totalorder %s118, %s119
      %p128 = scmp.eq.s32.totalorder %s24, 0
      %p129 = por %p127, %p128
      %p130 = scmp.ne.s32.totalorder %s118, %s119
      %p131 = scmp.eq.s32.totalorder %s25, 1
      %p132 = por %p130, %p131
      %p134 = scmp.ne.s32.totalorder %s119, %s133
      %p135 = scmp.eq.s32.totalorder %s25, 0
      %p136 = por %p134, %p135
      %s138 = sadd.s32 %s137, 1
      %p141 = scmp.eq.s32.totalorder %s19, 1
      %p142 = scmp.ne.s32.totalorder %s137, %s139
      %p143 = scmp.eq.s32.totalorder %s19, 0
      %p144 = por %p142, %p143
      %p145 = scmp.ne.s32.totalorder %s137, %s139
      %p146 = scmp.eq.s32.totalorder %s24, 1
      %p147 = por %p145, %p146
      %p148 = scmp.ne.s32.totalorder %s139, %s140
      %p149 = scmp.eq.s32.totalorder %s24, 0
      %p150 = por %p148, %p149
      %p151 = scmp.ne.s32.totalorder %s139, %s140
      %p152 = scmp.eq.s32.totalorder %s25, 1
      %p153 = por %p151, %p152
      %p155 = scmp.ne.s32.totalorder %s140, %s154
      %p156 = scmp.eq.s32.totalorder %s25, 0
      %p157 = por %p155, %p156
      %s159 = sadd.s32 %s158, 1
      %p162 = scmp.eq.s32.totalorder %s19, 1
      %p163 = scmp.ne.s32.totalorder %s158, %s160
      %p164 = scmp.eq.s32.totalorder %s19, 0
      %p165 = por %p163, %p164
      %p166 = scmp.ne.s32.totalorder %s158, %s160
      %p167 = scmp.eq.s32.totalorder %s24, 1
      %p168 = por %p166, %p167
      %p169 = scmp.ne.s32.totalorder %s160, %s161
      %p170 = scmp.eq.s32.totalorder %s24, 0
      %p171 = por %p169, %p170
      %p172 = scmp.ne.s32.totalorder %s160, %s161
      %p173 = scmp.eq.s32.totalorder %s25, 1
      %p174 = por %p172, %p173
      %p176 = scmp.ne.s32.totalorder %s161, %s175
      %p177 = scmp.eq.s32.totalorder %s25, 0
      %p178 = por %p176, %p177
      %s180 = sadd.s32 %s179, 1
      %p183 = scmp.eq.s32.totalorder %s19, 1
      %p184 = scmp.ne.s32.totalorder %s179, %s181
      %p185 = scmp.eq.s32.totalorder %s19, 0
      %p186 = por %p184, %p185
      %p187 = scmp.ne.s32.totalorder %s179, %s181
      %p188 = scmp.eq.s32.totalorder %s24, 1
      %p189 = por %p187, %p188
      %p190 = scmp.ne.s32.totalorder %s181, %s182
      %p191 = scmp.eq.s32.totalorder %s24, 0
      %p192 = por %p190, %p191
      %p193 = scmp.ne.s32.totalorder %s181, %s182
      %p194 = scmp.eq.s32.totalorder %s25, 1
      %p195 = por %p193, %p194
      %p197 = scmp.ne.s32.totalorder %s182, %s196
      %p198 = scmp.eq.s32.totalorder %s25, 0
      %p199 = por %p197, %p198
      %s201 = sadd.s32 %s200, 1
      %p204 = scmp.eq.s32.totalorder %s19, 1
      %p205 = scmp.ne.s32.totalorder %s200, %s202
      %p206 = scmp.eq.s32.totalorder %s19, 0
      %p207 = por %p205, %p206
      %p208 = scmp.ne.s32.totalorder %s200, %s202
      %p209 = scmp.eq.s32.totalorder %s24, 1
      %p210 = por %p208, %p209
      %p211 = scmp.ne.s32.totalorder %s202, %s203
      %p212 = scmp.eq.s32.totalorder %s24, 0
      %p213 = por %p211, %p212
      %p214 = scmp.ne.s32.totalorder %s202, %s203
      %p215 = scmp.eq.s32.totalorder %s25, 1
      %p216 = por %p214, %p215
      %p218 = scmp.ne.s32.totalorder %s203, %s217
      %p219 = scmp.eq.s32.totalorder %s25, 0
      %p220 = por %p218, %p219
      %s222 = sadd.s32 %s221, 1
      %p225 = scmp.eq.s32.totalorder %s19, 1
      %p226 = scmp.ne.s32.totalorder %s221, %s223
      %p227 = scmp.eq.s32.totalorder %s19, 0
      %p228 = por %p226, %p227
      %p229 = scmp.ne.s32.totalorder %s221, %s223
      %p230 = scmp.eq.s32.totalorder %s24, 1
      %p231 = por %p229, %p230
      %p232 = scmp.ne.s32.totalorder %s223, %s224
      %p233 = scmp.eq.s32.totalorder %s24, 0
      %p234 = por %p232, %p233
      %p235 = scmp.ne.s32.totalorder %s223, %s224
      %p236 = scmp.eq.s32.totalorder %s25, 1
      %p237 = por %p235, %p236
      %p239 = scmp.ne.s32.totalorder %s224, %s238
      %p240 = scmp.eq.s32.totalorder %s25, 0
      %p241 = por %p239, %p240
      %s242 = ssub.s32 %s19, %s26
      %p243 = scmp.eq.s32.totalorder %s242, 0
      %s245 = sadd.s32 %s244, 1
      %s246 = scalar_select %p243, %s244, %s245
      %p249 = pneg %p243
      %p250 = scmp.eq.s32.totalorder %s19, 1
      %p251 = por %p249, %p250
      %p252 = scmp.ne.s32.totalorder %s244, %s247
      %p253 = scmp.eq.s32.totalorder %s19, 0
      %p254 = por %p252, %p253
      %p255 = scmp.ne.s32.totalorder %s244, %s247
      %p256 = scmp.eq.s32.totalorder %s24, 1
      %p257 = por %p255, %p256
      %p258 = scmp.ne.s32.totalorder %s247, %s248
      %p259 = scmp.eq.s32.totalorder %s24, 0
      %p260 = por %p258, %p259
      %p261 = scmp.ne.s32.totalorder %s247, %s248
      %p262 = scmp.eq.s32.totalorder %s25, 1
      %p263 = por %p261, %p262
      %p265 = scmp.ne.s32.totalorder %s248, %s264
      %p266 = scmp.eq.s32.totalorder %s25, 0
      %p267 = por %p265, %p266
      %p268 = scmp.le.s32.totalorder 1, %s19
      %p269 = scmp.lt.s32.totalorder %s19, 3
      %p270 = pnand %p268, %p269
      %p271 = pneg %p270
      // Predicated region
      $region9: #{mamba_scale_block.5} parent=5 // pred_check
        _
      $region10: #{mamba_scale_block.5} parent=5 // pred_check_branch
        %273 = sbr.rel (%p270) target = $region12
      $region11: #{mamba_scale_block.5} parent=5 // pred_region
        %s274 = ssub.s32 %s19, 1
        // Predicated region
        $region13: #{mamba_scale_block.5} parent=11 // pred_check
          %p275 = pneg %p66
        $region14: #{mamba_scale_block.5} parent=11 // pred_check_branch
          %277 = sbr.rel (%p275) target = $region16
        $region15: #{mamba_scale_block.5} parent=11 // pred_region
          _
        $region16: #{mamba_scale_block.5} parent=11 // pred_fallthru
          _
        // Predicated region
        $region17: #{mamba_scale_block.5} parent=11 // pred_check
          %p278 = pneg %p87
        $region18: #{mamba_scale_block.5} parent=11 // pred_check_branch
          %280 = sbr.rel (%p278) target = $region20
        $region19: #{mamba_scale_block.5} parent=11 // pred_region
          _
        $region20: #{mamba_scale_block.5} parent=11 // pred_fallthru
          _
        // Predicated region
        $region21: #{mamba_scale_block.5} parent=11 // pred_check
          %p281 = pneg %p108
        $region22: #{mamba_scale_block.5} parent=11 // pred_check_branch
          %283 = sbr.rel (%p281) target = $region24
        $region23: #{mamba_scale_block.5} parent=11 // pred_region
          _
        $region24: #{mamba_scale_block.5} parent=11 // pred_fallthru
          _
        // Predicated region
        $region25: #{mamba_scale_block.5} parent=11 // pred_check
          %p284 = pneg %p129
        $region26: #{mamba_scale_block.5} parent=11 // pred_check_branch
          %286 = sbr.rel (%p284) target = $region28
        $region27: #{mamba_scale_block.5} parent=11 // pred_region
          _
        $region28: #{mamba_scale_block.5} parent=11 // pred_fallthru
          _
        // Predicated region
        $region29: #{mamba_scale_block.5} parent=11 // pred_check
          %p287 = pneg %p150
        $region30: #{mamba_scale_block.5} parent=11 // pred_check_branch
          %289 = sbr.rel (%p287) target = $region32
        $region31: #{mamba_scale_block.5} parent=11 // pred_region
          _
        $region32: #{mamba_scale_block.5} parent=11 // pred_fallthru
          _
        // Predicated region
        $region33: #{mamba_scale_block.5} parent=11 // pred_check
          %p290 = pneg %p171
        $region34: #{mamba_scale_block.5} parent=11 // pred_check_branch
          %292 = sbr.rel (%p290) target = $region36
        $region35: #{mamba_scale_block.5} parent=11 // pred_region
          _
        $region36: #{mamba_scale_block.5} parent=11 // pred_fallthru
          _
        // Predicated region
        $region37: #{mamba_scale_block.5} parent=11 // pred_check
          %p293 = pneg %p192
        $region38: #{mamba_scale_block.5} parent=11 // pred_check_branch
          %295 = sbr.rel (%p293) target = $region40
        $region39: #{mamba_scale_block.5} parent=11 // pred_region
          _
        $region40: #{mamba_scale_block.5} parent=11 // pred_fallthru
          _
        // Predicated region
        $region41: #{mamba_scale_block.5} parent=11 // pred_check
          %p296 = pneg %p213
        $region42: #{mamba_scale_block.5} parent=11 // pred_check_branch
          %298 = sbr.rel (%p296) target = $region44
        $region43: #{mamba_scale_block.5} parent=11 // pred_region
          _
        $region44: #{mamba_scale_block.5} parent=11 // pred_fallthru
          _
        // Predicated region
        $region45: #{mamba_scale_block.5} parent=11 // pred_check
          %p299 = pneg %p234
        $region46: #{mamba_scale_block.5} parent=11 // pred_check_branch
          %301 = sbr.rel (%p299) target = $region48
        $region47: #{mamba_scale_block.5} parent=11 // pred_region
          _
        $region48: #{mamba_scale_block.5} parent=11 // pred_fallthru
          _
      $region12: #{mamba_scale_block.5} parent=5 // pred_fallthru
        _
      %p302 = scmp.lt.s32.totalorder %s19, 2
      // Predicated region
      $region49: #{mamba_scale_block.5} parent=5 // pred_check
        %p303 = pneg %p302
      $region50: #{mamba_scale_block.5} parent=5 // pred_check_branch
        %305 = sbr.rel (%p303) target = $region52
      $region51: #{mamba_scale_block.5} parent=5 // pred_region
        // Predicated region
        $region53: #{mamba_scale_block.5} parent=51 // pred_check
          %p306 = pneg %p39
        $region54: #{mamba_scale_block.5} parent=51 // pred_check_branch
          %308 = sbr.rel (%p306) target = $region56
        $region55: #{mamba_scale_block.5} parent=51 // pred_region
          %p309 = scmp.lt.s32.totalorder %s19, 1
          %s310 = scalar_select %p309, %s19, 1
          %s311 = smul.addr %s310, 8
          %s312 = smul.addr %s311, 8
          %s313 = scalar_lea.vmem %s0, %s312
        $region56: #{mamba_scale_block.5} parent=51 // pred_fallthru
          _
      $region52: #{mamba_scale_block.5} parent=5 // pred_fallthru
        _
      %p314 = scmp.le.s32.totalorder 1, %s19
      %p315 = scmp.lt.s32.totalorder %s19, 3
      %p316 = pnand %p314, %p315
      %p317 = pneg %p316
      // Predicated region
      $region57: #{mamba_scale_block.5} parent=5 // pred_check
        _
      $region58: #{mamba_scale_block.5} parent=5 // pred_check_branch
        %319 = sbr.rel (%p316) target = $region60
      $region59: #{mamba_scale_block.5} parent=5 // pred_region
        %s320 = ssub.s32 %s19, 1
        %p321 = scmp.lt.s32.totalorder %s24, 1
        %s322 = scalar_select %p321, %s24, 1
        %s323 = smul.addr %s322, 8
        %s324 = smul.addr %s323, 8
        %s325 = scalar_lea.vmem %s0, %s324
        %p326 = pneg %p45
        %p327 = pneg %p42
        %p328 = pneg %p66
        %p329 = pneg %p63
        %p330 = pneg %p87
        %p331 = pneg %p84
        %p332 = pneg %p108
        %p333 = pneg %p105
        %p334 = pneg %p129
        %p335 = pneg %p126
        %p336 = pneg %p150
        %p337 = pneg %p147
        %p338 = pneg %p171
        %p339 = pneg %p168
        %p340 = pneg %p192
        %p341 = pneg %p189
        %p342 = pneg %p213
        %p343 = pneg %p210
        %p344 = pneg %p234
        %p345 = pneg %p231
        %p346 = pneg %p260
        %p347 = pneg %p257
        %s348 = sand.u32 %s247, 1
        %s349 = scalar_lea.sflag [#allocation3], %s348
        %s350 = sand.u32 %s247, 1
        %s351 = smul.addr %s350, 64
        %s352 = scalar_lea.vmem [#allocation2], %s351
        %p353 = scmp.lt.s32.totalorder %s24, 1
        %s354 = scalar_select %p353, %s24, 1
        %s355 = smul.addr %s354, 8
        %s356 = smul.addr %s355, 8
        %s357 = scalar_lea.vmem %s0, %s356
        %v359 = vld [vmem:[%s357] sm:$0xff]
        %v360 = vld [vmem:[%s357 + $0x8] sm:$0xff]
        %v361 = vld [vmem:[%s357 + $0x10] sm:$0xff]
        %v362 = vld [vmem:[%s357 + $0x18] sm:$0xff]
        %v363 = vld [vmem:[%s357 + $0x20] sm:$0xff]
        %v364 = vld [vmem:[%s357 + $0x28] sm:$0xff]
        %v365 = vld [vmem:[%s357 + $0x30] sm:$0xff]
        %v366 = vld [vmem:[%s357 + $0x38] sm:$0xff]
        %v367 = vpack.c.bf16 %v360, %v359
        %v368 = vpack.c.bf16 %v362, %v361
        %v369 = vpack.c.bf16 %v364, %v363
        %v370 = vpack.c.bf16 %v366, %v365
        %v371 = vld [vmem:[%s1] sm:$0xf]
        %v372 = vld [vmem:[%s1 + $0x4] sm:$0xf]
        %v373 = vld [vmem:[%s1 + $0x8] sm:$0xf]
        %v374 = vld [vmem:[%s1 + $0xc] sm:$0xf]
        %v379 = vunpack.c.l.b16 %v371
        %v380 = vunpack.c.l.b16 %v372
        %v381 = vunpack.c.l.b16 %v373
        %v382 = vunpack.c.l.b16 %v374
        %v383 = vpack.c.b16 %v380, %v379
        %v384 = vpack.c.b16 %v382, %v381
        %vm387 = vcmask 261120
        %v389 = vsel %vm387, %v367, 0
        %v392 = vsel %vm387, %v368, 0
        %v395 = vsel %vm387, %v369, 0
        %v398 = vsel %vm387, %v370, 0
        %400 = vmatpush.bf16.msra.mxu0 0
        %401 = vmatpush.bf16.msra.mxu0 0
        %402 = vmatpush.bf16.msra.mxu0 0
        %403 = vmatpush.bf16.msra.mxu0 0
        %404 = vmatpush.bf16.msra.mxu0 0
        %405 = vmatpush.bf16.msra.mxu0 0
        %406 = vmatpush.bf16.msra.mxu0 %v384
        %407 = vmatpush.bf16.msra.mxu0 %v383
        %408 = vmatmul.bf16.gmra.mxu0 %v389
        %v409 = vpop.f32.mrf.mxu0
        %v410 = vadd.f32 0.0, %v409
        %v411 = vpop.f32.mrf.mxu0
        %v412 = vadd.f32 0.0, %v411
        %413 = vmatmul.bf16.gmra.mxu0 %v392
        %v414 = vpop.f32.mrf.mxu0
        %v415 = vadd.f32 0.0, %v414
        %v416 = vpop.f32.mrf.mxu0
        %v417 = vadd.f32 0.0, %v416
        %418 = vmatmul.bf16.gmra.mxu0 %v395
        %v419 = vpop.f32.mrf.mxu0
        %v420 = vadd.f32 0.0, %v419
        %v421 = vpop.f32.mrf.mxu0
        %v422 = vadd.f32 0.0, %v421
        %423 = vmatmul.bf16.gmra.mxu0 %v398
        %v424 = vpop.f32.mrf.mxu0
        %v425 = vadd.f32 0.0, %v424
        %v426 = vpop.f32.mrf.mxu0
        %v427 = vadd.f32 0.0, %v426
        %428 = vdwg.mxu0
        %v429 = vld [vmem:[%s2 + $0x3] sm:$0x1]
        %v430 = vperm.slane %v429, 0
        %v431 = vmul.f32 %v410, %v430
        %v432 = vmul.f32 %v412, %v430
        %v433 = vmul.f32 %v415, %v430
        %v434 = vmul.f32 %v417, %v430
        %v435 = vmul.f32 %v420, %v430
        %v436 = vmul.f32 %v422, %v430
        %v437 = vmul.f32 %v425, %v430
        %v438 = vmul.f32 %v427, %v430
        %v439 = vld [vmem:[%s3] sm:$0x1]
        %v441 = vperm.slane %v439, 0
        %v443 = vadd.f32 %v431, %v441
        %v444 = vadd.f32 %v432, %v441
        %v445 = vadd.f32 %v433, %v441
        %v446 = vadd.f32 %v434, %v441
        %v447 = vadd.f32 %v435, %v441
        %v448 = vadd.f32 %v436, %v441
        %v449 = vadd.f32 %v437, %v441
        %v450 = vadd.f32 %v438, %v441
        %v451 = vld [vmem:[%s2 + $0x2] sm:$0x1]
        %v452 = vperm.slane %v451, 0
        %v453 = vmul.f32 %v452, 0.0
        %v454 = vmul.f32 %v410, %v452
        %v455 = vmul.f32 %v412, %v452
        %v456 = vmul.f32 %v415, %v452
        %v457 = vmul.f32 %v417, %v452
        %v458 = vmul.f32 %v420, %v452
        %v459 = vmul.f32 %v422, %v452
        %v460 = vmul.f32 %v425, %v452
        %v461 = vadd.f32 %v443, %v453
        %v462 = vadd.f32 %v444, %v454
        %v463 = vadd.f32 %v445, %v455
        %v464 = vadd.f32 %v446, %v456
        %v465 = vadd.f32 %v447, %v457
        %v466 = vadd.f32 %v448, %v458
        %v467 = vadd.f32 %v449, %v459
        %v468 = vadd.f32 %v450, %v460
        %v469 = vld [vmem:[%s2 + $0x1] sm:$0x1]
        %v470 = vperm.slane %v469, 0
        %v471 = vmul.f32 %v470, 0.0
        %v472 = vmul.f32 %v410, %v470
        %v473 = vmul.f32 %v412, %v470
        %v474 = vmul.f32 %v415, %v470
        %v475 = vmul.f32 %v417, %v470
        %v476 = vmul.f32 %v420, %v470
        %v477 = vmul.f32 %v422, %v470
        %v478 = vadd.f32 %v461, %v471
        %v479 = vadd.f32 %v462, %v471
        %v480 = vadd.f32 %v463, %v472
        %v481 = vadd.f32 %v464, %v473
        %v482 = vadd.f32 %v465, %v474
        %v483 = vadd.f32 %v466, %v475
        %v484 = vadd.f32 %v467, %v476
        %v485 = vadd.f32 %v468, %v477
        %v486 = vld [vmem:[%s2] sm:$0x1]
        %v487 = vperm.slane %v486, 0
        %v488 = vmul.f32 %v487, 0.0
        %v489 = vmul.f32 %v410, %v487
        %v490 = vmul.f32 %v412, %v487
        %v491 = vmul.f32 %v415, %v487
        %v492 = vmul.f32 %v417, %v487
        %v493 = vmul.f32 %v420, %v487
        %v494 = vadd.f32 %v478, %v488
        %v495 = vadd.f32 %v479, %v488
        %v496 = vadd.f32 %v480, %v488
        %v497 = vadd.f32 %v481, %v489
        %v498 = vadd.f32 %v482, %v490
        %v499 = vadd.f32 %v483, %v491
        %v500 = vadd.f32 %v484, %v492
        %v501 = vadd.f32 %v485, %v493
        %v502 = vxor.u32 %v494, 2147483648
        %v503 = vxor.u32 %v495, 2147483648
        %v504 = vxor.u32 %v496, 2147483648
        %v505 = vxor.u32 %v497, 2147483648
        %v506 = vxor.u32 %v498, 2147483648
        %v507 = vxor.u32 %v499, 2147483648
        %v508 = vxor.u32 %v500, 2147483648
        %v509 = vxor.u32 %v501, 2147483648
        %v510 = vmul.f32 %v502, 1.442695
        %v511 = vpow.pop %v510
        %v512 = vmul.f32 %v503, 1.442695
        %v513 = vpow.pop %v512
        %v514 = vmul.f32 %v504, 1.442695
        %v515 = vpow.pop %v514
        %v516 = vmul.f32 %v505, 1.442695
        %v517 = vpow.pop %v516
        %v518 = vmul.f32 %v506, 1.442695
        %v519 = vpow.pop %v518
        %v520 = vmul.f32 %v507, 1.442695
        %v521 = vpow.pop %v520
        %v522 = vmul.f32 %v508, 1.442695
        %v523 = vpow.pop %v522
        %v524 = vmul.f32 %v509, 1.442695
        %v525 = vpow.pop %v524
        %v526 = vadd.f32 %v511, 1.0
        %v527 = vadd.f32 %v513, 1.0
        %v528 = vadd.f32 %v515, 1.0
        %v529 = vadd.f32 %v517, 1.0
        %v530 = vadd.f32 %v519, 1.0
        %v531 = vadd.f32 %v521, 1.0
        %v532 = vadd.f32 %v523, 1.0
        %v533 = vadd.f32 %v525, 1.0
        %v534 = vrcp.pop %v526
        %v535 = vmul.f32 %v526, %v534
        %v536 = vsub.f32 1.0, %v535
        %v537 = vmul.f32 %v534, %v536
        %v538 = vadd.f32 %v534, %v537
        %vm539 = vweird.f32 %v526
        %vm540 = vweird.f32 %v534
        %vm541 = vmor %vm539, %vm540
        %v542 = vsel %vm541, %v534, %v538
        %v543 = vand.u32 2147483647, %v526
        %vm544 = vcmp.eq.f32.partialorder %v543, 8.507059e+37
        %v545 = vand.u32 %v526, 2147483648
        %v546 = vor.u32 1.1754944e-38, %v545
        %v547 = vsel %vm544, %v546, %v542
        %v548 = vmul.f32 1.0, %v547
        %v549 = vrcp.pop %v527
        %v550 = vmul.f32 %v527, %v549
        %v551 = vsub.f32 1.0, %v550
        %v552 = vmul.f32 %v549, %v551
        %v553 = vadd.f32 %v549, %v552
        %vm554 = vweird.f32 %v527
        %vm555 = vweird.f32 %v549
        %vm556 = vmor %vm554, %vm555
        %v557 = vsel %vm556, %v549, %v553
        %v558 = vand.u32 2147483647, %v527
        %vm559 = vcmp.eq.f32.partialorder %v558, 8.507059e+37
        %v560 = vand.u32 %v527, 2147483648
        %v561 = vor.u32 1.1754944e-38, %v560
        %v562 = vsel %vm559, %v561, %v557
        %v563 = vmul.f32 1.0, %v562
        %v564 = vrcp.pop %v528
        %v565 = vmul.f32 %v528, %v564
        %v566 = vsub.f32 1.0, %v565
        %v567 = vmul.f32 %v564, %v566
        %v568 = vadd.f32 %v564, %v567
        %vm569 = vweird.f32 %v528
        %vm570 = vweird.f32 %v564
        %vm571 = vmor %vm569, %vm570
        %v572 = vsel %vm571, %v564, %v568
        %v573 = vand.u32 2147483647, %v528
        %vm574 = vcmp.eq.f32.partialorder %v573, 8.507059e+37
        %v575 = vand.u32 %v528, 2147483648
        %v576 = vor.u32 1.1754944e-38, %v575
        %v577 = vsel %vm574, %v576, %v572
        %v578 = vmul.f32 1.0, %v577
        %v579 = vrcp.pop %v529
        %v580 = vmul.f32 %v529, %v579
        %v581 = vsub.f32 1.0, %v580
        %v582 = vmul.f32 %v579, %v581
        %v583 = vadd.f32 %v579, %v582
        %vm584 = vweird.f32 %v529
        %vm585 = vweird.f32 %v579
        %vm586 = vmor %vm584, %vm585
        %v587 = vsel %vm586, %v579, %v583
        %v588 = vand.u32 2147483647, %v529
        %vm589 = vcmp.eq.f32.partialorder %v588, 8.507059e+37
        %v590 = vand.u32 %v529, 2147483648
        %v591 = vor.u32 1.1754944e-38, %v590
        %v592 = vsel %vm589, %v591, %v587
        %v593 = vmul.f32 1.0, %v592
        %v594 = vrcp.pop %v530
        %v595 = vmul.f32 %v530, %v594
        %v596 = vsub.f32 1.0, %v595
        %v597 = vmul.f32 %v594, %v596
        %v598 = vadd.f32 %v594, %v597
        %vm599 = vweird.f32 %v530
        %vm600 = vweird.f32 %v594
        %vm601 = vmor %vm599, %vm600
        %v602 = vsel %vm601, %v594, %v598
        %v603 = vand.u32 2147483647, %v530
        %vm604 = vcmp.eq.f32.partialorder %v603, 8.507059e+37
        %v605 = vand.u32 %v530, 2147483648
        %v606 = vor.u32 1.1754944e-38, %v605
        %v607 = vsel %vm604, %v606, %v602
        %v608 = vmul.f32 1.0, %v607
        %v609 = vrcp.pop %v531
        %v610 = vmul.f32 %v531, %v609
        %v611 = vsub.f32 1.0, %v610
        %v612 = vmul.f32 %v609, %v611
        %v613 = vadd.f32 %v609, %v612
        %vm614 = vweird.f32 %v531
        %vm615 = vweird.f32 %v609
        %vm616 = vmor %vm614, %vm615
        %v617 = vsel %vm616, %v609, %v613
        %v618 = vand.u32 2147483647, %v531
        %vm619 = vcmp.eq.f32.partialorder %v618, 8.507059e+37
        %v620 = vand.u32 %v531, 2147483648
        %v621 = vor.u32 1.1754944e-38, %v620
        %v622 = vsel %vm619, %v621, %v617
        %v623 = vmul.f32 1.0, %v622
        %v624 = vrcp.pop %v532
        %v625 = vmul.f32 %v532, %v624
        %v626 = vsub.f32 1.0, %v625
        %v627 = vmul.f32 %v624, %v626
        %v628 = vadd.f32 %v624, %v627
        %vm629 = vweird.f32 %v532
        %vm630 = vweird.f32 %v624
        %vm631 = vmor %vm629, %vm630
        %v632 = vsel %vm631, %v624, %v628
        %v633 = vand.u32 2147483647, %v532
        %vm634 = vcmp.eq.f32.partialorder %v633, 8.507059e+37
        %v635 = vand.u32 %v532, 2147483648
        %v636 = vor.u32 1.1754944e-38, %v635
        %v637 = vsel %vm634, %v636, %v632
        %v638 = vmul.f32 1.0, %v637
        %v639 = vrcp.pop %v533
        %v640 = vmul.f32 %v533, %v639
        %v641 = vsub.f32 1.0, %v640
        %v642 = vmul.f32 %v639, %v641
        %v643 = vadd.f32 %v639, %v642
        %vm644 = vweird.f32 %v533
        %vm645 = vweird.f32 %v639
        %vm646 = vmor %vm644, %vm645
        %v647 = vsel %vm646, %v639, %v643
        %v648 = vand.u32 2147483647, %v533
        %vm649 = vcmp.eq.f32.partialorder %v648, 8.507059e+37
        %v650 = vand.u32 %v533, 2147483648
        %v651 = vor.u32 1.1754944e-38, %v650
        %v652 = vsel %vm649, %v651, %v647
        %v653 = vmul.f32 1.0, %v652
        %v654 = vmul.f32 %v494, %v548
        %v655 = vmul.f32 %v495, %v563
        %v656 = vmul.f32 %v496, %v578
        %v657 = vmul.f32 %v497, %v593
        %v658 = vmul.f32 %v498, %v608
        %v659 = vmul.f32 %v499, %v623
        %v660 = vmul.f32 %v500, %v638
        %v661 = vmul.f32 %v501, %v653
        %v662 = vpack.c.bf16 %v655, %v654
        %v663 = vpack.c.bf16 %v657, %v656
        %v664 = vpack.c.bf16 %v659, %v658
        %v665 = vpack.c.bf16 %v661, %v660
        %v666 = vld [vmem:[%s4] sm:$0xf]
        %v667 = vld [vmem:[%s4 + $0x4] sm:$0xf]
        %v668 = vld [vmem:[%s4 + $0x8] sm:$0xf]
        %v669 = vld [vmem:[%s4 + $0xc] sm:$0xf]
        %v670 = vld [vmem:[%s4 + $0x10] sm:$0xf]
        %v671 = vld [vmem:[%s4 + $0x14] sm:$0xf]
        %v672 = vld [vmem:[%s4 + $0x18] sm:$0xf]
        %v673 = vld [vmem:[%s4 + $0x1c] sm:$0xf]
        %v682 = vunpack.c.l.b16 %v666
        %v683 = vunpack.c.l.b16 %v667
        %v684 = vunpack.c.l.b16 %v668
        %v685 = vunpack.c.l.b16 %v669
        %v686 = vunpack.c.l.b16 %v670
        %v687 = vunpack.c.l.b16 %v671
        %v688 = vunpack.c.l.b16 %v672
        %v689 = vunpack.c.l.b16 %v673
        %v690 = vpack.c.b16 %v683, %v682
        %v691 = vpack.c.b16 %v685, %v684
        %v692 = vpack.c.b16 %v687, %v686
        %v693 = vpack.c.b16 %v689, %v688
        %vm698 = vcmask 523264
        %v700 = vsel %vm698, %v662, 0
        %v703 = vsel %vm698, %v663, 0
        %v706 = vsel %vm698, %v664, 0
        %v709 = vsel %vm698, %v665, 0
        %711 = vmatpush.bf16.msra.mxu0 0
        %712 = vmatpush.bf16.msra.mxu0 0
        %713 = vmatpush.bf16.msra.mxu0 0
        %714 = vmatpush.bf16.msra.mxu0 0
        %715 = vmatpush.bf16.msra.mxu0 %v693
        %716 = vmatpush.bf16.msra.mxu0 %v692
        %717 = vmatpush.bf16.msra.mxu0 %v691
        %718 = vmatpush.bf16.msra.mxu0 %v690
        %719 = vmatmul.bf16.gmra.mxu0 %v700
        %v720 = vpop.f32.mrf.mxu0
        %v721 = vadd.f32 0.0, %v720
        %v722 = vpop.f32.mrf.mxu0
        %v723 = vadd.f32 0.0, %v722
        %724 = vmatmul.bf16.gmra.mxu0 %v703
        %v725 = vpop.f32.mrf.mxu0
        %v726 = vadd.f32 0.0, %v725
        %v727 = vpop.f32.mrf.mxu0
        %v728 = vadd.f32 0.0, %v727
        %729 = vmatmul.bf16.gmra.mxu0 %v706
        %v730 = vpop.f32.mrf.mxu0
        %v731 = vadd.f32 0.0, %v730
        %v732 = vpop.f32.mrf.mxu0
        %v733 = vadd.f32 0.0, %v732
        %734 = vmatmul.bf16.gmra.mxu0 %v709
        %v735 = vpop.f32.mrf.mxu0
        %v736 = vadd.f32 0.0, %v735
        %v737 = vpop.f32.mrf.mxu0
        %v738 = vadd.f32 0.0, %v737
        %739 = vdwg.mxu0
        %v740 = vpack.c.bf16 %v723, %v721
        %v741 = vpack.c.bf16 %v728, %v726
        %v742 = vpack.c.bf16 %v733, %v731
        %v743 = vpack.c.bf16 %v738, %v736
        %v744 = vld [vmem:[%s5] sm:$0x1]
        %v745 = vld [vmem:[%s6] sm:$0x1]
        %v747 = vperm.slane %v745, 0
        %vm749 = vcmask 15360
        %v751 = vsel %vm749, %v740, 0
        %v754 = vsel %vm749, %v741, 0
        %v757 = vsel %vm749, %v742, 0
        %v760 = vsel %vm749, %v743, 0
        %vm762 = vcmask 1040384
        %v764 = vsel %vm762, %v744, 0
        %766 = vmatpush.bf16.msra.mxu0 0
        %767 = vmatpush.bf16.msra.mxu0 0
        %768 = vmatpush.bf16.msra.mxu0 0
        %769 = vmatpush.bf16.msra.mxu0 0
        %770 = vmatpush.bf16.msra.mxu0 0
        %771 = vmatpush.bf16.msra.mxu0 0
        %772 = vmatpush.bf16.msra.mxu0 0
        %773 = vmatpush.bf16.msra.mxu0 %v764
        %774 = vmatmul.bf16.gmra.mxu0 %v751
        %v775 = vpop.f32.mrf.mxu0
        %v776 = vadd.f32 %v747, %v775
        %v777 = vpop.f32.mrf.mxu0
        %v778 = vadd.f32 %v747, %v777
        %779 = vmatmul.bf16.gmra.mxu0 %v754
        %v780 = vpop.f32.mrf.mxu0
        %v781 = vadd.f32 %v747, %v780
        %v782 = vpop.f32.mrf.mxu0
        %v783 = vadd.f32 %v747, %v782
        %784 = vmatmul.bf16.gmra.mxu0 %v757
        %v785 = vpop.f32.mrf.mxu0
        %v786 = vadd.f32 %v747, %v785
        %v787 = vpop.f32.mrf.mxu0
        %v788 = vadd.f32 %v747, %v787
        %789 = vmatmul.bf16.gmra.mxu0 %v760
        %v790 = vpop.f32.mrf.mxu0
        %v791 = vadd.f32 %v747, %v790
        %v792 = vpop.f32.mrf.mxu0
        %v793 = vadd.f32 %v747, %v792
        %794 = vdwg.mxu0
        %v795 = vmax.f32 %v776, 0.0
        %v796 = vmax.f32 %v778, 0.0
        %v797 = vmax.f32 %v781, 0.0
        %v798 = vmax.f32 %v783, 0.0
        %v799 = vmax.f32 %v786, 0.0
        %v800 = vmax.f32 %v788, 0.0
        %v801 = vmax.f32 %v791, 0.0
        %v802 = vmax.f32 %v793, 0.0
        %v803 = vand.u32 2147483647, %v776
        %v804 = vand.u32 2147483647, %v778
        %v805 = vand.u32 2147483647, %v781
        %v806 = vand.u32 2147483647, %v783
        %v807 = vand.u32 2147483647, %v786
        %v808 = vand.u32 2147483647, %v788
        %v809 = vand.u32 2147483647, %v791
        %v810 = vand.u32 2147483647, %v793
        %v811 = vsub.f32 0.0, %v803
        %v812 = vsub.f32 0.0, %v804
        %v813 = vsub.f32 0.0, %v805
        %v814 = vsub.f32 0.0, %v806
        %v815 = vsub.f32 0.0, %v807
        %v816 = vsub.f32 0.0, %v808
        %v817 = vsub.f32 0.0, %v809
        %v818 = vsub.f32 0.0, %v810
        %v819 = vmul.f32 %v811, 1.442695
        %v820 = vpow.pop %v819
        %v821 = vmul.f32 %v812, 1.442695
        %v822 = vpow.pop %v821
        %v823 = vmul.f32 %v813, 1.442695
        %v824 = vpow.pop %v823
        %v825 = vmul.f32 %v814, 1.442695
        %v826 = vpow.pop %v825
        %v827 = vmul.f32 %v815, 1.442695
        %v828 = vpow.pop %v827
        %v829 = vmul.f32 %v816, 1.442695
        %v830 = vpow.pop %v829
        %v831 = vmul.f32 %v817, 1.442695
        %v832 = vpow.pop %v831
        %v833 = vmul.f32 %v818, 1.442695
        %v834 = vpow.pop %v833
        %v835 = vadd.f32 %v820, 1.0
        %v836 = vlog2.pop %v835
        %v837 = vmul.f32 %v836, 0.6931472
        %v838 = vmul.f32 -0.5, %v820
        %v839 = vadd.f32 %v838, 1.0
        %v840 = vmul.f32 %v839, %v820
        %v841 = vand.u32 2147483647, %v820
        %vm842 = vcmp.lt.f32.partialorder %v841, 0.0004427343
        %v843 = vsel %vm842, %v840, %v837
        %v844 = vadd.f32 %v822, 1.0
        %v845 = vlog2.pop %v844
        %v846 = vmul.f32 %v845, 0.6931472
        %v847 = vmul.f32 -0.5, %v822
        %v848 = vadd.f32 %v847, 1.0
        %v849 = vmul.f32 %v848, %v822
        %v850 = vand.u32 2147483647, %v822
        %vm851 = vcmp.lt.f32.partialorder %v850, 0.0004427343
        %v852 = vsel %vm851, %v849, %v846
        %v853 = vadd.f32 %v824, 1.0
        %v854 = vlog2.pop %v853
        %v855 = vmul.f32 %v854, 0.6931472
        %v856 = vmul.f32 -0.5, %v824
        %v857 = vadd.f32 %v856, 1.0
        %v858 = vmul.f32 %v857, %v824
        %v859 = vand.u32 2147483647, %v824
        %vm860 = vcmp.lt.f32.partialorder %v859, 0.0004427343
        %v861 = vsel %vm860, %v858, %v855
        %v862 = vadd.f32 %v826, 1.0
        %v863 = vlog2.pop %v862
        %v864 = vmul.f32 %v863, 0.6931472
        %v865 = vmul.f32 -0.5, %v826
        %v866 = vadd.f32 %v865, 1.0
        %v867 = vmul.f32 %v866, %v826
        %v868 = vand.u32 2147483647, %v826
        %vm869 = vcmp.lt.f32.partialorder %v868, 0.0004427343
        %v870 = vsel %vm869, %v867, %v864
        %v871 = vadd.f32 %v828, 1.0
        %v872 = vlog2.pop %v871
        %v873 = vmul.f32 %v872, 0.6931472
        %v874 = vmul.f32 -0.5, %v828
        %v875 = vadd.f32 %v874, 1.0
        %v876 = vmul.f32 %v875, %v828
        %v877 = vand.u32 2147483647, %v828
        %vm878 = vcmp.lt.f32.partialorder %v877, 0.0004427343
        %v879 = vsel %vm878, %v876, %v873
        %v880 = vadd.f32 %v830, 1.0
        %v881 = vlog2.pop %v880
        %v882 = vmul.f32 %v881, 0.6931472
        %v883 = vmul.f32 -0.5, %v830
        %v884 = vadd.f32 %v883, 1.0
        %v885 = vmul.f32 %v884, %v830
        %v886 = vand.u32 2147483647, %v830
        %vm887 = vcmp.lt.f32.partialorder %v886, 0.0004427343
        %v888 = vsel %vm887, %v885, %v882
        %v889 = vadd.f32 %v832, 1.0
        %v890 = vlog2.pop %v889
        %v891 = vmul.f32 %v890, 0.6931472
        %v892 = vmul.f32 -0.5, %v832
        %v893 = vadd.f32 %v892, 1.0
        %v894 = vmul.f32 %v893, %v832
        %v895 = vand.u32 2147483647, %v832
        %vm896 = vcmp.lt.f32.partialorder %v895, 0.0004427343
        %v897 = vsel %vm896, %v894, %v891
        %v898 = vadd.f32 %v834, 1.0
        %v899 = vlog2.pop %v898
        %v900 = vmul.f32 %v899, 0.6931472
        %v901 = vmul.f32 -0.5, %v834
        %v902 = vadd.f32 %v901, 1.0
        %v903 = vmul.f32 %v902, %v834
        %v904 = vand.u32 2147483647, %v834
        %vm905 = vcmp.lt.f32.partialorder %v904, 0.0004427343
        %v906 = vsel %vm905, %v903, %v900
        %v907 = vadd.f32 %v795, %v843
        %v908 = vadd.f32 %v796, %v852
        %v909 = vadd.f32 %v797, %v861
        %v910 = vadd.f32 %v798, %v870
        %v911 = vadd.f32 %v799, %v879
        %v912 = vadd.f32 %v800, %v888
        %v913 = vadd.f32 %v801, %v897
        %v914 = vadd.f32 %v802, %v906
        %923 = vrot.lane.b32.xlu0 %v907, 64
        %v924 = vpop.permute.xlu0 %923
        %925 = vrot.lane.b32.xlu0 %v908, 64
        %v926 = vpop.permute.xlu0 %925
        %927 = vrot.lane.b32.xlu0 %v909, 64
        %v928 = vpop.permute.xlu0 %927
        %929 = vrot.lane.b32.xlu0 %v910, 64
        %v930 = vpop.permute.xlu0 %929
        %931 = vrot.lane.b32.xlu0 %v911, 64
        %v932 = vpop.permute.xlu0 %931
        %933 = vrot.lane.b32.xlu0 %v912, 64
        %v934 = vpop.permute.xlu0 %933
        %935 = vrot.lane.b32.xlu0 %v913, 64
        %v936 = vpop.permute.xlu0 %935
        %937 = vrot.lane.b32.xlu0 %v914, 64
        %v938 = vpop.permute.xlu0 %937
        %v947 = vsel %vm698, %v907, %v924
        %v948 = vsel %vm698, %v908, %v926
        %v949 = vsel %vm698, %v909, %v928
        %v950 = vsel %vm698, %v910, %v930
        %v951 = vsel %vm698, %v911, %v932
        %v952 = vsel %vm698, %v912, %v934
        %v953 = vsel %vm698, %v913, %v936
        %v954 = vsel %vm698, %v914, %v938
        %v955 = vmul.f32 %v907, %v654
        %v956 = vmul.f32 %v908, %v655
        %v957 = vmul.f32 %v909, %v656
        %v958 = vmul.f32 %v910, %v657
        %v959 = vmul.f32 %v911, %v658
        %v960 = vmul.f32 %v912, %v659
        %v961 = vmul.f32 %v913, %v660
        %v962 = vmul.f32 %v914, %v661
        %971 = vrot.lane.b32.xlu0 %v955, 64
        %v972 = vpop.permute.xlu0 %971
        %973 = vrot.lane.b32.xlu0 %v956, 64
        %v974 = vpop.permute.xlu0 %973
        %975 = vrot.lane.b32.xlu0 %v957, 64
        %v976 = vpop.permute.xlu0 %975
        %977 = vrot.lane.b32.xlu0 %v958, 64
        %v978 = vpop.permute.xlu0 %977
        %979 = vrot.lane.b32.xlu0 %v959, 64
        %v980 = vpop.permute.xlu0 %979
        %981 = vrot.lane.b32.xlu0 %v960, 64
        %v982 = vpop.permute.xlu0 %981
        %983 = vrot.lane.b32.xlu0 %v961, 64
        %v984 = vpop.permute.xlu0 %983
        %985 = vrot.lane.b32.xlu0 %v962, 64
        %v986 = vpop.permute.xlu0 %985
        %v995 = vsel %vm698, %v955, %v972
        %v996 = vsel %vm698, %v956, %v974
        %v997 = vsel %vm698, %v957, %v976
        %v998 = vsel %vm698, %v958, %v978
        %v999 = vsel %vm698, %v959, %v980
        %v1000 = vsel %vm698, %v960, %v982
        %v1001 = vsel %vm698, %v961, %v984
        %v1002 = vsel %vm698, %v962, %v986
        %v1003 = vld [vmem:[%s7] sm:$0xff]
        %v1005 = vperm.slane %v1003, 0
        %v1006 = vperm.slane %v1003, 1
        %v1007 = vperm.slane %v1003, 2
        %v1008 = vperm.slane %v1003, 3
        %v1009 = vperm.slane %v1003, 4
        %v1010 = vperm.slane %v1003, 5
        %v1011 = vperm.slane %v1003, 6
        %v1012 = vperm.slane %v1003, 7
        %v1021 = vmul.f32 %v947, %v1005
        %v1022 = vmul.f32 %v947, %v1006
        %v1023 = vmul.f32 %v947, %v1007
        %v1024 = vmul.f32 %v947, %v1008
        %v1025 = vmul.f32 %v947, %v1009
        %v1026 = vmul.f32 %v947, %v1010
        %v1027 = vmul.f32 %v947, %v1011
        %v1028 = vmul.f32 %v947, %v1012
        %v1029 = vmul.f32 %v948, %v1005
        %v1030 = vmul.f32 %v948, %v1006
        %v1031 = vmul.f32 %v948, %v1007
        %v1032 = vmul.f32 %v948, %v1008
        %v1033 = vmul.f32 %v948, %v1009
        %v1034 = vmul.f32 %v948, %v1010
        %v1035 = vmul.f32 %v948, %v1011
        %v1036 = vmul.f32 %v948, %v1012
        %v1037 = vmul.f32 %v949, %v1005
        %v1038 = vmul.f32 %v949, %v1006
        %v1039 = vmul.f32 %v949, %v1007
        %v1040 = vmul.f32 %v949, %v1008
        %v1041 = vmul.f32 %v949, %v1009
        %v1042 = vmul.f32 %v949, %v1010
        %v1043 = vmul.f32 %v949, %v1011
        %v1044 = vmul.f32 %v949, %v1012
        %v1045 = vmul.f32 %v950, %v1005
        %v1046 = vmul.f32 %v950, %v1006
        %v1047 = vmul.f32 %v950, %v1007
        %v1048 = vmul.f32 %v950, %v1008
        %v1049 = vmul.f32 %v950, %v1009
        %v1050 = vmul.f32 %v950, %v1010
        %v1051 = vmul.f32 %v950, %v1011
        %v1052 = vmul.f32 %v950, %v1012
        %v1053 = vmul.f32 %v951, %v1005
        %v1054 = vmul.f32 %v951, %v1006
        %v1055 = vmul.f32 %v951, %v1007
        %v1056 = vmul.f32 %v951, %v1008
        %v1057 = vmul.f32 %v951, %v1009
        %v1058 = vmul.f32 %v951, %v1010
        %v1059 = vmul.f32 %v951, %v1011
        %v1060 = vmul.f32 %v951, %v1012
        %v1061 = vmul.f32 %v952, %v1005
        %v1062 = vmul.f32 %v952, %v1006
        %v1063 = vmul.f32 %v952, %v1007
        %v1064 = vmul.f32 %v952, %v1008
        %v1065 = vmul.f32 %v952, %v1009
        %v1066 = vmul.f32 %v952, %v1010
        %v1067 = vmul.f32 %v952, %v1011
        %v1068 = vmul.f32 %v952, %v1012
        %v1069 = vmul.f32 %v953, %v1005
        %v1070 = vmul.f32 %v953, %v1006
        %v1071 = vmul.f32 %v953, %v1007
        %v1072 = vmul.f32 %v953, %v1008
        %v1073 = vmul.f32 %v953, %v1009
        %v1074 = vmul.f32 %v953, %v1010
        %v1075 = vmul.f32 %v953, %v1011
        %v1076 = vmul.f32 %v953, %v1012
        %v1077 = vmul.f32 %v954, %v1005
        %v1078 = vmul.f32 %v954, %v1006
        %v1079 = vmul.f32 %v954, %v1007
        %v1080 = vmul.f32 %v954, %v1008
        %v1081 = vmul.f32 %v954, %v1009
        %v1082 = vmul.f32 %v954, %v1010
        %v1083 = vmul.f32 %v954, %v1011
        %v1084 = vmul.f32 %v954, %v1012
        %v1085 = vmul.f32 %v1021, 1.442695
        %v1086 = vpow.pop %v1085
        %v1087 = vmul.f32 %v1022, 1.442695
        %v1088 = vpow.pop %v1087
        %v1089 = vmul.f32 %v1023, 1.442695
        %v1090 = vpow.pop %v1089
        %v1091 = vmul.f32 %v1024, 1.442695
        %v1092 = vpow.pop %v1091
        %v1093 = vmul.f32 %v1025, 1.442695
        %v1094 = vpow.pop %v1093
        %v1095 = vmul.f32 %v1026, 1.442695
        %v1096 = vpow.pop %v1095
        %v1097 = vmul.f32 %v1027, 1.442695
        %v1098 = vpow.pop %v1097
        %v1099 = vmul.f32 %v1028, 1.442695
        %v1100 = vpow.pop %v1099
        %v1101 = vmul.f32 %v1029, 1.442695
        %v1102 = vpow.pop %v1101
        %v1103 = vmul.f32 %v1030, 1.442695
        %v1104 = vpow.pop %v1103
        %v1105 = vmul.f32 %v1031, 1.442695
        %v1106 = vpow.pop %v1105
        %v1107 = vmul.f32 %v1032, 1.442695
        %v1108 = vpow.pop %v1107
        %v1109 = vmul.f32 %v1033, 1.442695
        %v1110 = vpow.pop %v1109
        %v1111 = vmul.f32 %v1034, 1.442695
        %v1112 = vpow.pop %v1111
        %v1113 = vmul.f32 %v1035, 1.442695
        %v1114 = vpow.pop %v1113
        %v1115 = vmul.f32 %v1036, 1.442695
        %v1116 = vpow.pop %v1115
        %v1117 = vmul.f32 %v1037, 1.442695
        %v1118 = vpow.pop %v1117
        %v1119 = vmul.f32 %v1038, 1.442695
        %v1120 = vpow.pop %v1119
        %v1121 = vmul.f32 %v1039, 1.442695
        %v1122 = vpow.pop %v1121
        %v1123 = vmul.f32 %v1040, 1.442695
        %v1124 = vpow.pop %v1123
        %v1125 = vmul.f32 %v1041, 1.442695
        %v1126 = vpow.pop %v1125
        %v1127 = vmul.f32 %v1042, 1.442695
        %v1128 = vpow.pop %v1127
        %v1129 = vmul.f32 %v1043, 1.442695
        %v1130 = vpow.pop %v1129
        %v1131 = vmul.f32 %v1044, 1.442695
        %v1132 = vpow.pop %v1131
        %v1133 = vmul.f32 %v1045, 1.442695
        %v1134 = vpow.pop %v1133
        %v1135 = vmul.f32 %v1046, 1.442695
        %v1136 = vpow.pop %v1135
        %v1137 = vmul.f32 %v1047, 1.442695
        %v1138 = vpow.pop %v1137
        %v1139 = vmul.f32 %v1048, 1.442695
        %v1140 = vpow.pop %v1139
        %v1141 = vmul.f32 %v1049, 1.442695
        %v1142 = vpow.pop %v1141
        %v1143 = vmul.f32 %v1050, 1.442695
        %v1144 = vpow.pop %v1143
        %v1145 = vmul.f32 %v1051, 1.442695
        %v1146 = vpow.pop %v1145
        %v1147 = vmul.f32 %v1052, 1.442695
        %v1148 = vpow.pop %v1147
        %v1149 = vmul.f32 %v1053, 1.442695
        %v1150 = vpow.pop %v1149
        %v1151 = vmul.f32 %v1054, 1.442695
        %v1152 = vpow.pop %v1151
        %v1153 = vmul.f32 %v1055, 1.442695
        %v1154 = vpow.pop %v1153
        %v1155 = vmul.f32 %v1056, 1.442695
        %v1156 = vpow.pop %v1155
        %v1157 = vmul.f32 %v1057, 1.442695
        %v1158 = vpow.pop %v1157
        %v1159 = vmul.f32 %v1058, 1.442695
        %v1160 = vpow.pop %v1159
        %v1161 = vmul.f32 %v1059, 1.442695
        %v1162 = vpow.pop %v1161
        %v1163 = vmul.f32 %v1060, 1.442695
        %v1164 = vpow.pop %v1163
        %v1165 = vmul.f32 %v1061, 1.442695
        %v1166 = vpow.pop %v1165
        %v1167 = vmul.f32 %v1062, 1.442695
        %v1168 = vpow.pop %v1167
        %v1169 = vmul.f32 %v1063, 1.442695
        %v1170 = vpow.pop %v1169
        %v1171 = vmul.f32 %v1064, 1.442695
        %v1172 = vpow.pop %v1171
        %v1173 = vmul.f32 %v1065, 1.442695
        %v1174 = vpow.pop %v1173
        %v1175 = vmul.f32 %v1066, 1.442695
        %v1176 = vpow.pop %v1175
        %v1177 = vmul.f32 %v1067, 1.442695
        %v1178 = vpow.pop %v1177
        %v1179 = vmul.f32 %v1068, 1.442695
        %v1180 = vpow.pop %v1179
        %v1181 = vmul.f32 %v1069, 1.442695
        %v1182 = vpow.pop %v1181
        %v1183 = vmul.f32 %v1070, 1.442695
        %v1184 = vpow.pop %v1183
        %v1185 = vmul.f32 %v1071, 1.442695
        %v1186 = vpow.pop %v1185
        %v1187 = vmul.f32 %v1072, 1.442695
        %v1188 = vpow.pop %v1187
        %v1189 = vmul.f32 %v1073, 1.442695
        %v1190 = vpow.pop %v1189
        %v1191 = vmul.f32 %v1074, 1.442695
        %v1192 = vpow.pop %v1191
        %v1193 = vmul.f32 %v1075, 1.442695
        %v1194 = vpow.pop %v1193
        %v1195 = vmul.f32 %v1076, 1.442695
        %v1196 = vpow.pop %v1195
        %v1197 = vmul.f32 %v1077, 1.442695
        %v1198 = vpow.pop %v1197
        %v1199 = vmul.f32 %v1078, 1.442695
        %v1200 = vpow.pop %v1199
        %v1201 = vmul.f32 %v1079, 1.442695
        %v1202 = vpow.pop %v1201
        %v1203 = vmul.f32 %v1080, 1.442695
        %v1204 = vpow.pop %v1203
        %v1205 = vmul.f32 %v1081, 1.442695
        %v1206 = vpow.pop %v1205
        %v1207 = vmul.f32 %v1082, 1.442695
        %v1208 = vpow.pop %v1207
        %v1209 = vmul.f32 %v1083, 1.442695
        %v1210 = vpow.pop %v1209
        %v1211 = vmul.f32 %v1084, 1.442695
        %v1212 = vpow.pop %v1211
        %1214 = vset.pattern.permute.xlu0 2
        %1215 = vperm.xlu0 %1214, %v721
        %v1216 = vpop.permute.xlu0 %1215
        %1219 = vset.pattern.permute.xlu0 2
        %1220 = vperm.xlu0 %1219, %v723
        %v1221 = vpop.permute.xlu0 %1220
        %1224 = vset.pattern.permute.xlu0 2
        %1225 = vperm.xlu0 %1224, %v726
        %v1226 = vpop.permute.xlu0 %1225
        %1229 = vset.pattern.permute.xlu0 2
        %1230 = vperm.xlu0 %1229, %v728
        %v1231 = vpop.permute.xlu0 %1230
        %1234 = vset.pattern.permute.xlu0 2
        %1235 = vperm.xlu0 %1234, %v731
        %v1236 = vpop.permute.xlu0 %1235
        %1239 = vset.pattern.permute.xlu0 2
        %1240 = vperm.xlu0 %1239, %v733
        %v1241 = vpop.permute.xlu0 %1240
        %1244 = vset.pattern.permute.xlu0 2
        %1245 = vperm.xlu0 %1244, %v736
        %v1246 = vpop.permute.xlu0 %1245
        %1249 = vset.pattern.permute.xlu0 2
        %1250 = vperm.xlu0 %1249, %v738
        %v1251 = vpop.permute.xlu0 %1250
        %1253 = vset.pattern.permute.xlu0 3
        %1254 = vperm.xlu0 %1253, %v721
        %v1255 = vpop.permute.xlu0 %1254
        %1257 = vset.pattern.permute.xlu0 3
        %1258 = vperm.xlu0 %1257, %v723
        %v1259 = vpop.permute.xlu0 %1258
        %1261 = vset.pattern.permute.xlu0 3
        %1262 = vperm.xlu0 %1261, %v726
        %v1263 = vpop.permute.xlu0 %1262
        %1265 = vset.pattern.permute.xlu0 3
        %1266 = vperm.xlu0 %1265, %v728
        %v1267 = vpop.permute.xlu0 %1266
        %1269 = vset.pattern.permute.xlu0 3
        %1270 = vperm.xlu0 %1269, %v731
        %v1271 = vpop.permute.xlu0 %1270
        %1273 = vset.pattern.permute.xlu0 3
        %1274 = vperm.xlu0 %1273, %v733
        %v1275 = vpop.permute.xlu0 %1274
        %1277 = vset.pattern.permute.xlu0 3
        %1278 = vperm.xlu0 %1277, %v736
        %v1279 = vpop.permute.xlu0 %1278
        %1281 = vset.pattern.permute.xlu0 3
        %1282 = vperm.xlu0 %1281, %v738
        %v1283 = vpop.permute.xlu0 %1282
        %1285 = vset.pattern.permute.xlu0 4
        %1286 = vperm.xlu0 %1285, %v721
        %v1287 = vpop.permute.xlu0 %1286
        %1289 = vset.pattern.permute.xlu0 4
        %1290 = vperm.xlu0 %1289, %v723
        %v1291 = vpop.permute.xlu0 %1290
        %1293 = vset.pattern.permute.xlu0 4
        %1294 = vperm.xlu0 %1293, %v726
        %v1295 = vpop.permute.xlu0 %1294
        %1297 = vset.pattern.permute.xlu0 4
        %1298 = vperm.xlu0 %1297, %v728
        %v1299 = vpop.permute.xlu0 %1298
        %1301 = vset.pattern.permute.xlu0 4
        %1302 = vperm.xlu0 %1301, %v731
        %v1303 = vpop.permute.xlu0 %1302
        %1305 = vset.pattern.permute.xlu0 4
        %1306 = vperm.xlu0 %1305, %v733
        %v1307 = vpop.permute.xlu0 %1306
        %1309 = vset.pattern.permute.xlu0 4
        %1310 = vperm.xlu0 %1309, %v736
        %v1311 = vpop.permute.xlu0 %1310
        %1313 = vset.pattern.permute.xlu0 4
        %1314 = vperm.xlu0 %1313, %v738
        %v1315 = vpop.permute.xlu0 %1314
        %1317 = vset.pattern.permute.xlu0 5
        %1318 = vperm.xlu0 %1317, %v721
        %v1319 = vpop.permute.xlu0 %1318
        %1321 = vset.pattern.permute.xlu0 5
        %1322 = vperm.xlu0 %1321, %v723
        %v1323 = vpop.permute.xlu0 %1322
        %1325 = vset.pattern.permute.xlu0 5
        %1326 = vperm.xlu0 %1325, %v726
        %v1327 = vpop.permute.xlu0 %1326
        %1329 = vset.pattern.permute.xlu0 5
        %1330 = vperm.xlu0 %1329, %v728
        %v1331 = vpop.permute.xlu0 %1330
        %1333 = vset.pattern.permute.xlu0 5
        %1334 = vperm.xlu0 %1333, %v731
        %v1335 = vpop.permute.xlu0 %1334
        %1337 = vset.pattern.permute.xlu0 5
        %1338 = vperm.xlu0 %1337, %v733
        %v1339 = vpop.permute.xlu0 %1338
        %1341 = vset.pattern.permute.xlu0 5
        %1342 = vperm.xlu0 %1341, %v736
        %v1343 = vpop.permute.xlu0 %1342
        %1345 = vset.pattern.permute.xlu0 5
        %1346 = vperm.xlu0 %1345, %v738
        %v1347 = vpop.permute.xlu0 %1346
        %1349 = vset.pattern.permute.xlu0 6
        %1350 = vperm.xlu0 %1349, %v721
        %v1351 = vpop.permute.xlu0 %1350
        %1353 = vset.pattern.permute.xlu0 6
        %1354 = vperm.xlu0 %1353, %v723
        %v1355 = vpop.permute.xlu0 %1354
        %1357 = vset.pattern.permute.xlu0 6
        %1358 = vperm.xlu0 %1357, %v726
        %v1359 = vpop.permute.xlu0 %1358
        %1361 = vset.pattern.permute.xlu0 6
        %1362 = vperm.xlu0 %1361, %v728
        %v1363 = vpop.permute.xlu0 %1362
        %1365 = vset.pattern.permute.xlu0 6
        %1366 = vperm.xlu0 %1365, %v731
        %v1367 = vpop.permute.xlu0 %1366
        %1369 = vset.pattern.permute.xlu0 6
        %1370 = vperm.xlu0 %1369, %v733
        %v1371 = vpop.permute.xlu0 %1370
        %1373 = vset.pattern.permute.xlu0 6
        %1374 = vperm.xlu0 %1373, %v736
        %v1375 = vpop.permute.xlu0 %1374
        %1377 = vset.pattern.permute.xlu0 6
        %1378 = vperm.xlu0 %1377, %v738
        %v1379 = vpop.permute.xlu0 %1378
        %1381 = vset.pattern.permute.xlu0 7
        %1382 = vperm.xlu0 %1381, %v721
        %v1383 = vpop.permute.xlu0 %1382
        %1385 = vset.pattern.permute.xlu0 7
        %1386 = vperm.xlu0 %1385, %v723
        %v1387 = vpop.permute.xlu0 %1386
        %1389 = vset.pattern.permute.xlu0 7
        %1390 = vperm.xlu0 %1389, %v726
        %v1391 = vpop.permute.xlu0 %1390
        %1393 = vset.pattern.permute.xlu0 7
        %1394 = vperm.xlu0 %1393, %v728
        %v1395 = vpop.permute.xlu0 %1394
        %1397 = vset.pattern.permute.xlu0 7
        %1398 = vperm.xlu0 %1397, %v731
        %v1399 = vpop.permute.xlu0 %1398
        %1401 = vset.pattern.permute.xlu0 7
        %1402 = vperm.xlu0 %1401, %v733
        %v1403 = vpop.permute.xlu0 %1402
        %1405 = vset.pattern.permute.xlu0 7
        %1406 = vperm.xlu0 %1405, %v736
        %v1407 = vpop.permute.xlu0 %1406
        %1409 = vset.pattern.permute.xlu0 7
        %1410 = vperm.xlu0 %1409, %v738
        %v1411 = vpop.permute.xlu0 %1410
        %1413 = vset.pattern.permute.xlu0 8
        %1414 = vperm.xlu0 %1413, %v721
        %v1415 = vpop.permute.xlu0 %1414
        %1417 = vset.pattern.permute.xlu0 8
        %1418 = vperm.xlu0 %1417, %v723
        %v1419 = vpop.permute.xlu0 %1418
        %1421 = vset.pattern.permute.xlu0 8
        %1422 = vperm.xlu0 %1421, %v726
        %v1423 = vpop.permute.xlu0 %1422
        %1425 = vset.pattern.permute.xlu0 8
        %1426 = vperm.xlu0 %1425, %v728
        %v1427 = vpop.permute.xlu0 %1426
        %1429 = vset.pattern.permute.xlu0 8
        %1430 = vperm.xlu0 %1429, %v731
        %v1431 = vpop.permute.xlu0 %1430
        %1433 = vset.pattern.permute.xlu0 8
        %1434 = vperm.xlu0 %1433, %v733
        %v1435 = vpop.permute.xlu0 %1434
        %1437 = vset.pattern.permute.xlu0 8
        %1438 = vperm.xlu0 %1437, %v736
        %v1439 = vpop.permute.xlu0 %1438
        %1441 = vset.pattern.permute.xlu0 8
        %1442 = vperm.xlu0 %1441, %v738
        %v1443 = vpop.permute.xlu0 %1442
        %1445 = vset.pattern.permute.xlu0 9
        %1446 = vperm.xlu0 %1445, %v721
        %v1447 = vpop.permute.xlu0 %1446
        %1449 = vset.pattern.permute.xlu0 9
        %1450 = vperm.xlu0 %1449, %v723
        %v1451 = vpop.permute.xlu0 %1450
        %1453 = vset.pattern.permute.xlu0 9
        %1454 = vperm.xlu0 %1453, %v726
        %v1455 = vpop.permute.xlu0 %1454
        %1457 = vset.pattern.permute.xlu0 9
        %1458 = vperm.xlu0 %1457, %v728
        %v1459 = vpop.permute.xlu0 %1458
        %1461 = vset.pattern.permute.xlu0 9
        %1462 = vperm.xlu0 %1461, %v731
        %v1463 = vpop.permute.xlu0 %1462
        %1465 = vset.pattern.permute.xlu0 9
        %1466 = vperm.xlu0 %1465, %v733
        %v1467 = vpop.permute.xlu0 %1466
        %1469 = vset.pattern.permute.xlu0 9
        %1470 = vperm.xlu0 %1469, %v736
        %v1471 = vpop.permute.xlu0 %1470
        %1473 = vset.pattern.permute.xlu0 9
        %1474 = vperm.xlu0 %1473, %v738
        %v1475 = vpop.permute.xlu0 %1474
        %1477 = vset.pattern.permute.xlu0 10
        %1478 = vperm.xlu0 %1477, %v721
        %v1479 = vpop.permute.xlu0 %1478
        %1481 = vset.pattern.permute.xlu0 10
        %1482 = vperm.xlu0 %1481, %v723
        %v1483 = vpop.permute.xlu0 %1482
        %1485 = vset.pattern.permute.xlu0 10
        %1486 = vperm.xlu0 %1485, %v726
        %v1487 = vpop.permute.xlu0 %1486
        %1489 = vset.pattern.permute.xlu0 10
        %1490 = vperm.xlu0 %1489, %v728
        %v1491 = vpop.permute.xlu0 %1490
        %1493 = vset.pattern.permute.xlu0 10
        %1494 = vperm.xlu0 %1493, %v731
        %v1495 = vpop.permute.xlu0 %1494
        %1497 = vset.pattern.permute.xlu0 10
        %1498 = vperm.xlu0 %1497, %v733
        %v1499 = vpop.permute.xlu0 %1498
        %1501 = vset.pattern.permute.xlu0 10
        %1502 = vperm.xlu0 %1501, %v736
        %v1503 = vpop.permute.xlu0 %1502
        %1505 = vset.pattern.permute.xlu0 10
        %1506 = vperm.xlu0 %1505, %v738
        %v1507 = vpop.permute.xlu0 %1506
        %1509 = vset.pattern.permute.xlu0 11
        %1510 = vperm.xlu0 %1509, %v721
        %v1511 = vpop.permute.xlu0 %1510
        %1513 = vset.pattern.permute.xlu0 11
        %1514 = vperm.xlu0 %1513, %v723
        %v1515 = vpop.permute.xlu0 %1514
        %1517 = vset.pattern.permute.xlu0 11
        %1518 = vperm.xlu0 %1517, %v726
        %v1519 = vpop.permute.xlu0 %1518
        %1521 = vset.pattern.permute.xlu0 11
        %1522 = vperm.xlu0 %1521, %v728
        %v1523 = vpop.permute.xlu0 %1522
        %1525 = vset.pattern.permute.xlu0 11
        %1526 = vperm.xlu0 %1525, %v731
        %v1527 = vpop.permute.xlu0 %1526
        %1529 = vset.pattern.permute.xlu0 11
        %1530 = vperm.xlu0 %1529, %v733
        %v1531 = vpop.permute.xlu0 %1530
        %1533 = vset.pattern.permute.xlu0 11
        %1534 = vperm.xlu0 %1533, %v736
        %v1535 = vpop.permute.xlu0 %1534
        %1537 = vset.pattern.permute.xlu0 11
        %1538 = vperm.xlu0 %1537, %v738
        %v1539 = vpop.permute.xlu0 %1538
        %1541 = vset.pattern.permute.xlu0 12
        %1542 = vperm.xlu0 %1541, %v721
        %v1543 = vpop.permute.xlu0 %1542
        %1545 = vset.pattern.permute.xlu0 12
        %1546 = vperm.xlu0 %1545, %v723
        %v1547 = vpop.permute.xlu0 %1546
        %1549 = vset.pattern.permute.xlu0 12
        %1550 = vperm.xlu0 %1549, %v726
        %v1551 = vpop.permute.xlu0 %1550
        %1553 = vset.pattern.permute.xlu0 12
        %1554 = vperm.xlu0 %1553, %v728
        %v1555 = vpop.permute.xlu0 %1554
        %1557 = vset.pattern.permute.xlu0 12
        %1558 = vperm.xlu0 %1557, %v731
        %v1559 = vpop.permute.xlu0 %1558
        %1561 = vset.pattern.permute.xlu0 12
        %1562 = vperm.xlu0 %1561, %v733
        %v1563 = vpop.permute.xlu0 %1562
        %1565 = vset.pattern.permute.xlu0 12
        %1566 = vperm.xlu0 %1565, %v736
        %v1567 = vpop.permute.xlu0 %1566
        %1569 = vset.pattern.permute.xlu0 12
        %1570 = vperm.xlu0 %1569, %v738
        %v1571 = vpop.permute.xlu0 %1570
        %1573 = vset.pattern.permute.xlu0 13
        %1574 = vperm.xlu0 %1573, %v721
        %v1575 = vpop.permute.xlu0 %1574
        %1577 = vset.pattern.permute.xlu0 13
        %1578 = vperm.xlu0 %1577, %v723
        %v1579 = vpop.permute.xlu0 %1578
        %1581 = vset.pattern.permute.xlu0 13
        %1582 = vperm.xlu0 %1581, %v726
        %v1583 = vpop.permute.xlu0 %1582
        %1585 = vset.pattern.permute.xlu0 13
        %1586 = vperm.xlu0 %1585, %v728
        %v1587 = vpop.permute.xlu0 %1586
        %1589 = vset.pattern.permute.xlu0 13
        %1590 = vperm.xlu0 %1589, %v731
        %v1591 = vpop.permute.xlu0 %1590
        %1593 = vset.pattern.permute.xlu0 13
        %1594 = vperm.xlu0 %1593, %v733
        %v1595 = vpop.permute.xlu0 %1594
        %1597 = vset.pattern.permute.xlu0 13
        %1598 = vperm.xlu0 %1597, %v736
        %v1599 = vpop.permute.xlu0 %1598
        %1601 = vset.pattern.permute.xlu0 13
        %1602 = vperm.xlu0 %1601, %v738
        %v1603 = vpop.permute.xlu0 %1602
        %1605 = vset.pattern.permute.xlu0 14
        %1606 = vperm.xlu0 %1605, %v721
        %v1607 = vpop.permute.xlu0 %1606
        %1609 = vset.pattern.permute.xlu0 14
        %1610 = vperm.xlu0 %1609, %v723
        %v1611 = vpop.permute.xlu0 %1610
        %1613 = vset.pattern.permute.xlu0 14
        %1614 = vperm.xlu0 %1613, %v726
        %v1615 = vpop.permute.xlu0 %1614
        %1617 = vset.pattern.permute.xlu0 14
        %1618 = vperm.xlu0 %1617, %v728
        %v1619 = vpop.permute.xlu0 %1618
        %1621 = vset.pattern.permute.xlu0 14
        %1622 = vperm.xlu0 %1621, %v731
        %v1623 = vpop.permute.xlu0 %1622
        %1625 = vset.pattern.permute.xlu0 14
        %1626 = vperm.xlu0 %1625, %v733
        %v1627 = vpop.permute.xlu0 %1626
        %1629 = vset.pattern.permute.xlu0 14
        %1630 = vperm.xlu0 %1629, %v736
        %v1631 = vpop.permute.xlu0 %1630
        %1633 = vset.pattern.permute.xlu0 14
        %1634 = vperm.xlu0 %1633, %v738
        %v1635 = vpop.permute.xlu0 %1634
        %1637 = vset.pattern.permute.xlu0 15
        %1638 = vperm.xlu0 %1637, %v721
        %v1639 = vpop.permute.xlu0 %1638
        %1641 = vset.pattern.permute.xlu0 15
        %1642 = vperm.xlu0 %1641, %v723
        %v1643 = vpop.permute.xlu0 %1642
        %1645 = vset.pattern.permute.xlu0 15
        %1646 = vperm.xlu0 %1645, %v726
        %v1647 = vpop.permute.xlu0 %1646
        %1649 = vset.pattern.permute.xlu0 15
        %1650 = vperm.xlu0 %1649, %v728
        %v1651 = vpop.permute.xlu0 %1650
        %1653 = vset.pattern.permute.xlu0 15
        %1654 = vperm.xlu0 %1653, %v731
        %v1655 = vpop.permute.xlu0 %1654
        %1657 = vset.pattern.permute.xlu0 15
        %1658 = vperm.xlu0 %1657, %v733
        %v1659 = vpop.permute.xlu0 %1658
        %1661 = vset.pattern.permute.xlu0 15
        %1662 = vperm.xlu0 %1661, %v736
        %v1663 = vpop.permute.xlu0 %1662
        %1665 = vset.pattern.permute.xlu0 15
        %1666 = vperm.xlu0 %1665, %v738
        %v1667 = vpop.permute.xlu0 %1666
        %1669 = vset.pattern.permute.xlu0 16
        %1670 = vperm.xlu0 %1669, %v721
        %v1671 = vpop.permute.xlu0 %1670
        %1673 = vset.pattern.permute.xlu0 16
        %1674 = vperm.xlu0 %1673, %v723
        %v1675 = vpop.permute.xlu0 %1674
        %1677 = vset.pattern.permute.xlu0 16
        %1678 = vperm.xlu0 %1677, %v726
        %v1679 = vpop.permute.xlu0 %1678
        %1681 = vset.pattern.permute.xlu0 16
        %1682 = vperm.xlu0 %1681, %v728
        %v1683 = vpop.permute.xlu0 %1682
        %1685 = vset.pattern.permute.xlu0 16
        %1686 = vperm.xlu0 %1685, %v731
        %v1687 = vpop.permute.xlu0 %1686
        %1689 = vset.pattern.permute.xlu0 16
        %1690 = vperm.xlu0 %1689, %v733
        %v1691 = vpop.permute.xlu0 %1690
        %1693 = vset.pattern.permute.xlu0 16
        %1694 = vperm.xlu0 %1693, %v736
        %v1695 = vpop.permute.xlu0 %1694
        %1697 = vset.pattern.permute.xlu0 16
        %1698 = vperm.xlu0 %1697, %v738
        %v1699 = vpop.permute.xlu0 %1698
        %1701 = vset.pattern.permute.xlu0 17
        %1702 = vperm.xlu0 %1701, %v721
        %v1703 = vpop.permute.xlu0 %1702
        %1705 = vset.pattern.permute.xlu0 17
        %1706 = vperm.xlu0 %1705, %v723
        %v1707 = vpop.permute.xlu0 %1706
        %1709 = vset.pattern.permute.xlu0 17
        %1710 = vperm.xlu0 %1709, %v726
        %v1711 = vpop.permute.xlu0 %1710
        %1713 = vset.pattern.permute.xlu0 17
        %1714 = vperm.xlu0 %1713, %v728
        %v1715 = vpop.permute.xlu0 %1714
        %1717 = vset.pattern.permute.xlu0 17
        %1718 = vperm.xlu0 %1717, %v731
        %v1719 = vpop.permute.xlu0 %1718
        %1721 = vset.pattern.permute.xlu0 17
        %1722 = vperm.xlu0 %1721, %v733
        %v1723 = vpop.permute.xlu0 %1722
        %1725 = vset.pattern.permute.xlu0 17
        %1726 = vperm.xlu0 %1725, %v736
        %v1727 = vpop.permute.xlu0 %1726
        %1729 = vset.pattern.permute.xlu0 17
        %1730 = vperm.xlu0 %1729, %v738
        %v1731 = vpop.permute.xlu0 %1730
        %v1733 = vsel %vm698, %v1216, %v1255
        %v1734 = vsel %vm698, %v1221, %v1259
        %v1735 = vsel %vm698, %v1226, %v1263
        %v1736 = vsel %vm698, %v1231, %v1267
        %v1737 = vsel %vm698, %v1236, %v1271
        %v1738 = vsel %vm698, %v1241, %v1275
        %v1739 = vsel %vm698, %v1246, %v1279
        %v1740 = vsel %vm698, %v1251, %v1283
        %v1741 = vsel %vm698, %v1287, %v1319
        %v1742 = vsel %vm698, %v1291, %v1323
        %v1743 = vsel %vm698, %v1295, %v1327
        %v1744 = vsel %vm698, %v1299, %v1331
        %v1745 = vsel %vm698, %v1303, %v1335
        %v1746 = vsel %vm698, %v1307, %v1339
        %v1747 = vsel %vm698, %v1311, %v1343
        %v1748 = vsel %vm698, %v1315, %v1347
        %v1749 = vsel %vm698, %v1351, %v1383
        %v1750 = vsel %vm698, %v1355, %v1387
        %v1751 = vsel %vm698, %v1359, %v1391
        %v1752 = vsel %vm698, %v1363, %v1395
        %v1753 = vsel %vm698, %v1367, %v1399
        %v1754 = vsel %vm698, %v1371, %v1403
        %v1755 = vsel %vm698, %v1375, %v1407
        %v1756 = vsel %vm698, %v1379, %v1411
        %v1757 = vsel %vm698, %v1415, %v1447
        %v1758 = vsel %vm698, %v1419, %v1451
        %v1759 = vsel %vm698, %v1423, %v1455
        %v1760 = vsel %vm698, %v1427, %v1459
        %v1761 = vsel %vm698, %v1431, %v1463
        %v1762 = vsel %vm698, %v1435, %v1467
        %v1763 = vsel %vm698, %v1439, %v1471
        %v1764 = vsel %vm698, %v1443, %v1475
        %v1765 = vsel %vm698, %v1479, %v1511
        %v1766 = vsel %vm698, %v1483, %v1515
        %v1767 = vsel %vm698, %v1487, %v1519
        %v1768 = vsel %vm698, %v1491, %v1523
        %v1769 = vsel %vm698, %v1495, %v1527
        %v1770 = vsel %vm698, %v1499, %v1531
        %v1771 = vsel %vm698, %v1503, %v1535
        %v1772 = vsel %vm698, %v1507, %v1539
        %v1773 = vsel %vm698, %v1543, %v1575
        %v1774 = vsel %vm698, %v1547, %v1579
        %v1775 = vsel %vm698, %v1551, %v1583
        %v1776 = vsel %vm698, %v1555, %v1587
        %v1777 = vsel %vm698, %v1559, %v1591
        %v1778 = vsel %vm698, %v1563, %v1595
        %v1779 = vsel %vm698, %v1567, %v1599
        %v1780 = vsel %vm698, %v1571, %v1603
        %v1781 = vsel %vm698, %v1607, %v1639
        %v1782 = vsel %vm698, %v1611, %v1643
        %v1783 = vsel %vm698, %v1615, %v1647
        %v1784 = vsel %vm698, %v1619, %v1651
        %v1785 = vsel %vm698, %v1623, %v1655
        %v1786 = vsel %vm698, %v1627, %v1659
        %v1787 = vsel %vm698, %v1631, %v1663
        %v1788 = vsel %vm698, %v1635, %v1667
        %v1789 = vsel %vm698, %v1671, %v1703
        %v1790 = vsel %vm698, %v1675, %v1707
        %v1791 = vsel %vm698, %v1679, %v1711
        %v1792 = vsel %vm698, %v1683, %v1715
        %v1793 = vsel %vm698, %v1687, %v1719
        %v1794 = vsel %vm698, %v1691, %v1723
        %v1795 = vsel %vm698, %v1695, %v1727
        %v1796 = vsel %vm698, %v1699, %v1731
        %1797 = vset.pattern.permute.xlu0 18
        %1798 = vperm.xlu0 %1797, %v721
        %v1799 = vpop.permute.xlu0 %1798
        %1801 = vset.pattern.permute.xlu0 18
        %1802 = vperm.xlu0 %1801, %v723
        %v1803 = vpop.permute.xlu0 %1802
        %1805 = vset.pattern.permute.xlu0 18
        %1806 = vperm.xlu0 %1805, %v726
        %v1807 = vpop.permute.xlu0 %1806
        %1809 = vset.pattern.permute.xlu0 18
        %1810 = vperm.xlu0 %1809, %v728
        %v1811 = vpop.permute.xlu0 %1810
        %1813 = vset.pattern.permute.xlu0 18
        %1814 = vperm.xlu0 %1813, %v731
        %v1815 = vpop.permute.xlu0 %1814
        %1817 = vset.pattern.permute.xlu0 18
        %1818 = vperm.xlu0 %1817, %v733
        %v1819 = vpop.permute.xlu0 %1818
        %1821 = vset.pattern.permute.xlu0 18
        %1822 = vperm.xlu0 %1821, %v736
        %v1823 = vpop.permute.xlu0 %1822
        %1825 = vset.pattern.permute.xlu0 18
        %1826 = vperm.xlu0 %1825, %v738
        %v1827 = vpop.permute.xlu0 %1826
        %1829 = vset.pattern.permute.xlu0 19
        %1830 = vperm.xlu0 %1829, %v721
        %v1831 = vpop.permute.xlu0 %1830
        %1833 = vset.pattern.permute.xlu0 19
        %1834 = vperm.xlu0 %1833, %v723
        %v1835 = vpop.permute.xlu0 %1834
        %1837 = vset.pattern.permute.xlu0 19
        %1838 = vperm.xlu0 %1837, %v726
        %v1839 = vpop.permute.xlu0 %1838
        %1841 = vset.pattern.permute.xlu0 19
        %1842 = vperm.xlu0 %1841, %v728
        %v1843 = vpop.permute.xlu0 %1842
        %1845 = vset.pattern.permute.xlu0 19
        %1846 = vperm.xlu0 %1845, %v731
        %v1847 = vpop.permute.xlu0 %1846
        %1849 = vset.pattern.permute.xlu0 19
        %1850 = vperm.xlu0 %1849, %v733
        %v1851 = vpop.permute.xlu0 %1850
        %1853 = vset.pattern.permute.xlu0 19
        %1854 = vperm.xlu0 %1853, %v736
        %v1855 = vpop.permute.xlu0 %1854
        %1857 = vset.pattern.permute.xlu0 19
        %1858 = vperm.xlu0 %1857, %v738
        %v1859 = vpop.permute.xlu0 %1858
        %1861 = vset.pattern.permute.xlu0 20
        %1862 = vperm.xlu0 %1861, %v721
        %v1863 = vpop.permute.xlu0 %1862
        %1865 = vset.pattern.permute.xlu0 20
        %1866 = vperm.xlu0 %1865, %v723
        %v1867 = vpop.permute.xlu0 %1866
        %1869 = vset.pattern.permute.xlu0 20
        %1870 = vperm.xlu0 %1869, %v726
        %v1871 = vpop.permute.xlu0 %1870
        %1873 = vset.pattern.permute.xlu0 20
        %1874 = vperm.xlu0 %1873, %v728
        %v1875 = vpop.permute.xlu0 %1874
        %1877 = vset.pattern.permute.xlu0 20
        %1878 = vperm.xlu0 %1877, %v731
        %v1879 = vpop.permute.xlu0 %1878
        %1881 = vset.pattern.permute.xlu0 20
        %1882 = vperm.xlu0 %1881, %v733
        %v1883 = vpop.permute.xlu0 %1882
        %1885 = vset.pattern.permute.xlu0 20
        %1886 = vperm.xlu0 %1885, %v736
        %v1887 = vpop.permute.xlu0 %1886
        %1889 = vset.pattern.permute.xlu0 20
        %1890 = vperm.xlu0 %1889, %v738
        %v1891 = vpop.permute.xlu0 %1890
        %1893 = vset.pattern.permute.xlu0 21
        %1894 = vperm.xlu0 %1893, %v721
        %v1895 = vpop.permute.xlu0 %1894
        %1897 = vset.pattern.permute.xlu0 21
        %1898 = vperm.xlu0 %1897, %v723
        %v1899 = vpop.permute.xlu0 %1898
        %1901 = vset.pattern.permute.xlu0 21
        %1902 = vperm.xlu0 %1901, %v726
        %v1903 = vpop.permute.xlu0 %1902
        %1905 = vset.pattern.permute.xlu0 21
        %1906 = vperm.xlu0 %1905, %v728
        %v1907 = vpop.permute.xlu0 %1906
        %1909 = vset.pattern.permute.xlu0 21
        %1910 = vperm.xlu0 %1909, %v731
        %v1911 = vpop.permute.xlu0 %1910
        %1913 = vset.pattern.permute.xlu0 21
        %1914 = vperm.xlu0 %1913, %v733
        %v1915 = vpop.permute.xlu0 %1914
        %1917 = vset.pattern.permute.xlu0 21
        %1918 = vperm.xlu0 %1917, %v736
        %v1919 = vpop.permute.xlu0 %1918
        %1921 = vset.pattern.permute.xlu0 21
        %1922 = vperm.xlu0 %1921, %v738
        %v1923 = vpop.permute.xlu0 %1922
        %1925 = vset.pattern.permute.xlu0 22
        %1926 = vperm.xlu0 %1925, %v721
        %v1927 = vpop.permute.xlu0 %1926
        %1929 = vset.pattern.permute.xlu0 22
        %1930 = vperm.xlu0 %1929, %v723
        %v1931 = vpop.permute.xlu0 %1930
        %1933 = vset.pattern.permute.xlu0 22
        %1934 = vperm.xlu0 %1933, %v726
        %v1935 = vpop.permute.xlu0 %1934
        %1937 = vset.pattern.permute.xlu0 22
        %1938 = vperm.xlu0 %1937, %v728
        %v1939 = vpop.permute.xlu0 %1938
        %1941 = vset.pattern.permute.xlu0 22
        %1942 = vperm.xlu0 %1941, %v731
        %v1943 = vpop.permute.xlu0 %1942
        %1945 = vset.pattern.permute.xlu0 22
        %1946 = vperm.xlu0 %1945, %v733
        %v1947 = vpop.permute.xlu0 %1946
        %1949 = vset.pattern.permute.xlu0 22
        %1950 = vperm.xlu0 %1949, %v736
        %v1951 = vpop.permute.xlu0 %1950
        %1953 = vset.pattern.permute.xlu0 22
        %1954 = vperm.xlu0 %1953, %v738
        %v1955 = vpop.permute.xlu0 %1954
        %1957 = vset.pattern.permute.xlu0 23
        %1958 = vperm.xlu0 %1957, %v721
        %v1959 = vpop.permute.xlu0 %1958
        %1961 = vset.pattern.permute.xlu0 23
        %1962 = vperm.xlu0 %1961, %v723
        %v1963 = vpop.permute.xlu0 %1962
        %1965 = vset.pattern.permute.xlu0 23
        %1966 = vperm.xlu0 %1965, %v726
        %v1967 = vpop.permute.xlu0 %1966
        %1969 = vset.pattern.permute.xlu0 23
        %1970 = vperm.xlu0 %1969, %v728
        %v1971 = vpop.permute.xlu0 %1970
        %1973 = vset.pattern.permute.xlu0 23
        %1974 = vperm.xlu0 %1973, %v731
        %v1975 = vpop.permute.xlu0 %1974
        %1977 = vset.pattern.permute.xlu0 23
        %1978 = vperm.xlu0 %1977, %v733
        %v1979 = vpop.permute.xlu0 %1978
        %1981 = vset.pattern.permute.xlu0 23
        %1982 = vperm.xlu0 %1981, %v736
        %v1983 = vpop.permute.xlu0 %1982
        %1985 = vset.pattern.permute.xlu0 23
        %1986 = vperm.xlu0 %1985, %v738
        %v1987 = vpop.permute.xlu0 %1986
        %1989 = vset.pattern.permute.xlu0 24
        %1990 = vperm.xlu0 %1989, %v721
        %v1991 = vpop.permute.xlu0 %1990
        %1993 = vset.pattern.permute.xlu0 24
        %1994 = vperm.xlu0 %1993, %v723
        %v1995 = vpop.permute.xlu0 %1994
        %1997 = vset.pattern.permute.xlu0 24
        %1998 = vperm.xlu0 %1997, %v726
        %v1999 = vpop.permute.xlu0 %1998
        %2001 = vset.pattern.permute.xlu0 24
        %2002 = vperm.xlu0 %2001, %v728
        %v2003 = vpop.permute.xlu0 %2002
        %2005 = vset.pattern.permute.xlu0 24
        %2006 = vperm.xlu0 %2005, %v731
        %v2007 = vpop.permute.xlu0 %2006
        %2009 = vset.pattern.permute.xlu0 24
        %2010 = vperm.xlu0 %2009, %v733
        %v2011 = vpop.permute.xlu0 %2010
        %2013 = vset.pattern.permute.xlu0 24
        %2014 = vperm.xlu0 %2013, %v736
        %v2015 = vpop.permute.xlu0 %2014
        %2017 = vset.pattern.permute.xlu0 24
        %2018 = vperm.xlu0 %2017, %v738
        %v2019 = vpop.permute.xlu0 %2018
        %2021 = vset.pattern.permute.xlu0 25
        %2022 = vperm.xlu0 %2021, %v721
        %v2023 = vpop.permute.xlu0 %2022
        %2025 = vset.pattern.permute.xlu0 25
        %2026 = vperm.xlu0 %2025, %v723
        %v2027 = vpop.permute.xlu0 %2026
        %2029 = vset.pattern.permute.xlu0 25
        %2030 = vperm.xlu0 %2029, %v726
        %v2031 = vpop.permute.xlu0 %2030
        %2033 = vset.pattern.permute.xlu0 25
        %2034 = vperm.xlu0 %2033, %v728
        %v2035 = vpop.permute.xlu0 %2034
        %2037 = vset.pattern.permute.xlu0 25
        %2038 = vperm.xlu0 %2037, %v731
        %v2039 = vpop.permute.xlu0 %2038
        %2041 = vset.pattern.permute.xlu0 25
        %2042 = vperm.xlu0 %2041, %v733
        %v2043 = vpop.permute.xlu0 %2042
        %2045 = vset.pattern.permute.xlu0 25
        %2046 = vperm.xlu0 %2045, %v736
        %v2047 = vpop.permute.xlu0 %2046
        %2049 = vset.pattern.permute.xlu0 25
        %2050 = vperm.xlu0 %2049, %v738
        %v2051 = vpop.permute.xlu0 %2050
        %2053 = vset.pattern.permute.xlu0 26
        %2054 = vperm.xlu0 %2053, %v721
        %v2055 = vpop.permute.xlu0 %2054
        %2057 = vset.pattern.permute.xlu0 26
        %2058 = vperm.xlu0 %2057, %v723
        %v2059 = vpop.permute.xlu0 %2058
        %2061 = vset.pattern.permute.xlu0 26
        %2062 = vperm.xlu0 %2061, %v726
        %v2063 = vpop.permute.xlu0 %2062
        %2065 = vset.pattern.permute.xlu0 26
        %2066 = vperm.xlu0 %2065, %v728
        %v2067 = vpop.permute.xlu0 %2066
        %2069 = vset.pattern.permute.xlu0 26
        %2070 = vperm.xlu0 %2069, %v731
        %v2071 = vpop.permute.xlu0 %2070
        %2073 = vset.pattern.permute.xlu0 26
        %2074 = vperm.xlu0 %2073, %v733
        %v2075 = vpop.permute.xlu0 %2074
        %2077 = vset.pattern.permute.xlu0 26
        %2078 = vperm.xlu0 %2077, %v736
        %v2079 = vpop.permute.xlu0 %2078
        %2081 = vset.pattern.permute.xlu0 26
        %2082 = vperm.xlu0 %2081, %v738
        %v2083 = vpop.permute.xlu0 %2082
        %2085 = vset.pattern.permute.xlu0 27
        %2086 = vperm.xlu0 %2085, %v721
        %v2087 = vpop.permute.xlu0 %2086
        %2089 = vset.pattern.permute.xlu0 27
        %2090 = vperm.xlu0 %2089, %v723
        %v2091 = vpop.permute.xlu0 %2090
        %2093 = vset.pattern.permute.xlu0 27
        %2094 = vperm.xlu0 %2093, %v726
        %v2095 = vpop.permute.xlu0 %2094
        %2097 = vset.pattern.permute.xlu0 27
        %2098 = vperm.xlu0 %2097, %v728
        %v2099 = vpop.permute.xlu0 %2098
        %2101 = vset.pattern.permute.xlu0 27
        %2102 = vperm.xlu0 %2101, %v731
        %v2103 = vpop.permute.xlu0 %2102
        %2105 = vset.pattern.permute.xlu0 27
        %2106 = vperm.xlu0 %2105, %v733
        %v2107 = vpop.permute.xlu0 %2106
        %2109 = vset.pattern.permute.xlu0 27
        %2110 = vperm.xlu0 %2109, %v736
        %v2111 = vpop.permute.xlu0 %2110
        %2113 = vset.pattern.permute.xlu0 27
        %2114 = vperm.xlu0 %2113, %v738
        %v2115 = vpop.permute.xlu0 %2114
        %2117 = vset.pattern.permute.xlu0 28
        %2118 = vperm.xlu0 %2117, %v721
        %v2119 = vpop.permute.xlu0 %2118
        %2121 = vset.pattern.permute.xlu0 28
        %2122 = vperm.xlu0 %2121, %v723
        %v2123 = vpop.permute.xlu0 %2122
        %2125 = vset.pattern.permute.xlu0 28
        %2126 = vperm.xlu0 %2125, %v726
        %v2127 = vpop.permute.xlu0 %2126
        %2129 = vset.pattern.permute.xlu0 28
        %2130 = vperm.xlu0 %2129, %v728
        %v2131 = vpop.permute.xlu0 %2130
        %2133 = vset.pattern.permute.xlu0 28
        %2134 = vperm.xlu0 %2133, %v731
        %v2135 = vpop.permute.xlu0 %2134
        %2137 = vset.pattern.permute.xlu0 28
        %2138 = vperm.xlu0 %2137, %v733
        %v2139 = vpop.permute.xlu0 %2138
        %2141 = vset.pattern.permute.xlu0 28
        %2142 = vperm.xlu0 %2141, %v736
        %v2143 = vpop.permute.xlu0 %2142
        %2145 = vset.pattern.permute.xlu0 28
        %2146 = vperm.xlu0 %2145, %v738
        %v2147 = vpop.permute.xlu0 %2146
        %2149 = vset.pattern.permute.xlu0 29
        %2150 = vperm.xlu0 %2149, %v721
        %v2151 = vpop.permute.xlu0 %2150
        %2153 = vset.pattern.permute.xlu0 29
        %2154 = vperm.xlu0 %2153, %v723
        %v2155 = vpop.permute.xlu0 %2154
        %2157 = vset.pattern.permute.xlu0 29
        %2158 = vperm.xlu0 %2157, %v726
        %v2159 = vpop.permute.xlu0 %2158
        %2161 = vset.pattern.permute.xlu0 29
        %2162 = vperm.xlu0 %2161, %v728
        %v2163 = vpop.permute.xlu0 %2162
        %2165 = vset.pattern.permute.xlu0 29
        %2166 = vperm.xlu0 %2165, %v731
        %v2167 = vpop.permute.xlu0 %2166
        %2169 = vset.pattern.permute.xlu0 29
        %2170 = vperm.xlu0 %2169, %v733
        %v2171 = vpop.permute.xlu0 %2170
        %2173 = vset.pattern.permute.xlu0 29
        %2174 = vperm.xlu0 %2173, %v736
        %v2175 = vpop.permute.xlu0 %2174
        %2177 = vset.pattern.permute.xlu0 29
        %2178 = vperm.xlu0 %2177, %v738
        %v2179 = vpop.permute.xlu0 %2178
        %2181 = vset.pattern.permute.xlu0 30
        %2182 = vperm.xlu0 %2181, %v721
        %v2183 = vpop.permute.xlu0 %2182
        %2185 = vset.pattern.permute.xlu0 30
        %2186 = vperm.xlu0 %2185, %v723
        %v2187 = vpop.permute.xlu0 %2186
        %2189 = vset.pattern.permute.xlu0 30
        %2190 = vperm.xlu0 %2189, %v726
        %v2191 = vpop.permute.xlu0 %2190
        %2193 = vset.pattern.permute.xlu0 30
        %2194 = vperm.xlu0 %2193, %v728
        %v2195 = vpop.permute.xlu0 %2194
        %2197 = vset.pattern.permute.xlu0 30
        %2198 = vperm.xlu0 %2197, %v731
        %v2199 = vpop.permute.xlu0 %2198
        %2201 = vset.pattern.permute.xlu0 30
        %2202 = vperm.xlu0 %2201, %v733
        %v2203 = vpop.permute.xlu0 %2202
        %2205 = vset.pattern.permute.xlu0 30
        %2206 = vperm.xlu0 %2205, %v736
        %v2207 = vpop.permute.xlu0 %2206
        %2209 = vset.pattern.permute.xlu0 30
        %2210 = vperm.xlu0 %2209, %v738
        %v2211 = vpop.permute.xlu0 %2210
        %2213 = vset.pattern.permute.xlu0 31
        %2214 = vperm.xlu0 %2213, %v721
        %v2215 = vpop.permute.xlu0 %2214
        %2217 = vset.pattern.permute.xlu0 31
        %2218 = vperm.xlu0 %2217, %v723
        %v2219 = vpop.permute.xlu0 %2218
        %2221 = vset.pattern.permute.xlu0 31
        %2222 = vperm.xlu0 %2221, %v726
        %v2223 = vpop.permute.xlu0 %2222
        %2225 = vset.pattern.permute.xlu0 31
        %2226 = vperm.xlu0 %2225, %v728
        %v2227 = vpop.permute.xlu0 %2226
        %2229 = vset.pattern.permute.xlu0 31
        %2230 = vperm.xlu0 %2229, %v731
        %v2231 = vpop.permute.xlu0 %2230
        %2233 = vset.pattern.permute.xlu0 31
        %2234 = vperm.xlu0 %2233, %v733
        %v2235 = vpop.permute.xlu0 %2234
        %2237 = vset.pattern.permute.xlu0 31
        %2238 = vperm.xlu0 %2237, %v736
        %v2239 = vpop.permute.xlu0 %2238
        %2241 = vset.pattern.permute.xlu0 31
        %2242 = vperm.xlu0 %2241, %v738
        %v2243 = vpop.permute.xlu0 %2242
        %2245 = vset.pattern.permute.xlu0 32
        %2246 = vperm.xlu0 %2245, %v721
        %v2247 = vpop.permute.xlu0 %2246
        %2249 = vset.pattern.permute.xlu0 32
        %2250 = vperm.xlu0 %2249, %v723
        %v2251 = vpop.permute.xlu0 %2250
        %2253 = vset.pattern.permute.xlu0 32
        %2254 = vperm.xlu0 %2253, %v726
        %v2255 = vpop.permute.xlu0 %2254
        %2257 = vset.pattern.permute.xlu0 32
        %2258 = vperm.xlu0 %2257, %v728
        %v2259 = vpop.permute.xlu0 %2258
        %2261 = vset.pattern.permute.xlu0 32
        %2262 = vperm.xlu0 %2261, %v731
        %v2263 = vpop.permute.xlu0 %2262
        %2265 = vset.pattern.permute.xlu0 32
        %2266 = vperm.xlu0 %2265, %v733
        %v2267 = vpop.permute.xlu0 %2266
        %2269 = vset.pattern.permute.xlu0 32
        %2270 = vperm.xlu0 %2269, %v736
        %v2271 = vpop.permute.xlu0 %2270
        %2273 = vset.pattern.permute.xlu0 32
        %2274 = vperm.xlu0 %2273, %v738
        %v2275 = vpop.permute.xlu0 %2274
        %2277 = vset.pattern.permute.xlu0 33
        %2278 = vperm.xlu0 %2277, %v721
        %v2279 = vpop.permute.xlu0 %2278
        %2281 = vset.pattern.permute.xlu0 33
        %2282 = vperm.xlu0 %2281, %v723
        %v2283 = vpop.permute.xlu0 %2282
        %2285 = vset.pattern.permute.xlu0 33
        %2286 = vperm.xlu0 %2285, %v726
        %v2287 = vpop.permute.xlu0 %2286
        %2289 = vset.pattern.permute.xlu0 33
        %2290 = vperm.xlu0 %2289, %v728
        %v2291 = vpop.permute.xlu0 %2290
        %2293 = vset.pattern.permute.xlu0 33
        %2294 = vperm.xlu0 %2293, %v731
        %v2295 = vpop.permute.xlu0 %2294
        %2297 = vset.pattern.permute.xlu0 33
        %2298 = vperm.xlu0 %2297, %v733
        %v2299 = vpop.permute.xlu0 %2298
        %2301 = vset.pattern.permute.xlu0 33
        %2302 = vperm.xlu0 %2301, %v736
        %v2303 = vpop.permute.xlu0 %2302
        %2305 = vset.pattern.permute.xlu0 33
        %2306 = vperm.xlu0 %2305, %v738
        %v2307 = vpop.permute.xlu0 %2306
        %v2309 = vsel %vm698, %v1799, %v1831
        %v2310 = vsel %vm698, %v1803, %v1835
        %v2311 = vsel %vm698, %v1807, %v1839
        %v2312 = vsel %vm698, %v1811, %v1843
        %v2313 = vsel %vm698, %v1815, %v1847
        %v2314 = vsel %vm698, %v1819, %v1851
        %v2315 = vsel %vm698, %v1823, %v1855
        %v2316 = vsel %vm698, %v1827, %v1859
        %v2317 = vsel %vm698, %v1863, %v1895
        %v2318 = vsel %vm698, %v1867, %v1899
        %v2319 = vsel %vm698, %v1871, %v1903
        %v2320 = vsel %vm698, %v1875, %v1907
        %v2321 = vsel %vm698, %v1879, %v1911
        %v2322 = vsel %vm698, %v1883, %v1915
        %v2323 = vsel %vm698, %v1887, %v1919
        %v2324 = vsel %vm698, %v1891, %v1923
        %v2325 = vsel %vm698, %v1927, %v1959
        %v2326 = vsel %vm698, %v1931, %v1963
        %v2327 = vsel %vm698, %v1935, %v1967
        %v2328 = vsel %vm698, %v1939, %v1971
        %v2329 = vsel %vm698, %v1943, %v1975
        %v2330 = vsel %vm698, %v1947, %v1979
        %v2331 = vsel %vm698, %v1951, %v1983
        %v2332 = vsel %vm698, %v1955, %v1987
        %v2333 = vsel %vm698, %v1991, %v2023
        %v2334 = vsel %vm698, %v1995, %v2027
        %v2335 = vsel %vm698, %v1999, %v2031
        %v2336 = vsel %vm698, %v2003, %v2035
        %v2337 = vsel %vm698, %v2007, %v2039
        %v2338 = vsel %vm698, %v2011, %v2043
        %v2339 = vsel %vm698, %v2015, %v2047
        %v2340 = vsel %vm698, %v2019, %v2051
        %v2341 = vsel %vm698, %v2055, %v2087
        %v2342 = vsel %vm698, %v2059, %v2091
        %v2343 = vsel %vm698, %v2063, %v2095
        %v2344 = vsel %vm698, %v2067, %v2099
        %v2345 = vsel %vm698, %v2071, %v2103
        %v2346 = vsel %vm698, %v2075, %v2107
        %v2347 = vsel %vm698, %v2079, %v2111
        %v2348 = vsel %vm698, %v2083, %v2115
        %v2349 = vsel %vm698, %v2119, %v2151
        %v2350 = vsel %vm698, %v2123, %v2155
        %v2351 = vsel %vm698, %v2127, %v2159
        %v2352 = vsel %vm698, %v2131, %v2163
        %v2353 = vsel %vm698, %v2135, %v2167
        %v2354 = vsel %vm698, %v2139, %v2171
        %v2355 = vsel %vm698, %v2143, %v2175
        %v2356 = vsel %vm698, %v2147, %v2179
        %v2357 = vsel %vm698, %v2183, %v2215
        %v2358 = vsel %vm698, %v2187, %v2219
        %v2359 = vsel %vm698, %v2191, %v2223
        %v2360 = vsel %vm698, %v2195, %v2227
        %v2361 = vsel %vm698, %v2199, %v2231
        %v2362 = vsel %vm698, %v2203, %v2235
        %v2363 = vsel %vm698, %v2207, %v2239
        %v2364 = vsel %vm698, %v2211, %v2243
        %v2365 = vsel %vm698, %v2247, %v2279
        %v2366 = vsel %vm698, %v2251, %v2283
        %v2367 = vsel %vm698, %v2255, %v2287
        %v2368 = vsel %vm698, %v2259, %v2291
        %v2369 = vsel %vm698, %v2263, %v2295
        %v2370 = vsel %vm698, %v2267, %v2299
        %v2371 = vsel %vm698, %v2271, %v2303
        %v2372 = vsel %vm698, %v2275, %v2307
        %v2373 = vmul.f32 %v995, %v1733
        %v2374 = vmul.f32 %v995, %v1741
        %v2375 = vmul.f32 %v995, %v1749
        %v2376 = vmul.f32 %v995, %v1757
        %v2377 = vmul.f32 %v995, %v1765
        %v2378 = vmul.f32 %v995, %v1773
        %v2379 = vmul.f32 %v995, %v1781
        %v2380 = vmul.f32 %v995, %v1789
        %v2381 = vmul.f32 %v996, %v1734
        %v2382 = vmul.f32 %v996, %v1742
        %v2383 = vmul.f32 %v996, %v1750
        %v2384 = vmul.f32 %v996, %v1758
        %v2385 = vmul.f32 %v996, %v1766
        %v2386 = vmul.f32 %v996, %v1774
        %v2387 = vmul.f32 %v996, %v1782
        %v2388 = vmul.f32 %v996, %v1790
        %v2389 = vmul.f32 %v997, %v1735
        %v2390 = vmul.f32 %v997, %v1743
        %v2391 = vmul.f32 %v997, %v1751
        %v2392 = vmul.f32 %v997, %v1759
        %v2393 = vmul.f32 %v997, %v1767
        %v2394 = vmul.f32 %v997, %v1775
        %v2395 = vmul.f32 %v997, %v1783
        %v2396 = vmul.f32 %v997, %v1791
        %v2397 = vmul.f32 %v998, %v1736
        %v2398 = vmul.f32 %v998, %v1744
        %v2399 = vmul.f32 %v998, %v1752
        %v2400 = vmul.f32 %v998, %v1760
        %v2401 = vmul.f32 %v998, %v1768
        %v2402 = vmul.f32 %v998, %v1776
        %v2403 = vmul.f32 %v998, %v1784
        %v2404 = vmul.f32 %v998, %v1792
        %v2405 = vmul.f32 %v999, %v1737
        %v2406 = vmul.f32 %v999, %v1745
        %v2407 = vmul.f32 %v999, %v1753
        %v2408 = vmul.f32 %v999, %v1761
        %v2409 = vmul.f32 %v999, %v1769
        %v2410 = vmul.f32 %v999, %v1777
        %v2411 = vmul.f32 %v999, %v1785
        %v2412 = vmul.f32 %v999, %v1793
        %v2413 = vmul.f32 %v1000, %v1738
        %v2414 = vmul.f32 %v1000, %v1746
        %v2415 = vmul.f32 %v1000, %v1754
        %v2416 = vmul.f32 %v1000, %v1762
        %v2417 = vmul.f32 %v1000, %v1770
        %v2418 = vmul.f32 %v1000, %v1778
        %v2419 = vmul.f32 %v1000, %v1786
        %v2420 = vmul.f32 %v1000, %v1794
        %v2421 = vmul.f32 %v1001, %v1739
        %v2422 = vmul.f32 %v1001, %v1747
        %v2423 = vmul.f32 %v1001, %v1755
        %v2424 = vmul.f32 %v1001, %v1763
        %v2425 = vmul.f32 %v1001, %v1771
        %v2426 = vmul.f32 %v1001, %v1779
        %v2427 = vmul.f32 %v1001, %v1787
        %v2428 = vmul.f32 %v1001, %v1795
        %v2429 = vmul.f32 %v1002, %v1740
        %v2430 = vmul.f32 %v1002, %v1748
        %v2431 = vmul.f32 %v1002, %v1756
        %v2432 = vmul.f32 %v1002, %v1764
        %v2433 = vmul.f32 %v1002, %v1772
        %v2434 = vmul.f32 %v1002, %v1780
        %v2435 = vmul.f32 %v1002, %v1788
        %v2436 = vmul.f32 %v1002, %v1796
        %v2437 = vld [vmem:[%s8] sm:$0x1]
        %v2438 = vmul.f32 %v1086, 0.0
        %v2439 = vmul.f32 %v1088, 0.0
        %v2440 = vmul.f32 %v1090, 0.0
        %v2441 = vmul.f32 %v1092, 0.0
        %v2442 = vmul.f32 %v1094, 0.0
        %v2443 = vmul.f32 %v1096, 0.0
        %v2444 = vmul.f32 %v1098, 0.0
        %v2445 = vmul.f32 %v1100, 0.0
        %v2446 = vadd.f32 %v2438, %v2373
        %v2447 = vadd.f32 %v2439, %v2374
        %v2448 = vadd.f32 %v2440, %v2375
        %v2449 = vadd.f32 %v2441, %v2376
        %v2450 = vadd.f32 %v2442, %v2377
        %v2451 = vadd.f32 %v2443, %v2378
        %v2452 = vadd.f32 %v2444, %v2379
        %v2453 = vadd.f32 %v2445, %v2380
        %v2454 = vmul.f32 %v2446, %v2309
        %v2455 = vmul.f32 %v2447, %v2317
        %v2456 = vmul.f32 %v2448, %v2325
        %v2457 = vmul.f32 %v2449, %v2333
        %v2458 = vmul.f32 %v2450, %v2341
        %v2459 = vmul.f32 %v2451, %v2349
        %v2460 = vmul.f32 %v2452, %v2357
        %v2461 = vmul.f32 %v2453, %v2365
        %2463 = vrot.lane.b32.xlu0 %v2454, 64
        %v2464 = vpop.permute.xlu0 %2463
        %v2466 = vadd.f32 %v2454, %v2464
        %v2467 = vadd.f32 %v2466, %v2455
        %2469 = vrot.lane.b32.xlu0 %v2455, 64
        %v2470 = vpop.permute.xlu0 %2469
        %v2472 = vadd.f32 %v2467, %v2470
        %v2473 = vadd.f32 %v2472, %v2456
        %2475 = vrot.lane.b32.xlu0 %v2456, 64
        %v2476 = vpop.permute.xlu0 %2475
        %v2478 = vadd.f32 %v2473, %v2476
        %v2479 = vadd.f32 %v2478, %v2457
        %2481 = vrot.lane.b32.xlu0 %v2457, 64
        %v2482 = vpop.permute.xlu0 %2481
        %v2484 = vadd.f32 %v2479, %v2482
        %v2485 = vadd.f32 %v2484, %v2458
        %2487 = vrot.lane.b32.xlu0 %v2458, 64
        %v2488 = vpop.permute.xlu0 %2487
        %v2490 = vadd.f32 %v2485, %v2488
        %v2491 = vadd.f32 %v2490, %v2459
        %2493 = vrot.lane.b32.xlu0 %v2459, 64
        %v2494 = vpop.permute.xlu0 %2493
        %v2496 = vadd.f32 %v2491, %v2494
        %v2497 = vadd.f32 %v2496, %v2460
        %2499 = vrot.lane.b32.xlu0 %v2460, 64
        %v2500 = vpop.permute.xlu0 %2499
        %v2502 = vadd.f32 %v2497, %v2500
        %v2503 = vadd.f32 %v2502, %v2461
        %2505 = vrot.lane.b32.xlu0 %v2461, 64
        %v2506 = vpop.permute.xlu0 %2505
        %v2508 = vadd.f32 %v2503, %v2506
        %v2510 = vperm.slane %v2437, 0
        %v2512 = vmul.f32 %v654, %v2510
        %v2513 = vadd.f32 %v2508, %v2512
        %v2514 = vmul.f32 %v1102, %v2446
        %v2515 = vmul.f32 %v1104, %v2447
        %v2516 = vmul.f32 %v1106, %v2448
        %v2517 = vmul.f32 %v1108, %v2449
        %v2518 = vmul.f32 %v1110, %v2450
        %v2519 = vmul.f32 %v1112, %v2451
        %v2520 = vmul.f32 %v1114, %v2452
        %v2521 = vmul.f32 %v1116, %v2453
        %v2522 = vadd.f32 %v2514, %v2381
        %v2523 = vadd.f32 %v2515, %v2382
        %v2524 = vadd.f32 %v2516, %v2383
        %v2525 = vadd.f32 %v2517, %v2384
        %v2526 = vadd.f32 %v2518, %v2385
        %v2527 = vadd.f32 %v2519, %v2386
        %v2528 = vadd.f32 %v2520, %v2387
        %v2529 = vadd.f32 %v2521, %v2388
        %v2530 = vmul.f32 %v2522, %v2310
        %v2531 = vmul.f32 %v2523, %v2318
        %v2532 = vmul.f32 %v2524, %v2326
        %v2533 = vmul.f32 %v2525, %v2334
        %v2534 = vmul.f32 %v2526, %v2342
        %v2535 = vmul.f32 %v2527, %v2350
        %v2536 = vmul.f32 %v2528, %v2358
        %v2537 = vmul.f32 %v2529, %v2366
        %2539 = vrot.lane.b32.xlu0 %v2530, 64
        %v2540 = vpop.permute.xlu0 %2539
        %v2542 = vadd.f32 %v2530, %v2540
        %v2543 = vadd.f32 %v2542, %v2531
        %2545 = vrot.lane.b32.xlu0 %v2531, 64
        %v2546 = vpop.permute.xlu0 %2545
        %v2548 = vadd.f32 %v2543, %v2546
        %v2549 = vadd.f32 %v2548, %v2532
        %2551 = vrot.lane.b32.xlu0 %v2532, 64
        %v2552 = vpop.permute.xlu0 %2551
        %v2554 = vadd.f32 %v2549, %v2552
        %v2555 = vadd.f32 %v2554, %v2533
        %2557 = vrot.lane.b32.xlu0 %v2533, 64
        %v2558 = vpop.permute.xlu0 %2557
        %v2560 = vadd.f32 %v2555, %v2558
        %v2561 = vadd.f32 %v2560, %v2534
        %2563 = vrot.lane.b32.xlu0 %v2534, 64
        %v2564 = vpop.permute.xlu0 %2563
        %v2566 = vadd.f32 %v2561, %v2564
        %v2567 = vadd.f32 %v2566, %v2535
        %2569 = vrot.lane.b32.xlu0 %v2535, 64
        %v2570 = vpop.permute.xlu0 %2569
        %v2572 = vadd.f32 %v2567, %v2570
        %v2573 = vadd.f32 %v2572, %v2536
        %2575 = vrot.lane.b32.xlu0 %v2536, 64
        %v2576 = vpop.permute.xlu0 %2575
        %v2578 = vadd.f32 %v2573, %v2576
        %v2579 = vadd.f32 %v2578, %v2537
        %2581 = vrot.lane.b32.xlu0 %v2537, 64
        %v2582 = vpop.permute.xlu0 %2581
        %v2584 = vadd.f32 %v2579, %v2582
        %v2585 = vmul.f32 %v655, %v2510
        %v2586 = vadd.f32 %v2584, %v2585
        %v2587 = vmul.f32 %v1118, %v2522
        %v2588 = vmul.f32 %v1120, %v2523
        %v2589 = vmul.f32 %v1122, %v2524
        %v2590 = vmul.f32 %v1124, %v2525
        %v2591 = vmul.f32 %v1126, %v2526
        %v2592 = vmul.f32 %v1128, %v2527
        %v2593 = vmul.f32 %v1130, %v2528
        %v2594 = vmul.f32 %v1132, %v2529
        %v2595 = vadd.f32 %v2587, %v2389
        %v2596 = vadd.f32 %v2588, %v2390
        %v2597 = vadd.f32 %v2589, %v2391
        %v2598 = vadd.f32 %v2590, %v2392
        %v2599 = vadd.f32 %v2591, %v2393
        %v2600 = vadd.f32 %v2592, %v2394
        %v2601 = vadd.f32 %v2593, %v2395
        %v2602 = vadd.f32 %v2594, %v2396
        %v2603 = vmul.f32 %v2595, %v2311
        %v2604 = vmul.f32 %v2596, %v2319
        %v2605 = vmul.f32 %v2597, %v2327
        %v2606 = vmul.f32 %v2598, %v2335
        %v2607 = vmul.f32 %v2599, %v2343
        %v2608 = vmul.f32 %v2600, %v2351
        %v2609 = vmul.f32 %v2601, %v2359
        %v2610 = vmul.f32 %v2602, %v2367
        %2612 = vrot.lane.b32.xlu0 %v2603, 64
        %v2613 = vpop.permute.xlu0 %2612
        %v2615 = vadd.f32 %v2603, %v2613
        %v2616 = vadd.f32 %v2615, %v2604
        %2618 = vrot.lane.b32.xlu0 %v2604, 64
        %v2619 = vpop.permute.xlu0 %2618
        %v2621 = vadd.f32 %v2616, %v2619
        %v2622 = vadd.f32 %v2621, %v2605
        %2624 = vrot.lane.b32.xlu0 %v2605, 64
        %v2625 = vpop.permute.xlu0 %2624
        %v2627 = vadd.f32 %v2622, %v2625
        %v2628 = vadd.f32 %v2627, %v2606
        %2630 = vrot.lane.b32.xlu0 %v2606, 64
        %v2631 = vpop.permute.xlu0 %2630
        %v2633 = vadd.f32 %v2628, %v2631
        %v2634 = vadd.f32 %v2633, %v2607
        %2636 = vrot.lane.b32.xlu0 %v2607, 64
        %v2637 = vpop.permute.xlu0 %2636
        %v2639 = vadd.f32 %v2634, %v2637
        %v2640 = vadd.f32 %v2639, %v2608
        %2642 = vrot.lane.b32.xlu0 %v2608, 64
        %v2643 = vpop.permute.xlu0 %2642
        %v2645 = vadd.f32 %v2640, %v2643
        %v2646 = vadd.f32 %v2645, %v2609
        %2648 = vrot.lane.b32.xlu0 %v2609, 64
        %v2649 = vpop.permute.xlu0 %2648
        %v2651 = vadd.f32 %v2646, %v2649
        %v2652 = vadd.f32 %v2651, %v2610
        %2654 = vrot.lane.b32.xlu0 %v2610, 64
        %v2655 = vpop.permute.xlu0 %2654
        %v2657 = vadd.f32 %v2652, %v2655
        %v2658 = vmul.f32 %v656, %v2510
        %v2659 = vadd.f32 %v2657, %v2658
        %v2660 = vmul.f32 %v1134, %v2595
        %v2661 = vmul.f32 %v1136, %v2596
        %v2662 = vmul.f32 %v1138, %v2597
        %v2663 = vmul.f32 %v1140, %v2598
        %v2664 = vmul.f32 %v1142, %v2599
        %v2665 = vmul.f32 %v1144, %v2600
        %v2666 = vmul.f32 %v1146, %v2601
        %v2667 = vmul.f32 %v1148, %v2602
        %v2668 = vadd.f32 %v2660, %v2397
        %v2669 = vadd.f32 %v2661, %v2398
        %v2670 = vadd.f32 %v2662, %v2399
        %v2671 = vadd.f32 %v2663, %v2400
        %v2672 = vadd.f32 %v2664, %v2401
        %v2673 = vadd.f32 %v2665, %v2402
        %v2674 = vadd.f32 %v2666, %v2403
        %v2675 = vadd.f32 %v2667, %v2404
        %v2676 = vmul.f32 %v2668, %v2312
        %v2677 = vmul.f32 %v2669, %v2320
        %v2678 = vmul.f32 %v2670, %v2328
        %v2679 = vmul.f32 %v2671, %v2336
        %v2680 = vmul.f32 %v2672, %v2344
        %v2681 = vmul.f32 %v2673, %v2352
        %v2682 = vmul.f32 %v2674, %v2360
        %v2683 = vmul.f32 %v2675, %v2368
        %2685 = vrot.lane.b32.xlu0 %v2676, 64
        %v2686 = vpop.permute.xlu0 %2685
        %v2688 = vadd.f32 %v2676, %v2686
        %v2689 = vadd.f32 %v2688, %v2677
        %2691 = vrot.lane.b32.xlu0 %v2677, 64
        %v2692 = vpop.permute.xlu0 %2691
        %v2694 = vadd.f32 %v2689, %v2692
        %v2695 = vadd.f32 %v2694, %v2678
        %2697 = vrot.lane.b32.xlu0 %v2678, 64
        %v2698 = vpop.permute.xlu0 %2697
        %v2700 = vadd.f32 %v2695, %v2698
        %v2701 = vadd.f32 %v2700, %v2679
        %2703 = vrot.lane.b32.xlu0 %v2679, 64
        %v2704 = vpop.permute.xlu0 %2703
        %v2706 = vadd.f32 %v2701, %v2704
        %v2707 = vadd.f32 %v2706, %v2680
        %2709 = vrot.lane.b32.xlu0 %v2680, 64
        %v2710 = vpop.permute.xlu0 %2709
        %v2712 = vadd.f32 %v2707, %v2710
        %v2713 = vadd.f32 %v2712, %v2681
        %2715 = vrot.lane.b32.xlu0 %v2681, 64
        %v2716 = vpop.permute.xlu0 %2715
        %v2718 = vadd.f32 %v2713, %v2716
        %v2719 = vadd.f32 %v2718, %v2682
        %2721 = vrot.lane.b32.xlu0 %v2682, 64
        %v2722 = vpop.permute.xlu0 %2721
        %v2724 = vadd.f32 %v2719, %v2722
        %v2725 = vadd.f32 %v2724, %v2683
        %2727 = vrot.lane.b32.xlu0 %v2683, 64
        %v2728 = vpop.permute.xlu0 %2727
        %v2730 = vadd.f32 %v2725, %v2728
        %v2731 = vmul.f32 %v657, %v2510
        %v2732 = vadd.f32 %v2730, %v2731
        %v2733 = vmul.f32 %v1150, %v2668
        %v2734 = vmul.f32 %v1152, %v2669
        %v2735 = vmul.f32 %v1154, %v2670
        %v2736 = vmul.f32 %v1156, %v2671
        %v2737 = vmul.f32 %v1158, %v2672
        %v2738 = vmul.f32 %v1160, %v2673
        %v2739 = vmul.f32 %v1162, %v2674
        %v2740 = vmul.f32 %v1164, %v2675
        %v2741 = vadd.f32 %v2733, %v2405
        %v2742 = vadd.f32 %v2734, %v2406
        %v2743 = vadd.f32 %v2735, %v2407
        %v2744 = vadd.f32 %v2736, %v2408
        %v2745 = vadd.f32 %v2737, %v2409
        %v2746 = vadd.f32 %v2738, %v2410
        %v2747 = vadd.f32 %v2739, %v2411
        %v2748 = vadd.f32 %v2740, %v2412
        %v2749 = vmul.f32 %v2741, %v2313
        %v2750 = vmul.f32 %v2742, %v2321
        %v2751 = vmul.f32 %v2743, %v2329
        %v2752 = vmul.f32 %v2744, %v2337
        %v2753 = vmul.f32 %v2745, %v2345
        %v2754 = vmul.f32 %v2746, %v2353
        %v2755 = vmul.f32 %v2747, %v2361
        %v2756 = vmul.f32 %v2748, %v2369
        %2758 = vrot.lane.b32.xlu0 %v2749, 64
        %v2759 = vpop.permute.xlu0 %2758
        %v2761 = vadd.f32 %v2749, %v2759
        %v2762 = vadd.f32 %v2761, %v2750
        %2764 = vrot.lane.b32.xlu0 %v2750, 64
        %v2765 = vpop.permute.xlu0 %2764
        %v2767 = vadd.f32 %v2762, %v2765
        %v2768 = vadd.f32 %v2767, %v2751
        %2770 = vrot.lane.b32.xlu0 %v2751, 64
        %v2771 = vpop.permute.xlu0 %2770
        %v2773 = vadd.f32 %v2768, %v2771
        %v2774 = vadd.f32 %v2773, %v2752
        %2776 = vrot.lane.b32.xlu0 %v2752, 64
        %v2777 = vpop.permute.xlu0 %2776
        %v2779 = vadd.f32 %v2774, %v2777
        %v2780 = vadd.f32 %v2779, %v2753
        %2782 = vrot.lane.b32.xlu0 %v2753, 64
        %v2783 = vpop.permute.xlu0 %2782
        %v2785 = vadd.f32 %v2780, %v2783
        %v2786 = vadd.f32 %v2785, %v2754
        %2788 = vrot.lane.b32.xlu0 %v2754, 64
        %v2789 = vpop.permute.xlu0 %2788
        %v2791 = vadd.f32 %v2786, %v2789
        %v2792 = vadd.f32 %v2791, %v2755
        %2794 = vrot.lane.b32.xlu0 %v2755, 64
        %v2795 = vpop.permute.xlu0 %2794
        %v2797 = vadd.f32 %v2792, %v2795
        %v2798 = vadd.f32 %v2797, %v2756
        %2800 = vrot.lane.b32.xlu0 %v2756, 64
        %v2801 = vpop.permute.xlu0 %2800
        %v2803 = vadd.f32 %v2798, %v2801
        %v2804 = vmul.f32 %v658, %v2510
        %v2805 = vadd.f32 %v2803, %v2804
        %v2806 = vmul.f32 %v1166, %v2741
        %v2807 = vmul.f32 %v1168, %v2742
        %v2808 = vmul.f32 %v1170, %v2743
        %v2809 = vmul.f32 %v1172, %v2744
        %v2810 = vmul.f32 %v1174, %v2745
        %v2811 = vmul.f32 %v1176, %v2746
        %v2812 = vmul.f32 %v1178, %v2747
        %v2813 = vmul.f32 %v1180, %v2748
        %v2814 = vadd.f32 %v2806, %v2413
        %v2815 = vadd.f32 %v2807, %v2414
        %v2816 = vadd.f32 %v2808, %v2415
        %v2817 = vadd.f32 %v2809, %v2416
        %v2818 = vadd.f32 %v2810, %v2417
        %v2819 = vadd.f32 %v2811, %v2418
        %v2820 = vadd.f32 %v2812, %v2419
        %v2821 = vadd.f32 %v2813, %v2420
        %v2822 = vmul.f32 %v2814, %v2314
        %v2823 = vmul.f32 %v2815, %v2322
        %v2824 = vmul.f32 %v2816, %v2330
        %v2825 = vmul.f32 %v2817, %v2338
        %v2826 = vmul.f32 %v2818, %v2346
        %v2827 = vmul.f32 %v2819, %v2354
        %v2828 = vmul.f32 %v2820, %v2362
        %v2829 = vmul.f32 %v2821, %v2370
        %2831 = vrot.lane.b32.xlu0 %v2822, 64
        %v2832 = vpop.permute.xlu0 %2831
        %v2834 = vadd.f32 %v2822, %v2832
        %v2835 = vadd.f32 %v2834, %v2823
        %2837 = vrot.lane.b32.xlu0 %v2823, 64
        %v2838 = vpop.permute.xlu0 %2837
        %v2840 = vadd.f32 %v2835, %v2838
        %v2841 = vadd.f32 %v2840, %v2824
        %2843 = vrot.lane.b32.xlu0 %v2824, 64
        %v2844 = vpop.permute.xlu0 %2843
        %v2846 = vadd.f32 %v2841, %v2844
        %v2847 = vadd.f32 %v2846, %v2825
        %2849 = vrot.lane.b32.xlu0 %v2825, 64
        %v2850 = vpop.permute.xlu0 %2849
        %v2852 = vadd.f32 %v2847, %v2850
        %v2853 = vadd.f32 %v2852, %v2826
        %2855 = vrot.lane.b32.xlu0 %v2826, 64
        %v2856 = vpop.permute.xlu0 %2855
        %v2858 = vadd.f32 %v2853, %v2856
        %v2859 = vadd.f32 %v2858, %v2827
        %2861 = vrot.lane.b32.xlu0 %v2827, 64
        %v2862 = vpop.permute.xlu0 %2861
        %v2864 = vadd.f32 %v2859, %v2862
        %v2865 = vadd.f32 %v2864, %v2828
        %2867 = vrot.lane.b32.xlu0 %v2828, 64
        %v2868 = vpop.permute.xlu0 %2867
        %v2870 = vadd.f32 %v2865, %v2868
        %v2871 = vadd.f32 %v2870, %v2829
        %2873 = vrot.lane.b32.xlu0 %v2829, 64
        %v2874 = vpop.permute.xlu0 %2873
        %v2876 = vadd.f32 %v2871, %v2874
        %v2877 = vmul.f32 %v659, %v2510
        %v2878 = vadd.f32 %v2876, %v2877
        %v2879 = vmul.f32 %v1182, %v2814
        %v2880 = vmul.f32 %v1184, %v2815
        %v2881 = vmul.f32 %v1186, %v2816
        %v2882 = vmul.f32 %v1188, %v2817
        %v2883 = vmul.f32 %v1190, %v2818
        %v2884 = vmul.f32 %v1192, %v2819
        %v2885 = vmul.f32 %v1194, %v2820
        %v2886 = vmul.f32 %v1196, %v2821
        %v2887 = vadd.f32 %v2879, %v2421
        %v2888 = vadd.f32 %v2880, %v2422
        %v2889 = vadd.f32 %v2881, %v2423
        %v2890 = vadd.f32 %v2882, %v2424
        %v2891 = vadd.f32 %v2883, %v2425
        %v2892 = vadd.f32 %v2884, %v2426
        %v2893 = vadd.f32 %v2885, %v2427
        %v2894 = vadd.f32 %v2886, %v2428
        %v2895 = vmul.f32 %v2887, %v2315
        %v2896 = vmul.f32 %v2888, %v2323
        %v2897 = vmul.f32 %v2889, %v2331
        %v2898 = vmul.f32 %v2890, %v2339
        %v2899 = vmul.f32 %v2891, %v2347
        %v2900 = vmul.f32 %v2892, %v2355
        %v2901 = vmul.f32 %v2893, %v2363
        %v2902 = vmul.f32 %v2894, %v2371
        %2904 = vrot.lane.b32.xlu0 %v2895, 64
        %v2905 = vpop.permute.xlu0 %2904
        %v2907 = vadd.f32 %v2895, %v2905
        %v2908 = vadd.f32 %v2907, %v2896
        %2910 = vrot.lane.b32.xlu0 %v2896, 64
        %v2911 = vpop.permute.xlu0 %2910
        %v2913 = vadd.f32 %v2908, %v2911
        %v2914 = vadd.f32 %v2913, %v2897
        %2916 = vrot.lane.b32.xlu0 %v2897, 64
        %v2917 = vpop.permute.xlu0 %2916
        %v2919 = vadd.f32 %v2914, %v2917
        %v2920 = vadd.f32 %v2919, %v2898
        %2922 = vrot.lane.b32.xlu0 %v2898, 64
        %v2923 = vpop.permute.xlu0 %2922
        %v2925 = vadd.f32 %v2920, %v2923
        %v2926 = vadd.f32 %v2925, %v2899
        %2928 = vrot.lane.b32.xlu0 %v2899, 64
        %v2929 = vpop.permute.xlu0 %2928
        %v2931 = vadd.f32 %v2926, %v2929
        %v2932 = vadd.f32 %v2931, %v2900
        %2934 = vrot.lane.b32.xlu0 %v2900, 64
        %v2935 = vpop.permute.xlu0 %2934
        %v2937 = vadd.f32 %v2932, %v2935
        %v2938 = vadd.f32 %v2937, %v2901
        %2940 = vrot.lane.b32.xlu0 %v2901, 64
        %v2941 = vpop.permute.xlu0 %2940
        %v2943 = vadd.f32 %v2938, %v2941
        %v2944 = vadd.f32 %v2943, %v2902
        %2946 = vrot.lane.b32.xlu0 %v2902, 64
        %v2947 = vpop.permute.xlu0 %2946
        %v2949 = vadd.f32 %v2944, %v2947
        %v2950 = vmul.f32 %v660, %v2510
        %v2951 = vadd.f32 %v2949, %v2950
        %v2952 = vmul.f32 %v1198, %v2887
        %v2953 = vmul.f32 %v1200, %v2888
        %v2954 = vmul.f32 %v1202, %v2889
        %v2955 = vmul.f32 %v1204, %v2890
        %v2956 = vmul.f32 %v1206, %v2891
        %v2957 = vmul.f32 %v1208, %v2892
        %v2958 = vmul.f32 %v1210, %v2893
        %v2959 = vmul.f32 %v1212, %v2894
        %v2960 = vadd.f32 %v2952, %v2429
        %v2961 = vadd.f32 %v2953, %v2430
        %v2962 = vadd.f32 %v2954, %v2431
        %v2963 = vadd.f32 %v2955, %v2432
        %v2964 = vadd.f32 %v2956, %v2433
        %v2965 = vadd.f32 %v2957, %v2434
        %v2966 = vadd.f32 %v2958, %v2435
        %v2967 = vadd.f32 %v2959, %v2436
        %v2968 = vmul.f32 %v2960, %v2316
        %v2969 = vmul.f32 %v2961, %v2324
        %v2970 = vmul.f32 %v2962, %v2332
        %v2971 = vmul.f32 %v2963, %v2340
        %v2972 = vmul.f32 %v2964, %v2348
        %v2973 = vmul.f32 %v2965, %v2356
        %v2974 = vmul.f32 %v2966, %v2364
        %v2975 = vmul.f32 %v2967, %v2372
        %2977 = vrot.lane.b32.xlu0 %v2968, 64
        %v2978 = vpop.permute.xlu0 %2977
        %v2980 = vadd.f32 %v2968, %v2978
        %v2981 = vadd.f32 %v2980, %v2969
        %2983 = vrot.lane.b32.xlu0 %v2969, 64
        %v2984 = vpop.permute.xlu0 %2983
        %v2986 = vadd.f32 %v2981, %v2984
        %v2987 = vadd.f32 %v2986, %v2970
        %2989 = vrot.lane.b32.xlu0 %v2970, 64
        %v2990 = vpop.permute.xlu0 %2989
        %v2992 = vadd.f32 %v2987, %v2990
        %v2993 = vadd.f32 %v2992, %v2971
        %2995 = vrot.lane.b32.xlu0 %v2971, 64
        %v2996 = vpop.permute.xlu0 %2995
        %v2998 = vadd.f32 %v2993, %v2996
        %v2999 = vadd.f32 %v2998, %v2972
        %3001 = vrot.lane.b32.xlu0 %v2972, 64
        %v3002 = vpop.permute.xlu0 %3001
        %v3004 = vadd.f32 %v2999, %v3002
        %v3005 = vadd.f32 %v3004, %v2973
        %3007 = vrot.lane.b32.xlu0 %v2973, 64
        %v3008 = vpop.permute.xlu0 %3007
        %v3010 = vadd.f32 %v3005, %v3008
        %v3011 = vadd.f32 %v3010, %v2974
        %3013 = vrot.lane.b32.xlu0 %v2974, 64
        %v3014 = vpop.permute.xlu0 %3013
        %v3016 = vadd.f32 %v3011, %v3014
        %v3017 = vadd.f32 %v3016, %v2975
        %3019 = vrot.lane.b32.xlu0 %v2975, 64
        %v3020 = vpop.permute.xlu0 %3019
        %v3022 = vadd.f32 %v3017, %v3020
        %v3023 = vmul.f32 %v661, %v2510
        %v3024 = vadd.f32 %v3022, %v3023
        %v3025 = vxor.u32 %v410, 2147483648
        %v3026 = vxor.u32 %v412, 2147483648
        %v3027 = vxor.u32 %v415, 2147483648
        %v3028 = vxor.u32 %v417, 2147483648
        %v3029 = vxor.u32 %v420, 2147483648
        %v3030 = vxor.u32 %v422, 2147483648
        %v3031 = vxor.u32 %v425, 2147483648
        %v3032 = vxor.u32 %v427, 2147483648
        %v3033 = vmul.f32 %v3025, 1.442695
        %v3034 = vpow.pop %v3033
        %v3035 = vmul.f32 %v3026, 1.442695
        %v3036 = vpow.pop %v3035
        %v3037 = vmul.f32 %v3027, 1.442695
        %v3038 = vpow.pop %v3037
        %v3039 = vmul.f32 %v3028, 1.442695
        %v3040 = vpow.pop %v3039
        %v3041 = vmul.f32 %v3029, 1.442695
        %v3042 = vpow.pop %v3041
        %v3043 = vmul.f32 %v3030, 1.442695
        %v3044 = vpow.pop %v3043
        %v3045 = vmul.f32 %v3031, 1.442695
        %v3046 = vpow.pop %v3045
        %v3047 = vmul.f32 %v3032, 1.442695
        %v3048 = vpow.pop %v3047
        %v3049 = vadd.f32 %v3034, 1.0
        %v3050 = vadd.f32 %v3036, 1.0
        %v3051 = vadd.f32 %v3038, 1.0
        %v3052 = vadd.f32 %v3040, 1.0
        %v3053 = vadd.f32 %v3042, 1.0
        %v3054 = vadd.f32 %v3044, 1.0
        %v3055 = vadd.f32 %v3046, 1.0
        %v3056 = vadd.f32 %v3048, 1.0
        %v3057 = vrcp.pop %v3049
        %v3058 = vmul.f32 %v3049, %v3057
        %v3059 = vsub.f32 1.0, %v3058
        %v3060 = vmul.f32 %v3057, %v3059
        %v3061 = vadd.f32 %v3057, %v3060
        %vm3062 = vweird.f32 %v3049
        %vm3063 = vweird.f32 %v3057
        %vm3064 = vmor %vm3062, %vm3063
        %v3065 = vsel %vm3064, %v3057, %v3061
        %v3066 = vand.u32 2147483647, %v3049
        %vm3067 = vcmp.eq.f32.partialorder %v3066, 8.507059e+37
        %v3068 = vand.u32 %v3049, 2147483648
        %v3069 = vor.u32 1.1754944e-38, %v3068
        %v3070 = vsel %vm3067, %v3069, %v3065
        %v3071 = vmul.f32 1.0, %v3070
        %v3072 = vrcp.pop %v3050
        %v3073 = vmul.f32 %v3050, %v3072
        %v3074 = vsub.f32 1.0, %v3073
        %v3075 = vmul.f32 %v3072, %v3074
        %v3076 = vadd.f32 %v3072, %v3075
        %vm3077 = vweird.f32 %v3050
        %vm3078 = vweird.f32 %v3072
        %vm3079 = vmor %vm3077, %vm3078
        %v3080 = vsel %vm3079, %v3072, %v3076
        %v3081 = vand.u32 2147483647, %v3050
        %vm3082 = vcmp.eq.f32.partialorder %v3081, 8.507059e+37
        %v3083 = vand.u32 %v3050, 2147483648
        %v3084 = vor.u32 1.1754944e-38, %v3083
        %v3085 = vsel %vm3082, %v3084, %v3080
        %v3086 = vmul.f32 1.0, %v3085
        %v3087 = vrcp.pop %v3051
        %v3088 = vmul.f32 %v3051, %v3087
        %v3089 = vsub.f32 1.0, %v3088
        %v3090 = vmul.f32 %v3087, %v3089
        %v3091 = vadd.f32 %v3087, %v3090
        %vm3092 = vweird.f32 %v3051
        %vm3093 = vweird.f32 %v3087
        %vm3094 = vmor %vm3092, %vm3093
        %v3095 = vsel %vm3094, %v3087, %v3091
        %v3096 = vand.u32 2147483647, %v3051
        %vm3097 = vcmp.eq.f32.partialorder %v3096, 8.507059e+37
        %v3098 = vand.u32 %v3051, 2147483648
        %v3099 = vor.u32 1.1754944e-38, %v3098
        %v3100 = vsel %vm3097, %v3099, %v3095
        %v3101 = vmul.f32 1.0, %v3100
        %v3102 = vrcp.pop %v3052
        %v3103 = vmul.f32 %v3052, %v3102
        %v3104 = vsub.f32 1.0, %v3103
        %v3105 = vmul.f32 %v3102, %v3104
        %v3106 = vadd.f32 %v3102, %v3105
        %vm3107 = vweird.f32 %v3052
        %vm3108 = vweird.f32 %v3102
        %vm3109 = vmor %vm3107, %vm3108
        %v3110 = vsel %vm3109, %v3102, %v3106
        %v3111 = vand.u32 2147483647, %v3052
        %vm3112 = vcmp.eq.f32.partialorder %v3111, 8.507059e+37
        %v3113 = vand.u32 %v3052, 2147483648
        %v3114 = vor.u32 1.1754944e-38, %v3113
        %v3115 = vsel %vm3112, %v3114, %v3110
        %v3116 = vmul.f32 1.0, %v3115
        %v3117 = vrcp.pop %v3053
        %v3118 = vmul.f32 %v3053, %v3117
        %v3119 = vsub.f32 1.0, %v3118
        %v3120 = vmul.f32 %v3117, %v3119
        %v3121 = vadd.f32 %v3117, %v3120
        %vm3122 = vweird.f32 %v3053
        %vm3123 = vweird.f32 %v3117
        %vm3124 = vmor %vm3122, %vm3123
        %v3125 = vsel %vm3124, %v3117, %v3121
        %v3126 = vand.u32 2147483647, %v3053
        %vm3127 = vcmp.eq.f32.partialorder %v3126, 8.507059e+37
        %v3128 = vand.u32 %v3053, 2147483648
        %v3129 = vor.u32 1.1754944e-38, %v3128
        %v3130 = vsel %vm3127, %v3129, %v3125
        %v3131 = vmul.f32 1.0, %v3130
        %v3132 = vrcp.pop %v3054
        %v3133 = vmul.f32 %v3054, %v3132
        %v3134 = vsub.f32 1.0, %v3133
        %v3135 = vmul.f32 %v3132, %v3134
        %v3136 = vadd.f32 %v3132, %v3135
        %vm3137 = vweird.f32 %v3054
        %vm3138 = vweird.f32 %v3132
        %vm3139 = vmor %vm3137, %vm3138
        %v3140 = vsel %vm3139, %v3132, %v3136
        %v3141 = vand.u32 2147483647, %v3054
        %vm3142 = vcmp.eq.f32.partialorder %v3141, 8.507059e+37
        %v3143 = vand.u32 %v3054, 2147483648
        %v3144 = vor.u32 1.1754944e-38, %v3143
        %v3145 = vsel %vm3142, %v3144, %v3140
        %v3146 = vmul.f32 1.0, %v3145
        %v3147 = vrcp.pop %v3055
        %v3148 = vmul.f32 %v3055, %v3147
        %v3149 = vsub.f32 1.0, %v3148
        %v3150 = vmul.f32 %v3147, %v3149
        %v3151 = vadd.f32 %v3147, %v3150
        %vm3152 = vweird.f32 %v3055
        %vm3153 = vweird.f32 %v3147
        %vm3154 = vmor %vm3152, %vm3153
        %v3155 = vsel %vm3154, %v3147, %v3151
        %v3156 = vand.u32 2147483647, %v3055
        %vm3157 = vcmp.eq.f32.partialorder %v3156, 8.507059e+37
        %v3158 = vand.u32 %v3055, 2147483648
        %v3159 = vor.u32 1.1754944e-38, %v3158
        %v3160 = vsel %vm3157, %v3159, %v3155
        %v3161 = vmul.f32 1.0, %v3160
        %v3162 = vrcp.pop %v3056
        %v3163 = vmul.f32 %v3056, %v3162
        %v3164 = vsub.f32 1.0, %v3163
        %v3165 = vmul.f32 %v3162, %v3164
        %v3166 = vadd.f32 %v3162, %v3165
        %vm3167 = vweird.f32 %v3056
        %vm3168 = vweird.f32 %v3162
        %vm3169 = vmor %vm3167, %vm3168
        %v3170 = vsel %vm3169, %v3162, %v3166
        %v3171 = vand.u32 2147483647, %v3056
        %vm3172 = vcmp.eq.f32.partialorder %v3171, 8.507059e+37
        %v3173 = vand.u32 %v3056, 2147483648
        %v3174 = vor.u32 1.1754944e-38, %v3173
        %v3175 = vsel %vm3172, %v3174, %v3170
        %v3176 = vmul.f32 1.0, %v3175
        %v3177 = vmul.f32 %v410, %v3071
        %v3178 = vmul.f32 %v412, %v3086
        %v3179 = vmul.f32 %v415, %v3101
        %v3180 = vmul.f32 %v417, %v3116
        %v3181 = vmul.f32 %v420, %v3131
        %v3182 = vmul.f32 %v422, %v3146
        %v3183 = vmul.f32 %v425, %v3161
        %v3184 = vmul.f32 %v427, %v3176
        %3193 = vrot.lane.b32.xlu0 %v3177, 64
        %v3194 = vpop.permute.xlu0 %3193
        %3195 = vrot.lane.b32.xlu0 %v3178, 64
        %v3196 = vpop.permute.xlu0 %3195
        %3197 = vrot.lane.b32.xlu0 %v3179, 64
        %v3198 = vpop.permute.xlu0 %3197
        %3199 = vrot.lane.b32.xlu0 %v3180, 64
        %v3200 = vpop.permute.xlu0 %3199
        %3201 = vrot.lane.b32.xlu0 %v3181, 64
        %v3202 = vpop.permute.xlu0 %3201
        %3203 = vrot.lane.b32.xlu0 %v3182, 64
        %v3204 = vpop.permute.xlu0 %3203
        %3205 = vrot.lane.b32.xlu0 %v3183, 64
        %v3206 = vpop.permute.xlu0 %3205
        %3207 = vrot.lane.b32.xlu0 %v3184, 64
        %v3208 = vpop.permute.xlu0 %3207
        %v3217 = vmul.f32 %v2513, %v3194
        %v3218 = vmul.f32 %v2586, %v3196
        %v3219 = vmul.f32 %v2659, %v3198
        %v3220 = vmul.f32 %v2732, %v3200
        %v3221 = vmul.f32 %v2805, %v3202
        %v3222 = vmul.f32 %v2878, %v3204
        %v3223 = vmul.f32 %v2951, %v3206
        %v3224 = vmul.f32 %v3024, %v3208
        %v3225 = vpack.c.bf16 %v3218, %v3217
        %v3226 = vpack.c.bf16 %v3220, %v3219
        %v3227 = vpack.c.bf16 %v3222, %v3221
        %v3228 = vpack.c.bf16 %v3224, %v3223
        %v3229 = vld [vmem:[%s9] sm:$0xf]
        %v3230 = vld [vmem:[%s9 + $0x4] sm:$0xf]
        %v3231 = vld [vmem:[%s9 + $0x8] sm:$0xf]
        %v3232 = vld [vmem:[%s9 + $0xc] sm:$0xf]
        %v3233 = vld [vmem:[%s9 + $0x10] sm:$0xf]
        %v3234 = vld [vmem:[%s9 + $0x14] sm:$0xf]
        %v3235 = vld [vmem:[%s9 + $0x18] sm:$0xf]
        %v3236 = vld [vmem:[%s9 + $0x1c] sm:$0xf]
        %v3245 = vunpack.c.l.b16 %v3229
        %v3246 = vunpack.c.l.b16 %v3230
        %v3247 = vunpack.c.l.b16 %v3231
        %v3248 = vunpack.c.l.b16 %v3232
        %v3249 = vunpack.c.l.b16 %v3233
        %v3250 = vunpack.c.l.b16 %v3234
        %v3251 = vunpack.c.l.b16 %v3235
        %v3252 = vunpack.c.l.b16 %v3236
        %v3253 = vpack.c.b16 %v3246, %v3245
        %v3254 = vpack.c.b16 %v3248, %v3247
        %v3255 = vpack.c.b16 %v3250, %v3249
        %v3256 = vpack.c.b16 %v3252, %v3251
        %v3262 = vsel %vm698, %v3225, 0
        %v3265 = vsel %vm698, %v3226, 0
        %v3268 = vsel %vm698, %v3227, 0
        %v3271 = vsel %vm698, %v3228, 0
        %3273 = vmatpush.bf16.msra.mxu0 0
        %3274 = vmatpush.bf16.msra.mxu0 0
        %3275 = vmatpush.bf16.msra.mxu0 0
        %3276 = vmatpush.bf16.msra.mxu0 0
        %3277 = vmatpush.bf16.msra.mxu0 %v3256
        %3278 = vmatpush.bf16.msra.mxu0 %v3255
        %3279 = vmatpush.bf16.msra.mxu0 %v3254
        %3280 = vmatpush.bf16.msra.mxu0 %v3253
        %3281 = vmatmul.bf16.gmra.mxu0 %v3262
        %v3282 = vpop.f32.mrf.mxu0
        %v3283 = vadd.f32 0.0, %v3282
        %v3284 = vpop.f32.mrf.mxu0
        %v3285 = vadd.f32 0.0, %v3284
        %3286 = vmatmul.bf16.gmra.mxu0 %v3265
        %v3287 = vpop.f32.mrf.mxu0
        %v3288 = vadd.f32 0.0, %v3287
        %v3289 = vpop.f32.mrf.mxu0
        %v3290 = vadd.f32 0.0, %v3289
        %3291 = vmatmul.bf16.gmra.mxu0 %v3268
        %v3292 = vpop.f32.mrf.mxu0
        %v3293 = vadd.f32 0.0, %v3292
        %v3294 = vpop.f32.mrf.mxu0
        %v3295 = vadd.f32 0.0, %v3294
        %3296 = vmatmul.bf16.gmra.mxu0 %v3271
        %v3297 = vpop.f32.mrf.mxu0
        %v3298 = vadd.f32 0.0, %v3297
        %v3299 = vpop.f32.mrf.mxu0
        %v3300 = vadd.f32 0.0, %v3299
        %3301 = vdwg.mxu0
        %3302 = vst.msk [vmem:[%s352] sm:$0xff] %vm387, %v3283
        %3303 = vst.msk [vmem:[%s352 + $0x8] sm:$0xff] %vm387, %v3285
        %3304 = vst.msk [vmem:[%s352 + $0x10] sm:$0xff] %vm387, %v3288
        %3305 = vst.msk [vmem:[%s352 + $0x18] sm:$0xff] %vm387, %v3290
        %3306 = vst.msk [vmem:[%s352 + $0x20] sm:$0xff] %vm387, %v3293
        %3307 = vst.msk [vmem:[%s352 + $0x28] sm:$0xff] %vm387, %v3295
        %3308 = vst.msk [vmem:[%s352 + $0x30] sm:$0xff] %vm387, %v3298
        %3309 = vst.msk [vmem:[%s352 + $0x38] sm:$0xff] %vm387, %v3300
        %s3310 = sand.u32 %s247, 1
        %s3311 = scalar_lea.sflag [#allocation3], %s3310
        %s3312 = sand.u32 %s247, 1
        %s3313 = smul.addr %s3312, 64
        %s3314 = scalar_lea.vmem [#allocation2], %s3313
        // Predicated region
        $region61: #{mamba_scale_block.5} parent=59 // pred_check
          %p3315 = pneg %p257
        $region62: #{mamba_scale_block.5} parent=59 // pred_check_branch
          %3317 = sbr.rel (%p3315) target = $region64
        $region63: #{mamba_scale_block.5} parent=59 // pred_region
          %3319 = vsyncadd %s3311, 0
          %s3320 = smul.addr %s24, 8
          %s3321 = smul.addr %s3320, 8
          %s3322 = scalar_lea.hbm %s10, %s3321
          %s3323 = sshll.u32 %s3314, 4
          %s3324 = int_to_ptr.vmem [resolvable:$true] %s3323
          %s3325 = sshll.u32 %s3322, 4
          %s3326 = int_to_ptr.hbm [resolvable:$true] %s3325
          %3331 = dma.vmem_to_hbm [thread:$0]  %s3324, 1024, %s3326, %s3311, 128, 128, 8
        $region64: #{mamba_scale_block.5} parent=59 // pred_fallthru
          _
      $region60: #{mamba_scale_block.5} parent=5 // pred_fallthru
        _
      %p3332 = scmp.le.s32.totalorder 2, %s19
      // Predicated region
      $region65: #{mamba_scale_block.5} parent=5 // pred_check
        %p3333 = pneg %p3332
      $region66: #{mamba_scale_block.5} parent=5 // pred_check_branch
        %3335 = sbr.rel (%p3333) target = $region68
      $region67: #{mamba_scale_block.5} parent=5 // pred_region
        %s3336 = ssub.s32 %s19, 2
        // Predicated region
        $region69: #{mamba_scale_block.5} parent=67 // pred_check
          %p3337 = pneg %p263
        $region70: #{mamba_scale_block.5} parent=67 // pred_check_branch
          %3339 = sbr.rel (%p3337) target = $region72
        $region71: #{mamba_scale_block.5} parent=67 // pred_region
          %s3340 = sand.u32 %s248, 1
          %s3341 = scalar_lea.sflag [#allocation3], %s3340
          %s3342 = sand.u32 %s248, 1
          %s3343 = smul.addr %s3342, 64
          %s3344 = scalar_lea.vmem [#allocation2], %s3343
          %3346 = dma.done %s3341, 1024
        $region72: #{mamba_scale_block.5} parent=67 // pred_fallthru
          _
      $region68: #{mamba_scale_block.5} parent=5 // pred_fallthru
        _
    $region6: #{mamba_scale_block.5} parent=1 // loop_footer
      %s23 = sadd.s32 1, %s19
    $region7: #{mamba_scale_block.5} parent=1 // loop_footer_branch
      %18 = sbr.rel target = $region3
    $region8: #{mamba_scale_block.5} parent=1 // loop_exit
      _
    %3347 = vsyncpa [#allocation3], 1
    %s3348 = scalar_lea.sflag [#allocation3], 1
    %3349 = vsyncpa %s3348, 1

</llo_original>
